<compile_context>
chip_gen: v7x
topology: tpu7x:2x2x1
jax: 0.10.0
libtpu: 0.0.40
codegen_flags: <defaults>
</compile_context>

<pallas_src>
import functools
import math

import jax
import jax.numpy as jnp
import numpy as np
from jax import lax
from jax.experimental import pallas as pl
from jax.experimental.pallas import tpu as pltpu


# Weights that live in HBM as bf16 (cast to f32 inside the kernel before each matmul).
_BF16_KEYS = ("w_l", "w_r", "w_qkv", "w_o", "w_ff1", "w_ff2", "w_fc")

_CONST_KEYS = ("w_l", "b_l", "w_r", "b_r", "att", "b_gat")                 # GAT prologue
_LAYER_KEYS = ("w_qkv", "b_qkv", "w_o", "b_o", "ln1_w", "ln1_b",
               "w_ff1", "b_ff1", "w_ff2", "b_ff2", "ln2_w", "ln2_b")       # per encoder layer
_HEAD_KEYS = ("w_fc", "b_fc")                                              # classifier


# --------------------------------------------------------------------------- shared math
def _layer_norm(x, w, b, eps):
    mu = jnp.mean(x, axis=-1, keepdims=True)
    xc = x - mu
    var = jnp.mean(xc * xc, axis=-1, keepdims=True)
    return xc * lax.rsqrt(var + eps) * w + b


def _softmax_last(logits):
    m = jnp.max(logits, axis=-1, keepdims=True)
    p = jnp.exp(logits - m)
    return p / jnp.sum(p, axis=-1, keepdims=True)


def _gat_relu(x, adj, w_l, b_l, w_r, b_r, att, b_gat, *,
              gat_heads, gat_dim, negative_slope):
    """GATv2Conv (concat=True, add_self_loops in adj, eval mode) followed by ReLU."""
    f32 = jnp.float32
    xl = jnp.dot(x, w_l, preferred_element_type=f32) + b_l      # (N, H*C) source feats
    xr = jnp.dot(x, w_r, preferred_element_type=f32) + b_r      # (N, H*C) target feats
    head_outs = []
    for h in range(gat_heads):
        lo = h * gat_dim
        xl_h = xl[:, lo:lo + gat_dim]                           # (N, C)
        xr_h = xr[:, lo:lo + gat_dim]                           # (N, C)
        # e[i, j, :] = LeakyReLU(xr[i] + xl[j])  -- direct broadcast (no one-hot matmul).
        e = xr_h[:, None, :] + xl_h[None, :, :]                 # (N, N, C)
        e = jnp.where(e >= 0, e, negative_slope * e)
        scores = jnp.sum(e * att[h][None, :, :], axis=-1)       # (N, N)
        scores = jnp.where(adj > 0, scores, -1e30)              # mask non-edges
        alpha = _softmax_last(scores)                           # softmax over sources j
        head_outs.append(jnp.dot(alpha, xl_h, preferred_element_type=f32))
    out = jnp.concatenate(head_outs, axis=-1) + b_gat           # (N, H*C)
    return jnp.maximum(out, 0.0)                                # torch.relu


def _encoder_layer(hid, w_qkv, b_qkv, w_o, b_o, ln1_w, ln1_b,
                   w_ff1, b_ff1, w_ff2, b_ff2, ln2_w, ln2_b, *, nhead, ln_eps):
    """One post-norm torch.nn.TransformerEncoderLayer (relu FF, eval mode, batch of 1)."""
    f32 = jnp.float32
    d = hid.shape[-1]
    hd = d // nhead
    scale = 1.0 / math.sqrt(hd)
    qkv = jnp.dot(hid, w_qkv, preferred_element_type=f32) + b_qkv           # (N, 3d)
    q, k, v = qkv[:, :d], qkv[:, d:2 * d], qkv[:, 2 * d:]
    heads = []
    for hh in range(nhead):                                                 # unrolled at trace time
        s = hh * hd
        qh, kh, vh = q[:, s:s + hd], k[:, s:s + hd], v[:, s:s + hd]
        logits = lax.dot_general(qh, kh, (((1,), (1,)), ((), ())),
                                 preferred_element_type=f32) * scale        # (N, N)
        p = _softmax_last(logits)
        heads.append(jnp.dot(p, vh, preferred_element_type=f32))
    attn = jnp.concatenate(heads, axis=-1)                                  # (N, d)
    attn = jnp.dot(attn, w_o, preferred_element_type=f32) + b_o
    hid = _layer_norm(hid + attn, ln1_w, ln1_b, ln_eps)                     # post-norm 1
    ff = jnp.dot(hid, w_ff1, preferred_element_type=f32) + b_ff1
    ff = jnp.maximum(ff, 0.0)
    ff = jnp.dot(ff, w_ff2, preferred_element_type=f32) + b_ff2
    return _layer_norm(hid + ff, ln2_w, ln2_b, ln_eps)                      # post-norm 2


# ------------------------------------------------------------------------------- kernel
def _gat_transformer_kernel(
        x_ref, adj_ref,
        w_l_ref, b_l_ref, w_r_ref, b_r_ref, att_ref, b_gat_ref,
        w_qkv_ref, b_qkv_ref, w_o_ref, b_o_ref, ln1_w_ref, ln1_b_ref,
        w_ff1_ref, b_ff1_ref, w_ff2_ref, b_ff2_ref, ln2_w_ref, ln2_b_ref,
        w_fc_ref, b_fc_ref,
        out_ref,
        hid_ref, *,
        gat_heads, gat_dim, nhead, negative_slope, ln_eps):
    f32 = jnp.float32
    l = pl.program_id(0)

    @pl.when(l == 0)
    def _prologue():  # GATv2Conv + ReLU -> persistent VMEM accumulator
        hid_ref[...] = _gat_relu(
            x_ref[...], adj_ref[...],
            w_l_ref[...].astype(f32), b_l_ref[...],
            w_r_ref[...].astype(f32), b_r_ref[...],
            att_ref[...], b_gat_ref[...],
            gat_heads=gat_heads, gat_dim=gat_dim, negative_slope=negative_slope)

    # One transformer encoder layer per grid step (this step's weight slab is in VMEM,
    # the next step's slab is being DMA'd behind this compute).
    hid_ref[...] = _encoder_layer(
        hid_ref[...],
        w_qkv_ref[...].astype(f32), b_qkv_ref[...],
        w_o_ref[...].astype(f32), b_o_ref[...],
        ln1_w_ref[...], ln1_b_ref[...],
        w_ff1_ref[...].astype(f32), b_ff1_ref[...],
        w_ff2_ref[...].astype(f32), b_ff2_ref[...],
        ln2_w_ref[...], ln2_b_ref[...],
        nhead=nhead, ln_eps=ln_eps)

    @pl.when(l == pl.num_programs(0) - 1)
    def _epilogue():  # classifier head
        out_ref[...] = (jnp.dot(hid_ref[...], w_fc_ref[...].astype(f32),
                                preferred_element_type=f32)
                        + b_fc_ref[...]).astype(out_ref.dtype)


# ------------------------------------------------------------------------------ wrapper
def gat_transformer_classifier(x, adj, params, *, gat_heads, gat_dim, nhead,
                               num_layers, negative_slope=0.2, ln_eps=1e-5):
    """Eval-mode forward of GATTransformerClassifier, pipelined over encoder layers."""
    n = x.shape[0]
    d = gat_heads * gat_dim
    num_classes = params["w_fc"].shape[-1]
    assert d % nhead == 0

    def const_spec(arr):  # whole array, same block every step -> DMA'd once
        nd = arr.ndim
        return pl.BlockSpec(arr.shape, lambda l, nd=nd: (0,) * nd)

    def layer_spec(arr):  # leading (num_layers,) axis indexed by the grid step
        tail = tuple(arr.shape[1:])
        nt = len(tail)
        return pl.BlockSpec((None,) + tail, lambda l, nt=nt: (l,) + (0,) * nt)

    args = [x, adj]
    in_specs = [const_spec(x), const_spec(adj)]
    for k in _CONST_KEYS:
        args.append(params[k]); in_specs.append(const_spec(params[k]))
    for k in _LAYER_KEYS:
        args.append(params[k]); in_specs.append(layer_spec(params[k]))
    for k in _HEAD_KEYS:
        args.append(params[k]); in_specs.append(const_spec(params[k]))

    kernel = functools.partial(
        _gat_transformer_kernel,
        gat_heads=gat_heads, gat_dim=gat_dim, nhead=nhead,
        negative_slope=negative_slope, ln_eps=ln_eps)

    return pl.pallas_call(
        kernel,
        out_shape=jax.ShapeDtypeStruct((n, num_classes), jnp.float32),
        grid=(num_layers,),
        in_specs=in_specs,
        out_specs=pl.BlockSpec((n, num_classes), lambda l: (0, 0)),
        scratch_shapes=[pltpu.VMEM((n, d), jnp.float32)],   # hid carried across layers
        compiler_params=pltpu.CompilerParams(
            dimension_semantics=("arbitrary",),
            vmem_limit_bytes=32 * 1024 * 1024),
    )(*args)


# ----------------------------------------------------------------------- pure-JAX reference
def reference_forward(x, adj, p, *, gat_heads, gat_dim, nhead, num_layers,
                      negative_slope=0.2, ln_eps=1e-5):
    hid = _gat_relu(x, adj, p["w_l"], p["b_l"], p["w_r"], p["b_r"], p["att"], p["b_gat"],
                    gat_heads=gat_heads, gat_dim=gat_dim, negative_slope=negative_slope)
    for l in range(num_layers):
        hid = _encoder_layer(hid, p["w_qkv"][l], p["b_qkv"][l], p["w_o"][l], p["b_o"][l],
                             p["ln1_w"][l], p["ln1_b"][l], p["w_ff1"][l], p["b_ff1"][l],
                             p["w_ff2"][l], p["b_ff2"][l], p["ln2_w"][l], p["ln2_b"][l],
                             nhead=nhead, ln_eps=ln_eps)
    return jnp.dot(hid, p["w_fc"], preferred_element_type=jnp.float32) + p["b_fc"]


# ----------------------------------------------------------------------------- utilities
def edge_index_to_adj(edge_index, num_nodes):
    """Densify edge_index (2, E) into an (N, N) mask; adj[dst, src] = 1 (+ self loops)."""
    src, dst = edge_index[0], edge_index[1]
    adj = jnp.zeros((num_nodes, num_nodes), jnp.float32).at[dst, src].set(1.0)
    return jnp.maximum(adj, jnp.eye(num_nodes, dtype=jnp.float32))


def init_params(key, *, input_size, num_classes, hidden_size, gat_heads, nhead,
                num_layers, dim_feedforward):
    d = hidden_size * gat_heads
    keys = iter(jax.random.split(key, 24))

    def uni(shape, fan_in):
        b = 1.0 / np.sqrt(fan_in)
        return jax.random.uniform(next(keys), shape, jnp.float32, -b, b)

    return {
        # GATv2Conv
        "w_l": uni((input_size, d), input_size),
        "b_l": uni((1, d), input_size),
        "w_r": uni((input_size, d), input_size),
        "b_r": uni((1, d), input_size),
        "att": uni((gat_heads, 1, hidden_size), hidden_size),
        "b_gat": jnp.zeros((1, d), jnp.float32),
        # TransformerEncoder (stacked over layers)
        "w_qkv": uni((num_layers, d, 3 * d), d),
        "b_qkv": jnp.zeros((num_layers, 1, 3 * d), jnp.float32),
        "w_o": uni((num_layers, d, d), d),
        "b_o": jnp.zeros((num_layers, 1, d), jnp.float32),
        "ln1_w": jnp.ones((num_layers, 1, d), jnp.float32),
        "ln1_b": jnp.zeros((num_layers, 1, d), jnp.float32),
        "w_ff1": uni((num_layers, d, dim_feedforward), d),
        "b_ff1": uni((num_layers, 1, dim_feedforward), d),
        "w_ff2": uni((num_layers, dim_feedforward, d), dim_feedforward),
        "b_ff2": uni((num_layers, 1, d), dim_feedforward),
        "ln2_w": jnp.ones((num_layers, 1, d), jnp.float32),
        "ln2_b": jnp.zeros((num_layers, 1, d), jnp.float32),
        # classifier head
        "w_fc": uni((d, num_classes), d),
        "b_fc": uni((1, num_classes), d),
    }


def quantize_params(params):
    """Store the big matmul weights as bf16 in HBM (halves DMA bytes; cast in-kernel)."""
    return {k: (v.astype(jnp.bfloat16) if k in _BF16_KEYS else v) for k, v in params.items()}


def dequantize_params(params):
    return {k: v.astype(jnp.float32) for k, v in params.items()}


if __name__ == "__main__":
    INPUT_SIZE = 16
    NUM_CLASSES = 8
    HIDDEN_SIZE = 64        # per-head GAT width -> d_model = 128 (lane-dense)
    GAT_HEADS = 2
    NHEAD = 4
    NUM_LAYERS = 2
    DIM_FF = 2048           # torch TransformerEncoderLayer default
    N_NODES = 32

    key = jax.random.PRNGKey(0)
    kx, kp = jax.random.split(key)
    x = jax.random.normal(kx, (N_NODES, INPUT_SIZE), dtype=jnp.float32)

    # deterministic small graph: bidirectional ring + skip-5 chords -> edge_index (2, 96)
    src = np.arange(N_NODES)
    nxt = (src + 1) % N_NODES
    skp = (src + 5) % N_NODES
    edge_index = jnp.asarray(
        np.concatenate([np.stack([src, nxt]), np.stack([nxt, src]),
                        np.stack([src, skp])], axis=1),
        dtype=jnp.int32)
    adj = edge_index_to_adj(edge_index, N_NODES)

    params_f32 = init_params(kp, input_size=INPUT_SIZE, num_classes=NUM_CLASSES,
                             hidden_size=HIDDEN_SIZE, gat_heads=GAT_HEADS, nhead=NHEAD,
                             num_layers=NUM_LAYERS, dim_feedforward=DIM_FF)
    params = quantize_params(params_f32)        # bf16 weights handed to the kernel
    params_ref = dequantize_params(params)      # reference uses bit-identical (quantized) weights

    out = gat_transformer_classifier(
        x, adj, params, gat_heads=GAT_HEADS, gat_dim=HIDDEN_SIZE, nhead=NHEAD,
        num_layers=NUM_LAYERS)
    out = jax.block_until_ready(out)
    assert out.shape == (N_NODES, NUM_CLASSES)

    ref = reference_forward(
        x, adj, params_ref, gat_heads=GAT_HEADS, gat_dim=HIDDEN_SIZE, nhead=NHEAD,
        num_layers=NUM_LAYERS)
    # weights are bit-identical between kernel and reference; tolerance only covers
    # MXU-vs-XLA f32 matmul precision differences across the fused stack.
    np.testing.assert_allclose(np.asarray(out), np.asarray(ref), rtol=2e-2, atol=2e-2)

    print("KERNEL_OK")
</pallas_src>

<mosaic_0001>
module attributes {stable_mosaic.version = 11 : i64} {
  func.func @_gat_transformer_kernel(%arg0: i32, %arg1: memref<32x16xf32, #tpu.memory_space<vmem>>, %arg2: memref<32x32xf32, #tpu.memory_space<vmem>>, %arg3: memref<16x128xbf16, #tpu.memory_space<vmem>>, %arg4: memref<1x128xf32, #tpu.memory_space<vmem>>, %arg5: memref<16x128xbf16, #tpu.memory_space<vmem>>, %arg6: memref<1x128xf32, #tpu.memory_space<vmem>>, %arg7: memref<2x1x64xf32, #tpu.memory_space<vmem>>, %arg8: memref<1x128xf32, #tpu.memory_space<vmem>>, %arg9: memref<1x128x384xbf16, #tpu.memory_space<vmem>>, %arg10: memref<1x1x384xf32, #tpu.memory_space<vmem>>, %arg11: memref<1x128x128xbf16, #tpu.memory_space<vmem>>, %arg12: memref<1x1x128xf32, #tpu.memory_space<vmem>>, %arg13: memref<1x1x128xf32, #tpu.memory_space<vmem>>, %arg14: memref<1x1x128xf32, #tpu.memory_space<vmem>>, %arg15: memref<1x128x2048xbf16, #tpu.memory_space<vmem>>, %arg16: memref<1x1x2048xf32, #tpu.memory_space<vmem>>, %arg17: memref<1x2048x128xbf16, #tpu.memory_space<vmem>>, %arg18: memref<1x1x128xf32, #tpu.memory_space<vmem>>, %arg19: memref<1x1x128xf32, #tpu.memory_space<vmem>>, %arg20: memref<1x1x128xf32, #tpu.memory_space<vmem>>, %arg21: memref<128x8xbf16, #tpu.memory_space<vmem>>, %arg22: memref<1x8xf32, #tpu.memory_space<vmem>>, %arg23: memref<32x8xf32, #tpu.memory_space<vmem>>, %arg24: memref<32x128xf32, #tpu.memory_space<vmem>>) attributes {dimension_semantics = [#tpu.dimension_semantics<arbitrary>], iteration_bounds = array<i64: 2>, scalar_prefetch = 0 : i64, scratch_operands = 1 : i64, tpu.core_type = #tpu.core_type<tc>, window_params = [{pipeline_mode = #tpu.pipeline_mode<synchronous>, transform_indices = @transform_0, window_bounds = array<i64: 32, 16>}, {pipeline_mode = #tpu.pipeline_mode<synchronous>, transform_indices = @transform_1, window_bounds = array<i64: 32, 32>}, {pipeline_mode = #tpu.pipeline_mode<synchronous>, transform_indices = @transform_2, window_bounds = array<i64: 16, 128>}, {pipeline_mode = #tpu.pipeline_mode<synchronous>, transform_indices = @transform_3, window_bounds = array<i64: 1, 128>}, {pipeline_mode = #tpu.pipeline_mode<synchronous>, transform_indices = @transform_4, window_bounds = array<i64: 16, 128>}, {pipeline_mode = #tpu.pipeline_mode<synchronous>, transform_indices = @transform_5, window_bounds = array<i64: 1, 128>}, {pipeline_mode = #tpu.pipeline_mode<synchronous>, transform_indices = @transform_6, window_bounds = array<i64: 2, 1, 64>}, {pipeline_mode = #tpu.pipeline_mode<synchronous>, transform_indices = @transform_7, window_bounds = array<i64: 1, 128>}, {transform_indices = @transform_8, window_bounds = array<i64: 1, 128, 384>}, {transform_indices = @transform_9, window_bounds = array<i64: 1, 1, 384>}, {transform_indices = @transform_10, window_bounds = array<i64: 1, 128, 128>}, {transform_indices = @transform_11, window_bounds = array<i64: 1, 1, 128>}, {transform_indices = @transform_12, window_bounds = array<i64: 1, 1, 128>}, {transform_indices = @transform_13, window_bounds = array<i64: 1, 1, 128>}, {transform_indices = @transform_14, window_bounds = array<i64: 1, 128, 2048>}, {transform_indices = @transform_15, window_bounds = array<i64: 1, 1, 2048>}, {transform_indices = @transform_16, window_bounds = array<i64: 1, 2048, 128>}, {transform_indices = @transform_17, window_bounds = array<i64: 1, 1, 128>}, {transform_indices = @transform_18, window_bounds = array<i64: 1, 1, 128>}, {transform_indices = @transform_19, window_bounds = array<i64: 1, 1, 128>}, {pipeline_mode = #tpu.pipeline_mode<synchronous>, transform_indices = @transform_20, window_bounds = array<i64: 128, 8>}, {pipeline_mode = #tpu.pipeline_mode<synchronous>, transform_indices = @transform_21, window_bounds = array<i64: 1, 8>}, {pipeline_mode = #tpu.pipeline_mode<synchronous>, transform_indices = @transform_22, window_bounds = array<i64: 32, 8>}]} {
    %c0_i32 = arith.constant 0 : i32
    %0 = arith.cmpi eq, %arg0, %c0_i32 : i32
    %1 = arith.extui %0 : i1 to i32
    %c0_i32_0 = arith.constant 0 : i32
    %2 = arith.cmpi ne, %1, %c0_i32_0 : i32
    scf.if %2 {
      %c0_75 = arith.constant 0 : index
      %c0_76 = arith.constant 0 : index
      %160 = vector.load %arg1[%c0_75, %c0_76] : memref<32x16xf32, #tpu.memory_space<vmem>>, vector<32x16xf32>
      %c0_77 = arith.constant 0 : index
      %c0_78 = arith.constant 0 : index
      %161 = vector.load %arg2[%c0_77, %c0_78] : memref<32x32xf32, #tpu.memory_space<vmem>>, vector<32x32xf32>
      %c0_79 = arith.constant 0 : index
      %c0_80 = arith.constant 0 : index
      %162 = vector.load %arg3[%c0_79, %c0_80] : memref<16x128xbf16, #tpu.memory_space<vmem>>, vector<16x128xbf16>
      %163 = arith.extf %162 : vector<16x128xbf16> to vector<16x128xf32>
      %c0_81 = arith.constant 0 : index
      %c0_82 = arith.constant 0 : index
      %164 = vector.load %arg4[%c0_81, %c0_82] : memref<1x128xf32, #tpu.memory_space<vmem>>, vector<1x128xf32>
      %c0_83 = arith.constant 0 : index
      %c0_84 = arith.constant 0 : index
      %165 = vector.load %arg5[%c0_83, %c0_84] : memref<16x128xbf16, #tpu.memory_space<vmem>>, vector<16x128xbf16>
      %166 = arith.extf %165 : vector<16x128xbf16> to vector<16x128xf32>
      %c0_85 = arith.constant 0 : index
      %c0_86 = arith.constant 0 : index
      %167 = vector.load %arg6[%c0_85, %c0_86] : memref<1x128xf32, #tpu.memory_space<vmem>>, vector<1x128xf32>
      %c0_87 = arith.constant 0 : index
      %c0_88 = arith.constant 0 : index
      %c0_89 = arith.constant 0 : index
      %168 = vector.load %arg7[%c0_87, %c0_88, %c0_89] : memref<2x1x64xf32, #tpu.memory_space<vmem>>, vector<2x1x64xf32>
      %c0_90 = arith.constant 0 : index
      %c0_91 = arith.constant 0 : index
      %169 = vector.load %arg8[%c0_90, %c0_91] : memref<1x128xf32, #tpu.memory_space<vmem>>, vector<1x128xf32>
      %cst_92 = arith.constant dense<0.000000e+00> : vector<32x128xf32>
      %170 = tpu.matmul %160, %163, %cst_92 {dimension_numbers = #tpu.dot_dimension_numbers<[1], [0], [0], [1], [0, 0, 1, 1], [], []>} : vector<32x16xf32>, vector<16x128xf32>, vector<32x128xf32> -> vector<32x128xf32>
      %171 = vector.broadcast %164 : vector<1x128xf32> to vector<32x128xf32>
      %172 = arith.addf %170, %171 : vector<32x128xf32>
      %cst_93 = arith.constant dense<0.000000e+00> : vector<32x128xf32>
      %173 = tpu.matmul %160, %166, %cst_93 {dimension_numbers = #tpu.dot_dimension_numbers<[1], [0], [0], [1], [0, 0, 1, 1], [], []>} : vector<32x16xf32>, vector<16x128xf32>, vector<32x128xf32> -> vector<32x128xf32>
      %174 = vector.broadcast %167 : vector<1x128xf32> to vector<32x128xf32>
      %175 = arith.addf %173, %174 : vector<32x128xf32>
      %176 = vector.extract_strided_slice %172 {offsets = [0, 0], sizes = [32, 64], strides = [1, 1]} : vector<32x128xf32> to vector<32x64xf32>
      %177 = vector.extract_strided_slice %175 {offsets = [0, 0], sizes = [32, 64], strides = [1, 1]} : vector<32x128xf32> to vector<32x64xf32>
      %178 = vector.shape_cast %177 : vector<32x64xf32> to vector<32x1x64xf32>
      %179 = vector.shape_cast %176 : vector<32x64xf32> to vector<1x32x64xf32>
      %180 = vector.broadcast %178 : vector<32x1x64xf32> to vector<32x32x64xf32>
      %181 = vector.broadcast %179 : vector<1x32x64xf32> to vector<32x32x64xf32>
      %182 = arith.addf %180, %181 : vector<32x32x64xf32>
      %cst_94 = arith.constant 0.000000e+00 : f32
      %183 = vector.broadcast %cst_94 : f32 to vector<32x32x64xf32>
      %184 = arith.cmpf oge, %182, %183 : vector<32x32x64xf32>
      %cst_95 = arith.constant 2.000000e-01 : f32
      %185 = vector.broadcast %cst_95 : f32 to vector<32x32x64xf32>
      %186 = arith.mulf %185, %182 : vector<32x32x64xf32>
      %187 = arith.select %184, %182, %186 : vector<32x32x64xi1>, vector<32x32x64xf32>
      %188 = vector.extract_strided_slice %168 {offsets = [0, 0, 0], sizes = [1, 1, 64], strides = [1, 1, 1]} : vector<2x1x64xf32> to vector<1x1x64xf32>
      %189 = vector.shape_cast %188 : vector<1x1x64xf32> to vector<1x64xf32>
      %190 = vector.shape_cast %189 : vector<1x64xf32> to vector<1x1x64xf32>
      %191 = vector.broadcast %190 : vector<1x1x64xf32> to vector<32x32x64xf32>
      %192 = arith.mulf %187, %191 : vector<32x32x64xf32>
      %cst_96 = arith.constant dense<0.000000e+00> : vector<32x32xf32>
      %193 = vector.multi_reduction <add>, %192, %cst_96 [2] : vector<32x32x64xf32> to vector<32x32xf32>
      %cst_97 = arith.constant 0.000000e+00 : f32
      %194 = vector.broadcast %cst_97 : f32 to vector<32x32xf32>
      %195 = arith.cmpf ogt, %161, %194 : vector<32x32xf32>
      %cst_98 = arith.constant -1.000000e+30 : f32
      %196 = vector.broadcast %cst_98 : f32 to vector<32x32xf32>
      %197 = arith.select %195, %193, %196 : vector<32x32xi1>, vector<32x32xf32>
      %cst_99 = arith.constant dense<0xFF800000> : vector<32xf32>
      %198 = vector.multi_reduction <maximumf>, %197, %cst_99 [1] : vector<32x32xf32> to vector<32xf32>
      %199 = vector.shape_cast %198 : vector<32xf32> to vector<32x1xf32>
      %200 = vector.broadcast %199 : vector<32x1xf32> to vector<32x32xf32>
      %201 = arith.subf %197, %200 : vector<32x32xf32>
      %202 = math.exp %201 : vector<32x32xf32>
      %cst_100 = arith.constant dense<0.000000e+00> : vector<32xf32>
      %203 = vector.multi_reduction <add>, %202, %cst_100 [1] : vector<32x32xf32> to vector<32xf32>
      %204 = vector.shape_cast %203 : vector<32xf32> to vector<32x1xf32>
      %205 = vector.broadcast %204 : vector<32x1xf32> to vector<32x32xf32>
      %206 = arith.divf %202, %205 : vector<32x32xf32>
      %cst_101 = arith.constant dense<0.000000e+00> : vector<32x64xf32>
      %207 = tpu.matmul %206, %176, %cst_101 {dimension_numbers = #tpu.dot_dimension_numbers<[1], [0], [0], [1], [0, 0, 1, 1], [], []>} : vector<32x32xf32>, vector<32x64xf32>, vector<32x64xf32> -> vector<32x64xf32>
      %208 = vector.extract_strided_slice %172 {offsets = [0, 64], sizes = [32, 64], strides = [1, 1]} : vector<32x128xf32> to vector<32x64xf32>
      %209 = vector.extract_strided_slice %175 {offsets = [0, 64], sizes = [32, 64], strides = [1, 1]} : vector<32x128xf32> to vector<32x64xf32>
      %210 = vector.shape_cast %209 : vector<32x64xf32> to vector<32x1x64xf32>
      %211 = vector.shape_cast %208 : vector<32x64xf32> to vector<1x32x64xf32>
      %212 = vector.broadcast %210 : vector<32x1x64xf32> to vector<32x32x64xf32>
      %213 = vector.broadcast %211 : vector<1x32x64xf32> to vector<32x32x64xf32>
      %214 = arith.addf %212, %213 : vector<32x32x64xf32>
      %cst_102 = arith.constant 0.000000e+00 : f32
      %215 = vector.broadcast %cst_102 : f32 to vector<32x32x64xf32>
      %216 = arith.cmpf oge, %214, %215 : vector<32x32x64xf32>
      %cst_103 = arith.constant 2.000000e-01 : f32
      %217 = vector.broadcast %cst_103 : f32 to vector<32x32x64xf32>
      %218 = arith.mulf %217, %214 : vector<32x32x64xf32>
      %219 = arith.select %216, %214, %218 : vector<32x32x64xi1>, vector<32x32x64xf32>
      %220 = vector.extract_strided_slice %168 {offsets = [1, 0, 0], sizes = [1, 1, 64], strides = [1, 1, 1]} : vector<2x1x64xf32> to vector<1x1x64xf32>
      %221 = vector.shape_cast %220 : vector<1x1x64xf32> to vector<1x64xf32>
      %222 = vector.shape_cast %221 : vector<1x64xf32> to vector<1x1x64xf32>
      %223 = vector.broadcast %222 : vector<1x1x64xf32> to vector<32x32x64xf32>
      %224 = arith.mulf %219, %223 : vector<32x32x64xf32>
      %cst_104 = arith.constant dense<0.000000e+00> : vector<32x32xf32>
      %225 = vector.multi_reduction <add>, %224, %cst_104 [2] : vector<32x32x64xf32> to vector<32x32xf32>
      %cst_105 = arith.constant 0.000000e+00 : f32
      %226 = vector.broadcast %cst_105 : f32 to vector<32x32xf32>
      %227 = arith.cmpf ogt, %161, %226 : vector<32x32xf32>
      %cst_106 = arith.constant -1.000000e+30 : f32
      %228 = vector.broadcast %cst_106 : f32 to vector<32x32xf32>
      %229 = arith.select %227, %225, %228 : vector<32x32xi1>, vector<32x32xf32>
      %cst_107 = arith.constant dense<0xFF800000> : vector<32xf32>
      %230 = vector.multi_reduction <maximumf>, %229, %cst_107 [1] : vector<32x32xf32> to vector<32xf32>
      %231 = vector.shape_cast %230 : vector<32xf32> to vector<32x1xf32>
      %232 = vector.broadcast %231 : vector<32x1xf32> to vector<32x32xf32>
      %233 = arith.subf %229, %232 : vector<32x32xf32>
      %234 = math.exp %233 : vector<32x32xf32>
      %cst_108 = arith.constant dense<0.000000e+00> : vector<32xf32>
      %235 = vector.multi_reduction <add>, %234, %cst_108 [1] : vector<32x32xf32> to vector<32xf32>
      %236 = vector.shape_cast %235 : vector<32xf32> to vector<32x1xf32>
      %237 = vector.broadcast %236 : vector<32x1xf32> to vector<32x32xf32>
      %238 = arith.divf %234, %237 : vector<32x32xf32>
      %cst_109 = arith.constant dense<0.000000e+00> : vector<32x64xf32>
      %239 = tpu.matmul %238, %208, %cst_109 {dimension_numbers = #tpu.dot_dimension_numbers<[1], [0], [0], [1], [0, 0, 1, 1], [], []>} : vector<32x32xf32>, vector<32x64xf32>, vector<32x64xf32> -> vector<32x64xf32>
      %240 = tpu.concatenate %207, %239 in 1 : vector<32x64xf32>, vector<32x64xf32> -> vector<32x128xf32>
      %241 = vector.broadcast %169 : vector<1x128xf32> to vector<32x128xf32>
      %242 = arith.addf %240, %241 : vector<32x128xf32>
      %cst_110 = arith.constant 0.000000e+00 : f32
      %243 = vector.broadcast %cst_110 : f32 to vector<32x128xf32>
      %244 = arith.maximumf %242, %243 : vector<32x128xf32>
      %c0_111 = arith.constant 0 : index
      %c0_112 = arith.constant 0 : index
      %245 = vector.load %arg24[%c0_111, %c0_112] : memref<32x128xf32, #tpu.memory_space<vmem>>, vector<32x128xf32>
      tpu.vector_store %arg24[%c0_111, %c0_112], %244 {strides = array<i32>} : memref<32x128xf32, #tpu.memory_space<vmem>>, vector<32x128xf32>,
    } else {
    }
    %c0 = arith.constant 0 : index
    %c0_1 = arith.constant 0 : index
    %3 = vector.load %arg24[%c0, %c0_1] : memref<32x128xf32, #tpu.memory_space<vmem>>, vector<32x128xf32>
    %c0_2 = arith.constant 0 : index
    %c0_3 = arith.constant 0 : index
    %c0_4 = arith.constant 0 : index
    %4 = vector.load %arg9[%c0_2, %c0_3, %c0_4] : memref<1x128x384xbf16, #tpu.memory_space<vmem>>, vector<1x128x384xbf16>
    %5 = vector.shape_cast %4 : vector<1x128x384xbf16> to vector<128x384xbf16>
    %6 = arith.extf %5 : vector<128x384xbf16> to vector<128x384xf32>
    %c0_5 = arith.constant 0 : index
    %c0_6 = arith.constant 0 : index
    %c0_7 = arith.constant 0 : index
    %7 = vector.load %arg10[%c0_5, %c0_6, %c0_7] : memref<1x1x384xf32, #tpu.memory_space<vmem>>, vector<1x1x384xf32>
    %8 = vector.shape_cast %7 : vector<1x1x384xf32> to vector<1x384xf32>
    %c0_8 = arith.constant 0 : index
    %c0_9 = arith.constant 0 : index
    %c0_10 = arith.constant 0 : index
    %9 = vector.load %arg11[%c0_8, %c0_9, %c0_10] : memref<1x128x128xbf16, #tpu.memory_space<vmem>>, vector<1x128x128xbf16>
    %10 = vector.shape_cast %9 : vector<1x128x128xbf16> to vector<128x128xbf16>
    %11 = arith.extf %10 : vector<128x128xbf16> to vector<128x128xf32>
    %c0_11 = arith.constant 0 : index
    %c0_12 = arith.constant 0 : index
    %c0_13 = arith.constant 0 : index
    %12 = vector.load %arg12[%c0_11, %c0_12, %c0_13] : memref<1x1x128xf32, #tpu.memory_space<vmem>>, vector<1x1x128xf32>
    %13 = vector.shape_cast %12 : vector<1x1x128xf32> to vector<1x128xf32>
    %c0_14 = arith.constant 0 : index
    %c0_15 = arith.constant 0 : index
    %c0_16 = arith.constant 0 : index
    %14 = vector.load %arg13[%c0_14, %c0_15, %c0_16] : memref<1x1x128xf32, #tpu.memory_space<vmem>>, vector<1x1x128xf32>
    %15 = vector.shape_cast %14 : vector<1x1x128xf32> to vector<1x128xf32>
    %c0_17 = arith.constant 0 : index
    %c0_18 = arith.constant 0 : index
    %c0_19 = arith.constant 0 : index
    %16 = vector.load %arg14[%c0_17, %c0_18, %c0_19] : memref<1x1x128xf32, #tpu.memory_space<vmem>>, vector<1x1x128xf32>
    %17 = vector.shape_cast %16 : vector<1x1x128xf32> to vector<1x128xf32>
    %c0_20 = arith.constant 0 : index
    %c0_21 = arith.constant 0 : index
    %c0_22 = arith.constant 0 : index
    %18 = vector.load %arg15[%c0_20, %c0_21, %c0_22] : memref<1x128x2048xbf16, #tpu.memory_space<vmem>>, vector<1x128x2048xbf16>
    %19 = vector.shape_cast %18 : vector<1x128x2048xbf16> to vector<128x2048xbf16>
    %20 = arith.extf %19 : vector<128x2048xbf16> to vector<128x2048xf32>
    %c0_23 = arith.constant 0 : index
    %c0_24 = arith.constant 0 : index
    %c0_25 = arith.constant 0 : index
    %21 = vector.load %arg16[%c0_23, %c0_24, %c0_25] : memref<1x1x2048xf32, #tpu.memory_space<vmem>>, vector<1x1x2048xf32>
    %22 = vector.shape_cast %21 : vector<1x1x2048xf32> to vector<1x2048xf32>
    %c0_26 = arith.constant 0 : index
    %c0_27 = arith.constant 0 : index
    %c0_28 = arith.constant 0 : index
    %23 = vector.load %arg17[%c0_26, %c0_27, %c0_28] : memref<1x2048x128xbf16, #tpu.memory_space<vmem>>, vector<1x2048x128xbf16>
    %24 = vector.shape_cast %23 : vector<1x2048x128xbf16> to vector<2048x128xbf16>
    %25 = arith.extf %24 : vector<2048x128xbf16> to vector<2048x128xf32>
    %c0_29 = arith.constant 0 : index
    %c0_30 = arith.constant 0 : index
    %c0_31 = arith.constant 0 : index
    %26 = vector.load %arg18[%c0_29, %c0_30, %c0_31] : memref<1x1x128xf32, #tpu.memory_space<vmem>>, vector<1x1x128xf32>
    %27 = vector.shape_cast %26 : vector<1x1x128xf32> to vector<1x128xf32>
    %c0_32 = arith.constant 0 : index
    %c0_33 = arith.constant 0 : index
    %c0_34 = arith.constant 0 : index
    %28 = vector.load %arg19[%c0_32, %c0_33, %c0_34] : memref<1x1x128xf32, #tpu.memory_space<vmem>>, vector<1x1x128xf32>
    %29 = vector.shape_cast %28 : vector<1x1x128xf32> to vector<1x128xf32>
    %c0_35 = arith.constant 0 : index
    %c0_36 = arith.constant 0 : index
    %c0_37 = arith.constant 0 : index
    %30 = vector.load %arg20[%c0_35, %c0_36, %c0_37] : memref<1x1x128xf32, #tpu.memory_space<vmem>>, vector<1x1x128xf32>
    %31 = vector.shape_cast %30 : vector<1x1x128xf32> to vector<1x128xf32>
    %cst = arith.constant dense<0.000000e+00> : vector<32x384xf32>
    %32 = tpu.matmul %3, %6, %cst {dimension_numbers = #tpu.dot_dimension_numbers<[1], [0], [0], [1], [0, 0, 1, 1], [], []>} : vector<32x128xf32>, vector<128x384xf32>, vector<32x384xf32> -> vector<32x384xf32>
    %33 = vector.broadcast %8 : vector<1x384xf32> to vector<32x384xf32>
    %34 = arith.addf %32, %33 : vector<32x384xf32>
    %35 = vector.extract_strided_slice %34 {offsets = [0, 0], sizes = [32, 128], strides = [1, 1]} : vector<32x384xf32> to vector<32x128xf32>
    %36 = vector.extract_strided_slice %34 {offsets = [0, 128], sizes = [32, 128], strides = [1, 1]} : vector<32x384xf32> to vector<32x128xf32>
    %37 = vector.extract_strided_slice %34 {offsets = [0, 256], sizes = [32, 128], strides = [1, 1]} : vector<32x384xf32> to vector<32x128xf32>
    %38 = vector.extract_strided_slice %35 {offsets = [0, 0], sizes = [32, 32], strides = [1, 1]} : vector<32x128xf32> to vector<32x32xf32>
    %39 = vector.extract_strided_slice %36 {offsets = [0, 0], sizes = [32, 32], strides = [1, 1]} : vector<32x128xf32> to vector<32x32xf32>
    %40 = vector.extract_strided_slice %37 {offsets = [0, 0], sizes = [32, 32], strides = [1, 1]} : vector<32x128xf32> to vector<32x32xf32>
    %cst_38 = arith.constant dense<0.000000e+00> : vector<32x32xf32>
    %41 = tpu.matmul %38, %39, %cst_38 {dimension_numbers = #tpu.dot_dimension_numbers<[1], [1], [0], [0], [0, 0, 1, 0], [], []>} : vector<32x32xf32>, vector<32x32xf32>, vector<32x32xf32> -> vector<32x32xf32>
    %cst_39 = arith.constant 0.176776692 : f32
    %42 = vector.broadcast %cst_39 : f32 to vector<32x32xf32>
    %43 = arith.mulf %41, %42 : vector<32x32xf32>
    %cst_40 = arith.constant dense<0xFF800000> : vector<32xf32>
    %44 = vector.multi_reduction <maximumf>, %43, %cst_40 [1] : vector<32x32xf32> to vector<32xf32>
    %45 = vector.shape_cast %44 : vector<32xf32> to vector<32x1xf32>
    %46 = vector.broadcast %45 : vector<32x1xf32> to vector<32x32xf32>
    %47 = arith.subf %43, %46 : vector<32x32xf32>
    %48 = math.exp %47 : vector<32x32xf32>
    %cst_41 = arith.constant dense<0.000000e+00> : vector<32xf32>
    %49 = vector.multi_reduction <add>, %48, %cst_41 [1] : vector<32x32xf32> to vector<32xf32>
    %50 = vector.shape_cast %49 : vector<32xf32> to vector<32x1xf32>
    %51 = vector.broadcast %50 : vector<32x1xf32> to vector<32x32xf32>
    %52 = arith.divf %48, %51 : vector<32x32xf32>
    %cst_42 = arith.constant dense<0.000000e+00> : vector<32x32xf32>
    %53 = tpu.matmul %52, %40, %cst_42 {dimension_numbers = #tpu.dot_dimension_numbers<[1], [0], [0], [1], [0, 0, 1, 1], [], []>} : vector<32x32xf32>, vector<32x32xf32>, vector<32x32xf32> -> vector<32x32xf32>
    %54 = vector.extract_strided_slice %35 {offsets = [0, 32], sizes = [32, 32], strides = [1, 1]} : vector<32x128xf32> to vector<32x32xf32>
    %55 = vector.extract_strided_slice %36 {offsets = [0, 32], sizes = [32, 32], strides = [1, 1]} : vector<32x128xf32> to vector<32x32xf32>
    %56 = vector.extract_strided_slice %37 {offsets = [0, 32], sizes = [32, 32], strides = [1, 1]} : vector<32x128xf32> to vector<32x32xf32>
    %cst_43 = arith.constant dense<0.000000e+00> : vector<32x32xf32>
    %57 = tpu.matmul %54, %55, %cst_43 {dimension_numbers = #tpu.dot_dimension_numbers<[1], [1], [0], [0], [0, 0, 1, 0], [], []>} : vector<32x32xf32>, vector<32x32xf32>, vector<32x32xf32> -> vector<32x32xf32>
    %cst_44 = arith.constant 0.176776692 : f32
    %58 = vector.broadcast %cst_44 : f32 to vector<32x32xf32>
    %59 = arith.mulf %57, %58 : vector<32x32xf32>
    %cst_45 = arith.constant dense<0xFF800000> : vector<32xf32>
    %60 = vector.multi_reduction <maximumf>, %59, %cst_45 [1] : vector<32x32xf32> to vector<32xf32>
    %61 = vector.shape_cast %60 : vector<32xf32> to vector<32x1xf32>
    %62 = vector.broadcast %61 : vector<32x1xf32> to vector<32x32xf32>
    %63 = arith.subf %59, %62 : vector<32x32xf32>
    %64 = math.exp %63 : vector<32x32xf32>
    %cst_46 = arith.constant dense<0.000000e+00> : vector<32xf32>
    %65 = vector.multi_reduction <add>, %64, %cst_46 [1] : vector<32x32xf32> to vector<32xf32>
    %66 = vector.shape_cast %65 : vector<32xf32> to vector<32x1xf32>
    %67 = vector.broadcast %66 : vector<32x1xf32> to vector<32x32xf32>
    %68 = arith.divf %64, %67 : vector<32x32xf32>
    %cst_47 = arith.constant dense<0.000000e+00> : vector<32x32xf32>
    %69 = tpu.matmul %68, %56, %cst_47 {dimension_numbers = #tpu.dot_dimension_numbers<[1], [0], [0], [1], [0, 0, 1, 1], [], []>} : vector<32x32xf32>, vector<32x32xf32>, vector<32x32xf32> -> vector<32x32xf32>
    %70 = vector.extract_strided_slice %35 {offsets = [0, 64], sizes = [32, 32], strides = [1, 1]} : vector<32x128xf32> to vector<32x32xf32>
    %71 = vector.extract_strided_slice %36 {offsets = [0, 64], sizes = [32, 32], strides = [1, 1]} : vector<32x128xf32> to vector<32x32xf32>
    %72 = vector.extract_strided_slice %37 {offsets = [0, 64], sizes = [32, 32], strides = [1, 1]} : vector<32x128xf32> to vector<32x32xf32>
    %cst_48 = arith.constant dense<0.000000e+00> : vector<32x32xf32>
    %73 = tpu.matmul %70, %71, %cst_48 {dimension_numbers = #tpu.dot_dimension_numbers<[1], [1], [0], [0], [0, 0, 1, 0], [], []>} : vector<32x32xf32>, vector<32x32xf32>, vector<32x32xf32> -> vector<32x32xf32>
    %cst_49 = arith.constant 0.176776692 : f32
    %74 = vector.broadcast %cst_49 : f32 to vector<32x32xf32>
    %75 = arith.mulf %73, %74 : vector<32x32xf32>
    %cst_50 = arith.constant dense<0xFF800000> : vector<32xf32>
    %76 = vector.multi_reduction <maximumf>, %75, %cst_50 [1] : vector<32x32xf32> to vector<32xf32>
    %77 = vector.shape_cast %76 : vector<32xf32> to vector<32x1xf32>
    %78 = vector.broadcast %77 : vector<32x1xf32> to vector<32x32xf32>
    %79 = arith.subf %75, %78 : vector<32x32xf32>
    %80 = math.exp %79 : vector<32x32xf32>
    %cst_51 = arith.constant dense<0.000000e+00> : vector<32xf32>
    %81 = vector.multi_reduction <add>, %80, %cst_51 [1] : vector<32x32xf32> to vector<32xf32>
    %82 = vector.shape_cast %81 : vector<32xf32> to vector<32x1xf32>
    %83 = vector.broadcast %82 : vector<32x1xf32> to vector<32x32xf32>
    %84 = arith.divf %80, %83 : vector<32x32xf32>
    %cst_52 = arith.constant dense<0.000000e+00> : vector<32x32xf32>
    %85 = tpu.matmul %84, %72, %cst_52 {dimension_numbers = #tpu.dot_dimension_numbers<[1], [0], [0], [1], [0, 0, 1, 1], [], []>} : vector<32x32xf32>, vector<32x32xf32>, vector<32x32xf32> -> vector<32x32xf32>
    %86 = vector.extract_strided_slice %35 {offsets = [0, 96], sizes = [32, 32], strides = [1, 1]} : vector<32x128xf32> to vector<32x32xf32>
    %87 = vector.extract_strided_slice %36 {offsets = [0, 96], sizes = [32, 32], strides = [1, 1]} : vector<32x128xf32> to vector<32x32xf32>
    %88 = vector.extract_strided_slice %37 {offsets = [0, 96], sizes = [32, 32], strides = [1, 1]} : vector<32x128xf32> to vector<32x32xf32>
    %cst_53 = arith.constant dense<0.000000e+00> : vector<32x32xf32>
    %89 = tpu.matmul %86, %87, %cst_53 {dimension_numbers = #tpu.dot_dimension_numbers<[1], [1], [0], [0], [0, 0, 1, 0], [], []>} : vector<32x32xf32>, vector<32x32xf32>, vector<32x32xf32> -> vector<32x32xf32>
    %cst_54 = arith.constant 0.176776692 : f32
    %90 = vector.broadcast %cst_54 : f32 to vector<32x32xf32>
    %91 = arith.mulf %89, %90 : vector<32x32xf32>
    %cst_55 = arith.constant dense<0xFF800000> : vector<32xf32>
    %92 = vector.multi_reduction <maximumf>, %91, %cst_55 [1] : vector<32x32xf32> to vector<32xf32>
    %93 = vector.shape_cast %92 : vector<32xf32> to vector<32x1xf32>
    %94 = vector.broadcast %93 : vector<32x1xf32> to vector<32x32xf32>
    %95 = arith.subf %91, %94 : vector<32x32xf32>
    %96 = math.exp %95 : vector<32x32xf32>
    %cst_56 = arith.constant dense<0.000000e+00> : vector<32xf32>
    %97 = vector.multi_reduction <add>, %96, %cst_56 [1] : vector<32x32xf32> to vector<32xf32>
    %98 = vector.shape_cast %97 : vector<32xf32> to vector<32x1xf32>
    %99 = vector.broadcast %98 : vector<32x1xf32> to vector<32x32xf32>
    %100 = arith.divf %96, %99 : vector<32x32xf32>
    %cst_57 = arith.constant dense<0.000000e+00> : vector<32x32xf32>
    %101 = tpu.matmul %100, %88, %cst_57 {dimension_numbers = #tpu.dot_dimension_numbers<[1], [0], [0], [1], [0, 0, 1, 1], [], []>} : vector<32x32xf32>, vector<32x32xf32>, vector<32x32xf32> -> vector<32x32xf32>
    %102 = tpu.concatenate %53, %69, %85, %101 in 1 : vector<32x32xf32>, vector<32x32xf32>, vector<32x32xf32>, vector<32x32xf32> -> vector<32x128xf32>
    %cst_58 = arith.constant dense<0.000000e+00> : vector<32x128xf32>
    %103 = tpu.matmul %102, %11, %cst_58 {dimension_numbers = #tpu.dot_dimension_numbers<[1], [0], [0], [1], [0, 0, 1, 1], [], []>} : vector<32x128xf32>, vector<128x128xf32>, vector<32x128xf32> -> vector<32x128xf32>
    %104 = vector.broadcast %13 : vector<1x128xf32> to vector<32x128xf32>
    %105 = arith.addf %103, %104 : vector<32x128xf32>
    %106 = arith.addf %3, %105 : vector<32x128xf32>
    %cst_59 = arith.constant dense<0.000000e+00> : vector<32xf32>
    %107 = vector.multi_reduction <add>, %106, %cst_59 [1] : vector<32x128xf32> to vector<32xf32>
    %108 = vector.shape_cast %107 : vector<32xf32> to vector<32x1xf32>
    %cst_60 = arith.constant 1.280000e+02 : f32
    %109 = vector.broadcast %cst_60 : f32 to vector<32x1xf32>
    %110 = arith.divf %108, %109 : vector<32x1xf32>
    %111 = vector.broadcast %110 : vector<32x1xf32> to vector<32x128xf32>
    %112 = arith.subf %106, %111 : vector<32x128xf32>
    %113 = arith.mulf %112, %112 : vector<32x128xf32>
    %cst_61 = arith.constant dense<0.000000e+00> : vector<32xf32>
    %114 = vector.multi_reduction <add>, %113, %cst_61 [1] : vector<32x128xf32> to vector<32xf32>
    %115 = vector.shape_cast %114 : vector<32xf32> to vector<32x1xf32>
    %cst_62 = arith.constant 1.280000e+02 : f32
    %116 = vector.broadcast %cst_62 : f32 to vector<32x1xf32>
    %117 = arith.divf %115, %116 : vector<32x1xf32>
    %cst_63 = arith.constant 9.99999974E-6 : f32
    %118 = vector.broadcast %cst_63 : f32 to vector<32x1xf32>
    %119 = arith.addf %117, %118 : vector<32x1xf32>
    %120 = math.rsqrt %119 : vector<32x1xf32>
    %121 = vector.broadcast %120 : vector<32x1xf32> to vector<32x128xf32>
    %122 = arith.mulf %112, %121 : vector<32x128xf32>
    %123 = vector.broadcast %15 : vector<1x128xf32> to vector<32x128xf32>
    %124 = arith.mulf %122, %123 : vector<32x128xf32>
    %125 = vector.broadcast %17 : vector<1x128xf32> to vector<32x128xf32>
    %126 = arith.addf %124, %125 : vector<32x128xf32>
    %cst_64 = arith.constant dense<0.000000e+00> : vector<32x2048xf32>
    %127 = tpu.matmul %126, %20, %cst_64 {dimension_numbers = #tpu.dot_dimension_numbers<[1], [0], [0], [1], [0, 0, 1, 1], [], []>} : vector<32x128xf32>, vector<128x2048xf32>, vector<32x2048xf32> -> vector<32x2048xf32>
    %128 = vector.broadcast %22 : vector<1x2048xf32> to vector<32x2048xf32>
    %129 = arith.addf %127, %128 : vector<32x2048xf32>
    %cst_65 = arith.constant 0.000000e+00 : f32
    %130 = vector.broadcast %cst_65 : f32 to vector<32x2048xf32>
    %131 = arith.maximumf %129, %130 : vector<32x2048xf32>
    %cst_66 = arith.constant dense<0.000000e+00> : vector<32x128xf32>
    %132 = tpu.matmul %131, %25, %cst_66 {dimension_numbers = #tpu.dot_dimension_numbers<[1], [0], [0], [1], [0, 0, 1, 1], [], []>} : vector<32x2048xf32>, vector<2048x128xf32>, vector<32x128xf32> -> vector<32x128xf32>
    %133 = vector.broadcast %27 : vector<1x128xf32> to vector<32x128xf32>
    %134 = arith.addf %132, %133 : vector<32x128xf32>
    %135 = arith.addf %126, %134 : vector<32x128xf32>
    %cst_67 = arith.constant dense<0.000000e+00> : vector<32xf32>
    %136 = vector.multi_reduction <add>, %135, %cst_67 [1] : vector<32x128xf32> to vector<32xf32>
    %137 = vector.shape_cast %136 : vector<32xf32> to vector<32x1xf32>
    %cst_68 = arith.constant 1.280000e+02 : f32
    %138 = vector.broadcast %cst_68 : f32 to vector<32x1xf32>
    %139 = arith.divf %137, %138 : vector<32x1xf32>
    %140 = vector.broadcast %139 : vector<32x1xf32> to vector<32x128xf32>
    %141 = arith.subf %135, %140 : vector<32x128xf32>
    %142 = arith.mulf %141, %141 : vector<32x128xf32>
    %cst_69 = arith.constant dense<0.000000e+00> : vector<32xf32>
    %143 = vector.multi_reduction <add>, %142, %cst_69 [1] : vector<32x128xf32> to vector<32xf32>
    %144 = vector.shape_cast %143 : vector<32xf32> to vector<32x1xf32>
    %cst_70 = arith.constant 1.280000e+02 : f32
    %145 = vector.broadcast %cst_70 : f32 to vector<32x1xf32>
    %146 = arith.divf %144, %145 : vector<32x1xf32>
    %cst_71 = arith.constant 9.99999974E-6 : f32
    %147 = vector.broadcast %cst_71 : f32 to vector<32x1xf32>
    %148 = arith.addf %146, %147 : vector<32x1xf32>
    %149 = math.rsqrt %148 : vector<32x1xf32>
    %150 = vector.broadcast %149 : vector<32x1xf32> to vector<32x128xf32>
    %151 = arith.mulf %141, %150 : vector<32x128xf32>
    %152 = vector.broadcast %29 : vector<1x128xf32> to vector<32x128xf32>
    %153 = arith.mulf %151, %152 : vector<32x128xf32>
    %154 = vector.broadcast %31 : vector<1x128xf32> to vector<32x128xf32>
    %155 = arith.addf %153, %154 : vector<32x128xf32>
    %c0_72 = arith.constant 0 : index
    %c0_73 = arith.constant 0 : index
    %156 = vector.load %arg24[%c0_72, %c0_73] : memref<32x128xf32, #tpu.memory_space<vmem>>, vector<32x128xf32>
    tpu.vector_store %arg24[%c0_72, %c0_73], %155 {strides = array<i32>} : memref<32x128xf32, #tpu.memory_space<vmem>>, vector<32x128xf32>,
    %c1_i32 = arith.constant 1 : i32
    %157 = arith.cmpi eq, %arg0, %c1_i32 : i32
    %158 = arith.extui %157 : i1 to i32
    %c0_i32_74 = arith.constant 0 : i32
    %159 = arith.cmpi ne, %158, %c0_i32_74 : i32
    scf.if %159 {
      %c0_75 = arith.constant 0 : index
      %c0_76 = arith.constant 0 : index
      %160 = vector.load %arg24[%c0_75, %c0_76] : memref<32x128xf32, #tpu.memory_space<vmem>>, vector<32x128xf32>
      %c0_77 = arith.constant 0 : index
      %c0_78 = arith.constant 0 : index
      %161 = vector.load %arg21[%c0_77, %c0_78] : memref<128x8xbf16, #tpu.memory_space<vmem>>, vector<128x8xbf16>
      %162 = arith.extf %161 : vector<128x8xbf16> to vector<128x8xf32>
      %cst_79 = arith.constant dense<0.000000e+00> : vector<32x8xf32>
      %163 = tpu.matmul %160, %162, %cst_79 {dimension_numbers = #tpu.dot_dimension_numbers<[1], [0], [0], [1], [0, 0, 1, 1], [], []>} : vector<32x128xf32>, vector<128x8xf32>, vector<32x8xf32> -> vector<32x8xf32>
      %c0_80 = arith.constant 0 : index
      %c0_81 = arith.constant 0 : index
      %164 = vector.load %arg22[%c0_80, %c0_81] : memref<1x8xf32, #tpu.memory_space<vmem>>, vector<1x8xf32>
      %165 = vector.broadcast %164 : vector<1x8xf32> to vector<32x8xf32>
      %166 = arith.addf %163, %165 : vector<32x8xf32>
      %c0_82 = arith.constant 0 : index
      %c0_83 = arith.constant 0 : index
      %167 = vector.load %arg23[%c0_82, %c0_83] : memref<32x8xf32, #tpu.memory_space<vmem>>, vector<32x8xf32>
      tpu.vector_store %arg23[%c0_82, %c0_83], %166 {strides = array<i32>} : memref<32x8xf32, #tpu.memory_space<vmem>>, vector<32x8xf32>,
    } else {
    }
    return
  }
  func.func @transform_0(%arg0: i32) -> (i32, i32) {
    %c0_i32 = arith.constant 0 : i32
    %c0_i32_0 = arith.constant 0 : i32
    %c0_i32_1 = arith.constant 0 : i32
    return %c0_i32, %c0_i32_0 : i32, i32
  }
  func.func @transform_1(%arg0: i32) -> (i32, i32) {
    %c0_i32 = arith.constant 0 : i32
    %c0_i32_0 = arith.constant 0 : i32
    %c0_i32_1 = arith.constant 0 : i32
    return %c0_i32, %c0_i32_0 : i32, i32
  }
  func.func @transform_2(%arg0: i32) -> (i32, i32) {
    %c0_i32 = arith.constant 0 : i32
    %c0_i32_0 = arith.constant 0 : i32
    %c0_i32_1 = arith.constant 0 : i32
    return %c0_i32, %c0_i32_0 : i32, i32
  }
  func.func @transform_3(%arg0: i32) -> (i32, i32) {
    %c0_i32 = arith.constant 0 : i32
    %c0_i32_0 = arith.constant 0 : i32
    %c0_i32_1 = arith.constant 0 : i32
    return %c0_i32, %c0_i32_0 : i32, i32
  }
  func.func @transform_4(%arg0: i32) -> (i32, i32) {
    %c0_i32 = arith.constant 0 : i32
    %c0_i32_0 = arith.constant 0 : i32
    %c0_i32_1 = arith.constant 0 : i32
    return %c0_i32, %c0_i32_0 : i32, i32
  }
  func.func @transform_5(%arg0: i32) -> (i32, i32) {
    %c0_i32 = arith.constant 0 : i32
    %c0_i32_0 = arith.constant 0 : i32
    %c0_i32_1 = arith.constant 0 : i32
    return %c0_i32, %c0_i32_0 : i32, i32
  }
  func.func @transform_6(%arg0: i32) -> (i32, i32, i32) {
    %c0_i32 = arith.constant 0 : i32
    %c0_i32_0 = arith.constant 0 : i32
    %c0_i32_1 = arith.constant 0 : i32
    %c0_i32_2 = arith.constant 0 : i32
    return %c0_i32, %c0_i32_0, %c0_i32_1 : i32, i32, i32
  }
  func.func @transform_7(%arg0: i32) -> (i32, i32) {
    %c0_i32 = arith.constant 0 : i32
    %c0_i32_0 = arith.constant 0 : i32
    %c0_i32_1 = arith.constant 0 : i32
    return %c0_i32, %c0_i32_0 : i32, i32
  }
  func.func @transform_8(%arg0: i32) -> (i32, i32, i32) {
    %c0_i32 = arith.constant 0 : i32
    %c0_i32_0 = arith.constant 0 : i32
    %c0_i32_1 = arith.constant 0 : i32
    return %arg0, %c0_i32, %c0_i32_0 : i32, i32, i32
  }
  func.func @transform_9(%arg0: i32) -> (i32, i32, i32) {
    %c0_i32 = arith.constant 0 : i32
    %c0_i32_0 = arith.constant 0 : i32
    %c0_i32_1 = arith.constant 0 : i32
    return %arg0, %c0_i32, %c0_i32_0 : i32, i32, i32
  }
  func.func @transform_10(%arg0: i32) -> (i32, i32, i32) {
    %c0_i32 = arith.constant 0 : i32
    %c0_i32_0 = arith.constant 0 : i32
    %c0_i32_1 = arith.constant 0 : i32
    return %arg0, %c0_i32, %c0_i32_0 : i32, i32, i32
  }
  func.func @transform_11(%arg0: i32) -> (i32, i32, i32) {
    %c0_i32 = arith.constant 0 : i32
    %c0_i32_0 = arith.constant 0 : i32
    %c0_i32_1 = arith.constant 0 : i32
    return %arg0, %c0_i32, %c0_i32_0 : i32, i32, i32
  }
  func.func @transform_12(%arg0: i32) -> (i32, i32, i32) {
    %c0_i32 = arith.constant 0 : i32
    %c0_i32_0 = arith.constant 0 : i32
    %c0_i32_1 = arith.constant 0 : i32
    return %arg0, %c0_i32, %c0_i32_0 : i32, i32, i32
  }
  func.func @transform_13(%arg0: i32) -> (i32, i32, i32) {
    %c0_i32 = arith.constant 0 : i32
    %c0_i32_0 = arith.constant 0 : i32
    %c0_i32_1 = arith.constant 0 : i32
    return %arg0, %c0_i32, %c0_i32_0 : i32, i32, i32
  }
  func.func @transform_14(%arg0: i32) -> (i32, i32, i32) {
    %c0_i32 = arith.constant 0 : i32
    %c0_i32_0 = arith.constant 0 : i32
    %c0_i32_1 = arith.constant 0 : i32
    return %arg0, %c0_i32, %c0_i32_0 : i32, i32, i32
  }
  func.func @transform_15(%arg0: i32) -> (i32, i32, i32) {
    %c0_i32 = arith.constant 0 : i32
    %c0_i32_0 = arith.constant 0 : i32
    %c0_i32_1 = arith.constant 0 : i32
    return %arg0, %c0_i32, %c0_i32_0 : i32, i32, i32
  }
  func.func @transform_16(%arg0: i32) -> (i32, i32, i32) {
    %c0_i32 = arith.constant 0 : i32
    %c0_i32_0 = arith.constant 0 : i32
    %c0_i32_1 = arith.constant 0 : i32
    return %arg0, %c0_i32, %c0_i32_0 : i32, i32, i32
  }
  func.func @transform_17(%arg0: i32) -> (i32, i32, i32) {
    %c0_i32 = arith.constant 0 : i32
    %c0_i32_0 = arith.constant 0 : i32
    %c0_i32_1 = arith.constant 0 : i32
    return %arg0, %c0_i32, %c0_i32_0 : i32, i32, i32
  }
  func.func @transform_18(%arg0: i32) -> (i32, i32, i32) {
    %c0_i32 = arith.constant 0 : i32
    %c0_i32_0 = arith.constant 0 : i32
    %c0_i32_1 = arith.constant 0 : i32
    return %arg0, %c0_i32, %c0_i32_0 : i32, i32, i32
  }
  func.func @transform_19(%arg0: i32) -> (i32, i32, i32) {
    %c0_i32 = arith.constant 0 : i32
    %c0_i32_0 = arith.constant 0 : i32
    %c0_i32_1 = arith.constant 0 : i32
    return %arg0, %c0_i32, %c0_i32_0 : i32, i32, i32
  }
  func.func @transform_20(%arg0: i32) -> (i32, i32) {
    %c0_i32 = arith.constant 0 : i32
    %c0_i32_0 = arith.constant 0 : i32
    %c0_i32_1 = arith.constant 0 : i32
    return %c0_i32, %c0_i32_0 : i32, i32
  }
  func.func @transform_21(%arg0: i32) -> (i32, i32) {
    %c0_i32 = arith.constant 0 : i32
    %c0_i32_0 = arith.constant 0 : i32
    %c0_i32_1 = arith.constant 0 : i32
    return %c0_i32, %c0_i32_0 : i32, i32
  }
  func.func @transform_22(%arg0: i32) -> (i32, i32) {
    %c0_i32 = arith.constant 0 : i32
    %c0_i32_0 = arith.constant 0 : i32
    %c0_i32_1 = arith.constant 0 : i32
    return %c0_i32, %c0_i32_0 : i32, i32
  }
}

</mosaic_0001>

<llo_original>
// kernel: tpu_custom_call.1
$region0: #{tpu_custom_call.1}
  #allocation0 [shape = 'u32[]', space=smem, size = 0x4, offset = 0x4, fixed_abs, tag = 'smem constant byte address 0x4 - core index']
  #allocation1 [shape = 'u32[144,128]{1,0:T(1,128)}', space=vmem, size = 0x12000, scoped, tag = 'internal scratch']
  #allocation2 [shape = 'f32[32,128]{1,0:T(8,128)}', space=vmem, size = 0x4000, scoped, tag = 'scratch operand']
  %s0 = inlined_call_operand.vmem [shape: f32[32,16], index: 0, kind: input, shape index: {}]
  %s1 = inlined_call_operand.hbm [shape: f32[32,32], index: 1, kind: input, shape index: {}]
  %s2 = inlined_call_operand.hbm [shape: bf16[16,128], index: 2, kind: input, shape index: {}]
  %s3 = inlined_call_operand.vmem [shape: f32[1,128], index: 3, kind: input, shape index: {}]
  %s4 = inlined_call_operand.hbm [shape: bf16[16,128], index: 4, kind: input, shape index: {}]
  %s5 = inlined_call_operand.hbm [shape: f32[1,128], index: 5, kind: input, shape index: {}]
  %s6 = inlined_call_operand.hbm [shape: f32[2,1,64], index: 6, kind: input, shape index: {}]
  %s7 = inlined_call_operand.hbm [shape: f32[1,128], index: 7, kind: input, shape index: {}]
  %s8 = inlined_call_operand.hbm [shape: bf16[2,128,384], index: 8, kind: input, shape index: {}]
  %s9 = inlined_call_operand.hbm [shape: f32[2,1,384], index: 9, kind: input, shape index: {}]
  %s10 = inlined_call_operand.vmem [shape: bf16[2,128,128], index: 10, kind: input, shape index: {}]
  %s11 = inlined_call_operand.hbm [shape: f32[2,1,128], index: 11, kind: input, shape index: {}]
  %s12 = inlined_call_operand.hbm [shape: f32[2,1,128], index: 12, kind: input, shape index: {}]
  %s13 = inlined_call_operand.hbm [shape: f32[2,1,128], index: 13, kind: input, shape index: {}]
  %s14 = inlined_call_operand.hbm [shape: bf16[2,128,2048], index: 14, kind: input, shape index: {}]
  %s15 = inlined_call_operand.vmem [shape: f32[2,1,2048], index: 15, kind: input, shape index: {}]
  %s16 = inlined_call_operand.hbm [shape: bf16[2,2048,128], index: 16, kind: input, shape index: {}]
  %s17 = inlined_call_operand.vmem [shape: f32[2,1,128], index: 17, kind: input, shape index: {}]
  %s18 = inlined_call_operand.vmem [shape: f32[2,1,128], index: 18, kind: input, shape index: {}]
  %s19 = inlined_call_operand.vmem [shape: f32[2,1,128], index: 19, kind: input, shape index: {}]
  %s20 = inlined_call_operand.vmem [shape: bf16[128,8], index: 20, kind: input, shape index: {}]
  %s21 = inlined_call_operand.vmem [shape: f32[1,8], index: 21, kind: input, shape index: {}]
  %s22 = inlined_call_operand.vmem [shape: f32[32,8], index: 22, kind: output, shape index: {}]
  %s23 = sld [smem:[#allocation0]]
  $region181: #{tpu_custom_call.1} parent=0
    _
  %s25 = ssub.s32 1, %s23
  %s26 = scalar_select 0, %s25, %s23
  $region1: #{tpu_custom_call.1} parent=0
    #allocation3 [shape = 'u8[16384]{0}', space=vmem, size = 0x4000, scoped, tag = 'input window, operand 1, single buffered']
    #allocation4 [shape = 's32[2]{0}', space=sflag, size = 0x8, scoped, tag = 'scoped memory for tpu_custom_call.1']
    #allocation5 [shape = 'u8[4096]{0}', space=vmem, size = 0x1000, scoped, tag = 'input window, operand 2, single buffered']
    #allocation6 [shape = 's32[1]{0}', space=sflag, size = 0x4, scoped, tag = 'scoped memory for tpu_custom_call.1']
    #allocation7 [shape = 'u8[4096]{0}', space=vmem, size = 0x1000, scoped, tag = 'input window, operand 4, single buffered']
    #allocation8 [shape = 'u8[512]{0}', space=vmem, size = 0x400, scoped, tag = 'input window, operand 5, single buffered']
    #allocation9 [shape = 's32[1]{0}', space=sflag, size = 0x4, scoped, tag = 'scoped memory for tpu_custom_call.1']
    #allocation10 [shape = 'u8[1024]{0}', space=vmem, size = 0x400, scoped, tag = 'input window, operand 6, single buffered']
    #allocation11 [shape = 'u8[512]{0}', space=vmem, size = 0x400, scoped, tag = 'input window, operand 7, single buffered']
    #allocation12 [shape = 's32[1]{0}', space=sflag, size = 0x4, scoped, tag = 'scoped memory for tpu_custom_call.1']
    #allocation13 [shape = 'u8[196608]{0}', space=vmem, size = 0x30000, scoped, tag = 'input window, operand 8']
    #allocation14 [shape = 'u8[3072]{0}', space=vmem, size = 0xc00, scoped, tag = 'input window, operand 9']
    #allocation15 [shape = 'u8[1024]{0}', space=vmem, size = 0x400, scoped, tag = 'input window, operand 11']
    #allocation16 [shape = 'u8[1024]{0}', space=vmem, size = 0x400, scoped, tag = 'input window, operand 12']
    #allocation17 [shape = 'u8[1024]{0}', space=vmem, size = 0x400, scoped, tag = 'input window, operand 13']
    #allocation18 [shape = 'u8[1048576]{0}', space=vmem, size = 0x100000, scoped, tag = 'input window, operand 14']
    #allocation19 [shape = 'u8[1048576]{0}', space=vmem, size = 0x100000, scoped, tag = 'input window, operand 16']
    %27 = vsyncpa [#allocation4], 0
    %28 = vsyncpa [#allocation6], 0
    %29 = vsyncpa [#allocation9], 0
    %30 = vsyncpa [#allocation12], 0
    loop: start=0, step=1, limit=4
    $region2: #{tpu_custom_call.1} parent=1 // loop_pre_header
      _
    $region3: #{tpu_custom_call.1} parent=1 // loop_header
      %s32 = sphi 0, %s36
      %p33 = scmp.ge.s32.totalorder %s32, 4
      %s40 = sphi 0, %s40
      %s42 = sphi 0, %s40
      %s43 = sphi 0, %s42
      %s57 = sphi 0, %s43
      %s61 = sphi 0, %s61
      %s63 = sphi 0, %s61
      %s64 = sphi 0, %s63
      %s78 = sphi 0, %s64
      %s82 = sphi 0, %s82
      %s84 = sphi 0, %s82
      %s85 = sphi 0, %s84
      %s99 = sphi 0, %s85
      %s103 = sphi 0, %s103
      %s105 = sphi 0, %s103
      %s106 = sphi 0, %s105
      %s120 = sphi 0, %s106
      %s124 = sphi 0, %s124
      %s126 = sphi 0, %s124
      %s127 = sphi 0, %s126
      %s141 = sphi 0, %s127
      %s145 = sphi 0, %s145
      %s147 = sphi 0, %s145
      %s148 = sphi 0, %s147
      %s162 = sphi 0, %s148
      %s166 = sphi 0, %s166
      %s168 = sphi 0, %s166
      %s169 = sphi 0, %s168
      %s183 = sphi 0, %s169
      %s187 = sphi 0, %s187
      %s189 = sphi 0, %s187
      %s190 = sphi 0, %s189
      %s204 = sphi 0, %s190
      %s210 = sphi 0, %s212
      %s213 = sphi 0, %s210
      %s214 = sphi 0, %s213
      %s230 = sphi 0, %s214
      %s236 = sphi 0, %s238
      %s239 = sphi 0, %s236
      %s240 = sphi 0, %s239
      %s256 = sphi 0, %s240
      %s262 = sphi 0, %s264
      %s265 = sphi 0, %s262
      %s266 = sphi 0, %s265
      %s282 = sphi 0, %s266
      %s288 = sphi 0, %s290
      %s291 = sphi 0, %s288
      %s292 = sphi 0, %s291
      %s308 = sphi 0, %s292
      %s314 = sphi 0, %s316
      %s317 = sphi 0, %s314
      %s318 = sphi 0, %s317
      %s334 = sphi 0, %s318
      %s340 = sphi 0, %s342
      %s343 = sphi 0, %s340
      %s344 = sphi 0, %s343
      %s360 = sphi 0, %s344
      %s366 = sphi 0, %s368
      %s369 = sphi 0, %s366
      %s370 = sphi 0, %s369
      %s386 = sphi 0, %s370
      %s392 = sphi 0, %s394
      %s395 = sphi 0, %s392
      %s396 = sphi 0, %s395
      %s412 = sphi 0, %s396
      %s418 = sphi 0, %s420
      %s421 = sphi 0, %s418
      %s422 = sphi 0, %s421
      %s438 = sphi 0, %s422
      %s444 = sphi 0, %s446
      %s447 = sphi 0, %s444
      %s448 = sphi 0, %s447
      %s464 = sphi 0, %s448
      %s470 = sphi 0, %s472
      %s473 = sphi 0, %s470
      %s474 = sphi 0, %s473
      %s490 = sphi 0, %s474
      %s496 = sphi 0, %s498
      %s499 = sphi 0, %s496
      %s500 = sphi 0, %s499
      %s516 = sphi 0, %s500
      %s520 = sphi 0, %s520
      %s522 = sphi 0, %s520
      %s523 = sphi 0, %s522
      %s537 = sphi 0, %s523
      %s541 = sphi 0, %s541
      %s543 = sphi 0, %s541
      %s544 = sphi 0, %s543
      %s558 = sphi 0, %s544
      %s562 = sphi 0, %s562
      %s564 = sphi 0, %s562
      %s565 = sphi 0, %s564
      %s579 = sphi 0, %s565
    $region4: #{tpu_custom_call.1} parent=1 // loop_header_branch
      %35 = sbr.rel (%p33) target = $region8
    $region5: #{tpu_custom_call.1} parent=1 // loop_body
      %s37 = ssub.s32 %s32, 1
      %s38 = ssub.s32 %s32, 2
      %s39 = sadd.s32 %s32, 1
      %s41 = sadd.s32 %s40, 1
      %p44 = scmp.eq.s32.totalorder %s32, 1
      %p45 = scmp.ne.s32.totalorder %s40, %s42
      %p46 = scmp.eq.s32.totalorder %s32, 0
      %p47 = por %p45, %p46
      %p48 = scmp.ne.s32.totalorder %s40, %s42
      %p49 = scmp.eq.s32.totalorder %s37, 1
      %p50 = por %p48, %p49
      %p51 = scmp.ne.s32.totalorder %s42, %s43
      %p52 = scmp.eq.s32.totalorder %s37, 0
      %p53 = por %p51, %p52
      %p54 = scmp.ne.s32.totalorder %s42, %s43
      %p55 = scmp.eq.s32.totalorder %s38, 1
      %p56 = por %p54, %p55
      %p58 = scmp.ne.s32.totalorder %s43, %s57
      %p59 = scmp.eq.s32.totalorder %s38, 0
      %p60 = por %p58, %p59
      %s62 = sadd.s32 %s61, 1
      %p65 = scmp.eq.s32.totalorder %s32, 1
      %p66 = scmp.ne.s32.totalorder %s61, %s63
      %p67 = scmp.eq.s32.totalorder %s32, 0
      %p68 = por %p66, %p67
      %p69 = scmp.ne.s32.totalorder %s61, %s63
      %p70 = scmp.eq.s32.totalorder %s37, 1
      %p71 = por %p69, %p70
      %p72 = scmp.ne.s32.totalorder %s63, %s64
      %p73 = scmp.eq.s32.totalorder %s37, 0
      %p74 = por %p72, %p73
      %p75 = scmp.ne.s32.totalorder %s63, %s64
      %p76 = scmp.eq.s32.totalorder %s38, 1
      %p77 = por %p75, %p76
      %p79 = scmp.ne.s32.totalorder %s64, %s78
      %p80 = scmp.eq.s32.totalorder %s38, 0
      %p81 = por %p79, %p80
      %s83 = sadd.s32 %s82, 1
      %p86 = scmp.eq.s32.totalorder %s32, 1
      %p87 = scmp.ne.s32.totalorder %s82, %s84
      %p88 = scmp.eq.s32.totalorder %s32, 0
      %p89 = por %p87, %p88
      %p90 = scmp.ne.s32.totalorder %s82, %s84
      %p91 = scmp.eq.s32.totalorder %s37, 1
      %p92 = por %p90, %p91
      %p93 = scmp.ne.s32.totalorder %s84, %s85
      %p94 = scmp.eq.s32.totalorder %s37, 0
      %p95 = por %p93, %p94
      %p96 = scmp.ne.s32.totalorder %s84, %s85
      %p97 = scmp.eq.s32.totalorder %s38, 1
      %p98 = por %p96, %p97
      %p100 = scmp.ne.s32.totalorder %s85, %s99
      %p101 = scmp.eq.s32.totalorder %s38, 0
      %p102 = por %p100, %p101
      %s104 = sadd.s32 %s103, 1
      %p107 = scmp.eq.s32.totalorder %s32, 1
      %p108 = scmp.ne.s32.totalorder %s103, %s105
      %p109 = scmp.eq.s32.totalorder %s32, 0
      %p110 = por %p108, %p109
      %p111 = scmp.ne.s32.totalorder %s103, %s105
      %p112 = scmp.eq.s32.totalorder %s37, 1
      %p113 = por %p111, %p112
      %p114 = scmp.ne.s32.totalorder %s105, %s106
      %p115 = scmp.eq.s32.totalorder %s37, 0
      %p116 = por %p114, %p115
      %p117 = scmp.ne.s32.totalorder %s105, %s106
      %p118 = scmp.eq.s32.totalorder %s38, 1
      %p119 = por %p117, %p118
      %p121 = scmp.ne.s32.totalorder %s106, %s120
      %p122 = scmp.eq.s32.totalorder %s38, 0
      %p123 = por %p121, %p122
      %s125 = sadd.s32 %s124, 1
      %p128 = scmp.eq.s32.totalorder %s32, 1
      %p129 = scmp.ne.s32.totalorder %s124, %s126
      %p130 = scmp.eq.s32.totalorder %s32, 0
      %p131 = por %p129, %p130
      %p132 = scmp.ne.s32.totalorder %s124, %s126
      %p133 = scmp.eq.s32.totalorder %s37, 1
      %p134 = por %p132, %p133
      %p135 = scmp.ne.s32.totalorder %s126, %s127
      %p136 = scmp.eq.s32.totalorder %s37, 0
      %p137 = por %p135, %p136
      %p138 = scmp.ne.s32.totalorder %s126, %s127
      %p139 = scmp.eq.s32.totalorder %s38, 1
      %p140 = por %p138, %p139
      %p142 = scmp.ne.s32.totalorder %s127, %s141
      %p143 = scmp.eq.s32.totalorder %s38, 0
      %p144 = por %p142, %p143
      %s146 = sadd.s32 %s145, 1
      %p149 = scmp.eq.s32.totalorder %s32, 1
      %p150 = scmp.ne.s32.totalorder %s145, %s147
      %p151 = scmp.eq.s32.totalorder %s32, 0
      %p152 = por %p150, %p151
      %p153 = scmp.ne.s32.totalorder %s145, %s147
      %p154 = scmp.eq.s32.totalorder %s37, 1
      %p155 = por %p153, %p154
      %p156 = scmp.ne.s32.totalorder %s147, %s148
      %p157 = scmp.eq.s32.totalorder %s37, 0
      %p158 = por %p156, %p157
      %p159 = scmp.ne.s32.totalorder %s147, %s148
      %p160 = scmp.eq.s32.totalorder %s38, 1
      %p161 = por %p159, %p160
      %p163 = scmp.ne.s32.totalorder %s148, %s162
      %p164 = scmp.eq.s32.totalorder %s38, 0
      %p165 = por %p163, %p164
      %s167 = sadd.s32 %s166, 1
      %p170 = scmp.eq.s32.totalorder %s32, 1
      %p171 = scmp.ne.s32.totalorder %s166, %s168
      %p172 = scmp.eq.s32.totalorder %s32, 0
      %p173 = por %p171, %p172
      %p174 = scmp.ne.s32.totalorder %s166, %s168
      %p175 = scmp.eq.s32.totalorder %s37, 1
      %p176 = por %p174, %p175
      %p177 = scmp.ne.s32.totalorder %s168, %s169
      %p178 = scmp.eq.s32.totalorder %s37, 0
      %p179 = por %p177, %p178
      %p180 = scmp.ne.s32.totalorder %s168, %s169
      %p181 = scmp.eq.s32.totalorder %s38, 1
      %p182 = por %p180, %p181
      %p184 = scmp.ne.s32.totalorder %s169, %s183
      %p185 = scmp.eq.s32.totalorder %s38, 0
      %p186 = por %p184, %p185
      %s188 = sadd.s32 %s187, 1
      %p191 = scmp.eq.s32.totalorder %s32, 1
      %p192 = scmp.ne.s32.totalorder %s187, %s189
      %p193 = scmp.eq.s32.totalorder %s32, 0
      %p194 = por %p192, %p193
      %p195 = scmp.ne.s32.totalorder %s187, %s189
      %p196 = scmp.eq.s32.totalorder %s37, 1
      %p197 = por %p195, %p196
      %p198 = scmp.ne.s32.totalorder %s189, %s190
      %p199 = scmp.eq.s32.totalorder %s37, 0
      %p200 = por %p198, %p199
      %p201 = scmp.ne.s32.totalorder %s189, %s190
      %p202 = scmp.eq.s32.totalorder %s38, 1
      %p203 = por %p201, %p202
      %p205 = scmp.ne.s32.totalorder %s190, %s204
      %p206 = scmp.eq.s32.totalorder %s38, 0
      %p207 = por %p205, %p206
      %s208 = ssub.s32 %s32, %s39
      %p209 = scmp.eq.s32.totalorder %s208, 0
      %s211 = sadd.s32 %s210, 1
      %s212 = scalar_select %p209, %s210, %s211
      %p215 = pneg %p209
      %p216 = scmp.eq.s32.totalorder %s32, 1
      %p217 = por %p215, %p216
      %p218 = scmp.ne.s32.totalorder %s210, %s213
      %p219 = scmp.eq.s32.totalorder %s32, 0
      %p220 = por %p218, %p219
      %p221 = scmp.ne.s32.totalorder %s210, %s213
      %p222 = scmp.eq.s32.totalorder %s37, 1
      %p223 = por %p221, %p222
      %p224 = scmp.ne.s32.totalorder %s213, %s214
      %p225 = scmp.eq.s32.totalorder %s37, 0
      %p226 = por %p224, %p225
      %p227 = scmp.ne.s32.totalorder %s213, %s214
      %p228 = scmp.eq.s32.totalorder %s38, 1
      %p229 = por %p227, %p228
      %p231 = scmp.ne.s32.totalorder %s214, %s230
      %p232 = scmp.eq.s32.totalorder %s38, 0
      %p233 = por %p231, %p232
      %s234 = ssub.s32 %s32, %s39
      %p235 = scmp.eq.s32.totalorder %s234, 0
      %s237 = sadd.s32 %s236, 1
      %s238 = scalar_select %p235, %s236, %s237
      %p241 = pneg %p235
      %p242 = scmp.eq.s32.totalorder %s32, 1
      %p243 = por %p241, %p242
      %p244 = scmp.ne.s32.totalorder %s236, %s239
      %p245 = scmp.eq.s32.totalorder %s32, 0
      %p246 = por %p244, %p245
      %p247 = scmp.ne.s32.totalorder %s236, %s239
      %p248 = scmp.eq.s32.totalorder %s37, 1
      %p249 = por %p247, %p248
      %p250 = scmp.ne.s32.totalorder %s239, %s240
      %p251 = scmp.eq.s32.totalorder %s37, 0
      %p252 = por %p250, %p251
      %p253 = scmp.ne.s32.totalorder %s239, %s240
      %p254 = scmp.eq.s32.totalorder %s38, 1
      %p255 = por %p253, %p254
      %p257 = scmp.ne.s32.totalorder %s240, %s256
      %p258 = scmp.eq.s32.totalorder %s38, 0
      %p259 = por %p257, %p258
      %s260 = ssub.s32 %s32, %s39
      %p261 = scmp.eq.s32.totalorder %s260, 0
      %s263 = sadd.s32 %s262, 1
      %s264 = scalar_select %p261, %s262, %s263
      %p267 = pneg %p261
      %p268 = scmp.eq.s32.totalorder %s32, 1
      %p269 = por %p267, %p268
      %p270 = scmp.ne.s32.totalorder %s262, %s265
      %p271 = scmp.eq.s32.totalorder %s32, 0
      %p272 = por %p270, %p271
      %p273 = scmp.ne.s32.totalorder %s262, %s265
      %p274 = scmp.eq.s32.totalorder %s37, 1
      %p275 = por %p273, %p274
      %p276 = scmp.ne.s32.totalorder %s265, %s266
      %p277 = scmp.eq.s32.totalorder %s37, 0
      %p278 = por %p276, %p277
      %p279 = scmp.ne.s32.totalorder %s265, %s266
      %p280 = scmp.eq.s32.totalorder %s38, 1
      %p281 = por %p279, %p280
      %p283 = scmp.ne.s32.totalorder %s266, %s282
      %p284 = scmp.eq.s32.totalorder %s38, 0
      %p285 = por %p283, %p284
      %s286 = ssub.s32 %s32, %s39
      %p287 = scmp.eq.s32.totalorder %s286, 0
      %s289 = sadd.s32 %s288, 1
      %s290 = scalar_select %p287, %s288, %s289
      %p293 = pneg %p287
      %p294 = scmp.eq.s32.totalorder %s32, 1
      %p295 = por %p293, %p294
      %p296 = scmp.ne.s32.totalorder %s288, %s291
      %p297 = scmp.eq.s32.totalorder %s32, 0
      %p298 = por %p296, %p297
      %p299 = scmp.ne.s32.totalorder %s288, %s291
      %p300 = scmp.eq.s32.totalorder %s37, 1
      %p301 = por %p299, %p300
      %p302 = scmp.ne.s32.totalorder %s291, %s292
      %p303 = scmp.eq.s32.totalorder %s37, 0
      %p304 = por %p302, %p303
      %p305 = scmp.ne.s32.totalorder %s291, %s292
      %p306 = scmp.eq.s32.totalorder %s38, 1
      %p307 = por %p305, %p306
      %p309 = scmp.ne.s32.totalorder %s292, %s308
      %p310 = scmp.eq.s32.totalorder %s38, 0
      %p311 = por %p309, %p310
      %s312 = ssub.s32 %s32, %s39
      %p313 = scmp.eq.s32.totalorder %s312, 0
      %s315 = sadd.s32 %s314, 1
      %s316 = scalar_select %p313, %s314, %s315
      %p319 = pneg %p313
      %p320 = scmp.eq.s32.totalorder %s32, 1
      %p321 = por %p319, %p320
      %p322 = scmp.ne.s32.totalorder %s314, %s317
      %p323 = scmp.eq.s32.totalorder %s32, 0
      %p324 = por %p322, %p323
      %p325 = scmp.ne.s32.totalorder %s314, %s317
      %p326 = scmp.eq.s32.totalorder %s37, 1
      %p327 = por %p325, %p326
      %p328 = scmp.ne.s32.totalorder %s317, %s318
      %p329 = scmp.eq.s32.totalorder %s37, 0
      %p330 = por %p328, %p329
      %p331 = scmp.ne.s32.totalorder %s317, %s318
      %p332 = scmp.eq.s32.totalorder %s38, 1
      %p333 = por %p331, %p332
      %p335 = scmp.ne.s32.totalorder %s318, %s334
      %p336 = scmp.eq.s32.totalorder %s38, 0
      %p337 = por %p335, %p336
      %s338 = ssub.s32 %s32, %s39
      %p339 = scmp.eq.s32.totalorder %s338, 0
      %s341 = sadd.s32 %s340, 1
      %s342 = scalar_select %p339, %s340, %s341
      %p345 = pneg %p339
      %p346 = scmp.eq.s32.totalorder %s32, 1
      %p347 = por %p345, %p346
      %p348 = scmp.ne.s32.totalorder %s340, %s343
      %p349 = scmp.eq.s32.totalorder %s32, 0
      %p350 = por %p348, %p349
      %p351 = scmp.ne.s32.totalorder %s340, %s343
      %p352 = scmp.eq.s32.totalorder %s37, 1
      %p353 = por %p351, %p352
      %p354 = scmp.ne.s32.totalorder %s343, %s344
      %p355 = scmp.eq.s32.totalorder %s37, 0
      %p356 = por %p354, %p355
      %p357 = scmp.ne.s32.totalorder %s343, %s344
      %p358 = scmp.eq.s32.totalorder %s38, 1
      %p359 = por %p357, %p358
      %p361 = scmp.ne.s32.totalorder %s344, %s360
      %p362 = scmp.eq.s32.totalorder %s38, 0
      %p363 = por %p361, %p362
      %s364 = ssub.s32 %s32, %s39
      %p365 = scmp.eq.s32.totalorder %s364, 0
      %s367 = sadd.s32 %s366, 1
      %s368 = scalar_select %p365, %s366, %s367
      %p371 = pneg %p365
      %p372 = scmp.eq.s32.totalorder %s32, 1
      %p373 = por %p371, %p372
      %p374 = scmp.ne.s32.totalorder %s366, %s369
      %p375 = scmp.eq.s32.totalorder %s32, 0
      %p376 = por %p374, %p375
      %p377 = scmp.ne.s32.totalorder %s366, %s369
      %p378 = scmp.eq.s32.totalorder %s37, 1
      %p379 = por %p377, %p378
      %p380 = scmp.ne.s32.totalorder %s369, %s370
      %p381 = scmp.eq.s32.totalorder %s37, 0
      %p382 = por %p380, %p381
      %p383 = scmp.ne.s32.totalorder %s369, %s370
      %p384 = scmp.eq.s32.totalorder %s38, 1
      %p385 = por %p383, %p384
      %p387 = scmp.ne.s32.totalorder %s370, %s386
      %p388 = scmp.eq.s32.totalorder %s38, 0
      %p389 = por %p387, %p388
      %s390 = ssub.s32 %s32, %s39
      %p391 = scmp.eq.s32.totalorder %s390, 0
      %s393 = sadd.s32 %s392, 1
      %s394 = scalar_select %p391, %s392, %s393
      %p397 = pneg %p391
      %p398 = scmp.eq.s32.totalorder %s32, 1
      %p399 = por %p397, %p398
      %p400 = scmp.ne.s32.totalorder %s392, %s395
      %p401 = scmp.eq.s32.totalorder %s32, 0
      %p402 = por %p400, %p401
      %p403 = scmp.ne.s32.totalorder %s392, %s395
      %p404 = scmp.eq.s32.totalorder %s37, 1
      %p405 = por %p403, %p404
      %p406 = scmp.ne.s32.totalorder %s395, %s396
      %p407 = scmp.eq.s32.totalorder %s37, 0
      %p408 = por %p406, %p407
      %p409 = scmp.ne.s32.totalorder %s395, %s396
      %p410 = scmp.eq.s32.totalorder %s38, 1
      %p411 = por %p409, %p410
      %p413 = scmp.ne.s32.totalorder %s396, %s412
      %p414 = scmp.eq.s32.totalorder %s38, 0
      %p415 = por %p413, %p414
      %s416 = ssub.s32 %s32, %s39
      %p417 = scmp.eq.s32.totalorder %s416, 0
      %s419 = sadd.s32 %s418, 1
      %s420 = scalar_select %p417, %s418, %s419
      %p423 = pneg %p417
      %p424 = scmp.eq.s32.totalorder %s32, 1
      %p425 = por %p423, %p424
      %p426 = scmp.ne.s32.totalorder %s418, %s421
      %p427 = scmp.eq.s32.totalorder %s32, 0
      %p428 = por %p426, %p427
      %p429 = scmp.ne.s32.totalorder %s418, %s421
      %p430 = scmp.eq.s32.totalorder %s37, 1
      %p431 = por %p429, %p430
      %p432 = scmp.ne.s32.totalorder %s421, %s422
      %p433 = scmp.eq.s32.totalorder %s37, 0
      %p434 = por %p432, %p433
      %p435 = scmp.ne.s32.totalorder %s421, %s422
      %p436 = scmp.eq.s32.totalorder %s38, 1
      %p437 = por %p435, %p436
      %p439 = scmp.ne.s32.totalorder %s422, %s438
      %p440 = scmp.eq.s32.totalorder %s38, 0
      %p441 = por %p439, %p440
      %s442 = ssub.s32 %s32, %s39
      %p443 = scmp.eq.s32.totalorder %s442, 0
      %s445 = sadd.s32 %s444, 1
      %s446 = scalar_select %p443, %s444, %s445
      %p449 = pneg %p443
      %p450 = scmp.eq.s32.totalorder %s32, 1
      %p451 = por %p449, %p450
      %p452 = scmp.ne.s32.totalorder %s444, %s447
      %p453 = scmp.eq.s32.totalorder %s32, 0
      %p454 = por %p452, %p453
      %p455 = scmp.ne.s32.totalorder %s444, %s447
      %p456 = scmp.eq.s32.totalorder %s37, 1
      %p457 = por %p455, %p456
      %p458 = scmp.ne.s32.totalorder %s447, %s448
      %p459 = scmp.eq.s32.totalorder %s37, 0
      %p460 = por %p458, %p459
      %p461 = scmp.ne.s32.totalorder %s447, %s448
      %p462 = scmp.eq.s32.totalorder %s38, 1
      %p463 = por %p461, %p462
      %p465 = scmp.ne.s32.totalorder %s448, %s464
      %p466 = scmp.eq.s32.totalorder %s38, 0
      %p467 = por %p465, %p466
      %s468 = ssub.s32 %s32, %s39
      %p469 = scmp.eq.s32.totalorder %s468, 0
      %s471 = sadd.s32 %s470, 1
      %s472 = scalar_select %p469, %s470, %s471
      %p475 = pneg %p469
      %p476 = scmp.eq.s32.totalorder %s32, 1
      %p477 = por %p475, %p476
      %p478 = scmp.ne.s32.totalorder %s470, %s473
      %p479 = scmp.eq.s32.totalorder %s32, 0
      %p480 = por %p478, %p479
      %p481 = scmp.ne.s32.totalorder %s470, %s473
      %p482 = scmp.eq.s32.totalorder %s37, 1
      %p483 = por %p481, %p482
      %p484 = scmp.ne.s32.totalorder %s473, %s474
      %p485 = scmp.eq.s32.totalorder %s37, 0
      %p486 = por %p484, %p485
      %p487 = scmp.ne.s32.totalorder %s473, %s474
      %p488 = scmp.eq.s32.totalorder %s38, 1
      %p489 = por %p487, %p488
      %p491 = scmp.ne.s32.totalorder %s474, %s490
      %p492 = scmp.eq.s32.totalorder %s38, 0
      %p493 = por %p491, %p492
      %s494 = ssub.s32 %s32, %s39
      %p495 = scmp.eq.s32.totalorder %s494, 0
      %s497 = sadd.s32 %s496, 1
      %s498 = scalar_select %p495, %s496, %s497
      %p501 = pneg %p495
      %p502 = scmp.eq.s32.totalorder %s32, 1
      %p503 = por %p501, %p502
      %p504 = scmp.ne.s32.totalorder %s496, %s499
      %p505 = scmp.eq.s32.totalorder %s32, 0
      %p506 = por %p504, %p505
      %p507 = scmp.ne.s32.totalorder %s496, %s499
      %p508 = scmp.eq.s32.totalorder %s37, 1
      %p509 = por %p507, %p508
      %p510 = scmp.ne.s32.totalorder %s499, %s500
      %p511 = scmp.eq.s32.totalorder %s37, 0
      %p512 = por %p510, %p511
      %p513 = scmp.ne.s32.totalorder %s499, %s500
      %p514 = scmp.eq.s32.totalorder %s38, 1
      %p515 = por %p513, %p514
      %p517 = scmp.ne.s32.totalorder %s500, %s516
      %p518 = scmp.eq.s32.totalorder %s38, 0
      %p519 = por %p517, %p518
      %s521 = sadd.s32 %s520, 1
      %p524 = scmp.eq.s32.totalorder %s32, 1
      %p525 = scmp.ne.s32.totalorder %s520, %s522
      %p526 = scmp.eq.s32.totalorder %s32, 0
      %p527 = por %p525, %p526
      %p528 = scmp.ne.s32.totalorder %s520, %s522
      %p529 = scmp.eq.s32.totalorder %s37, 1
      %p530 = por %p528, %p529
      %p531 = scmp.ne.s32.totalorder %s522, %s523
      %p532 = scmp.eq.s32.totalorder %s37, 0
      %p533 = por %p531, %p532
      %p534 = scmp.ne.s32.totalorder %s522, %s523
      %p535 = scmp.eq.s32.totalorder %s38, 1
      %p536 = por %p534, %p535
      %p538 = scmp.ne.s32.totalorder %s523, %s537
      %p539 = scmp.eq.s32.totalorder %s38, 0
      %p540 = por %p538, %p539
      %s542 = sadd.s32 %s541, 1
      %p545 = scmp.eq.s32.totalorder %s32, 1
      %p546 = scmp.ne.s32.totalorder %s541, %s543
      %p547 = scmp.eq.s32.totalorder %s32, 0
      %p548 = por %p546, %p547
      %p549 = scmp.ne.s32.totalorder %s541, %s543
      %p550 = scmp.eq.s32.totalorder %s37, 1
      %p551 = por %p549, %p550
      %p552 = scmp.ne.s32.totalorder %s543, %s544
      %p553 = scmp.eq.s32.totalorder %s37, 0
      %p554 = por %p552, %p553
      %p555 = scmp.ne.s32.totalorder %s543, %s544
      %p556 = scmp.eq.s32.totalorder %s38, 1
      %p557 = por %p555, %p556
      %p559 = scmp.ne.s32.totalorder %s544, %s558
      %p560 = scmp.eq.s32.totalorder %s38, 0
      %p561 = por %p559, %p560
      %s563 = sadd.s32 %s562, 1
      %p566 = scmp.eq.s32.totalorder %s32, 1
      %p567 = scmp.ne.s32.totalorder %s562, %s564
      %p568 = scmp.eq.s32.totalorder %s32, 0
      %p569 = por %p567, %p568
      %p570 = scmp.ne.s32.totalorder %s562, %s564
      %p571 = scmp.eq.s32.totalorder %s37, 1
      %p572 = por %p570, %p571
      %p573 = scmp.ne.s32.totalorder %s564, %s565
      %p574 = scmp.eq.s32.totalorder %s37, 0
      %p575 = por %p573, %p574
      %p576 = scmp.ne.s32.totalorder %s564, %s565
      %p577 = scmp.eq.s32.totalorder %s38, 1
      %p578 = por %p576, %p577
      %p580 = scmp.ne.s32.totalorder %s565, %s579
      %p581 = scmp.eq.s32.totalorder %s38, 0
      %p582 = por %p580, %p581
      %p583 = scmp.le.s32.totalorder 1, %s32
      %p584 = scmp.lt.s32.totalorder %s32, 3
      %p585 = pnand %p583, %p584
      %p586 = pneg %p585
      // Predicated region
      $region9: #{tpu_custom_call.1} parent=5 // pred_check
        _
      $region10: #{tpu_custom_call.1} parent=5 // pred_check_branch
        %588 = sbr.rel (%p585) target = $region12
      $region11: #{tpu_custom_call.1} parent=5 // pred_region
        %s589 = ssub.s32 %s32, 1
        // Predicated region
        $region13: #{tpu_custom_call.1} parent=11 // pred_check
          %p590 = pneg %p53
        $region14: #{tpu_custom_call.1} parent=11 // pred_check_branch
          %592 = sbr.rel (%p590) target = $region16
        $region15: #{tpu_custom_call.1} parent=11 // pred_region
          _
        $region16: #{tpu_custom_call.1} parent=11 // pred_fallthru
          _
        // Predicated region
        $region17: #{tpu_custom_call.1} parent=11 // pred_check
          %p593 = pneg %p74
        $region18: #{tpu_custom_call.1} parent=11 // pred_check_branch
          %595 = sbr.rel (%p593) target = $region20
        $region19: #{tpu_custom_call.1} parent=11 // pred_region
          %s597 = ssub.s32 512, 512
          %598 = vsyncadd [#allocation4], %s597
          %s599 = sshll.u32 [#allocation3], 4
          %s600 = int_to_ptr.vmem [resolvable:$true] %s599
          %605 = dma.hbm_to_vmem [thread:$0]  %s1, 512, %s600, [#allocation4], 128, 128, 8
        $region20: #{tpu_custom_call.1} parent=11 // pred_fallthru
          _
        // Predicated region
        $region21: #{tpu_custom_call.1} parent=11 // pred_check
          %p606 = pneg %p95
        $region22: #{tpu_custom_call.1} parent=11 // pred_check_branch
          %608 = sbr.rel (%p606) target = $region24
        $region23: #{tpu_custom_call.1} parent=11 // pred_region
          %s610 = ssub.s32 128, 128
          %611 = vsyncadd [#allocation6], %s610
          %s612 = sshll.u32 [#allocation5], 4
          %s613 = int_to_ptr.vmem [resolvable:$true] %s612
          %618 = dma.hbm_to_vmem [thread:$0]  %s2, 128, %s613, [#allocation6], 64, 64, 4
        $region24: #{tpu_custom_call.1} parent=11 // pred_fallthru
          _
        // Predicated region
        $region25: #{tpu_custom_call.1} parent=11 // pred_check
          %p619 = pneg %p116
        $region26: #{tpu_custom_call.1} parent=11 // pred_check_branch
          %621 = sbr.rel (%p619) target = $region28
        $region27: #{tpu_custom_call.1} parent=11 // pred_region
          _
        $region28: #{tpu_custom_call.1} parent=11 // pred_fallthru
          _
        // Predicated region
        $region29: #{tpu_custom_call.1} parent=11 // pred_check
          %p622 = pneg %p137
        $region30: #{tpu_custom_call.1} parent=11 // pred_check_branch
          %624 = sbr.rel (%p622) target = $region32
        $region31: #{tpu_custom_call.1} parent=11 // pred_region
          %s626 = ssub.s32 128, 128
          %627 = vsyncadd [#allocation6], %s626
          %s628 = sshll.u32 [#allocation7], 4
          %s629 = int_to_ptr.vmem [resolvable:$true] %s628
          %634 = dma.hbm_to_vmem [thread:$0]  %s4, 128, %s629, [#allocation6], 64, 64, 4
        $region32: #{tpu_custom_call.1} parent=11 // pred_fallthru
          _
        // Predicated region
        $region33: #{tpu_custom_call.1} parent=11 // pred_check
          %p635 = pneg %p158
        $region34: #{tpu_custom_call.1} parent=11 // pred_check_branch
          %637 = sbr.rel (%p635) target = $region36
        $region35: #{tpu_custom_call.1} parent=11 // pred_region
          %s639 = ssub.s32 16, 16
          %640 = vsyncadd [#allocation9], %s639
          %s642 = sshll.u32 [#allocation8], 4
          %s643 = int_to_ptr.vmem [resolvable:$true] %s642
          %645 = dma.hbm_to_vmem [thread:$0]  %s5, 16, %s643, [#allocation9]
        $region36: #{tpu_custom_call.1} parent=11 // pred_fallthru
          _
        // Predicated region
        $region37: #{tpu_custom_call.1} parent=11 // pred_check
          %p646 = pneg %p179
        $region38: #{tpu_custom_call.1} parent=11 // pred_check_branch
          %648 = sbr.rel (%p646) target = $region40
        $region39: #{tpu_custom_call.1} parent=11 // pred_region
          %s650 = ssub.s32 32, 32
          %651 = vsyncadd [#allocation9], %s650
          %s652 = sshll.u32 [#allocation10], 4
          %s653 = int_to_ptr.vmem [resolvable:$true] %s652
          %658 = dma.hbm_to_vmem [thread:$0]  %s6, 32, %s653, [#allocation9], 16, 16, 1
        $region40: #{tpu_custom_call.1} parent=11 // pred_fallthru
          _
        // Predicated region
        $region41: #{tpu_custom_call.1} parent=11 // pred_check
          %p659 = pneg %p200
        $region42: #{tpu_custom_call.1} parent=11 // pred_check_branch
          %661 = sbr.rel (%p659) target = $region44
        $region43: #{tpu_custom_call.1} parent=11 // pred_region
          %s663 = ssub.s32 16, 16
          %664 = vsyncadd [#allocation12], %s663
          %s666 = sshll.u32 [#allocation11], 4
          %s667 = int_to_ptr.vmem [resolvable:$true] %s666
          %669 = dma.hbm_to_vmem [thread:$0]  %s7, 16, %s667, [#allocation12]
        $region44: #{tpu_custom_call.1} parent=11 // pred_fallthru
          _
        // Predicated region
        $region45: #{tpu_custom_call.1} parent=11 // pred_check
          %p670 = pneg %p533
        $region46: #{tpu_custom_call.1} parent=11 // pred_check_branch
          %672 = sbr.rel (%p670) target = $region48
        $region47: #{tpu_custom_call.1} parent=11 // pred_region
          _
        $region48: #{tpu_custom_call.1} parent=11 // pred_fallthru
          _
        // Predicated region
        $region49: #{tpu_custom_call.1} parent=11 // pred_check
          %p673 = pneg %p554
        $region50: #{tpu_custom_call.1} parent=11 // pred_check_branch
          %675 = sbr.rel (%p673) target = $region52
        $region51: #{tpu_custom_call.1} parent=11 // pred_region
          _
        $region52: #{tpu_custom_call.1} parent=11 // pred_fallthru
          _
      $region12: #{tpu_custom_call.1} parent=5 // pred_fallthru
        _
      %p676 = scmp.lt.s32.totalorder %s32, 2
      // Predicated region
      $region53: #{tpu_custom_call.1} parent=5 // pred_check
        %p677 = pneg %p676
      $region54: #{tpu_custom_call.1} parent=5 // pred_check_branch
        %679 = sbr.rel (%p677) target = $region56
      $region55: #{tpu_custom_call.1} parent=5 // pred_region
        // Predicated region
        $region57: #{tpu_custom_call.1} parent=55 // pred_check
          %p680 = pneg %p220
        $region58: #{tpu_custom_call.1} parent=55 // pred_check_branch
          %682 = sbr.rel (%p680) target = $region60
        $region59: #{tpu_custom_call.1} parent=55 // pred_region
          %s683 = sand.u32 %s32, 1
          %s684 = scalar_lea.sflag [#allocation4], %s683
          %s685 = sand.u32 %s210, 1
          %s686 = smul.addr %s685, 192
          %s687 = scalar_lea.vmem [#allocation13], %s686
          %s689 = ssub.s32 3072, 3072
          %690 = vsyncadd %s684, %s689
          %s691 = smul.addr %s32, 48
          %s692 = smul.addr %s691, 64
          %s693 = scalar_lea.hbm %s8, %s692
          %s694 = sshll.u32 %s687, 4
          %s695 = int_to_ptr.vmem [resolvable:$true] %s694
          %700 = dma.hbm_to_vmem [thread:$0]  %s693, 3072, %s695, %s684, 192, 192, 12
        $region60: #{tpu_custom_call.1} parent=55 // pred_fallthru
          _
        // Predicated region
        $region61: #{tpu_custom_call.1} parent=55 // pred_check
          %p701 = pneg %p246
        $region62: #{tpu_custom_call.1} parent=55 // pred_check_branch
          %703 = sbr.rel (%p701) target = $region64
        $region63: #{tpu_custom_call.1} parent=55 // pred_region
          %s704 = sand.u32 %s32, 1
          %s705 = scalar_lea.sflag [#allocation4], %s704
          %s706 = sand.u32 %s236, 1
          %s707 = smul.addr %s706, 3
          %s708 = scalar_lea.vmem [#allocation14], %s707
          %s710 = ssub.s32 48, 48
          %711 = vsyncadd %s705, %s710
          %s712 = smul.addr %s32, 3
          %s713 = smul.addr %s712, 16
          %s714 = scalar_lea.hbm %s9, %s713
          %s716 = sshll.u32 %s708, 4
          %s717 = int_to_ptr.vmem [resolvable:$true] %s716
          %719 = dma.hbm_to_vmem [thread:$0]  %s714, 48, %s717, %s705
        $region64: #{tpu_custom_call.1} parent=55 // pred_fallthru
          _
        // Predicated region
        $region65: #{tpu_custom_call.1} parent=55 // pred_check
          %p720 = pneg %p272
        $region66: #{tpu_custom_call.1} parent=55 // pred_check_branch
          %722 = sbr.rel (%p720) target = $region68
        $region67: #{tpu_custom_call.1} parent=55 // pred_region
          %p723 = scmp.lt.s32.totalorder %s32, 1
          %s724 = scalar_select %p723, %s32, 1
          %s725 = smul.addr %s724, 16
          %s726 = smul.addr %s725, 4
          %s727 = scalar_lea.vmem %s10, %s726
        $region68: #{tpu_custom_call.1} parent=55 // pred_fallthru
          _
        // Predicated region
        $region69: #{tpu_custom_call.1} parent=55 // pred_check
          %p728 = pneg %p298
        $region70: #{tpu_custom_call.1} parent=55 // pred_check_branch
          %730 = sbr.rel (%p728) target = $region72
        $region71: #{tpu_custom_call.1} parent=55 // pred_region
          %s731 = sand.u32 %s32, 1
          %s732 = scalar_lea.sflag [#allocation4], %s731
          %s733 = sand.u32 %s288, 1
          %s734 = scalar_lea.vmem [#allocation15], %s733
          %s736 = ssub.s32 16, 16
          %737 = vsyncadd %s732, %s736
          %s738 = smul.addr %s32, 16
          %s739 = scalar_lea.hbm %s11, %s738
          %s741 = sshll.u32 %s734, 4
          %s742 = int_to_ptr.vmem [resolvable:$true] %s741
          %744 = dma.hbm_to_vmem [thread:$0]  %s739, 16, %s742, %s732
        $region72: #{tpu_custom_call.1} parent=55 // pred_fallthru
          _
        // Predicated region
        $region73: #{tpu_custom_call.1} parent=55 // pred_check
          %p745 = pneg %p324
        $region74: #{tpu_custom_call.1} parent=55 // pred_check_branch
          %747 = sbr.rel (%p745) target = $region76
        $region75: #{tpu_custom_call.1} parent=55 // pred_region
          %s748 = sand.u32 %s32, 1
          %s749 = scalar_lea.sflag [#allocation4], %s748
          %s750 = sand.u32 %s314, 1
          %s751 = scalar_lea.vmem [#allocation16], %s750
          %s753 = ssub.s32 16, 16
          %754 = vsyncadd %s749, %s753
          %s755 = smul.addr %s32, 16
          %s756 = scalar_lea.hbm %s12, %s755
          %s758 = sshll.u32 %s751, 4
          %s759 = int_to_ptr.vmem [resolvable:$true] %s758
          %761 = dma.hbm_to_vmem [thread:$0]  %s756, 16, %s759, %s749
        $region76: #{tpu_custom_call.1} parent=55 // pred_fallthru
          _
        // Predicated region
        $region77: #{tpu_custom_call.1} parent=55 // pred_check
          %p762 = pneg %p350
        $region78: #{tpu_custom_call.1} parent=55 // pred_check_branch
          %764 = sbr.rel (%p762) target = $region80
        $region79: #{tpu_custom_call.1} parent=55 // pred_region
          %s765 = sand.u32 %s32, 1
          %s766 = scalar_lea.sflag [#allocation4], %s765
          %s767 = sand.u32 %s340, 1
          %s768 = scalar_lea.vmem [#allocation17], %s767
          %s770 = ssub.s32 16, 16
          %771 = vsyncadd %s766, %s770
          %s772 = smul.addr %s32, 16
          %s773 = scalar_lea.hbm %s13, %s772
          %s775 = sshll.u32 %s768, 4
          %s776 = int_to_ptr.vmem [resolvable:$true] %s775
          %778 = dma.hbm_to_vmem [thread:$0]  %s773, 16, %s776, %s766
        $region80: #{tpu_custom_call.1} parent=55 // pred_fallthru
          _
        // Predicated region
        $region81: #{tpu_custom_call.1} parent=55 // pred_check
          %p779 = pneg %p376
        $region82: #{tpu_custom_call.1} parent=55 // pred_check_branch
          %781 = sbr.rel (%p779) target = $region84
        $region83: #{tpu_custom_call.1} parent=55 // pred_region
          %s782 = sand.u32 %s32, 1
          %s783 = scalar_lea.sflag [#allocation4], %s782
          %s784 = sand.u32 %s366, 1
          %s785 = smul.addr %s784, 1024
          %s786 = scalar_lea.vmem [#allocation18], %s785
          %s788 = ssub.s32 16384, 16384
          %789 = vsyncadd %s783, %s788
          %s790 = smul.addr %s32, 256
          %s791 = smul.addr %s790, 64
          %s792 = scalar_lea.hbm %s14, %s791
          %s793 = sshll.u32 %s786, 4
          %s794 = int_to_ptr.vmem [resolvable:$true] %s793
          %799 = dma.hbm_to_vmem [thread:$0]  %s792, 16384, %s794, %s783, 1024, 1024, 64
        $region84: #{tpu_custom_call.1} parent=55 // pred_fallthru
          _
        // Predicated region
        $region85: #{tpu_custom_call.1} parent=55 // pred_check
          %p800 = pneg %p402
        $region86: #{tpu_custom_call.1} parent=55 // pred_check_branch
          %802 = sbr.rel (%p800) target = $region88
        $region87: #{tpu_custom_call.1} parent=55 // pred_region
          %p803 = scmp.lt.s32.totalorder %s32, 1
          %s804 = scalar_select %p803, %s32, 1
          %s805 = smul.addr %s804, 16
          %s806 = scalar_lea.vmem %s15, %s805
        $region88: #{tpu_custom_call.1} parent=55 // pred_fallthru
          _
        // Predicated region
        $region89: #{tpu_custom_call.1} parent=55 // pred_check
          %p807 = pneg %p428
        $region90: #{tpu_custom_call.1} parent=55 // pred_check_branch
          %809 = sbr.rel (%p807) target = $region92
        $region91: #{tpu_custom_call.1} parent=55 // pred_region
          %s810 = sand.u32 %s32, 1
          %s811 = scalar_lea.sflag [#allocation4], %s810
          %s812 = sand.u32 %s418, 1
          %s813 = smul.addr %s812, 1024
          %s814 = scalar_lea.vmem [#allocation19], %s813
          %s816 = ssub.s32 16384, 16384
          %817 = vsyncadd %s811, %s816
          %s818 = smul.addr %s32, 256
          %s819 = smul.addr %s818, 64
          %s820 = scalar_lea.hbm %s16, %s819
          %s821 = sshll.u32 %s814, 4
          %s822 = int_to_ptr.vmem [resolvable:$true] %s821
          %827 = dma.hbm_to_vmem [thread:$0]  %s820, 16384, %s822, %s811, 64, 64, 4
        $region92: #{tpu_custom_call.1} parent=55 // pred_fallthru
          _
        // Predicated region
        $region93: #{tpu_custom_call.1} parent=55 // pred_check
          %p828 = pneg %p454
        $region94: #{tpu_custom_call.1} parent=55 // pred_check_branch
          %830 = sbr.rel (%p828) target = $region96
        $region95: #{tpu_custom_call.1} parent=55 // pred_region
          %p831 = scmp.lt.s32.totalorder %s32, 1
          %s832 = scalar_select %p831, %s32, 1
          %s833 = scalar_lea.vmem %s17, %s832
        $region96: #{tpu_custom_call.1} parent=55 // pred_fallthru
          _
        // Predicated region
        $region97: #{tpu_custom_call.1} parent=55 // pred_check
          %p834 = pneg %p480
        $region98: #{tpu_custom_call.1} parent=55 // pred_check_branch
          %836 = sbr.rel (%p834) target = $region100
        $region99: #{tpu_custom_call.1} parent=55 // pred_region
          %p837 = scmp.lt.s32.totalorder %s32, 1
          %s838 = scalar_select %p837, %s32, 1
          %s839 = scalar_lea.vmem %s18, %s838
        $region100: #{tpu_custom_call.1} parent=55 // pred_fallthru
          _
        // Predicated region
        $region101: #{tpu_custom_call.1} parent=55 // pred_check
          %p840 = pneg %p506
        $region102: #{tpu_custom_call.1} parent=55 // pred_check_branch
          %842 = sbr.rel (%p840) target = $region104
        $region103: #{tpu_custom_call.1} parent=55 // pred_region
          %p843 = scmp.lt.s32.totalorder %s32, 1
          %s844 = scalar_select %p843, %s32, 1
          %s845 = scalar_lea.vmem %s19, %s844
        $region104: #{tpu_custom_call.1} parent=55 // pred_fallthru
          _
      $region56: #{tpu_custom_call.1} parent=5 // pred_fallthru
        _
      %p846 = scmp.le.s32.totalorder 1, %s32
      %p847 = scmp.lt.s32.totalorder %s32, 3
      %p848 = pnand %p846, %p847
      %p849 = pneg %p848
      // Predicated region
      $region105: #{tpu_custom_call.1} parent=5 // pred_check
        _
      $region106: #{tpu_custom_call.1} parent=5 // pred_check_branch
        %851 = sbr.rel (%p848) target = $region108
      $region107: #{tpu_custom_call.1} parent=5 // pred_region
        %s852 = ssub.s32 %s32, 1
        // Predicated region
        $region109: #{tpu_custom_call.1} parent=107 // pred_check
          %p853 = pneg %p74
        $region110: #{tpu_custom_call.1} parent=107 // pred_check_branch
          %855 = sbr.rel (%p853) target = $region112
        $region111: #{tpu_custom_call.1} parent=107 // pred_region
          %856 = dma.done [#allocation4], 512
        $region112: #{tpu_custom_call.1} parent=107 // pred_fallthru
          _
        // Predicated region
        $region113: #{tpu_custom_call.1} parent=107 // pred_check
          %p857 = pneg %p95
        $region114: #{tpu_custom_call.1} parent=107 // pred_check_branch
          %859 = sbr.rel (%p857) target = $region116
        $region115: #{tpu_custom_call.1} parent=107 // pred_region
          %860 = dma.done [#allocation6], 128
        $region116: #{tpu_custom_call.1} parent=107 // pred_fallthru
          _
        // Predicated region
        $region117: #{tpu_custom_call.1} parent=107 // pred_check
          %p861 = pneg %p137
        $region118: #{tpu_custom_call.1} parent=107 // pred_check_branch
          %863 = sbr.rel (%p861) target = $region120
        $region119: #{tpu_custom_call.1} parent=107 // pred_region
          %864 = dma.done [#allocation6], 128
        $region120: #{tpu_custom_call.1} parent=107 // pred_fallthru
          _
        // Predicated region
        $region121: #{tpu_custom_call.1} parent=107 // pred_check
          %p865 = pneg %p158
        $region122: #{tpu_custom_call.1} parent=107 // pred_check_branch
          %867 = sbr.rel (%p865) target = $region124
        $region123: #{tpu_custom_call.1} parent=107 // pred_region
          %868 = dma.done [#allocation9], 16
        $region124: #{tpu_custom_call.1} parent=107 // pred_fallthru
          _
        // Predicated region
        $region125: #{tpu_custom_call.1} parent=107 // pred_check
          %p869 = pneg %p179
        $region126: #{tpu_custom_call.1} parent=107 // pred_check_branch
          %871 = sbr.rel (%p869) target = $region128
        $region127: #{tpu_custom_call.1} parent=107 // pred_region
          %872 = dma.done [#allocation9], 32
        $region128: #{tpu_custom_call.1} parent=107 // pred_fallthru
          _
        // Predicated region
        $region129: #{tpu_custom_call.1} parent=107 // pred_check
          %p873 = pneg %p200
        $region130: #{tpu_custom_call.1} parent=107 // pred_check_branch
          %875 = sbr.rel (%p873) target = $region132
        $region131: #{tpu_custom_call.1} parent=107 // pred_region
          %876 = dma.done [#allocation12], 16
        $region132: #{tpu_custom_call.1} parent=107 // pred_fallthru
          _
        %s877 = sand.u32 %s37, 1
        %s878 = scalar_lea.sflag [#allocation4], %s877
        %s879 = sand.u32 %s213, 1
        %s880 = smul.addr %s879, 192
        %s881 = scalar_lea.vmem [#allocation13], %s880
        // Predicated region
        $region133: #{tpu_custom_call.1} parent=107 // pred_check
          %p882 = pneg %p226
        $region134: #{tpu_custom_call.1} parent=107 // pred_check_branch
          %884 = sbr.rel (%p882) target = $region136
        $region135: #{tpu_custom_call.1} parent=107 // pred_region
          %885 = dma.done %s878, 3072
        $region136: #{tpu_custom_call.1} parent=107 // pred_fallthru
          _
        %s886 = sand.u32 %s37, 1
        %s887 = scalar_lea.sflag [#allocation4], %s886
        %s888 = sand.u32 %s239, 1
        %s889 = smul.addr %s888, 3
        %s890 = scalar_lea.vmem [#allocation14], %s889
        // Predicated region
        $region137: #{tpu_custom_call.1} parent=107 // pred_check
          %p891 = pneg %p252
        $region138: #{tpu_custom_call.1} parent=107 // pred_check_branch
          %893 = sbr.rel (%p891) target = $region140
        $region139: #{tpu_custom_call.1} parent=107 // pred_region
          %894 = dma.done %s887, 48
        $region140: #{tpu_custom_call.1} parent=107 // pred_fallthru
          _
        %s895 = sand.u32 %s37, 1
        %s896 = scalar_lea.sflag [#allocation4], %s895
        %s897 = sand.u32 %s291, 1
        %s898 = scalar_lea.vmem [#allocation15], %s897
        // Predicated region
        $region141: #{tpu_custom_call.1} parent=107 // pred_check
          %p899 = pneg %p304
        $region142: #{tpu_custom_call.1} parent=107 // pred_check_branch
          %901 = sbr.rel (%p899) target = $region144
        $region143: #{tpu_custom_call.1} parent=107 // pred_region
          %902 = dma.done %s896, 16
        $region144: #{tpu_custom_call.1} parent=107 // pred_fallthru
          _
        %s903 = sand.u32 %s37, 1
        %s904 = scalar_lea.sflag [#allocation4], %s903
        %s905 = sand.u32 %s317, 1
        %s906 = scalar_lea.vmem [#allocation16], %s905
        // Predicated region
        $region145: #{tpu_custom_call.1} parent=107 // pred_check
          %p907 = pneg %p330
        $region146: #{tpu_custom_call.1} parent=107 // pred_check_branch
          %909 = sbr.rel (%p907) target = $region148
        $region147: #{tpu_custom_call.1} parent=107 // pred_region
          %910 = dma.done %s904, 16
        $region148: #{tpu_custom_call.1} parent=107 // pred_fallthru
          _
        %s911 = sand.u32 %s37, 1
        %s912 = scalar_lea.sflag [#allocation4], %s911
        %s913 = sand.u32 %s343, 1
        %s914 = scalar_lea.vmem [#allocation17], %s913
        // Predicated region
        $region149: #{tpu_custom_call.1} parent=107 // pred_check
          %p915 = pneg %p356
        $region150: #{tpu_custom_call.1} parent=107 // pred_check_branch
          %917 = sbr.rel (%p915) target = $region152
        $region151: #{tpu_custom_call.1} parent=107 // pred_region
          %918 = dma.done %s912, 16
        $region152: #{tpu_custom_call.1} parent=107 // pred_fallthru
          _
        %s919 = sand.u32 %s37, 1
        %s920 = scalar_lea.sflag [#allocation4], %s919
        %s921 = sand.u32 %s369, 1
        %s922 = smul.addr %s921, 1024
        %s923 = scalar_lea.vmem [#allocation18], %s922
        // Predicated region
        $region153: #{tpu_custom_call.1} parent=107 // pred_check
          %p924 = pneg %p382
        $region154: #{tpu_custom_call.1} parent=107 // pred_check_branch
          %926 = sbr.rel (%p924) target = $region156
        $region155: #{tpu_custom_call.1} parent=107 // pred_region
          %927 = dma.done %s920, 16384
        $region156: #{tpu_custom_call.1} parent=107 // pred_fallthru
          _
        %s928 = sand.u32 %s37, 1
        %s929 = scalar_lea.sflag [#allocation4], %s928
        %s930 = sand.u32 %s421, 1
        %s931 = smul.addr %s930, 1024
        %s932 = scalar_lea.vmem [#allocation19], %s931
        // Predicated region
        $region157: #{tpu_custom_call.1} parent=107 // pred_check
          %p933 = pneg %p434
        $region158: #{tpu_custom_call.1} parent=107 // pred_check_branch
          %935 = sbr.rel (%p933) target = $region160
        $region159: #{tpu_custom_call.1} parent=107 // pred_region
          %936 = dma.done %s929, 16384
        $region160: #{tpu_custom_call.1} parent=107 // pred_fallthru
          _
        %p937 = pneg %p53
        %p938 = pneg %p50
        %p939 = pneg %p74
        %p940 = pneg %p71
        %p941 = pneg %p95
        %p942 = pneg %p92
        %p943 = pneg %p116
        %p944 = pneg %p113
        %p945 = pneg %p137
        %p946 = pneg %p134
        %p947 = pneg %p158
        %p948 = pneg %p155
        %p949 = pneg %p179
        %p950 = pneg %p176
        %p951 = pneg %p200
        %p952 = pneg %p197
        %s953 = sand.u32 %s37, 1
        %s954 = scalar_lea.sflag [#allocation4], %s953
        %s955 = sand.u32 %s213, 1
        %s956 = smul.addr %s955, 192
        %s957 = scalar_lea.vmem [#allocation13], %s956
        %p958 = pneg %p226
        %p959 = pneg %p223
        %s960 = sand.u32 %s37, 1
        %s961 = scalar_lea.sflag [#allocation4], %s960
        %s962 = sand.u32 %s239, 1
        %s963 = smul.addr %s962, 3
        %s964 = scalar_lea.vmem [#allocation14], %s963
        %p965 = pneg %p252
        %p966 = pneg %p249
        %p967 = scmp.lt.s32.totalorder %s37, 1
        %s968 = scalar_select %p967, %s37, 1
        %s969 = smul.addr %s968, 16
        %s970 = smul.addr %s969, 4
        %s971 = scalar_lea.vmem %s10, %s970
        %p972 = pneg %p278
        %p973 = pneg %p275
        %s974 = sand.u32 %s37, 1
        %s975 = scalar_lea.sflag [#allocation4], %s974
        %s976 = sand.u32 %s291, 1
        %s977 = scalar_lea.vmem [#allocation15], %s976
        %p978 = pneg %p304
        %p979 = pneg %p301
        %s980 = sand.u32 %s37, 1
        %s981 = scalar_lea.sflag [#allocation4], %s980
        %s982 = sand.u32 %s317, 1
        %s983 = scalar_lea.vmem [#allocation16], %s982
        %p984 = pneg %p330
        %p985 = pneg %p327
        %s986 = sand.u32 %s37, 1
        %s987 = scalar_lea.sflag [#allocation4], %s986
        %s988 = sand.u32 %s343, 1
        %s989 = scalar_lea.vmem [#allocation17], %s988
        %p990 = pneg %p356
        %p991 = pneg %p353
        %s992 = sand.u32 %s37, 1
        %s993 = scalar_lea.sflag [#allocation4], %s992
        %s994 = sand.u32 %s369, 1
        %s995 = smul.addr %s994, 1024
        %s996 = scalar_lea.vmem [#allocation18], %s995
        %p997 = pneg %p382
        %p998 = pneg %p379
        %p999 = scmp.lt.s32.totalorder %s37, 1
        %s1000 = scalar_select %p999, %s37, 1
        %s1001 = smul.addr %s1000, 16
        %s1002 = scalar_lea.vmem %s15, %s1001
        %p1003 = pneg %p408
        %p1004 = pneg %p405
        %s1005 = sand.u32 %s37, 1
        %s1006 = scalar_lea.sflag [#allocation4], %s1005
        %s1007 = sand.u32 %s421, 1
        %s1008 = smul.addr %s1007, 1024
        %s1009 = scalar_lea.vmem [#allocation19], %s1008
        %p1010 = pneg %p434
        %p1011 = pneg %p431
        %p1012 = scmp.lt.s32.totalorder %s37, 1
        %s1013 = scalar_select %p1012, %s37, 1
        %s1014 = scalar_lea.vmem %s17, %s1013
        %p1015 = pneg %p460
        %p1016 = pneg %p457
        %p1017 = scmp.lt.s32.totalorder %s37, 1
        %s1018 = scalar_select %p1017, %s37, 1
        %s1019 = scalar_lea.vmem %s18, %s1018
        %p1020 = pneg %p486
        %p1021 = pneg %p483
        %p1022 = scmp.lt.s32.totalorder %s37, 1
        %s1023 = scalar_select %p1022, %s37, 1
        %s1024 = scalar_lea.vmem %s19, %s1023
        %p1025 = pneg %p512
        %p1026 = pneg %p509
        %p1027 = pneg %p533
        %p1028 = pneg %p530
        %p1029 = pneg %p554
        %p1030 = pneg %p551
        %p1031 = pneg %p575
        %p1032 = pneg %p572
        %p1033 = scmp.lt.s32.totalorder %s37, 1
        %s1034 = scalar_select %p1033, %s37, 1
        %s1035 = smul.addr %s1034, 16
        %s1036 = smul.addr %s1035, 4
        %s1037 = scalar_lea.vmem %s10, %s1036
        %p1038 = scmp.lt.s32.totalorder %s37, 1
        %s1039 = scalar_select %p1038, %s37, 1
        %s1040 = smul.addr %s1039, 16
        %s1041 = scalar_lea.vmem %s15, %s1040
        %p1042 = scmp.lt.s32.totalorder %s37, 1
        %s1043 = scalar_select %p1042, %s37, 1
        %s1044 = scalar_lea.vmem %s17, %s1043
        %p1045 = scmp.lt.s32.totalorder %s37, 1
        %s1046 = scalar_select %p1045, %s37, 1
        %s1047 = scalar_lea.vmem %s18, %s1046
        %p1048 = scmp.lt.s32.totalorder %s37, 1
        %s1049 = scalar_select %p1048, %s37, 1
        %s1050 = scalar_lea.vmem %s19, %s1049
        %p1051 = scmp.eq.s32.totalorder %s37, 0
        // Predicated region
        $region161: #{tpu_custom_call.1} parent=107 // pred_check
          %p1052 = pneg %p1051
        $region162: #{tpu_custom_call.1} parent=107 // pred_check_branch
          %1054 = sbr.rel (%p1052) target = $region164
        $region163: #{tpu_custom_call.1} parent=107 // pred_region
          %v1055 = vld [vmem:[%s0] sm:$0xff]
          %v1056 = vld [vmem:[%s0 + $0x8] sm:$0xff]
          %v1057 = vld [vmem:[%s0 + $0x10] sm:$0xff]
          %v1058 = vld [vmem:[%s0 + $0x18] sm:$0xff]
          %v1059 = vld [vmem:[#allocation3] sm:$0xff]
          %v1060 = vld [vmem:[#allocation3 + $0x8] sm:$0xff]
          %v1061 = vld [vmem:[#allocation3 + $0x10] sm:$0xff]
          %v1062 = vld [vmem:[#allocation3 + $0x18] sm:$0xff]
          %v1063 = vld [vmem:[#allocation5] sm:$0xf]
          %v1064 = vld [vmem:[#allocation5 + $0x4] sm:$0xf]
          %v1065 = vunpack.c.l.bf16 %v1063
          %v1066 = vunpack.c.l.bf16 %v1064
          %v1067 = vld [vmem:[%s3] sm:$0x1]
          %v1068 = vld [vmem:[#allocation7] sm:$0xf]
          %v1069 = vld [vmem:[#allocation7 + $0x4] sm:$0xf]
          %v1070 = vunpack.c.l.bf16 %v1068
          %v1071 = vunpack.c.l.bf16 %v1069
          %v1072 = vld [vmem:[#allocation8] sm:$0x1]
          %v1073 = vld [vmem:[#allocation10] sm:$0x1]
          %v1074 = vld [vmem:[#allocation10 + $0x1] sm:$0x1]
          %v1075 = vld [vmem:[#allocation11] sm:$0x1]
          %v1077 = vlaneseq
          %v1078 = vshrl.u32 %v1077, 7
          %v1079 = vsub.s32 0, %v1078
          %v1080 = vrot.slane %v1067, %v1079
          %vm1082 = vcmask 130048
          %v1084 = vsel %vm1082, %v1055, 0
          %v1087 = vsel %vm1082, %v1056, 0
          %v1090 = vsel %vm1082, %v1057, 0
          %v1093 = vsel %vm1082, %v1058, 0
          %1095 = vmatprep.subr.mxu0 0.0
          %1096 = vmatpush1.msra.mxu0 %v1065
          %1097 = vmatprep.subr.mxu0 0.0
          %1098 = vmatpush1.msra.mxu0 %v1066
          %1099 = vmatprep.subr.mxu0 0.0
          %1100 = vmatpush1.msra.mxu0 0.0
          %1101 = vmatprep.subr.mxu0 0.0
          %1102 = vmatpush1.msra.mxu0 0.0
          %1103 = vmatprep.subr.mxu0 0.0
          %1104 = vmatpush1.msra.mxu0 0.0
          %1105 = vmatprep.subr.mxu0 0.0
          %1106 = vmatpush1.msra.mxu0 0.0
          %1107 = vmatprep.subr.mxu0 0.0
          %1108 = vmatpush1.msra.mxu0 0.0
          %1109 = vmatprep.subr.mxu0 0.0
          %1110 = vmatpush1.msra.mxu0 0.0
          %1111 = vmatprep.subr.mxu0 0.0
          %1112 = vmatpush1.msra.mxu0 0.0
          %1113 = vmatprep.subr.mxu0 0.0
          %1114 = vmatpush1.msra.mxu0 0.0
          %1115 = vmatprep.subr.mxu0 0.0
          %1116 = vmatpush1.msra.mxu0 0.0
          %1117 = vmatprep.subr.mxu0 0.0
          %1118 = vmatpush1.msra.mxu0 0.0
          %1119 = vmatprep.subr.mxu0 0.0
          %1120 = vmatpush1.msra.mxu0 0.0
          %1121 = vmatprep.subr.mxu0 0.0
          %1122 = vmatpush1.msra.mxu0 0.0
          %1123 = vmatprep.subr.mxu0 0.0
          %1124 = vmatpush1.msra.mxu0 0.0
          %1125 = vmatprep.subr.mxu0 0.0
          %1126 = vmatpush1.msra.mxu0 0.0
          %1127 = vmatprep.subr.mxu0 0.0
          %1128 = vmatpush1.msra.mxu0 0.0
          %1129 = vmatprep.subr.mxu0 0.0
          %1130 = vmatpush1.msra.mxu0 0.0
          %1131 = vmatprep.subr.mxu0 0.0
          %1132 = vmatpush1.msra.mxu0 0.0
          %1133 = vmatprep.subr.mxu0 0.0
          %1134 = vmatpush1.msra.mxu0 0.0
          %1135 = vmatprep.subr.mxu0 0.0
          %1136 = vmatpush1.msra.mxu0 0.0
          %1137 = vmatprep.subr.mxu0 0.0
          %1138 = vmatpush1.msra.mxu0 0.0
          %1139 = vmatprep.subr.mxu0 0.0
          %1140 = vmatpush1.msra.mxu0 0.0
          %1141 = vmatprep.subr.mxu0 0.0
          %1142 = vmatpush1.msra.mxu0 0.0
          %1143 = vmatprep.subr.mxu0 0.0
          %1144 = vmatpush1.msra.mxu0 0.0
          %1145 = vmatprep.subr.mxu0 0.0
          %1146 = vmatpush1.msra.mxu0 0.0
          %1147 = vmatprep.subr.mxu0 0.0
          %1148 = vmatpush1.msra.mxu0 0.0
          %1149 = vmatprep.subr.mxu0 0.0
          %1150 = vmatpush1.msra.mxu0 0.0
          %1151 = vmatprep.subr.mxu0 0.0
          %1152 = vmatpush1.msra.mxu0 0.0
          %1153 = vmatprep.subr.mxu0 0.0
          %1154 = vmatpush1.msra.mxu0 0.0
          %1155 = vmatprep.subr.mxu0 0.0
          %1156 = vmatpush1.msra.mxu0 0.0
          %1157 = vmatprep.subr.mxu0 0.0
          %1158 = vmatpush1.msra.mxu0 0.0
          %1159 = vmatprep.mubr.f32.mxu0 0.0
          %1160 = vmatmul.mubr.f32.gmra.mrb[0].mxu0 %v1084
          %v1161 = vpop.f32.mrb[0].mxu0
          %v1162 = vadd.f32 %v1080, %v1161
          %v1163 = vpop.f32.mrb[0].mxu0
          %1164 = vmatprep.mubr.f32.mxu0 0.0
          %1165 = vmatmul.mubr.f32.gmra.mrb[0].mxu0 %v1087
          %v1166 = vpop.f32.mrb[0].mxu0
          %v1167 = vadd.f32 %v1080, %v1166
          %v1168 = vpop.f32.mrb[0].mxu0
          %1169 = vmatprep.mubr.f32.mxu0 0.0
          %1170 = vmatmul.mubr.f32.gmra.mrb[0].mxu0 %v1090
          %v1171 = vpop.f32.mrb[0].mxu0
          %v1172 = vadd.f32 %v1080, %v1171
          %v1173 = vpop.f32.mrb[0].mxu0
          %1174 = vmatprep.mubr.f32.mxu0 0.0
          %1175 = vmatmul.mubr.f32.gmra.mrb[0].mxu0 %v1093
          %v1176 = vpop.f32.mrb[0].mxu0
          %v1177 = vadd.f32 %v1080, %v1176
          %v1178 = vpop.f32.mrb[0].mxu0
          %1179 = vdwg.mxu0
          %v1181 = vlaneseq
          %v1182 = vshrl.u32 %v1181, 7
          %v1183 = vsub.s32 0, %v1182
          %v1184 = vrot.slane %v1072, %v1183
          %1186 = vmatprep.subr.mxu0 0.0
          %1187 = vmatpush1.msra.mxu0 %v1070
          %1188 = vmatprep.subr.mxu0 0.0
          %1189 = vmatpush1.msra.mxu0 %v1071
          %1190 = vmatprep.subr.mxu0 0.0
          %1191 = vmatpush1.msra.mxu0 0.0
          %1192 = vmatprep.subr.mxu0 0.0
          %1193 = vmatpush1.msra.mxu0 0.0
          %1194 = vmatprep.subr.mxu0 0.0
          %1195 = vmatpush1.msra.mxu0 0.0
          %1196 = vmatprep.subr.mxu0 0.0
          %1197 = vmatpush1.msra.mxu0 0.0
          %1198 = vmatprep.subr.mxu0 0.0
          %1199 = vmatpush1.msra.mxu0 0.0
          %1200 = vmatprep.subr.mxu0 0.0
          %1201 = vmatpush1.msra.mxu0 0.0
          %1202 = vmatprep.subr.mxu0 0.0
          %1203 = vmatpush1.msra.mxu0 0.0
          %1204 = vmatprep.subr.mxu0 0.0
          %1205 = vmatpush1.msra.mxu0 0.0
          %1206 = vmatprep.subr.mxu0 0.0
          %1207 = vmatpush1.msra.mxu0 0.0
          %1208 = vmatprep.subr.mxu0 0.0
          %1209 = vmatpush1.msra.mxu0 0.0
          %1210 = vmatprep.subr.mxu0 0.0
          %1211 = vmatpush1.msra.mxu0 0.0
          %1212 = vmatprep.subr.mxu0 0.0
          %1213 = vmatpush1.msra.mxu0 0.0
          %1214 = vmatprep.subr.mxu0 0.0
          %1215 = vmatpush1.msra.mxu0 0.0
          %1216 = vmatprep.subr.mxu0 0.0
          %1217 = vmatpush1.msra.mxu0 0.0
          %1218 = vmatprep.subr.mxu0 0.0
          %1219 = vmatpush1.msra.mxu0 0.0
          %1220 = vmatprep.subr.mxu0 0.0
          %1221 = vmatpush1.msra.mxu0 0.0
          %1222 = vmatprep.subr.mxu0 0.0
          %1223 = vmatpush1.msra.mxu0 0.0
          %1224 = vmatprep.subr.mxu0 0.0
          %1225 = vmatpush1.msra.mxu0 0.0
          %1226 = vmatprep.subr.mxu0 0.0
          %1227 = vmatpush1.msra.mxu0 0.0
          %1228 = vmatprep.subr.mxu0 0.0
          %1229 = vmatpush1.msra.mxu0 0.0
          %1230 = vmatprep.subr.mxu0 0.0
          %1231 = vmatpush1.msra.mxu0 0.0
          %1232 = vmatprep.subr.mxu0 0.0
          %1233 = vmatpush1.msra.mxu0 0.0
          %1234 = vmatprep.subr.mxu0 0.0
          %1235 = vmatpush1.msra.mxu0 0.0
          %1236 = vmatprep.subr.mxu0 0.0
          %1237 = vmatpush1.msra.mxu0 0.0
          %1238 = vmatprep.subr.mxu0 0.0
          %1239 = vmatpush1.msra.mxu0 0.0
          %1240 = vmatprep.subr.mxu0 0.0
          %1241 = vmatpush1.msra.mxu0 0.0
          %1242 = vmatprep.subr.mxu0 0.0
          %1243 = vmatpush1.msra.mxu0 0.0
          %1244 = vmatprep.subr.mxu0 0.0
          %1245 = vmatpush1.msra.mxu0 0.0
          %1246 = vmatprep.subr.mxu0 0.0
          %1247 = vmatpush1.msra.mxu0 0.0
          %1248 = vmatprep.subr.mxu0 0.0
          %1249 = vmatpush1.msra.mxu0 0.0
          %1250 = vmatprep.mubr.f32.mxu0 0.0
          %1251 = vmatmul.mubr.f32.gmra.mrb[0].mxu0 %v1084
          %v1252 = vpop.f32.mrb[0].mxu0
          %v1253 = vadd.f32 %v1184, %v1252
          %v1254 = vpop.f32.mrb[0].mxu0
          %1255 = vmatprep.mubr.f32.mxu0 0.0
          %1256 = vmatmul.mubr.f32.gmra.mrb[0].mxu0 %v1087
          %v1257 = vpop.f32.mrb[0].mxu0
          %v1258 = vadd.f32 %v1184, %v1257
          %v1259 = vpop.f32.mrb[0].mxu0
          %1260 = vmatprep.mubr.f32.mxu0 0.0
          %1261 = vmatmul.mubr.f32.gmra.mrb[0].mxu0 %v1090
          %v1262 = vpop.f32.mrb[0].mxu0
          %v1263 = vadd.f32 %v1184, %v1262
          %v1264 = vpop.f32.mrb[0].mxu0
          %1265 = vmatprep.mubr.f32.mxu0 0.0
          %1266 = vmatmul.mubr.f32.gmra.mrb[0].mxu0 %v1093
          %v1267 = vpop.f32.mrb[0].mxu0
          %v1268 = vadd.f32 %v1184, %v1267
          %v1269 = vpop.f32.mrb[0].mxu0
          %1270 = vdwg.mxu0
          %v1275 = vcombine.high %v1253, %v1253
          %v1277 = vunpack.c.l.s4 1966171168
          %v1278 = vunpack.c.0.s8 %v1277
          %v1279 = vlaneseq
          %v1280 = vshrl.u32 %v1279, 7
          %v1281 = vsub.s32 %v1278, %v1280
          %v1282 = vrot.slane %v1253, %v1281
          %v1284 = vunpack.c.l.s4 1966171168
          %v1285 = vunpack.c.0.s8 %v1284
          %v1286 = vlaneseq
          %v1287 = vshrl.u32 %v1286, 7
          %v1288 = vsub.s32 %v1285, %v1287
          %v1289 = vrot.slane %v1275, %v1288
          %v1290 = vcombine.high %v1282, %v1282
          %v1291 = vcombine.high %v1289, %v1289
          %v1293 = vunpack.c.l.s4 1966171168
          %v1294 = vunpack.c.0.s8 %v1293
          %v1295 = vlaneseq
          %v1296 = vshrl.u32 %v1295, 7
          %v1297 = vsub.s32 %v1294, %v1296
          %v1298 = vrot.slane %v1282, %v1297
          %v1300 = vunpack.c.l.s4 1966171168
          %v1301 = vunpack.c.0.s8 %v1300
          %v1302 = vlaneseq
          %v1303 = vshrl.u32 %v1302, 7
          %v1304 = vsub.s32 %v1301, %v1303
          %v1305 = vrot.slane %v1289, %v1304
          %v1307 = vunpack.c.l.s4 1966171168
          %v1308 = vunpack.c.0.s8 %v1307
          %v1309 = vlaneseq
          %v1310 = vshrl.u32 %v1309, 7
          %v1311 = vsub.s32 %v1308, %v1310
          %v1312 = vrot.slane %v1290, %v1311
          %v1314 = vunpack.c.l.s4 1966171168
          %v1315 = vunpack.c.0.s8 %v1314
          %v1316 = vlaneseq
          %v1317 = vshrl.u32 %v1316, 7
          %v1318 = vsub.s32 %v1315, %v1317
          %v1319 = vrot.slane %v1291, %v1318
          %v1320 = vcombine.high %v1298, %v1298
          %v1321 = vcombine.high %v1305, %v1305
          %v1322 = vcombine.high %v1312, %v1312
          %v1323 = vcombine.high %v1319, %v1319
          %v1324 = vcombine.high %v1258, %v1258
          %v1326 = vunpack.c.l.s4 1966171168
          %v1327 = vunpack.c.0.s8 %v1326
          %v1328 = vlaneseq
          %v1329 = vshrl.u32 %v1328, 7
          %v1330 = vsub.s32 %v1327, %v1329
          %v1331 = vrot.slane %v1258, %v1330
          %v1333 = vunpack.c.l.s4 1966171168
          %v1334 = vunpack.c.0.s8 %v1333
          %v1335 = vlaneseq
          %v1336 = vshrl.u32 %v1335, 7
          %v1337 = vsub.s32 %v1334, %v1336
          %v1338 = vrot.slane %v1324, %v1337
          %v1339 = vcombine.high %v1331, %v1331
          %v1340 = vcombine.high %v1338, %v1338
          %v1342 = vunpack.c.l.s4 1966171168
          %v1343 = vunpack.c.0.s8 %v1342
          %v1344 = vlaneseq
          %v1345 = vshrl.u32 %v1344, 7
          %v1346 = vsub.s32 %v1343, %v1345
          %v1347 = vrot.slane %v1331, %v1346
          %v1349 = vunpack.c.l.s4 1966171168
          %v1350 = vunpack.c.0.s8 %v1349
          %v1351 = vlaneseq
          %v1352 = vshrl.u32 %v1351, 7
          %v1353 = vsub.s32 %v1350, %v1352
          %v1354 = vrot.slane %v1338, %v1353
          %v1356 = vunpack.c.l.s4 1966171168
          %v1357 = vunpack.c.0.s8 %v1356
          %v1358 = vlaneseq
          %v1359 = vshrl.u32 %v1358, 7
          %v1360 = vsub.s32 %v1357, %v1359
          %v1361 = vrot.slane %v1339, %v1360
          %v1363 = vunpack.c.l.s4 1966171168
          %v1364 = vunpack.c.0.s8 %v1363
          %v1365 = vlaneseq
          %v1366 = vshrl.u32 %v1365, 7
          %v1367 = vsub.s32 %v1364, %v1366
          %v1368 = vrot.slane %v1340, %v1367
          %v1369 = vcombine.high %v1347, %v1347
          %v1370 = vcombine.high %v1354, %v1354
          %v1371 = vcombine.high %v1361, %v1361
          %v1372 = vcombine.high %v1368, %v1368
          %v1373 = vcombine.high %v1263, %v1263
          %v1375 = vunpack.c.l.s4 1966171168
          %v1376 = vunpack.c.0.s8 %v1375
          %v1377 = vlaneseq
          %v1378 = vshrl.u32 %v1377, 7
          %v1379 = vsub.s32 %v1376, %v1378
          %v1380 = vrot.slane %v1263, %v1379
          %v1382 = vunpack.c.l.s4 1966171168
          %v1383 = vunpack.c.0.s8 %v1382
          %v1384 = vlaneseq
          %v1385 = vshrl.u32 %v1384, 7
          %v1386 = vsub.s32 %v1383, %v1385
          %v1387 = vrot.slane %v1373, %v1386
          %v1388 = vcombine.high %v1380, %v1380
          %v1389 = vcombine.high %v1387, %v1387
          %v1391 = vunpack.c.l.s4 1966171168
          %v1392 = vunpack.c.0.s8 %v1391
          %v1393 = vlaneseq
          %v1394 = vshrl.u32 %v1393, 7
          %v1395 = vsub.s32 %v1392, %v1394
          %v1396 = vrot.slane %v1380, %v1395
          %v1398 = vunpack.c.l.s4 1966171168
          %v1399 = vunpack.c.0.s8 %v1398
          %v1400 = vlaneseq
          %v1401 = vshrl.u32 %v1400, 7
          %v1402 = vsub.s32 %v1399, %v1401
          %v1403 = vrot.slane %v1387, %v1402
          %v1405 = vunpack.c.l.s4 1966171168
          %v1406 = vunpack.c.0.s8 %v1405
          %v1407 = vlaneseq
          %v1408 = vshrl.u32 %v1407, 7
          %v1409 = vsub.s32 %v1406, %v1408
          %v1410 = vrot.slane %v1388, %v1409
          %v1412 = vunpack.c.l.s4 1966171168
          %v1413 = vunpack.c.0.s8 %v1412
          %v1414 = vlaneseq
          %v1415 = vshrl.u32 %v1414, 7
          %v1416 = vsub.s32 %v1413, %v1415
          %v1417 = vrot.slane %v1389, %v1416
          %v1418 = vcombine.high %v1396, %v1396
          %v1419 = vcombine.high %v1403, %v1403
          %v1420 = vcombine.high %v1410, %v1410
          %v1421 = vcombine.high %v1417, %v1417
          %v1422 = vcombine.high %v1268, %v1268
          %v1424 = vunpack.c.l.s4 1966171168
          %v1425 = vunpack.c.0.s8 %v1424
          %v1426 = vlaneseq
          %v1427 = vshrl.u32 %v1426, 7
          %v1428 = vsub.s32 %v1425, %v1427
          %v1429 = vrot.slane %v1268, %v1428
          %v1431 = vunpack.c.l.s4 1966171168
          %v1432 = vunpack.c.0.s8 %v1431
          %v1433 = vlaneseq
          %v1434 = vshrl.u32 %v1433, 7
          %v1435 = vsub.s32 %v1432, %v1434
          %v1436 = vrot.slane %v1422, %v1435
          %v1437 = vcombine.high %v1429, %v1429
          %v1438 = vcombine.high %v1436, %v1436
          %v1440 = vunpack.c.l.s4 1966171168
          %v1441 = vunpack.c.0.s8 %v1440
          %v1442 = vlaneseq
          %v1443 = vshrl.u32 %v1442, 7
          %v1444 = vsub.s32 %v1441, %v1443
          %v1445 = vrot.slane %v1429, %v1444
          %v1447 = vunpack.c.l.s4 1966171168
          %v1448 = vunpack.c.0.s8 %v1447
          %v1449 = vlaneseq
          %v1450 = vshrl.u32 %v1449, 7
          %v1451 = vsub.s32 %v1448, %v1450
          %v1452 = vrot.slane %v1436, %v1451
          %v1454 = vunpack.c.l.s4 1966171168
          %v1455 = vunpack.c.0.s8 %v1454
          %v1456 = vlaneseq
          %v1457 = vshrl.u32 %v1456, 7
          %v1458 = vsub.s32 %v1455, %v1457
          %v1459 = vrot.slane %v1437, %v1458
          %v1461 = vunpack.c.l.s4 1966171168
          %v1462 = vunpack.c.0.s8 %v1461
          %v1463 = vlaneseq
          %v1464 = vshrl.u32 %v1463, 7
          %v1465 = vsub.s32 %v1462, %v1464
          %v1466 = vrot.slane %v1438, %v1465
          %v1467 = vcombine.high %v1445, %v1445
          %v1468 = vcombine.high %v1452, %v1452
          %v1469 = vcombine.high %v1459, %v1459
          %v1470 = vcombine.high %v1466, %v1466
          %v1471 = vlaneseq
          %v1472 = vshrl.u32 %v1471, 7
          %v1473 = vsub.s32 0, %v1472
          %v1474 = vrot.slane %v1298, %v1473
          %v1475 = vlaneseq
          %v1476 = vshrl.u32 %v1475, 7
          %v1477 = vsub.s32 0, %v1476
          %v1478 = vrot.slane %v1312, %v1477
          %v1479 = vlaneseq
          %v1480 = vshrl.u32 %v1479, 7
          %v1481 = vsub.s32 0, %v1480
          %v1482 = vrot.slane %v1320, %v1481
          %v1483 = vlaneseq
          %v1484 = vshrl.u32 %v1483, 7
          %v1485 = vsub.s32 0, %v1484
          %v1486 = vrot.slane %v1322, %v1485
          %v1487 = vlaneseq
          %v1488 = vshrl.u32 %v1487, 7
          %v1489 = vsub.s32 0, %v1488
          %v1490 = vrot.slane %v1305, %v1489
          %v1491 = vlaneseq
          %v1492 = vshrl.u32 %v1491, 7
          %v1493 = vsub.s32 0, %v1492
          %v1494 = vrot.slane %v1319, %v1493
          %v1495 = vlaneseq
          %v1496 = vshrl.u32 %v1495, 7
          %v1497 = vsub.s32 0, %v1496
          %v1498 = vrot.slane %v1321, %v1497
          %v1499 = vlaneseq
          %v1500 = vshrl.u32 %v1499, 7
          %v1501 = vsub.s32 0, %v1500
          %v1502 = vrot.slane %v1323, %v1501
          %v1503 = vlaneseq
          %v1504 = vshrl.u32 %v1503, 7
          %v1505 = vsub.s32 0, %v1504
          %v1506 = vrot.slane %v1347, %v1505
          %v1507 = vlaneseq
          %v1508 = vshrl.u32 %v1507, 7
          %v1509 = vsub.s32 0, %v1508
          %v1510 = vrot.slane %v1361, %v1509
          %v1511 = vlaneseq
          %v1512 = vshrl.u32 %v1511, 7
          %v1513 = vsub.s32 0, %v1512
          %v1514 = vrot.slane %v1369, %v1513
          %v1515 = vlaneseq
          %v1516 = vshrl.u32 %v1515, 7
          %v1517 = vsub.s32 0, %v1516
          %v1518 = vrot.slane %v1371, %v1517
          %v1519 = vlaneseq
          %v1520 = vshrl.u32 %v1519, 7
          %v1521 = vsub.s32 0, %v1520
          %v1522 = vrot.slane %v1354, %v1521
          %v1523 = vlaneseq
          %v1524 = vshrl.u32 %v1523, 7
          %v1525 = vsub.s32 0, %v1524
          %v1526 = vrot.slane %v1368, %v1525
          %v1527 = vlaneseq
          %v1528 = vshrl.u32 %v1527, 7
          %v1529 = vsub.s32 0, %v1528
          %v1530 = vrot.slane %v1370, %v1529
          %v1531 = vlaneseq
          %v1532 = vshrl.u32 %v1531, 7
          %v1533 = vsub.s32 0, %v1532
          %v1534 = vrot.slane %v1372, %v1533
          %v1535 = vlaneseq
          %v1536 = vshrl.u32 %v1535, 7
          %v1537 = vsub.s32 0, %v1536
          %v1538 = vrot.slane %v1396, %v1537
          %v1539 = vlaneseq
          %v1540 = vshrl.u32 %v1539, 7
          %v1541 = vsub.s32 0, %v1540
          %v1542 = vrot.slane %v1410, %v1541
          %v1543 = vlaneseq
          %v1544 = vshrl.u32 %v1543, 7
          %v1545 = vsub.s32 0, %v1544
          %v1546 = vrot.slane %v1418, %v1545
          %v1547 = vlaneseq
          %v1548 = vshrl.u32 %v1547, 7
          %v1549 = vsub.s32 0, %v1548
          %v1550 = vrot.slane %v1420, %v1549
          %v1551 = vlaneseq
          %v1552 = vshrl.u32 %v1551, 7
          %v1553 = vsub.s32 0, %v1552
          %v1554 = vrot.slane %v1403, %v1553
          %v1555 = vlaneseq
          %v1556 = vshrl.u32 %v1555, 7
          %v1557 = vsub.s32 0, %v1556
          %v1558 = vrot.slane %v1417, %v1557
          %v1559 = vlaneseq
          %v1560 = vshrl.u32 %v1559, 7
          %v1561 = vsub.s32 0, %v1560
          %v1562 = vrot.slane %v1419, %v1561
          %v1563 = vlaneseq
          %v1564 = vshrl.u32 %v1563, 7
          %v1565 = vsub.s32 0, %v1564
          %v1566 = vrot.slane %v1421, %v1565
          %v1567 = vlaneseq
          %v1568 = vshrl.u32 %v1567, 7
          %v1569 = vsub.s32 0, %v1568
          %v1570 = vrot.slane %v1445, %v1569
          %v1571 = vlaneseq
          %v1572 = vshrl.u32 %v1571, 7
          %v1573 = vsub.s32 0, %v1572
          %v1574 = vrot.slane %v1459, %v1573
          %v1575 = vlaneseq
          %v1576 = vshrl.u32 %v1575, 7
          %v1577 = vsub.s32 0, %v1576
          %v1578 = vrot.slane %v1467, %v1577
          %v1579 = vlaneseq
          %v1580 = vshrl.u32 %v1579, 7
          %v1581 = vsub.s32 0, %v1580
          %v1582 = vrot.slane %v1469, %v1581
          %v1583 = vlaneseq
          %v1584 = vshrl.u32 %v1583, 7
          %v1585 = vsub.s32 0, %v1584
          %v1586 = vrot.slane %v1452, %v1585
          %v1587 = vlaneseq
          %v1588 = vshrl.u32 %v1587, 7
          %v1589 = vsub.s32 0, %v1588
          %v1590 = vrot.slane %v1466, %v1589
          %v1591 = vlaneseq
          %v1592 = vshrl.u32 %v1591, 7
          %v1593 = vsub.s32 0, %v1592
          %v1594 = vrot.slane %v1468, %v1593
          %v1595 = vlaneseq
          %v1596 = vshrl.u32 %v1595, 7
          %v1597 = vsub.s32 0, %v1596
          %v1598 = vrot.slane %v1470, %v1597
          %v1631 = vadd.f32 %v1474, %v1162
          %v1632 = vadd.f32 %v1474, %v1167
          %v1633 = vadd.f32 %v1474, %v1172
          %v1634 = vadd.f32 %v1474, %v1177
          %v1635 = vadd.f32 %v1478, %v1162
          %v1636 = vadd.f32 %v1478, %v1167
          %v1637 = vadd.f32 %v1478, %v1172
          %v1638 = vadd.f32 %v1478, %v1177
          %v1639 = vadd.f32 %v1482, %v1162
          %v1640 = vadd.f32 %v1482, %v1167
          %v1641 = vadd.f32 %v1482, %v1172
          %v1642 = vadd.f32 %v1482, %v1177
          %v1643 = vadd.f32 %v1486, %v1162
          %v1644 = vadd.f32 %v1486, %v1167
          %v1645 = vadd.f32 %v1486, %v1172
          %v1646 = vadd.f32 %v1486, %v1177
          %v1647 = vadd.f32 %v1490, %v1162
          %v1648 = vadd.f32 %v1490, %v1167
          %v1649 = vadd.f32 %v1490, %v1172
          %v1650 = vadd.f32 %v1490, %v1177
          %v1651 = vadd.f32 %v1494, %v1162
          %v1652 = vadd.f32 %v1494, %v1167
          %v1653 = vadd.f32 %v1494, %v1172
          %v1654 = vadd.f32 %v1494, %v1177
          %v1655 = vadd.f32 %v1498, %v1162
          %v1656 = vadd.f32 %v1498, %v1167
          %v1657 = vadd.f32 %v1498, %v1172
          %v1658 = vadd.f32 %v1498, %v1177
          %v1659 = vadd.f32 %v1502, %v1162
          %v1660 = vadd.f32 %v1502, %v1167
          %v1661 = vadd.f32 %v1502, %v1172
          %v1662 = vadd.f32 %v1502, %v1177
          %v1663 = vadd.f32 %v1506, %v1162
          %v1664 = vadd.f32 %v1506, %v1167
          %v1665 = vadd.f32 %v1506, %v1172
          %v1666 = vadd.f32 %v1506, %v1177
          %v1667 = vadd.f32 %v1510, %v1162
          %v1668 = vadd.f32 %v1510, %v1167
          %v1669 = vadd.f32 %v1510, %v1172
          %v1670 = vadd.f32 %v1510, %v1177
          %v1671 = vadd.f32 %v1514, %v1162
          %v1672 = vadd.f32 %v1514, %v1167
          %v1673 = vadd.f32 %v1514, %v1172
          %v1674 = vadd.f32 %v1514, %v1177
          %v1675 = vadd.f32 %v1518, %v1162
          %v1676 = vadd.f32 %v1518, %v1167
          %v1677 = vadd.f32 %v1518, %v1172
          %v1678 = vadd.f32 %v1518, %v1177
          %v1679 = vadd.f32 %v1522, %v1162
          %v1680 = vadd.f32 %v1522, %v1167
          %v1681 = vadd.f32 %v1522, %v1172
          %v1682 = vadd.f32 %v1522, %v1177
          %v1683 = vadd.f32 %v1526, %v1162
          %v1684 = vadd.f32 %v1526, %v1167
          %v1685 = vadd.f32 %v1526, %v1172
          %v1686 = vadd.f32 %v1526, %v1177
          %v1687 = vadd.f32 %v1530, %v1162
          %v1688 = vadd.f32 %v1530, %v1167
          %v1689 = vadd.f32 %v1530, %v1172
          %v1690 = vadd.f32 %v1530, %v1177
          %v1691 = vadd.f32 %v1534, %v1162
          %v1692 = vadd.f32 %v1534, %v1167
          %v1693 = vadd.f32 %v1534, %v1172
          %v1694 = vadd.f32 %v1534, %v1177
          %v1695 = vadd.f32 %v1538, %v1162
          %v1696 = vadd.f32 %v1538, %v1167
          %v1697 = vadd.f32 %v1538, %v1172
          %v1698 = vadd.f32 %v1538, %v1177
          %v1699 = vadd.f32 %v1542, %v1162
          %v1700 = vadd.f32 %v1542, %v1167
          %v1701 = vadd.f32 %v1542, %v1172
          %v1702 = vadd.f32 %v1542, %v1177
          %v1703 = vadd.f32 %v1546, %v1162
          %v1704 = vadd.f32 %v1546, %v1167
          %v1705 = vadd.f32 %v1546, %v1172
          %v1706 = vadd.f32 %v1546, %v1177
          %v1707 = vadd.f32 %v1550, %v1162
          %v1708 = vadd.f32 %v1550, %v1167
          %v1709 = vadd.f32 %v1550, %v1172
          %v1710 = vadd.f32 %v1550, %v1177
          %v1711 = vadd.f32 %v1554, %v1162
          %v1712 = vadd.f32 %v1554, %v1167
          %v1713 = vadd.f32 %v1554, %v1172
          %v1714 = vadd.f32 %v1554, %v1177
          %v1715 = vadd.f32 %v1558, %v1162
          %v1716 = vadd.f32 %v1558, %v1167
          %v1717 = vadd.f32 %v1558, %v1172
          %v1718 = vadd.f32 %v1558, %v1177
          %v1719 = vadd.f32 %v1562, %v1162
          %v1720 = vadd.f32 %v1562, %v1167
          %v1721 = vadd.f32 %v1562, %v1172
          %v1722 = vadd.f32 %v1562, %v1177
          %v1723 = vadd.f32 %v1566, %v1162
          %v1724 = vadd.f32 %v1566, %v1167
          %v1725 = vadd.f32 %v1566, %v1172
          %v1726 = vadd.f32 %v1566, %v1177
          %v1727 = vadd.f32 %v1570, %v1162
          %v1728 = vadd.f32 %v1570, %v1167
          %v1729 = vadd.f32 %v1570, %v1172
          %v1730 = vadd.f32 %v1570, %v1177
          %v1731 = vadd.f32 %v1574, %v1162
          %v1732 = vadd.f32 %v1574, %v1167
          %v1733 = vadd.f32 %v1574, %v1172
          %v1734 = vadd.f32 %v1574, %v1177
          %v1735 = vadd.f32 %v1578, %v1162
          %v1736 = vadd.f32 %v1578, %v1167
          %v1737 = vadd.f32 %v1578, %v1172
          %v1738 = vadd.f32 %v1578, %v1177
          %v1739 = vadd.f32 %v1582, %v1162
          %v1740 = vadd.f32 %v1582, %v1167
          %v1741 = vadd.f32 %v1582, %v1172
          %v1742 = vadd.f32 %v1582, %v1177
          %v1743 = vadd.f32 %v1586, %v1162
          %v1744 = vadd.f32 %v1586, %v1167
          %v1745 = vadd.f32 %v1586, %v1172
          %v1746 = vadd.f32 %v1586, %v1177
          %v1747 = vadd.f32 %v1590, %v1162
          %v1748 = vadd.f32 %v1590, %v1167
          %v1749 = vadd.f32 %v1590, %v1172
          %v1750 = vadd.f32 %v1590, %v1177
          %v1751 = vadd.f32 %v1594, %v1162
          %v1752 = vadd.f32 %v1594, %v1167
          %v1753 = vadd.f32 %v1594, %v1172
          %v1754 = vadd.f32 %v1594, %v1177
          %v1755 = vadd.f32 %v1598, %v1162
          %v1756 = vadd.f32 %v1598, %v1167
          %v1757 = vadd.f32 %v1598, %v1172
          %v1758 = vadd.f32 %v1598, %v1177
          %vm1759 = vcmp.ge.f32.partialorder %v1631, 0.0
          %vm1760 = vcmp.ge.f32.partialorder %v1632, 0.0
          %vm1761 = vcmp.ge.f32.partialorder %v1633, 0.0
          %vm1762 = vcmp.ge.f32.partialorder %v1634, 0.0
          %vm1763 = vcmp.ge.f32.partialorder %v1635, 0.0
          %vm1764 = vcmp.ge.f32.partialorder %v1636, 0.0
          %vm1765 = vcmp.ge.f32.partialorder %v1637, 0.0
          %vm1766 = vcmp.ge.f32.partialorder %v1638, 0.0
          %vm1767 = vcmp.ge.f32.partialorder %v1639, 0.0
          %vm1768 = vcmp.ge.f32.partialorder %v1640, 0.0
          %vm1769 = vcmp.ge.f32.partialorder %v1641, 0.0
          %vm1770 = vcmp.ge.f32.partialorder %v1642, 0.0
          %vm1771 = vcmp.ge.f32.partialorder %v1643, 0.0
          %vm1772 = vcmp.ge.f32.partialorder %v1644, 0.0
          %vm1773 = vcmp.ge.f32.partialorder %v1645, 0.0
          %vm1774 = vcmp.ge.f32.partialorder %v1646, 0.0
          %vm1775 = vcmp.ge.f32.partialorder %v1647, 0.0
          %vm1776 = vcmp.ge.f32.partialorder %v1648, 0.0
          %vm1777 = vcmp.ge.f32.partialorder %v1649, 0.0
          %vm1778 = vcmp.ge.f32.partialorder %v1650, 0.0
          %vm1779 = vcmp.ge.f32.partialorder %v1651, 0.0
          %vm1780 = vcmp.ge.f32.partialorder %v1652, 0.0
          %vm1781 = vcmp.ge.f32.partialorder %v1653, 0.0
          %vm1782 = vcmp.ge.f32.partialorder %v1654, 0.0
          %vm1783 = vcmp.ge.f32.partialorder %v1655, 0.0
          %vm1784 = vcmp.ge.f32.partialorder %v1656, 0.0
          %vm1785 = vcmp.ge.f32.partialorder %v1657, 0.0
          %vm1786 = vcmp.ge.f32.partialorder %v1658, 0.0
          %vm1787 = vcmp.ge.f32.partialorder %v1659, 0.0
          %vm1788 = vcmp.ge.f32.partialorder %v1660, 0.0
          %vm1789 = vcmp.ge.f32.partialorder %v1661, 0.0
          %vm1790 = vcmp.ge.f32.partialorder %v1662, 0.0
          %vm1791 = vcmp.ge.f32.partialorder %v1663, 0.0
          %vm1792 = vcmp.ge.f32.partialorder %v1664, 0.0
          %vm1793 = vcmp.ge.f32.partialorder %v1665, 0.0
          %vm1794 = vcmp.ge.f32.partialorder %v1666, 0.0
          %vm1795 = vcmp.ge.f32.partialorder %v1667, 0.0
          %vm1796 = vcmp.ge.f32.partialorder %v1668, 0.0
          %vm1797 = vcmp.ge.f32.partialorder %v1669, 0.0
          %vm1798 = vcmp.ge.f32.partialorder %v1670, 0.0
          %vm1799 = vcmp.ge.f32.partialorder %v1671, 0.0
          %vm1800 = vcmp.ge.f32.partialorder %v1672, 0.0
          %vm1801 = vcmp.ge.f32.partialorder %v1673, 0.0
          %vm1802 = vcmp.ge.f32.partialorder %v1674, 0.0
          %vm1803 = vcmp.ge.f32.partialorder %v1675, 0.0
          %vm1804 = vcmp.ge.f32.partialorder %v1676, 0.0
          %vm1805 = vcmp.ge.f32.partialorder %v1677, 0.0
          %vm1806 = vcmp.ge.f32.partialorder %v1678, 0.0
          %vm1807 = vcmp.ge.f32.partialorder %v1679, 0.0
          %vm1808 = vcmp.ge.f32.partialorder %v1680, 0.0
          %vm1809 = vcmp.ge.f32.partialorder %v1681, 0.0
          %vm1810 = vcmp.ge.f32.partialorder %v1682, 0.0
          %vm1811 = vcmp.ge.f32.partialorder %v1683, 0.0
          %vm1812 = vcmp.ge.f32.partialorder %v1684, 0.0
          %vm1813 = vcmp.ge.f32.partialorder %v1685, 0.0
          %vm1814 = vcmp.ge.f32.partialorder %v1686, 0.0
          %vm1815 = vcmp.ge.f32.partialorder %v1687, 0.0
          %vm1816 = vcmp.ge.f32.partialorder %v1688, 0.0
          %vm1817 = vcmp.ge.f32.partialorder %v1689, 0.0
          %vm1818 = vcmp.ge.f32.partialorder %v1690, 0.0
          %vm1819 = vcmp.ge.f32.partialorder %v1691, 0.0
          %vm1820 = vcmp.ge.f32.partialorder %v1692, 0.0
          %vm1821 = vcmp.ge.f32.partialorder %v1693, 0.0
          %vm1822 = vcmp.ge.f32.partialorder %v1694, 0.0
          %vm1823 = vcmp.ge.f32.partialorder %v1695, 0.0
          %vm1824 = vcmp.ge.f32.partialorder %v1696, 0.0
          %vm1825 = vcmp.ge.f32.partialorder %v1697, 0.0
          %vm1826 = vcmp.ge.f32.partialorder %v1698, 0.0
          %vm1827 = vcmp.ge.f32.partialorder %v1699, 0.0
          %vm1828 = vcmp.ge.f32.partialorder %v1700, 0.0
          %vm1829 = vcmp.ge.f32.partialorder %v1701, 0.0
          %vm1830 = vcmp.ge.f32.partialorder %v1702, 0.0
          %vm1831 = vcmp.ge.f32.partialorder %v1703, 0.0
          %vm1832 = vcmp.ge.f32.partialorder %v1704, 0.0
          %vm1833 = vcmp.ge.f32.partialorder %v1705, 0.0
          %vm1834 = vcmp.ge.f32.partialorder %v1706, 0.0
          %vm1835 = vcmp.ge.f32.partialorder %v1707, 0.0
          %vm1836 = vcmp.ge.f32.partialorder %v1708, 0.0
          %vm1837 = vcmp.ge.f32.partialorder %v1709, 0.0
          %vm1838 = vcmp.ge.f32.partialorder %v1710, 0.0
          %vm1839 = vcmp.ge.f32.partialorder %v1711, 0.0
          %vm1840 = vcmp.ge.f32.partialorder %v1712, 0.0
          %vm1841 = vcmp.ge.f32.partialorder %v1713, 0.0
          %vm1842 = vcmp.ge.f32.partialorder %v1714, 0.0
          %vm1843 = vcmp.ge.f32.partialorder %v1715, 0.0
          %vm1844 = vcmp.ge.f32.partialorder %v1716, 0.0
          %vm1845 = vcmp.ge.f32.partialorder %v1717, 0.0
          %vm1846 = vcmp.ge.f32.partialorder %v1718, 0.0
          %vm1847 = vcmp.ge.f32.partialorder %v1719, 0.0
          %vm1848 = vcmp.ge.f32.partialorder %v1720, 0.0
          %vm1849 = vcmp.ge.f32.partialorder %v1721, 0.0
          %vm1850 = vcmp.ge.f32.partialorder %v1722, 0.0
          %vm1851 = vcmp.ge.f32.partialorder %v1723, 0.0
          %vm1852 = vcmp.ge.f32.partialorder %v1724, 0.0
          %vm1853 = vcmp.ge.f32.partialorder %v1725, 0.0
          %vm1854 = vcmp.ge.f32.partialorder %v1726, 0.0
          %vm1855 = vcmp.ge.f32.partialorder %v1727, 0.0
          %vm1856 = vcmp.ge.f32.partialorder %v1728, 0.0
          %vm1857 = vcmp.ge.f32.partialorder %v1729, 0.0
          %vm1858 = vcmp.ge.f32.partialorder %v1730, 0.0
          %vm1859 = vcmp.ge.f32.partialorder %v1731, 0.0
          %vm1860 = vcmp.ge.f32.partialorder %v1732, 0.0
          %vm1861 = vcmp.ge.f32.partialorder %v1733, 0.0
          %vm1862 = vcmp.ge.f32.partialorder %v1734, 0.0
          %vm1863 = vcmp.ge.f32.partialorder %v1735, 0.0
          %vm1864 = vcmp.ge.f32.partialorder %v1736, 0.0
          %vm1865 = vcmp.ge.f32.partialorder %v1737, 0.0
          %vm1866 = vcmp.ge.f32.partialorder %v1738, 0.0
          %vm1867 = vcmp.ge.f32.partialorder %v1739, 0.0
          %vm1868 = vcmp.ge.f32.partialorder %v1740, 0.0
          %vm1869 = vcmp.ge.f32.partialorder %v1741, 0.0
          %vm1870 = vcmp.ge.f32.partialorder %v1742, 0.0
          %vm1871 = vcmp.ge.f32.partialorder %v1743, 0.0
          %vm1872 = vcmp.ge.f32.partialorder %v1744, 0.0
          %vm1873 = vcmp.ge.f32.partialorder %v1745, 0.0
          %vm1874 = vcmp.ge.f32.partialorder %v1746, 0.0
          %vm1875 = vcmp.ge.f32.partialorder %v1747, 0.0
          %vm1876 = vcmp.ge.f32.partialorder %v1748, 0.0
          %vm1877 = vcmp.ge.f32.partialorder %v1749, 0.0
          %vm1878 = vcmp.ge.f32.partialorder %v1750, 0.0
          %vm1879 = vcmp.ge.f32.partialorder %v1751, 0.0
          %vm1880 = vcmp.ge.f32.partialorder %v1752, 0.0
          %vm1881 = vcmp.ge.f32.partialorder %v1753, 0.0
          %vm1882 = vcmp.ge.f32.partialorder %v1754, 0.0
          %vm1883 = vcmp.ge.f32.partialorder %v1755, 0.0
          %vm1884 = vcmp.ge.f32.partialorder %v1756, 0.0
          %vm1885 = vcmp.ge.f32.partialorder %v1757, 0.0
          %vm1886 = vcmp.ge.f32.partialorder %v1758, 0.0
          %v1887 = vmul.f32 %v1631, 0.2
          %v1888 = vmul.f32 %v1632, 0.2
          %v1889 = vmul.f32 %v1633, 0.2
          %v1890 = vmul.f32 %v1634, 0.2
          %v1891 = vmul.f32 %v1635, 0.2
          %v1892 = vmul.f32 %v1636, 0.2
          %v1893 = vmul.f32 %v1637, 0.2
          %v1894 = vmul.f32 %v1638, 0.2
          %v1895 = vmul.f32 %v1639, 0.2
          %v1896 = vmul.f32 %v1640, 0.2
          %v1897 = vmul.f32 %v1641, 0.2
          %v1898 = vmul.f32 %v1642, 0.2
          %v1899 = vmul.f32 %v1643, 0.2
          %v1900 = vmul.f32 %v1644, 0.2
          %v1901 = vmul.f32 %v1645, 0.2
          %v1902 = vmul.f32 %v1646, 0.2
          %v1903 = vmul.f32 %v1647, 0.2
          %v1904 = vmul.f32 %v1648, 0.2
          %v1905 = vmul.f32 %v1649, 0.2
          %v1906 = vmul.f32 %v1650, 0.2
          %v1907 = vmul.f32 %v1651, 0.2
          %v1908 = vmul.f32 %v1652, 0.2
          %v1909 = vmul.f32 %v1653, 0.2
          %v1910 = vmul.f32 %v1654, 0.2
          %v1911 = vmul.f32 %v1655, 0.2
          %v1912 = vmul.f32 %v1656, 0.2
          %v1913 = vmul.f32 %v1657, 0.2
          %v1914 = vmul.f32 %v1658, 0.2
          %v1915 = vmul.f32 %v1659, 0.2
          %v1916 = vmul.f32 %v1660, 0.2
          %v1917 = vmul.f32 %v1661, 0.2
          %v1918 = vmul.f32 %v1662, 0.2
          %v1919 = vmul.f32 %v1663, 0.2
          %v1920 = vmul.f32 %v1664, 0.2
          %v1921 = vmul.f32 %v1665, 0.2
          %v1922 = vmul.f32 %v1666, 0.2
          %v1923 = vmul.f32 %v1667, 0.2
          %v1924 = vmul.f32 %v1668, 0.2
          %v1925 = vmul.f32 %v1669, 0.2
          %v1926 = vmul.f32 %v1670, 0.2
          %v1927 = vmul.f32 %v1671, 0.2
          %v1928 = vmul.f32 %v1672, 0.2
          %v1929 = vmul.f32 %v1673, 0.2
          %v1930 = vmul.f32 %v1674, 0.2
          %v1931 = vmul.f32 %v1675, 0.2
          %v1932 = vmul.f32 %v1676, 0.2
          %v1933 = vmul.f32 %v1677, 0.2
          %v1934 = vmul.f32 %v1678, 0.2
          %v1935 = vmul.f32 %v1679, 0.2
          %v1936 = vmul.f32 %v1680, 0.2
          %v1937 = vmul.f32 %v1681, 0.2
          %v1938 = vmul.f32 %v1682, 0.2
          %v1939 = vmul.f32 %v1683, 0.2
          %v1940 = vmul.f32 %v1684, 0.2
          %v1941 = vmul.f32 %v1685, 0.2
          %v1942 = vmul.f32 %v1686, 0.2
          %v1943 = vmul.f32 %v1687, 0.2
          %v1944 = vmul.f32 %v1688, 0.2
          %v1945 = vmul.f32 %v1689, 0.2
          %v1946 = vmul.f32 %v1690, 0.2
          %v1947 = vmul.f32 %v1691, 0.2
          %v1948 = vmul.f32 %v1692, 0.2
          %v1949 = vmul.f32 %v1693, 0.2
          %v1950 = vmul.f32 %v1694, 0.2
          %v1951 = vmul.f32 %v1695, 0.2
          %v1952 = vmul.f32 %v1696, 0.2
          %v1953 = vmul.f32 %v1697, 0.2
          %v1954 = vmul.f32 %v1698, 0.2
          %v1955 = vmul.f32 %v1699, 0.2
          %v1956 = vmul.f32 %v1700, 0.2
          %v1957 = vmul.f32 %v1701, 0.2
          %v1958 = vmul.f32 %v1702, 0.2
          %v1959 = vmul.f32 %v1703, 0.2
          %v1960 = vmul.f32 %v1704, 0.2
          %v1961 = vmul.f32 %v1705, 0.2
          %v1962 = vmul.f32 %v1706, 0.2
          %v1963 = vmul.f32 %v1707, 0.2
          %v1964 = vmul.f32 %v1708, 0.2
          %v1965 = vmul.f32 %v1709, 0.2
          %v1966 = vmul.f32 %v1710, 0.2
          %v1967 = vmul.f32 %v1711, 0.2
          %v1968 = vmul.f32 %v1712, 0.2
          %v1969 = vmul.f32 %v1713, 0.2
          %v1970 = vmul.f32 %v1714, 0.2
          %v1971 = vmul.f32 %v1715, 0.2
          %v1972 = vmul.f32 %v1716, 0.2
          %v1973 = vmul.f32 %v1717, 0.2
          %v1974 = vmul.f32 %v1718, 0.2
          %v1975 = vmul.f32 %v1719, 0.2
          %v1976 = vmul.f32 %v1720, 0.2
          %v1977 = vmul.f32 %v1721, 0.2
          %v1978 = vmul.f32 %v1722, 0.2
          %v1979 = vmul.f32 %v1723, 0.2
          %v1980 = vmul.f32 %v1724, 0.2
          %v1981 = vmul.f32 %v1725, 0.2
          %v1982 = vmul.f32 %v1726, 0.2
          %v1983 = vmul.f32 %v1727, 0.2
          %v1984 = vmul.f32 %v1728, 0.2
          %v1985 = vmul.f32 %v1729, 0.2
          %v1986 = vmul.f32 %v1730, 0.2
          %v1987 = vmul.f32 %v1731, 0.2
          %v1988 = vmul.f32 %v1732, 0.2
          %v1989 = vmul.f32 %v1733, 0.2
          %v1990 = vmul.f32 %v1734, 0.2
          %v1991 = vmul.f32 %v1735, 0.2
          %v1992 = vmul.f32 %v1736, 0.2
          %v1993 = vmul.f32 %v1737, 0.2
          %v1994 = vmul.f32 %v1738, 0.2
          %v1995 = vmul.f32 %v1739, 0.2
          %v1996 = vmul.f32 %v1740, 0.2
          %v1997 = vmul.f32 %v1741, 0.2
          %v1998 = vmul.f32 %v1742, 0.2
          %v1999 = vmul.f32 %v1743, 0.2
          %v2000 = vmul.f32 %v1744, 0.2
          %v2001 = vmul.f32 %v1745, 0.2
          %v2002 = vmul.f32 %v1746, 0.2
          %v2003 = vmul.f32 %v1747, 0.2
          %v2004 = vmul.f32 %v1748, 0.2
          %v2005 = vmul.f32 %v1749, 0.2
          %v2006 = vmul.f32 %v1750, 0.2
          %v2007 = vmul.f32 %v1751, 0.2
          %v2008 = vmul.f32 %v1752, 0.2
          %v2009 = vmul.f32 %v1753, 0.2
          %v2010 = vmul.f32 %v1754, 0.2
          %v2011 = vmul.f32 %v1755, 0.2
          %v2012 = vmul.f32 %v1756, 0.2
          %v2013 = vmul.f32 %v1757, 0.2
          %v2014 = vmul.f32 %v1758, 0.2
          %v2015 = vsel %vm1759, %v1631, %v1887
          %v2016 = vsel %vm1760, %v1632, %v1888
          %v2017 = vsel %vm1761, %v1633, %v1889
          %v2018 = vsel %vm1762, %v1634, %v1890
          %v2019 = vsel %vm1763, %v1635, %v1891
          %v2020 = vsel %vm1764, %v1636, %v1892
          %v2021 = vsel %vm1765, %v1637, %v1893
          %v2022 = vsel %vm1766, %v1638, %v1894
          %v2023 = vsel %vm1767, %v1639, %v1895
          %v2024 = vsel %vm1768, %v1640, %v1896
          %v2025 = vsel %vm1769, %v1641, %v1897
          %v2026 = vsel %vm1770, %v1642, %v1898
          %v2027 = vsel %vm1771, %v1643, %v1899
          %v2028 = vsel %vm1772, %v1644, %v1900
          %v2029 = vsel %vm1773, %v1645, %v1901
          %v2030 = vsel %vm1774, %v1646, %v1902
          %v2031 = vsel %vm1775, %v1647, %v1903
          %v2032 = vsel %vm1776, %v1648, %v1904
          %v2033 = vsel %vm1777, %v1649, %v1905
          %v2034 = vsel %vm1778, %v1650, %v1906
          %v2035 = vsel %vm1779, %v1651, %v1907
          %v2036 = vsel %vm1780, %v1652, %v1908
          %v2037 = vsel %vm1781, %v1653, %v1909
          %v2038 = vsel %vm1782, %v1654, %v1910
          %v2039 = vsel %vm1783, %v1655, %v1911
          %v2040 = vsel %vm1784, %v1656, %v1912
          %v2041 = vsel %vm1785, %v1657, %v1913
          %v2042 = vsel %vm1786, %v1658, %v1914
          %v2043 = vsel %vm1787, %v1659, %v1915
          %v2044 = vsel %vm1788, %v1660, %v1916
          %v2045 = vsel %vm1789, %v1661, %v1917
          %v2046 = vsel %vm1790, %v1662, %v1918
          %v2047 = vsel %vm1791, %v1663, %v1919
          %v2048 = vsel %vm1792, %v1664, %v1920
          %v2049 = vsel %vm1793, %v1665, %v1921
          %v2050 = vsel %vm1794, %v1666, %v1922
          %v2051 = vsel %vm1795, %v1667, %v1923
          %v2052 = vsel %vm1796, %v1668, %v1924
          %v2053 = vsel %vm1797, %v1669, %v1925
          %v2054 = vsel %vm1798, %v1670, %v1926
          %v2055 = vsel %vm1799, %v1671, %v1927
          %v2056 = vsel %vm1800, %v1672, %v1928
          %v2057 = vsel %vm1801, %v1673, %v1929
          %v2058 = vsel %vm1802, %v1674, %v1930
          %v2059 = vsel %vm1803, %v1675, %v1931
          %v2060 = vsel %vm1804, %v1676, %v1932
          %v2061 = vsel %vm1805, %v1677, %v1933
          %v2062 = vsel %vm1806, %v1678, %v1934
          %v2063 = vsel %vm1807, %v1679, %v1935
          %v2064 = vsel %vm1808, %v1680, %v1936
          %v2065 = vsel %vm1809, %v1681, %v1937
          %v2066 = vsel %vm1810, %v1682, %v1938
          %v2067 = vsel %vm1811, %v1683, %v1939
          %v2068 = vsel %vm1812, %v1684, %v1940
          %v2069 = vsel %vm1813, %v1685, %v1941
          %v2070 = vsel %vm1814, %v1686, %v1942
          %v2071 = vsel %vm1815, %v1687, %v1943
          %v2072 = vsel %vm1816, %v1688, %v1944
          %v2073 = vsel %vm1817, %v1689, %v1945
          %v2074 = vsel %vm1818, %v1690, %v1946
          %v2075 = vsel %vm1819, %v1691, %v1947
          %v2076 = vsel %vm1820, %v1692, %v1948
          %v2077 = vsel %vm1821, %v1693, %v1949
          %v2078 = vsel %vm1822, %v1694, %v1950
          %v2079 = vsel %vm1823, %v1695, %v1951
          %v2080 = vsel %vm1824, %v1696, %v1952
          %v2081 = vsel %vm1825, %v1697, %v1953
          %v2082 = vsel %vm1826, %v1698, %v1954
          %v2083 = vsel %vm1827, %v1699, %v1955
          %v2084 = vsel %vm1828, %v1700, %v1956
          %v2085 = vsel %vm1829, %v1701, %v1957
          %v2086 = vsel %vm1830, %v1702, %v1958
          %v2087 = vsel %vm1831, %v1703, %v1959
          %v2088 = vsel %vm1832, %v1704, %v1960
          %v2089 = vsel %vm1833, %v1705, %v1961
          %v2090 = vsel %vm1834, %v1706, %v1962
          %v2091 = vsel %vm1835, %v1707, %v1963
          %v2092 = vsel %vm1836, %v1708, %v1964
          %v2093 = vsel %vm1837, %v1709, %v1965
          %v2094 = vsel %vm1838, %v1710, %v1966
          %v2095 = vsel %vm1839, %v1711, %v1967
          %v2096 = vsel %vm1840, %v1712, %v1968
          %v2097 = vsel %vm1841, %v1713, %v1969
          %v2098 = vsel %vm1842, %v1714, %v1970
          %v2099 = vsel %vm1843, %v1715, %v1971
          %v2100 = vsel %vm1844, %v1716, %v1972
          %v2101 = vsel %vm1845, %v1717, %v1973
          %v2102 = vsel %vm1846, %v1718, %v1974
          %v2103 = vsel %vm1847, %v1719, %v1975
          %v2104 = vsel %vm1848, %v1720, %v1976
          %v2105 = vsel %vm1849, %v1721, %v1977
          %v2106 = vsel %vm1850, %v1722, %v1978
          %v2107 = vsel %vm1851, %v1723, %v1979
          %v2108 = vsel %vm1852, %v1724, %v1980
          %v2109 = vsel %vm1853, %v1725, %v1981
          %v2110 = vsel %vm1854, %v1726, %v1982
          %v2111 = vsel %vm1855, %v1727, %v1983
          %v2112 = vsel %vm1856, %v1728, %v1984
          %v2113 = vsel %vm1857, %v1729, %v1985
          %v2114 = vsel %vm1858, %v1730, %v1986
          %v2115 = vsel %vm1859, %v1731, %v1987
          %v2116 = vsel %vm1860, %v1732, %v1988
          %v2117 = vsel %vm1861, %v1733, %v1989
          %v2118 = vsel %vm1862, %v1734, %v1990
          %v2119 = vsel %vm1863, %v1735, %v1991
          %v2120 = vsel %vm1864, %v1736, %v1992
          %v2121 = vsel %vm1865, %v1737, %v1993
          %v2122 = vsel %vm1866, %v1738, %v1994
          %v2123 = vsel %vm1867, %v1739, %v1995
          %v2124 = vsel %vm1868, %v1740, %v1996
          %v2125 = vsel %vm1869, %v1741, %v1997
          %v2126 = vsel %vm1870, %v1742, %v1998
          %v2127 = vsel %vm1871, %v1743, %v1999
          %v2128 = vsel %vm1872, %v1744, %v2000
          %v2129 = vsel %vm1873, %v1745, %v2001
          %v2130 = vsel %vm1874, %v1746, %v2002
          %v2131 = vsel %vm1875, %v1747, %v2003
          %v2132 = vsel %vm1876, %v1748, %v2004
          %v2133 = vsel %vm1877, %v1749, %v2005
          %v2134 = vsel %vm1878, %v1750, %v2006
          %v2135 = vsel %vm1879, %v1751, %v2007
          %v2136 = vsel %vm1880, %v1752, %v2008
          %v2137 = vsel %vm1881, %v1753, %v2009
          %v2138 = vsel %vm1882, %v1754, %v2010
          %v2139 = vsel %vm1883, %v1755, %v2011
          %v2140 = vsel %vm1884, %v1756, %v2012
          %v2141 = vsel %vm1885, %v1757, %v2013
          %v2142 = vsel %vm1886, %v1758, %v2014
          %v2144 = vlaneseq
          %v2145 = vshrl.u32 %v2144, 7
          %v2146 = vsub.s32 0, %v2145
          %v2147 = vrot.slane %v1073, %v2146
          %v2149 = vmul.f32 %v2015, %v2147
          %v2150 = vmul.f32 %v2016, %v2147
          %v2151 = vmul.f32 %v2017, %v2147
          %v2152 = vmul.f32 %v2018, %v2147
          %v2153 = vmul.f32 %v2019, %v2147
          %v2154 = vmul.f32 %v2020, %v2147
          %v2155 = vmul.f32 %v2021, %v2147
          %v2156 = vmul.f32 %v2022, %v2147
          %v2157 = vmul.f32 %v2023, %v2147
          %v2158 = vmul.f32 %v2024, %v2147
          %v2159 = vmul.f32 %v2025, %v2147
          %v2160 = vmul.f32 %v2026, %v2147
          %v2161 = vmul.f32 %v2027, %v2147
          %v2162 = vmul.f32 %v2028, %v2147
          %v2163 = vmul.f32 %v2029, %v2147
          %v2164 = vmul.f32 %v2030, %v2147
          %v2165 = vmul.f32 %v2031, %v2147
          %v2166 = vmul.f32 %v2032, %v2147
          %v2167 = vmul.f32 %v2033, %v2147
          %v2168 = vmul.f32 %v2034, %v2147
          %v2169 = vmul.f32 %v2035, %v2147
          %v2170 = vmul.f32 %v2036, %v2147
          %v2171 = vmul.f32 %v2037, %v2147
          %v2172 = vmul.f32 %v2038, %v2147
          %v2173 = vmul.f32 %v2039, %v2147
          %v2174 = vmul.f32 %v2040, %v2147
          %v2175 = vmul.f32 %v2041, %v2147
          %v2176 = vmul.f32 %v2042, %v2147
          %v2177 = vmul.f32 %v2043, %v2147
          %v2178 = vmul.f32 %v2044, %v2147
          %v2179 = vmul.f32 %v2045, %v2147
          %v2180 = vmul.f32 %v2046, %v2147
          %v2181 = vmul.f32 %v2047, %v2147
          %v2182 = vmul.f32 %v2048, %v2147
          %v2183 = vmul.f32 %v2049, %v2147
          %v2184 = vmul.f32 %v2050, %v2147
          %v2185 = vmul.f32 %v2051, %v2147
          %v2186 = vmul.f32 %v2052, %v2147
          %v2187 = vmul.f32 %v2053, %v2147
          %v2188 = vmul.f32 %v2054, %v2147
          %v2189 = vmul.f32 %v2055, %v2147
          %v2190 = vmul.f32 %v2056, %v2147
          %v2191 = vmul.f32 %v2057, %v2147
          %v2192 = vmul.f32 %v2058, %v2147
          %v2193 = vmul.f32 %v2059, %v2147
          %v2194 = vmul.f32 %v2060, %v2147
          %v2195 = vmul.f32 %v2061, %v2147
          %v2196 = vmul.f32 %v2062, %v2147
          %v2197 = vmul.f32 %v2063, %v2147
          %v2198 = vmul.f32 %v2064, %v2147
          %v2199 = vmul.f32 %v2065, %v2147
          %v2200 = vmul.f32 %v2066, %v2147
          %v2201 = vmul.f32 %v2067, %v2147
          %v2202 = vmul.f32 %v2068, %v2147
          %v2203 = vmul.f32 %v2069, %v2147
          %v2204 = vmul.f32 %v2070, %v2147
          %v2205 = vmul.f32 %v2071, %v2147
          %v2206 = vmul.f32 %v2072, %v2147
          %v2207 = vmul.f32 %v2073, %v2147
          %v2208 = vmul.f32 %v2074, %v2147
          %v2209 = vmul.f32 %v2075, %v2147
          %v2210 = vmul.f32 %v2076, %v2147
          %v2211 = vmul.f32 %v2077, %v2147
          %v2212 = vmul.f32 %v2078, %v2147
          %v2213 = vmul.f32 %v2079, %v2147
          %v2214 = vmul.f32 %v2080, %v2147
          %v2215 = vmul.f32 %v2081, %v2147
          %v2216 = vmul.f32 %v2082, %v2147
          %v2217 = vmul.f32 %v2083, %v2147
          %v2218 = vmul.f32 %v2084, %v2147
          %v2219 = vmul.f32 %v2085, %v2147
          %v2220 = vmul.f32 %v2086, %v2147
          %v2221 = vmul.f32 %v2087, %v2147
          %v2222 = vmul.f32 %v2088, %v2147
          %v2223 = vmul.f32 %v2089, %v2147
          %v2224 = vmul.f32 %v2090, %v2147
          %v2225 = vmul.f32 %v2091, %v2147
          %v2226 = vmul.f32 %v2092, %v2147
          %v2227 = vmul.f32 %v2093, %v2147
          %v2228 = vmul.f32 %v2094, %v2147
          %v2229 = vmul.f32 %v2095, %v2147
          %v2230 = vmul.f32 %v2096, %v2147
          %v2231 = vmul.f32 %v2097, %v2147
          %v2232 = vmul.f32 %v2098, %v2147
          %v2233 = vmul.f32 %v2099, %v2147
          %v2234 = vmul.f32 %v2100, %v2147
          %v2235 = vmul.f32 %v2101, %v2147
          %v2236 = vmul.f32 %v2102, %v2147
          %v2237 = vmul.f32 %v2103, %v2147
          %v2238 = vmul.f32 %v2104, %v2147
          %v2239 = vmul.f32 %v2105, %v2147
          %v2240 = vmul.f32 %v2106, %v2147
          %v2241 = vmul.f32 %v2107, %v2147
          %v2242 = vmul.f32 %v2108, %v2147
          %v2243 = vmul.f32 %v2109, %v2147
          %v2244 = vmul.f32 %v2110, %v2147
          %v2245 = vmul.f32 %v2111, %v2147
          %v2246 = vmul.f32 %v2112, %v2147
          %v2247 = vmul.f32 %v2113, %v2147
          %v2248 = vmul.f32 %v2114, %v2147
          %v2249 = vmul.f32 %v2115, %v2147
          %v2250 = vmul.f32 %v2116, %v2147
          %v2251 = vmul.f32 %v2117, %v2147
          %v2252 = vmul.f32 %v2118, %v2147
          %v2253 = vmul.f32 %v2119, %v2147
          %v2254 = vmul.f32 %v2120, %v2147
          %v2255 = vmul.f32 %v2121, %v2147
          %v2256 = vmul.f32 %v2122, %v2147
          %v2257 = vmul.f32 %v2123, %v2147
          %v2258 = vmul.f32 %v2124, %v2147
          %v2259 = vmul.f32 %v2125, %v2147
          %v2260 = vmul.f32 %v2126, %v2147
          %v2261 = vmul.f32 %v2127, %v2147
          %v2262 = vmul.f32 %v2128, %v2147
          %v2263 = vmul.f32 %v2129, %v2147
          %v2264 = vmul.f32 %v2130, %v2147
          %v2265 = vmul.f32 %v2131, %v2147
          %v2266 = vmul.f32 %v2132, %v2147
          %v2267 = vmul.f32 %v2133, %v2147
          %v2268 = vmul.f32 %v2134, %v2147
          %v2269 = vmul.f32 %v2135, %v2147
          %v2270 = vmul.f32 %v2136, %v2147
          %v2271 = vmul.f32 %v2137, %v2147
          %v2272 = vmul.f32 %v2138, %v2147
          %v2273 = vmul.f32 %v2139, %v2147
          %v2274 = vmul.f32 %v2140, %v2147
          %v2275 = vmul.f32 %v2141, %v2147
          %v2276 = vmul.f32 %v2142, %v2147
          %vm2277 = vcmask 523264
          %v2278 = vsel %vm2277, %v2149, 0.0
          %2279 = vadd.xlane.f32.xlu0 %v2278
          %v2280 = vpop.xlane.xlu0 %2279
          %v2281 = vsel %vm2277, %v2150, 0.0
          %2282 = vadd.xlane.f32.xlu0 %v2281
          %v2283 = vpop.xlane.xlu0 %2282
          %v2284 = vsel %vm2277, %v2151, 0.0
          %2285 = vadd.xlane.f32.xlu0 %v2284
          %v2286 = vpop.xlane.xlu0 %2285
          %v2287 = vsel %vm2277, %v2152, 0.0
          %2288 = vadd.xlane.f32.xlu0 %v2287
          %v2289 = vpop.xlane.xlu0 %2288
          %v2290 = vsel %vm2277, %v2153, 0.0
          %2291 = vadd.xlane.f32.xlu0 %v2290
          %v2292 = vpop.xlane.xlu0 %2291
          %v2293 = vsel %vm2277, %v2154, 0.0
          %2294 = vadd.xlane.f32.xlu0 %v2293
          %v2295 = vpop.xlane.xlu0 %2294
          %v2296 = vsel %vm2277, %v2155, 0.0
          %2297 = vadd.xlane.f32.xlu0 %v2296
          %v2298 = vpop.xlane.xlu0 %2297
          %v2299 = vsel %vm2277, %v2156, 0.0
          %2300 = vadd.xlane.f32.xlu0 %v2299
          %v2301 = vpop.xlane.xlu0 %2300
          %v2302 = vsel %vm2277, %v2157, 0.0
          %2303 = vadd.xlane.f32.xlu0 %v2302
          %v2304 = vpop.xlane.xlu0 %2303
          %v2305 = vsel %vm2277, %v2158, 0.0
          %2306 = vadd.xlane.f32.xlu0 %v2305
          %v2307 = vpop.xlane.xlu0 %2306
          %v2308 = vsel %vm2277, %v2159, 0.0
          %2309 = vadd.xlane.f32.xlu0 %v2308
          %v2310 = vpop.xlane.xlu0 %2309
          %v2311 = vsel %vm2277, %v2160, 0.0
          %2312 = vadd.xlane.f32.xlu0 %v2311
          %v2313 = vpop.xlane.xlu0 %2312
          %v2314 = vsel %vm2277, %v2161, 0.0
          %2315 = vadd.xlane.f32.xlu0 %v2314
          %v2316 = vpop.xlane.xlu0 %2315
          %v2317 = vsel %vm2277, %v2162, 0.0
          %2318 = vadd.xlane.f32.xlu0 %v2317
          %v2319 = vpop.xlane.xlu0 %2318
          %v2320 = vsel %vm2277, %v2163, 0.0
          %2321 = vadd.xlane.f32.xlu0 %v2320
          %v2322 = vpop.xlane.xlu0 %2321
          %v2323 = vsel %vm2277, %v2164, 0.0
          %2324 = vadd.xlane.f32.xlu0 %v2323
          %v2325 = vpop.xlane.xlu0 %2324
          %v2326 = vsel %vm2277, %v2165, 0.0
          %2327 = vadd.xlane.f32.xlu0 %v2326
          %v2328 = vpop.xlane.xlu0 %2327
          %v2329 = vsel %vm2277, %v2166, 0.0
          %2330 = vadd.xlane.f32.xlu0 %v2329
          %v2331 = vpop.xlane.xlu0 %2330
          %v2332 = vsel %vm2277, %v2167, 0.0
          %2333 = vadd.xlane.f32.xlu0 %v2332
          %v2334 = vpop.xlane.xlu0 %2333
          %v2335 = vsel %vm2277, %v2168, 0.0
          %2336 = vadd.xlane.f32.xlu0 %v2335
          %v2337 = vpop.xlane.xlu0 %2336
          %v2338 = vsel %vm2277, %v2169, 0.0
          %2339 = vadd.xlane.f32.xlu0 %v2338
          %v2340 = vpop.xlane.xlu0 %2339
          %v2341 = vsel %vm2277, %v2170, 0.0
          %2342 = vadd.xlane.f32.xlu0 %v2341
          %v2343 = vpop.xlane.xlu0 %2342
          %v2344 = vsel %vm2277, %v2171, 0.0
          %2345 = vadd.xlane.f32.xlu0 %v2344
          %v2346 = vpop.xlane.xlu0 %2345
          %v2347 = vsel %vm2277, %v2172, 0.0
          %2348 = vadd.xlane.f32.xlu0 %v2347
          %v2349 = vpop.xlane.xlu0 %2348
          %v2350 = vsel %vm2277, %v2173, 0.0
          %2351 = vadd.xlane.f32.xlu0 %v2350
          %v2352 = vpop.xlane.xlu0 %2351
          %v2353 = vsel %vm2277, %v2174, 0.0
          %2354 = vadd.xlane.f32.xlu0 %v2353
          %v2355 = vpop.xlane.xlu0 %2354
          %v2356 = vsel %vm2277, %v2175, 0.0
          %2357 = vadd.xlane.f32.xlu0 %v2356
          %v2358 = vpop.xlane.xlu0 %2357
          %v2359 = vsel %vm2277, %v2176, 0.0
          %2360 = vadd.xlane.f32.xlu0 %v2359
          %v2361 = vpop.xlane.xlu0 %2360
          %v2362 = vsel %vm2277, %v2177, 0.0
          %2363 = vadd.xlane.f32.xlu0 %v2362
          %v2364 = vpop.xlane.xlu0 %2363
          %v2365 = vsel %vm2277, %v2178, 0.0
          %2366 = vadd.xlane.f32.xlu0 %v2365
          %v2367 = vpop.xlane.xlu0 %2366
          %v2368 = vsel %vm2277, %v2179, 0.0
          %2369 = vadd.xlane.f32.xlu0 %v2368
          %v2370 = vpop.xlane.xlu0 %2369
          %v2371 = vsel %vm2277, %v2180, 0.0
          %2372 = vadd.xlane.f32.xlu0 %v2371
          %v2373 = vpop.xlane.xlu0 %2372
          %v2374 = vsel %vm2277, %v2181, 0.0
          %2375 = vadd.xlane.f32.xlu0 %v2374
          %v2376 = vpop.xlane.xlu0 %2375
          %v2377 = vsel %vm2277, %v2182, 0.0
          %2378 = vadd.xlane.f32.xlu0 %v2377
          %v2379 = vpop.xlane.xlu0 %2378
          %v2380 = vsel %vm2277, %v2183, 0.0
          %2381 = vadd.xlane.f32.xlu0 %v2380
          %v2382 = vpop.xlane.xlu0 %2381
          %v2383 = vsel %vm2277, %v2184, 0.0
          %2384 = vadd.xlane.f32.xlu0 %v2383
          %v2385 = vpop.xlane.xlu0 %2384
          %v2386 = vsel %vm2277, %v2185, 0.0
          %2387 = vadd.xlane.f32.xlu0 %v2386
          %v2388 = vpop.xlane.xlu0 %2387
          %v2389 = vsel %vm2277, %v2186, 0.0
          %2390 = vadd.xlane.f32.xlu0 %v2389
          %v2391 = vpop.xlane.xlu0 %2390
          %v2392 = vsel %vm2277, %v2187, 0.0
          %2393 = vadd.xlane.f32.xlu0 %v2392
          %v2394 = vpop.xlane.xlu0 %2393
          %v2395 = vsel %vm2277, %v2188, 0.0
          %2396 = vadd.xlane.f32.xlu0 %v2395
          %v2397 = vpop.xlane.xlu0 %2396
          %v2398 = vsel %vm2277, %v2189, 0.0
          %2399 = vadd.xlane.f32.xlu0 %v2398
          %v2400 = vpop.xlane.xlu0 %2399
          %v2401 = vsel %vm2277, %v2190, 0.0
          %2402 = vadd.xlane.f32.xlu0 %v2401
          %v2403 = vpop.xlane.xlu0 %2402
          %v2404 = vsel %vm2277, %v2191, 0.0
          %2405 = vadd.xlane.f32.xlu0 %v2404
          %v2406 = vpop.xlane.xlu0 %2405
          %v2407 = vsel %vm2277, %v2192, 0.0
          %2408 = vadd.xlane.f32.xlu0 %v2407
          %v2409 = vpop.xlane.xlu0 %2408
          %v2410 = vsel %vm2277, %v2193, 0.0
          %2411 = vadd.xlane.f32.xlu0 %v2410
          %v2412 = vpop.xlane.xlu0 %2411
          %v2413 = vsel %vm2277, %v2194, 0.0
          %2414 = vadd.xlane.f32.xlu0 %v2413
          %v2415 = vpop.xlane.xlu0 %2414
          %v2416 = vsel %vm2277, %v2195, 0.0
          %2417 = vadd.xlane.f32.xlu0 %v2416
          %v2418 = vpop.xlane.xlu0 %2417
          %v2419 = vsel %vm2277, %v2196, 0.0
          %2420 = vadd.xlane.f32.xlu0 %v2419
          %v2421 = vpop.xlane.xlu0 %2420
          %v2422 = vsel %vm2277, %v2197, 0.0
          %2423 = vadd.xlane.f32.xlu0 %v2422
          %v2424 = vpop.xlane.xlu0 %2423
          %v2425 = vsel %vm2277, %v2198, 0.0
          %2426 = vadd.xlane.f32.xlu0 %v2425
          %v2427 = vpop.xlane.xlu0 %2426
          %v2428 = vsel %vm2277, %v2199, 0.0
          %2429 = vadd.xlane.f32.xlu0 %v2428
          %v2430 = vpop.xlane.xlu0 %2429
          %v2431 = vsel %vm2277, %v2200, 0.0
          %2432 = vadd.xlane.f32.xlu0 %v2431
          %v2433 = vpop.xlane.xlu0 %2432
          %v2434 = vsel %vm2277, %v2201, 0.0
          %2435 = vadd.xlane.f32.xlu0 %v2434
          %v2436 = vpop.xlane.xlu0 %2435
          %v2437 = vsel %vm2277, %v2202, 0.0
          %2438 = vadd.xlane.f32.xlu0 %v2437
          %v2439 = vpop.xlane.xlu0 %2438
          %v2440 = vsel %vm2277, %v2203, 0.0
          %2441 = vadd.xlane.f32.xlu0 %v2440
          %v2442 = vpop.xlane.xlu0 %2441
          %v2443 = vsel %vm2277, %v2204, 0.0
          %2444 = vadd.xlane.f32.xlu0 %v2443
          %v2445 = vpop.xlane.xlu0 %2444
          %v2446 = vsel %vm2277, %v2205, 0.0
          %2447 = vadd.xlane.f32.xlu0 %v2446
          %v2448 = vpop.xlane.xlu0 %2447
          %v2449 = vsel %vm2277, %v2206, 0.0
          %2450 = vadd.xlane.f32.xlu0 %v2449
          %v2451 = vpop.xlane.xlu0 %2450
          %v2452 = vsel %vm2277, %v2207, 0.0
          %2453 = vadd.xlane.f32.xlu0 %v2452
          %v2454 = vpop.xlane.xlu0 %2453
          %v2455 = vsel %vm2277, %v2208, 0.0
          %2456 = vadd.xlane.f32.xlu0 %v2455
          %v2457 = vpop.xlane.xlu0 %2456
          %v2458 = vsel %vm2277, %v2209, 0.0
          %2459 = vadd.xlane.f32.xlu0 %v2458
          %v2460 = vpop.xlane.xlu0 %2459
          %v2461 = vsel %vm2277, %v2210, 0.0
          %2462 = vadd.xlane.f32.xlu0 %v2461
          %v2463 = vpop.xlane.xlu0 %2462
          %v2464 = vsel %vm2277, %v2211, 0.0
          %2465 = vadd.xlane.f32.xlu0 %v2464
          %v2466 = vpop.xlane.xlu0 %2465
          %v2467 = vsel %vm2277, %v2212, 0.0
          %2468 = vadd.xlane.f32.xlu0 %v2467
          %v2469 = vpop.xlane.xlu0 %2468
          %v2470 = vsel %vm2277, %v2213, 0.0
          %2471 = vadd.xlane.f32.xlu0 %v2470
          %v2472 = vpop.xlane.xlu0 %2471
          %v2473 = vsel %vm2277, %v2214, 0.0
          %2474 = vadd.xlane.f32.xlu0 %v2473
          %v2475 = vpop.xlane.xlu0 %2474
          %v2476 = vsel %vm2277, %v2215, 0.0
          %2477 = vadd.xlane.f32.xlu0 %v2476
          %v2478 = vpop.xlane.xlu0 %2477
          %v2479 = vsel %vm2277, %v2216, 0.0
          %2480 = vadd.xlane.f32.xlu0 %v2479
          %v2481 = vpop.xlane.xlu0 %2480
          %v2482 = vsel %vm2277, %v2217, 0.0
          %2483 = vadd.xlane.f32.xlu0 %v2482
          %v2484 = vpop.xlane.xlu0 %2483
          %v2485 = vsel %vm2277, %v2218, 0.0
          %2486 = vadd.xlane.f32.xlu0 %v2485
          %v2487 = vpop.xlane.xlu0 %2486
          %v2488 = vsel %vm2277, %v2219, 0.0
          %2489 = vadd.xlane.f32.xlu0 %v2488
          %v2490 = vpop.xlane.xlu0 %2489
          %v2491 = vsel %vm2277, %v2220, 0.0
          %2492 = vadd.xlane.f32.xlu0 %v2491
          %v2493 = vpop.xlane.xlu0 %2492
          %v2494 = vsel %vm2277, %v2221, 0.0
          %2495 = vadd.xlane.f32.xlu0 %v2494
          %v2496 = vpop.xlane.xlu0 %2495
          %v2497 = vsel %vm2277, %v2222, 0.0
          %2498 = vadd.xlane.f32.xlu0 %v2497
          %v2499 = vpop.xlane.xlu0 %2498
          %v2500 = vsel %vm2277, %v2223, 0.0
          %2501 = vadd.xlane.f32.xlu0 %v2500
          %v2502 = vpop.xlane.xlu0 %2501
          %v2503 = vsel %vm2277, %v2224, 0.0
          %2504 = vadd.xlane.f32.xlu0 %v2503
          %v2505 = vpop.xlane.xlu0 %2504
          %v2506 = vsel %vm2277, %v2225, 0.0
          %2507 = vadd.xlane.f32.xlu0 %v2506
          %v2508 = vpop.xlane.xlu0 %2507
          %v2509 = vsel %vm2277, %v2226, 0.0
          %2510 = vadd.xlane.f32.xlu0 %v2509
          %v2511 = vpop.xlane.xlu0 %2510
          %v2512 = vsel %vm2277, %v2227, 0.0
          %2513 = vadd.xlane.f32.xlu0 %v2512
          %v2514 = vpop.xlane.xlu0 %2513
          %v2515 = vsel %vm2277, %v2228, 0.0
          %2516 = vadd.xlane.f32.xlu0 %v2515
          %v2517 = vpop.xlane.xlu0 %2516
          %v2518 = vsel %vm2277, %v2229, 0.0
          %2519 = vadd.xlane.f32.xlu0 %v2518
          %v2520 = vpop.xlane.xlu0 %2519
          %v2521 = vsel %vm2277, %v2230, 0.0
          %2522 = vadd.xlane.f32.xlu0 %v2521
          %v2523 = vpop.xlane.xlu0 %2522
          %v2524 = vsel %vm2277, %v2231, 0.0
          %2525 = vadd.xlane.f32.xlu0 %v2524
          %v2526 = vpop.xlane.xlu0 %2525
          %v2527 = vsel %vm2277, %v2232, 0.0
          %2528 = vadd.xlane.f32.xlu0 %v2527
          %v2529 = vpop.xlane.xlu0 %2528
          %v2530 = vsel %vm2277, %v2233, 0.0
          %2531 = vadd.xlane.f32.xlu0 %v2530
          %v2532 = vpop.xlane.xlu0 %2531
          %v2533 = vsel %vm2277, %v2234, 0.0
          %2534 = vadd.xlane.f32.xlu0 %v2533
          %v2535 = vpop.xlane.xlu0 %2534
          %v2536 = vsel %vm2277, %v2235, 0.0
          %2537 = vadd.xlane.f32.xlu0 %v2536
          %v2538 = vpop.xlane.xlu0 %2537
          %v2539 = vsel %vm2277, %v2236, 0.0
          %2540 = vadd.xlane.f32.xlu0 %v2539
          %v2541 = vpop.xlane.xlu0 %2540
          %v2542 = vsel %vm2277, %v2237, 0.0
          %2543 = vadd.xlane.f32.xlu0 %v2542
          %v2544 = vpop.xlane.xlu0 %2543
          %v2545 = vsel %vm2277, %v2238, 0.0
          %2546 = vadd.xlane.f32.xlu0 %v2545
          %v2547 = vpop.xlane.xlu0 %2546
          %v2548 = vsel %vm2277, %v2239, 0.0
          %2549 = vadd.xlane.f32.xlu0 %v2548
          %v2550 = vpop.xlane.xlu0 %2549
          %v2551 = vsel %vm2277, %v2240, 0.0
          %2552 = vadd.xlane.f32.xlu0 %v2551
          %v2553 = vpop.xlane.xlu0 %2552
          %v2554 = vsel %vm2277, %v2241, 0.0
          %2555 = vadd.xlane.f32.xlu0 %v2554
          %v2556 = vpop.xlane.xlu0 %2555
          %v2557 = vsel %vm2277, %v2242, 0.0
          %2558 = vadd.xlane.f32.xlu0 %v2557
          %v2559 = vpop.xlane.xlu0 %2558
          %v2560 = vsel %vm2277, %v2243, 0.0
          %2561 = vadd.xlane.f32.xlu0 %v2560
          %v2562 = vpop.xlane.xlu0 %2561
          %v2563 = vsel %vm2277, %v2244, 0.0
          %2564 = vadd.xlane.f32.xlu0 %v2563
          %v2565 = vpop.xlane.xlu0 %2564
          %v2566 = vsel %vm2277, %v2245, 0.0
          %2567 = vadd.xlane.f32.xlu0 %v2566
          %v2568 = vpop.xlane.xlu0 %2567
          %v2569 = vsel %vm2277, %v2246, 0.0
          %2570 = vadd.xlane.f32.xlu0 %v2569
          %v2571 = vpop.xlane.xlu0 %2570
          %v2572 = vsel %vm2277, %v2247, 0.0
          %2573 = vadd.xlane.f32.xlu0 %v2572
          %v2574 = vpop.xlane.xlu0 %2573
          %v2575 = vsel %vm2277, %v2248, 0.0
          %2576 = vadd.xlane.f32.xlu0 %v2575
          %v2577 = vpop.xlane.xlu0 %2576
          %v2578 = vsel %vm2277, %v2249, 0.0
          %2579 = vadd.xlane.f32.xlu0 %v2578
          %v2580 = vpop.xlane.xlu0 %2579
          %v2581 = vsel %vm2277, %v2250, 0.0
          %2582 = vadd.xlane.f32.xlu0 %v2581
          %v2583 = vpop.xlane.xlu0 %2582
          %v2584 = vsel %vm2277, %v2251, 0.0
          %2585 = vadd.xlane.f32.xlu0 %v2584
          %v2586 = vpop.xlane.xlu0 %2585
          %v2587 = vsel %vm2277, %v2252, 0.0
          %2588 = vadd.xlane.f32.xlu0 %v2587
          %v2589 = vpop.xlane.xlu0 %2588
          %v2590 = vsel %vm2277, %v2253, 0.0
          %2591 = vadd.xlane.f32.xlu0 %v2590
          %v2592 = vpop.xlane.xlu0 %2591
          %v2593 = vsel %vm2277, %v2254, 0.0
          %2594 = vadd.xlane.f32.xlu0 %v2593
          %v2595 = vpop.xlane.xlu0 %2594
          %v2596 = vsel %vm2277, %v2255, 0.0
          %2597 = vadd.xlane.f32.xlu0 %v2596
          %v2598 = vpop.xlane.xlu0 %2597
          %v2599 = vsel %vm2277, %v2256, 0.0
          %2600 = vadd.xlane.f32.xlu0 %v2599
          %v2601 = vpop.xlane.xlu0 %2600
          %v2602 = vsel %vm2277, %v2257, 0.0
          %2603 = vadd.xlane.f32.xlu0 %v2602
          %v2604 = vpop.xlane.xlu0 %2603
          %v2605 = vsel %vm2277, %v2258, 0.0
          %2606 = vadd.xlane.f32.xlu0 %v2605
          %v2607 = vpop.xlane.xlu0 %2606
          %v2608 = vsel %vm2277, %v2259, 0.0
          %2609 = vadd.xlane.f32.xlu0 %v2608
          %v2610 = vpop.xlane.xlu0 %2609
          %v2611 = vsel %vm2277, %v2260, 0.0
          %2612 = vadd.xlane.f32.xlu0 %v2611
          %v2613 = vpop.xlane.xlu0 %2612
          %v2614 = vsel %vm2277, %v2261, 0.0
          %2615 = vadd.xlane.f32.xlu0 %v2614
          %v2616 = vpop.xlane.xlu0 %2615
          %v2617 = vsel %vm2277, %v2262, 0.0
          %2618 = vadd.xlane.f32.xlu0 %v2617
          %v2619 = vpop.xlane.xlu0 %2618
          %v2620 = vsel %vm2277, %v2263, 0.0
          %2621 = vadd.xlane.f32.xlu0 %v2620
          %v2622 = vpop.xlane.xlu0 %2621
          %v2623 = vsel %vm2277, %v2264, 0.0
          %2624 = vadd.xlane.f32.xlu0 %v2623
          %v2625 = vpop.xlane.xlu0 %2624
          %v2626 = vsel %vm2277, %v2265, 0.0
          %2627 = vadd.xlane.f32.xlu0 %v2626
          %v2628 = vpop.xlane.xlu0 %2627
          %v2629 = vsel %vm2277, %v2266, 0.0
          %2630 = vadd.xlane.f32.xlu0 %v2629
          %v2631 = vpop.xlane.xlu0 %2630
          %v2632 = vsel %vm2277, %v2267, 0.0
          %2633 = vadd.xlane.f32.xlu0 %v2632
          %v2634 = vpop.xlane.xlu0 %2633
          %v2635 = vsel %vm2277, %v2268, 0.0
          %2636 = vadd.xlane.f32.xlu0 %v2635
          %v2637 = vpop.xlane.xlu0 %2636
          %v2638 = vsel %vm2277, %v2269, 0.0
          %2639 = vadd.xlane.f32.xlu0 %v2638
          %v2640 = vpop.xlane.xlu0 %2639
          %v2641 = vsel %vm2277, %v2270, 0.0
          %2642 = vadd.xlane.f32.xlu0 %v2641
          %v2643 = vpop.xlane.xlu0 %2642
          %v2644 = vsel %vm2277, %v2271, 0.0
          %2645 = vadd.xlane.f32.xlu0 %v2644
          %v2646 = vpop.xlane.xlu0 %2645
          %v2647 = vsel %vm2277, %v2272, 0.0
          %2648 = vadd.xlane.f32.xlu0 %v2647
          %v2649 = vpop.xlane.xlu0 %2648
          %v2650 = vsel %vm2277, %v2273, 0.0
          %2651 = vadd.xlane.f32.xlu0 %v2650
          %v2652 = vpop.xlane.xlu0 %2651
          %v2653 = vsel %vm2277, %v2274, 0.0
          %2654 = vadd.xlane.f32.xlu0 %v2653
          %v2655 = vpop.xlane.xlu0 %2654
          %v2656 = vsel %vm2277, %v2275, 0.0
          %2657 = vadd.xlane.f32.xlu0 %v2656
          %v2658 = vpop.xlane.xlu0 %2657
          %v2659 = vsel %vm2277, %v2276, 0.0
          %2660 = vadd.xlane.f32.xlu0 %v2659
          %v2661 = vpop.xlane.xlu0 %2660
          %vm2662 = vcmp.gt.f32.partialorder %v1059, 0.0
          %vm2663 = vcmp.gt.f32.partialorder %v1060, 0.0
          %vm2664 = vcmp.gt.f32.partialorder %v1061, 0.0
          %vm2665 = vcmp.gt.f32.partialorder %v1062, 0.0
          %v2794 = vlaneseq
          %v2795 = vand.u32 %v2794, 127
          %v2796 = vlaneseq
          %v2797 = vshrl.u32 %v2796, 7
          %v2798 = vsub.s32 %v2795, %v2797
          %v2799 = vrot.slane %v2280, %v2798
          %v2800 = vadd.s32 %v2795, 4294967288
          %v2801 = vlaneseq
          %v2802 = vshrl.u32 %v2801, 7
          %v2803 = vsub.s32 %v2800, %v2802
          %v2804 = vrot.slane %v2283, %v2803
          %vm2805 = vcmask 130112
          %v2806 = vsel %vm2805, %v2804, %v2799
          %v2807 = vadd.s32 %v2795, 4294967280
          %v2808 = vlaneseq
          %v2809 = vshrl.u32 %v2808, 7
          %v2810 = vsub.s32 %v2807, %v2809
          %v2811 = vrot.slane %v2286, %v2810
          %vm2812 = vcmask 195712
          %v2813 = vsel %vm2812, %v2811, %v2806
          %v2814 = vadd.s32 %v2795, 4294967272
          %v2815 = vlaneseq
          %v2816 = vshrl.u32 %v2815, 7
          %v2817 = vsub.s32 %v2814, %v2816
          %v2818 = vrot.slane %v2289, %v2817
          %vm2819 = vcmask 261312
          %v2820 = vsel %vm2819, %v2818, %v2813
          %v2821 = vlaneseq
          %v2822 = vshrl.u32 %v2821, 7
          %v2823 = vsub.s32 %v2795, %v2822
          %v2824 = vrot.slane %v2292, %v2823
          %v2825 = vlaneseq
          %v2826 = vshrl.u32 %v2825, 7
          %v2827 = vsub.s32 %v2800, %v2826
          %v2828 = vrot.slane %v2295, %v2827
          %v2829 = vsel %vm2805, %v2828, %v2824
          %v2830 = vlaneseq
          %v2831 = vshrl.u32 %v2830, 7
          %v2832 = vsub.s32 %v2807, %v2831
          %v2833 = vrot.slane %v2298, %v2832
          %v2834 = vsel %vm2812, %v2833, %v2829
          %v2835 = vlaneseq
          %v2836 = vshrl.u32 %v2835, 7
          %v2837 = vsub.s32 %v2814, %v2836
          %v2838 = vrot.slane %v2301, %v2837
          %v2839 = vsel %vm2819, %v2838, %v2834
          %v2840 = vlaneseq
          %v2841 = vshrl.u32 %v2840, 7
          %v2842 = vsub.s32 %v2795, %v2841
          %v2843 = vrot.slane %v2304, %v2842
          %v2844 = vlaneseq
          %v2845 = vshrl.u32 %v2844, 7
          %v2846 = vsub.s32 %v2800, %v2845
          %v2847 = vrot.slane %v2307, %v2846
          %v2848 = vsel %vm2805, %v2847, %v2843
          %v2849 = vlaneseq
          %v2850 = vshrl.u32 %v2849, 7
          %v2851 = vsub.s32 %v2807, %v2850
          %v2852 = vrot.slane %v2310, %v2851
          %v2853 = vsel %vm2812, %v2852, %v2848
          %v2854 = vlaneseq
          %v2855 = vshrl.u32 %v2854, 7
          %v2856 = vsub.s32 %v2814, %v2855
          %v2857 = vrot.slane %v2313, %v2856
          %v2858 = vsel %vm2819, %v2857, %v2853
          %v2859 = vlaneseq
          %v2860 = vshrl.u32 %v2859, 7
          %v2861 = vsub.s32 %v2795, %v2860
          %v2862 = vrot.slane %v2316, %v2861
          %v2863 = vlaneseq
          %v2864 = vshrl.u32 %v2863, 7
          %v2865 = vsub.s32 %v2800, %v2864
          %v2866 = vrot.slane %v2319, %v2865
          %v2867 = vsel %vm2805, %v2866, %v2862
          %v2868 = vlaneseq
          %v2869 = vshrl.u32 %v2868, 7
          %v2870 = vsub.s32 %v2807, %v2869
          %v2871 = vrot.slane %v2322, %v2870
          %v2872 = vsel %vm2812, %v2871, %v2867
          %v2873 = vlaneseq
          %v2874 = vshrl.u32 %v2873, 7
          %v2875 = vsub.s32 %v2814, %v2874
          %v2876 = vrot.slane %v2325, %v2875
          %v2877 = vsel %vm2819, %v2876, %v2872
          %v2878 = vlaneseq
          %v2879 = vshrl.u32 %v2878, 7
          %v2880 = vsub.s32 %v2795, %v2879
          %v2881 = vrot.slane %v2328, %v2880
          %v2882 = vlaneseq
          %v2883 = vshrl.u32 %v2882, 7
          %v2884 = vsub.s32 %v2800, %v2883
          %v2885 = vrot.slane %v2331, %v2884
          %v2886 = vsel %vm2805, %v2885, %v2881
          %v2887 = vlaneseq
          %v2888 = vshrl.u32 %v2887, 7
          %v2889 = vsub.s32 %v2807, %v2888
          %v2890 = vrot.slane %v2334, %v2889
          %v2891 = vsel %vm2812, %v2890, %v2886
          %v2892 = vlaneseq
          %v2893 = vshrl.u32 %v2892, 7
          %v2894 = vsub.s32 %v2814, %v2893
          %v2895 = vrot.slane %v2337, %v2894
          %v2896 = vsel %vm2819, %v2895, %v2891
          %v2897 = vlaneseq
          %v2898 = vshrl.u32 %v2897, 7
          %v2899 = vsub.s32 %v2795, %v2898
          %v2900 = vrot.slane %v2340, %v2899
          %v2901 = vlaneseq
          %v2902 = vshrl.u32 %v2901, 7
          %v2903 = vsub.s32 %v2800, %v2902
          %v2904 = vrot.slane %v2343, %v2903
          %v2905 = vsel %vm2805, %v2904, %v2900
          %v2906 = vlaneseq
          %v2907 = vshrl.u32 %v2906, 7
          %v2908 = vsub.s32 %v2807, %v2907
          %v2909 = vrot.slane %v2346, %v2908
          %v2910 = vsel %vm2812, %v2909, %v2905
          %v2911 = vlaneseq
          %v2912 = vshrl.u32 %v2911, 7
          %v2913 = vsub.s32 %v2814, %v2912
          %v2914 = vrot.slane %v2349, %v2913
          %v2915 = vsel %vm2819, %v2914, %v2910
          %v2916 = vlaneseq
          %v2917 = vshrl.u32 %v2916, 7
          %v2918 = vsub.s32 %v2795, %v2917
          %v2919 = vrot.slane %v2352, %v2918
          %v2920 = vlaneseq
          %v2921 = vshrl.u32 %v2920, 7
          %v2922 = vsub.s32 %v2800, %v2921
          %v2923 = vrot.slane %v2355, %v2922
          %v2924 = vsel %vm2805, %v2923, %v2919
          %v2925 = vlaneseq
          %v2926 = vshrl.u32 %v2925, 7
          %v2927 = vsub.s32 %v2807, %v2926
          %v2928 = vrot.slane %v2358, %v2927
          %v2929 = vsel %vm2812, %v2928, %v2924
          %v2930 = vlaneseq
          %v2931 = vshrl.u32 %v2930, 7
          %v2932 = vsub.s32 %v2814, %v2931
          %v2933 = vrot.slane %v2361, %v2932
          %v2934 = vsel %vm2819, %v2933, %v2929
          %v2935 = vlaneseq
          %v2936 = vshrl.u32 %v2935, 7
          %v2937 = vsub.s32 %v2795, %v2936
          %v2938 = vrot.slane %v2364, %v2937
          %v2939 = vlaneseq
          %v2940 = vshrl.u32 %v2939, 7
          %v2941 = vsub.s32 %v2800, %v2940
          %v2942 = vrot.slane %v2367, %v2941
          %v2943 = vsel %vm2805, %v2942, %v2938
          %v2944 = vlaneseq
          %v2945 = vshrl.u32 %v2944, 7
          %v2946 = vsub.s32 %v2807, %v2945
          %v2947 = vrot.slane %v2370, %v2946
          %v2948 = vsel %vm2812, %v2947, %v2943
          %v2949 = vlaneseq
          %v2950 = vshrl.u32 %v2949, 7
          %v2951 = vsub.s32 %v2814, %v2950
          %v2952 = vrot.slane %v2373, %v2951
          %v2953 = vsel %vm2819, %v2952, %v2948
          %v2954 = vlaneseq
          %v2955 = vshrl.u32 %v2954, 7
          %v2956 = vsub.s32 %v2795, %v2955
          %v2957 = vrot.slane %v2376, %v2956
          %v2958 = vlaneseq
          %v2959 = vshrl.u32 %v2958, 7
          %v2960 = vsub.s32 %v2800, %v2959
          %v2961 = vrot.slane %v2379, %v2960
          %v2962 = vsel %vm2805, %v2961, %v2957
          %v2963 = vlaneseq
          %v2964 = vshrl.u32 %v2963, 7
          %v2965 = vsub.s32 %v2807, %v2964
          %v2966 = vrot.slane %v2382, %v2965
          %v2967 = vsel %vm2812, %v2966, %v2962
          %v2968 = vlaneseq
          %v2969 = vshrl.u32 %v2968, 7
          %v2970 = vsub.s32 %v2814, %v2969
          %v2971 = vrot.slane %v2385, %v2970
          %v2972 = vsel %vm2819, %v2971, %v2967
          %v2973 = vlaneseq
          %v2974 = vshrl.u32 %v2973, 7
          %v2975 = vsub.s32 %v2795, %v2974
          %v2976 = vrot.slane %v2388, %v2975
          %v2977 = vlaneseq
          %v2978 = vshrl.u32 %v2977, 7
          %v2979 = vsub.s32 %v2800, %v2978
          %v2980 = vrot.slane %v2391, %v2979
          %v2981 = vsel %vm2805, %v2980, %v2976
          %v2982 = vlaneseq
          %v2983 = vshrl.u32 %v2982, 7
          %v2984 = vsub.s32 %v2807, %v2983
          %v2985 = vrot.slane %v2394, %v2984
          %v2986 = vsel %vm2812, %v2985, %v2981
          %v2987 = vlaneseq
          %v2988 = vshrl.u32 %v2987, 7
          %v2989 = vsub.s32 %v2814, %v2988
          %v2990 = vrot.slane %v2397, %v2989
          %v2991 = vsel %vm2819, %v2990, %v2986
          %v2992 = vlaneseq
          %v2993 = vshrl.u32 %v2992, 7
          %v2994 = vsub.s32 %v2795, %v2993
          %v2995 = vrot.slane %v2400, %v2994
          %v2996 = vlaneseq
          %v2997 = vshrl.u32 %v2996, 7
          %v2998 = vsub.s32 %v2800, %v2997
          %v2999 = vrot.slane %v2403, %v2998
          %v3000 = vsel %vm2805, %v2999, %v2995
          %v3001 = vlaneseq
          %v3002 = vshrl.u32 %v3001, 7
          %v3003 = vsub.s32 %v2807, %v3002
          %v3004 = vrot.slane %v2406, %v3003
          %v3005 = vsel %vm2812, %v3004, %v3000
          %v3006 = vlaneseq
          %v3007 = vshrl.u32 %v3006, 7
          %v3008 = vsub.s32 %v2814, %v3007
          %v3009 = vrot.slane %v2409, %v3008
          %v3010 = vsel %vm2819, %v3009, %v3005
          %v3011 = vlaneseq
          %v3012 = vshrl.u32 %v3011, 7
          %v3013 = vsub.s32 %v2795, %v3012
          %v3014 = vrot.slane %v2412, %v3013
          %v3015 = vlaneseq
          %v3016 = vshrl.u32 %v3015, 7
          %v3017 = vsub.s32 %v2800, %v3016
          %v3018 = vrot.slane %v2415, %v3017
          %v3019 = vsel %vm2805, %v3018, %v3014
          %v3020 = vlaneseq
          %v3021 = vshrl.u32 %v3020, 7
          %v3022 = vsub.s32 %v2807, %v3021
          %v3023 = vrot.slane %v2418, %v3022
          %v3024 = vsel %vm2812, %v3023, %v3019
          %v3025 = vlaneseq
          %v3026 = vshrl.u32 %v3025, 7
          %v3027 = vsub.s32 %v2814, %v3026
          %v3028 = vrot.slane %v2421, %v3027
          %v3029 = vsel %vm2819, %v3028, %v3024
          %v3030 = vlaneseq
          %v3031 = vshrl.u32 %v3030, 7
          %v3032 = vsub.s32 %v2795, %v3031
          %v3033 = vrot.slane %v2424, %v3032
          %v3034 = vlaneseq
          %v3035 = vshrl.u32 %v3034, 7
          %v3036 = vsub.s32 %v2800, %v3035
          %v3037 = vrot.slane %v2427, %v3036
          %v3038 = vsel %vm2805, %v3037, %v3033
          %v3039 = vlaneseq
          %v3040 = vshrl.u32 %v3039, 7
          %v3041 = vsub.s32 %v2807, %v3040
          %v3042 = vrot.slane %v2430, %v3041
          %v3043 = vsel %vm2812, %v3042, %v3038
          %v3044 = vlaneseq
          %v3045 = vshrl.u32 %v3044, 7
          %v3046 = vsub.s32 %v2814, %v3045
          %v3047 = vrot.slane %v2433, %v3046
          %v3048 = vsel %vm2819, %v3047, %v3043
          %v3049 = vlaneseq
          %v3050 = vshrl.u32 %v3049, 7
          %v3051 = vsub.s32 %v2795, %v3050
          %v3052 = vrot.slane %v2436, %v3051
          %v3053 = vlaneseq
          %v3054 = vshrl.u32 %v3053, 7
          %v3055 = vsub.s32 %v2800, %v3054
          %v3056 = vrot.slane %v2439, %v3055
          %v3057 = vsel %vm2805, %v3056, %v3052
          %v3058 = vlaneseq
          %v3059 = vshrl.u32 %v3058, 7
          %v3060 = vsub.s32 %v2807, %v3059
          %v3061 = vrot.slane %v2442, %v3060
          %v3062 = vsel %vm2812, %v3061, %v3057
          %v3063 = vlaneseq
          %v3064 = vshrl.u32 %v3063, 7
          %v3065 = vsub.s32 %v2814, %v3064
          %v3066 = vrot.slane %v2445, %v3065
          %v3067 = vsel %vm2819, %v3066, %v3062
          %v3068 = vlaneseq
          %v3069 = vshrl.u32 %v3068, 7
          %v3070 = vsub.s32 %v2795, %v3069
          %v3071 = vrot.slane %v2448, %v3070
          %v3072 = vlaneseq
          %v3073 = vshrl.u32 %v3072, 7
          %v3074 = vsub.s32 %v2800, %v3073
          %v3075 = vrot.slane %v2451, %v3074
          %v3076 = vsel %vm2805, %v3075, %v3071
          %v3077 = vlaneseq
          %v3078 = vshrl.u32 %v3077, 7
          %v3079 = vsub.s32 %v2807, %v3078
          %v3080 = vrot.slane %v2454, %v3079
          %v3081 = vsel %vm2812, %v3080, %v3076
          %v3082 = vlaneseq
          %v3083 = vshrl.u32 %v3082, 7
          %v3084 = vsub.s32 %v2814, %v3083
          %v3085 = vrot.slane %v2457, %v3084
          %v3086 = vsel %vm2819, %v3085, %v3081
          %v3087 = vlaneseq
          %v3088 = vshrl.u32 %v3087, 7
          %v3089 = vsub.s32 %v2795, %v3088
          %v3090 = vrot.slane %v2460, %v3089
          %v3091 = vlaneseq
          %v3092 = vshrl.u32 %v3091, 7
          %v3093 = vsub.s32 %v2800, %v3092
          %v3094 = vrot.slane %v2463, %v3093
          %v3095 = vsel %vm2805, %v3094, %v3090
          %v3096 = vlaneseq
          %v3097 = vshrl.u32 %v3096, 7
          %v3098 = vsub.s32 %v2807, %v3097
          %v3099 = vrot.slane %v2466, %v3098
          %v3100 = vsel %vm2812, %v3099, %v3095
          %v3101 = vlaneseq
          %v3102 = vshrl.u32 %v3101, 7
          %v3103 = vsub.s32 %v2814, %v3102
          %v3104 = vrot.slane %v2469, %v3103
          %v3105 = vsel %vm2819, %v3104, %v3100
          %v3106 = vlaneseq
          %v3107 = vshrl.u32 %v3106, 7
          %v3108 = vsub.s32 %v2795, %v3107
          %v3109 = vrot.slane %v2472, %v3108
          %v3110 = vlaneseq
          %v3111 = vshrl.u32 %v3110, 7
          %v3112 = vsub.s32 %v2800, %v3111
          %v3113 = vrot.slane %v2475, %v3112
          %v3114 = vsel %vm2805, %v3113, %v3109
          %v3115 = vlaneseq
          %v3116 = vshrl.u32 %v3115, 7
          %v3117 = vsub.s32 %v2807, %v3116
          %v3118 = vrot.slane %v2478, %v3117
          %v3119 = vsel %vm2812, %v3118, %v3114
          %v3120 = vlaneseq
          %v3121 = vshrl.u32 %v3120, 7
          %v3122 = vsub.s32 %v2814, %v3121
          %v3123 = vrot.slane %v2481, %v3122
          %v3124 = vsel %vm2819, %v3123, %v3119
          %v3125 = vlaneseq
          %v3126 = vshrl.u32 %v3125, 7
          %v3127 = vsub.s32 %v2795, %v3126
          %v3128 = vrot.slane %v2484, %v3127
          %v3129 = vlaneseq
          %v3130 = vshrl.u32 %v3129, 7
          %v3131 = vsub.s32 %v2800, %v3130
          %v3132 = vrot.slane %v2487, %v3131
          %v3133 = vsel %vm2805, %v3132, %v3128
          %v3134 = vlaneseq
          %v3135 = vshrl.u32 %v3134, 7
          %v3136 = vsub.s32 %v2807, %v3135
          %v3137 = vrot.slane %v2490, %v3136
          %v3138 = vsel %vm2812, %v3137, %v3133
          %v3139 = vlaneseq
          %v3140 = vshrl.u32 %v3139, 7
          %v3141 = vsub.s32 %v2814, %v3140
          %v3142 = vrot.slane %v2493, %v3141
          %v3143 = vsel %vm2819, %v3142, %v3138
          %v3144 = vlaneseq
          %v3145 = vshrl.u32 %v3144, 7
          %v3146 = vsub.s32 %v2795, %v3145
          %v3147 = vrot.slane %v2496, %v3146
          %v3148 = vlaneseq
          %v3149 = vshrl.u32 %v3148, 7
          %v3150 = vsub.s32 %v2800, %v3149
          %v3151 = vrot.slane %v2499, %v3150
          %v3152 = vsel %vm2805, %v3151, %v3147
          %v3153 = vlaneseq
          %v3154 = vshrl.u32 %v3153, 7
          %v3155 = vsub.s32 %v2807, %v3154
          %v3156 = vrot.slane %v2502, %v3155
          %v3157 = vsel %vm2812, %v3156, %v3152
          %v3158 = vlaneseq
          %v3159 = vshrl.u32 %v3158, 7
          %v3160 = vsub.s32 %v2814, %v3159
          %v3161 = vrot.slane %v2505, %v3160
          %v3162 = vsel %vm2819, %v3161, %v3157
          %v3163 = vlaneseq
          %v3164 = vshrl.u32 %v3163, 7
          %v3165 = vsub.s32 %v2795, %v3164
          %v3166 = vrot.slane %v2508, %v3165
          %v3167 = vlaneseq
          %v3168 = vshrl.u32 %v3167, 7
          %v3169 = vsub.s32 %v2800, %v3168
          %v3170 = vrot.slane %v2511, %v3169
          %v3171 = vsel %vm2805, %v3170, %v3166
          %v3172 = vlaneseq
          %v3173 = vshrl.u32 %v3172, 7
          %v3174 = vsub.s32 %v2807, %v3173
          %v3175 = vrot.slane %v2514, %v3174
          %v3176 = vsel %vm2812, %v3175, %v3171
          %v3177 = vlaneseq
          %v3178 = vshrl.u32 %v3177, 7
          %v3179 = vsub.s32 %v2814, %v3178
          %v3180 = vrot.slane %v2517, %v3179
          %v3181 = vsel %vm2819, %v3180, %v3176
          %v3182 = vlaneseq
          %v3183 = vshrl.u32 %v3182, 7
          %v3184 = vsub.s32 %v2795, %v3183
          %v3185 = vrot.slane %v2520, %v3184
          %v3186 = vlaneseq
          %v3187 = vshrl.u32 %v3186, 7
          %v3188 = vsub.s32 %v2800, %v3187
          %v3189 = vrot.slane %v2523, %v3188
          %v3190 = vsel %vm2805, %v3189, %v3185
          %v3191 = vlaneseq
          %v3192 = vshrl.u32 %v3191, 7
          %v3193 = vsub.s32 %v2807, %v3192
          %v3194 = vrot.slane %v2526, %v3193
          %v3195 = vsel %vm2812, %v3194, %v3190
          %v3196 = vlaneseq
          %v3197 = vshrl.u32 %v3196, 7
          %v3198 = vsub.s32 %v2814, %v3197
          %v3199 = vrot.slane %v2529, %v3198
          %v3200 = vsel %vm2819, %v3199, %v3195
          %v3201 = vlaneseq
          %v3202 = vshrl.u32 %v3201, 7
          %v3203 = vsub.s32 %v2795, %v3202
          %v3204 = vrot.slane %v2532, %v3203
          %v3205 = vlaneseq
          %v3206 = vshrl.u32 %v3205, 7
          %v3207 = vsub.s32 %v2800, %v3206
          %v3208 = vrot.slane %v2535, %v3207
          %v3209 = vsel %vm2805, %v3208, %v3204
          %v3210 = vlaneseq
          %v3211 = vshrl.u32 %v3210, 7
          %v3212 = vsub.s32 %v2807, %v3211
          %v3213 = vrot.slane %v2538, %v3212
          %v3214 = vsel %vm2812, %v3213, %v3209
          %v3215 = vlaneseq
          %v3216 = vshrl.u32 %v3215, 7
          %v3217 = vsub.s32 %v2814, %v3216
          %v3218 = vrot.slane %v2541, %v3217
          %v3219 = vsel %vm2819, %v3218, %v3214
          %v3220 = vlaneseq
          %v3221 = vshrl.u32 %v3220, 7
          %v3222 = vsub.s32 %v2795, %v3221
          %v3223 = vrot.slane %v2544, %v3222
          %v3224 = vlaneseq
          %v3225 = vshrl.u32 %v3224, 7
          %v3226 = vsub.s32 %v2800, %v3225
          %v3227 = vrot.slane %v2547, %v3226
          %v3228 = vsel %vm2805, %v3227, %v3223
          %v3229 = vlaneseq
          %v3230 = vshrl.u32 %v3229, 7
          %v3231 = vsub.s32 %v2807, %v3230
          %v3232 = vrot.slane %v2550, %v3231
          %v3233 = vsel %vm2812, %v3232, %v3228
          %v3234 = vlaneseq
          %v3235 = vshrl.u32 %v3234, 7
          %v3236 = vsub.s32 %v2814, %v3235
          %v3237 = vrot.slane %v2553, %v3236
          %v3238 = vsel %vm2819, %v3237, %v3233
          %v3239 = vlaneseq
          %v3240 = vshrl.u32 %v3239, 7
          %v3241 = vsub.s32 %v2795, %v3240
          %v3242 = vrot.slane %v2556, %v3241
          %v3243 = vlaneseq
          %v3244 = vshrl.u32 %v3243, 7
          %v3245 = vsub.s32 %v2800, %v3244
          %v3246 = vrot.slane %v2559, %v3245
          %v3247 = vsel %vm2805, %v3246, %v3242
          %v3248 = vlaneseq
          %v3249 = vshrl.u32 %v3248, 7
          %v3250 = vsub.s32 %v2807, %v3249
          %v3251 = vrot.slane %v2562, %v3250
          %v3252 = vsel %vm2812, %v3251, %v3247
          %v3253 = vlaneseq
          %v3254 = vshrl.u32 %v3253, 7
          %v3255 = vsub.s32 %v2814, %v3254
          %v3256 = vrot.slane %v2565, %v3255
          %v3257 = vsel %vm2819, %v3256, %v3252
          %v3258 = vlaneseq
          %v3259 = vshrl.u32 %v3258, 7
          %v3260 = vsub.s32 %v2795, %v3259
          %v3261 = vrot.slane %v2568, %v3260
          %v3262 = vlaneseq
          %v3263 = vshrl.u32 %v3262, 7
          %v3264 = vsub.s32 %v2800, %v3263
          %v3265 = vrot.slane %v2571, %v3264
          %v3266 = vsel %vm2805, %v3265, %v3261
          %v3267 = vlaneseq
          %v3268 = vshrl.u32 %v3267, 7
          %v3269 = vsub.s32 %v2807, %v3268
          %v3270 = vrot.slane %v2574, %v3269
          %v3271 = vsel %vm2812, %v3270, %v3266
          %v3272 = vlaneseq
          %v3273 = vshrl.u32 %v3272, 7
          %v3274 = vsub.s32 %v2814, %v3273
          %v3275 = vrot.slane %v2577, %v3274
          %v3276 = vsel %vm2819, %v3275, %v3271
          %v3277 = vlaneseq
          %v3278 = vshrl.u32 %v3277, 7
          %v3279 = vsub.s32 %v2795, %v3278
          %v3280 = vrot.slane %v2580, %v3279
          %v3281 = vlaneseq
          %v3282 = vshrl.u32 %v3281, 7
          %v3283 = vsub.s32 %v2800, %v3282
          %v3284 = vrot.slane %v2583, %v3283
          %v3285 = vsel %vm2805, %v3284, %v3280
          %v3286 = vlaneseq
          %v3287 = vshrl.u32 %v3286, 7
          %v3288 = vsub.s32 %v2807, %v3287
          %v3289 = vrot.slane %v2586, %v3288
          %v3290 = vsel %vm2812, %v3289, %v3285
          %v3291 = vlaneseq
          %v3292 = vshrl.u32 %v3291, 7
          %v3293 = vsub.s32 %v2814, %v3292
          %v3294 = vrot.slane %v2589, %v3293
          %v3295 = vsel %vm2819, %v3294, %v3290
          %v3296 = vlaneseq
          %v3297 = vshrl.u32 %v3296, 7
          %v3298 = vsub.s32 %v2795, %v3297
          %v3299 = vrot.slane %v2592, %v3298
          %v3300 = vlaneseq
          %v3301 = vshrl.u32 %v3300, 7
          %v3302 = vsub.s32 %v2800, %v3301
          %v3303 = vrot.slane %v2595, %v3302
          %v3304 = vsel %vm2805, %v3303, %v3299
          %v3305 = vlaneseq
          %v3306 = vshrl.u32 %v3305, 7
          %v3307 = vsub.s32 %v2807, %v3306
          %v3308 = vrot.slane %v2598, %v3307
          %v3309 = vsel %vm2812, %v3308, %v3304
          %v3310 = vlaneseq
          %v3311 = vshrl.u32 %v3310, 7
          %v3312 = vsub.s32 %v2814, %v3311
          %v3313 = vrot.slane %v2601, %v3312
          %v3314 = vsel %vm2819, %v3313, %v3309
          %v3315 = vlaneseq
          %v3316 = vshrl.u32 %v3315, 7
          %v3317 = vsub.s32 %v2795, %v3316
          %v3318 = vrot.slane %v2604, %v3317
          %v3319 = vlaneseq
          %v3320 = vshrl.u32 %v3319, 7
          %v3321 = vsub.s32 %v2800, %v3320
          %v3322 = vrot.slane %v2607, %v3321
          %v3323 = vsel %vm2805, %v3322, %v3318
          %v3324 = vlaneseq
          %v3325 = vshrl.u32 %v3324, 7
          %v3326 = vsub.s32 %v2807, %v3325
          %v3327 = vrot.slane %v2610, %v3326
          %v3328 = vsel %vm2812, %v3327, %v3323
          %v3329 = vlaneseq
          %v3330 = vshrl.u32 %v3329, 7
          %v3331 = vsub.s32 %v2814, %v3330
          %v3332 = vrot.slane %v2613, %v3331
          %v3333 = vsel %vm2819, %v3332, %v3328
          %v3334 = vlaneseq
          %v3335 = vshrl.u32 %v3334, 7
          %v3336 = vsub.s32 %v2795, %v3335
          %v3337 = vrot.slane %v2616, %v3336
          %v3338 = vlaneseq
          %v3339 = vshrl.u32 %v3338, 7
          %v3340 = vsub.s32 %v2800, %v3339
          %v3341 = vrot.slane %v2619, %v3340
          %v3342 = vsel %vm2805, %v3341, %v3337
          %v3343 = vlaneseq
          %v3344 = vshrl.u32 %v3343, 7
          %v3345 = vsub.s32 %v2807, %v3344
          %v3346 = vrot.slane %v2622, %v3345
          %v3347 = vsel %vm2812, %v3346, %v3342
          %v3348 = vlaneseq
          %v3349 = vshrl.u32 %v3348, 7
          %v3350 = vsub.s32 %v2814, %v3349
          %v3351 = vrot.slane %v2625, %v3350
          %v3352 = vsel %vm2819, %v3351, %v3347
          %v3353 = vlaneseq
          %v3354 = vshrl.u32 %v3353, 7
          %v3355 = vsub.s32 %v2795, %v3354
          %v3356 = vrot.slane %v2628, %v3355
          %v3357 = vlaneseq
          %v3358 = vshrl.u32 %v3357, 7
          %v3359 = vsub.s32 %v2800, %v3358
          %v3360 = vrot.slane %v2631, %v3359
          %v3361 = vsel %vm2805, %v3360, %v3356
          %v3362 = vlaneseq
          %v3363 = vshrl.u32 %v3362, 7
          %v3364 = vsub.s32 %v2807, %v3363
          %v3365 = vrot.slane %v2634, %v3364
          %v3366 = vsel %vm2812, %v3365, %v3361
          %v3367 = vlaneseq
          %v3368 = vshrl.u32 %v3367, 7
          %v3369 = vsub.s32 %v2814, %v3368
          %v3370 = vrot.slane %v2637, %v3369
          %v3371 = vsel %vm2819, %v3370, %v3366
          %v3372 = vlaneseq
          %v3373 = vshrl.u32 %v3372, 7
          %v3374 = vsub.s32 %v2795, %v3373
          %v3375 = vrot.slane %v2640, %v3374
          %v3376 = vlaneseq
          %v3377 = vshrl.u32 %v3376, 7
          %v3378 = vsub.s32 %v2800, %v3377
          %v3379 = vrot.slane %v2643, %v3378
          %v3380 = vsel %vm2805, %v3379, %v3375
          %v3381 = vlaneseq
          %v3382 = vshrl.u32 %v3381, 7
          %v3383 = vsub.s32 %v2807, %v3382
          %v3384 = vrot.slane %v2646, %v3383
          %v3385 = vsel %vm2812, %v3384, %v3380
          %v3386 = vlaneseq
          %v3387 = vshrl.u32 %v3386, 7
          %v3388 = vsub.s32 %v2814, %v3387
          %v3389 = vrot.slane %v2649, %v3388
          %v3390 = vsel %vm2819, %v3389, %v3385
          %v3391 = vlaneseq
          %v3392 = vshrl.u32 %v3391, 7
          %v3393 = vsub.s32 %v2795, %v3392
          %v3394 = vrot.slane %v2652, %v3393
          %v3395 = vlaneseq
          %v3396 = vshrl.u32 %v3395, 7
          %v3397 = vsub.s32 %v2800, %v3396
          %v3398 = vrot.slane %v2655, %v3397
          %v3399 = vsel %vm2805, %v3398, %v3394
          %v3400 = vlaneseq
          %v3401 = vshrl.u32 %v3400, 7
          %v3402 = vsub.s32 %v2807, %v3401
          %v3403 = vrot.slane %v2658, %v3402
          %v3404 = vsel %vm2812, %v3403, %v3399
          %v3405 = vlaneseq
          %v3406 = vshrl.u32 %v3405, 7
          %v3407 = vsub.s32 %v2814, %v3406
          %v3408 = vrot.slane %v2661, %v3407
          %v3409 = vsel %vm2819, %v3408, %v3404
          %vm3410 = vcmask 1041409
          %v3411 = vsel %vm3410, %v2839, %v2820
          %vm3412 = vcmask 1042434
          %v3413 = vsel %vm3412, %v2858, %v3411
          %vm3414 = vcmask 1043459
          %v3415 = vsel %vm3414, %v2877, %v3413
          %vm3416 = vcmask 1044484
          %v3417 = vsel %vm3416, %v2896, %v3415
          %vm3418 = vcmask 1045509
          %v3419 = vsel %vm3418, %v2915, %v3417
          %vm3420 = vcmask 1046534
          %v3421 = vsel %vm3420, %v2934, %v3419
          %vm3422 = vcmask 1047559
          %v3423 = vsel %vm3422, %v2953, %v3421
          %v3424 = vsel %vm3410, %v2991, %v2972
          %v3425 = vsel %vm3412, %v3010, %v3424
          %v3426 = vsel %vm3414, %v3029, %v3425
          %v3427 = vsel %vm3416, %v3048, %v3426
          %v3428 = vsel %vm3418, %v3067, %v3427
          %v3429 = vsel %vm3420, %v3086, %v3428
          %v3430 = vsel %vm3422, %v3105, %v3429
          %v3431 = vsel %vm3410, %v3143, %v3124
          %v3432 = vsel %vm3412, %v3162, %v3431
          %v3433 = vsel %vm3414, %v3181, %v3432
          %v3434 = vsel %vm3416, %v3200, %v3433
          %v3435 = vsel %vm3418, %v3219, %v3434
          %v3436 = vsel %vm3420, %v3238, %v3435
          %v3437 = vsel %vm3422, %v3257, %v3436
          %v3438 = vsel %vm3410, %v3295, %v3276
          %v3439 = vsel %vm3412, %v3314, %v3438
          %v3440 = vsel %vm3414, %v3333, %v3439
          %v3441 = vsel %vm3416, %v3352, %v3440
          %v3442 = vsel %vm3418, %v3371, %v3441
          %v3443 = vsel %vm3420, %v3390, %v3442
          %v3444 = vsel %vm3422, %v3409, %v3443
          %v3449 = vsel %vm2662, %v3423, -1e+30
          %v3450 = vsel %vm2663, %v3430, -1e+30
          %v3451 = vsel %vm2664, %v3437, -1e+30
          %v3452 = vsel %vm2665, %v3444, -1e+30
          %vm3453 = vcmask 261120
          %v3454 = vsel %vm3453, %v3449, -inf
          %3455 = vmax.xlane.f32.xlu0 %v3454
          %v3456 = vpop.xlane.xlu0 %3455
          %v3457 = vsel %vm3453, %v3450, -inf
          %3458 = vmax.xlane.f32.xlu0 %v3457
          %v3459 = vpop.xlane.xlu0 %3458
          %v3460 = vsel %vm3453, %v3451, -inf
          %3461 = vmax.xlane.f32.xlu0 %v3460
          %v3462 = vpop.xlane.xlu0 %3461
          %v3463 = vsel %vm3453, %v3452, -inf
          %3464 = vmax.xlane.f32.xlu0 %v3463
          %v3465 = vpop.xlane.xlu0 %3464
          %v3466 = vsub.f32 %v3449, %v3456
          %v3467 = vsub.f32 %v3450, %v3459
          %v3468 = vsub.f32 %v3451, %v3462
          %v3469 = vsub.f32 %v3452, %v3465
          %v3470 = vmul.f32 %v3466, 1.442695
          %v3471 = vpow.pop %v3470
          %v3472 = vmul.f32 %v3467, 1.442695
          %v3473 = vpow.pop %v3472
          %v3474 = vmul.f32 %v3468, 1.442695
          %v3475 = vpow.pop %v3474
          %v3476 = vmul.f32 %v3469, 1.442695
          %v3477 = vpow.pop %v3476
          %v3478 = vsel %vm3453, %v3471, 0.0
          %3479 = vadd.xlane.f32.xlu0 %v3478
          %v3480 = vpop.xlane.xlu0 %3479
          %v3481 = vsel %vm3453, %v3473, 0.0
          %3482 = vadd.xlane.f32.xlu0 %v3481
          %v3483 = vpop.xlane.xlu0 %3482
          %v3484 = vsel %vm3453, %v3475, 0.0
          %3485 = vadd.xlane.f32.xlu0 %v3484
          %v3486 = vpop.xlane.xlu0 %3485
          %v3487 = vsel %vm3453, %v3477, 0.0
          %3488 = vadd.xlane.f32.xlu0 %v3487
          %v3489 = vpop.xlane.xlu0 %3488
          %v3490 = vrcp.pop %v3480
          %v3491 = vmul.f32 %v3471, %v3490
          %v3492 = vrcp.pop %v3483
          %v3493 = vmul.f32 %v3473, %v3492
          %v3494 = vrcp.pop %v3486
          %v3495 = vmul.f32 %v3475, %v3494
          %v3496 = vrcp.pop %v3489
          %v3497 = vmul.f32 %v3477, %v3496
          %v3499 = vsel %vm3453, %v3491, 0
          %v3502 = vsel %vm3453, %v3493, 0
          %v3505 = vsel %vm3453, %v3495, 0
          %v3508 = vsel %vm3453, %v3497, 0
          %3510 = vmatprep.subr.mxu0 0.0
          %3511 = vmatpush1.msra.mxu0 %v1162
          %3512 = vmatprep.subr.mxu0 0.0
          %3513 = vmatpush1.msra.mxu0 %v1167
          %3514 = vmatprep.subr.mxu0 0.0
          %3515 = vmatpush1.msra.mxu0 %v1172
          %3516 = vmatprep.subr.mxu0 0.0
          %3517 = vmatpush1.msra.mxu0 %v1177
          %3518 = vmatprep.subr.mxu0 0.0
          %3519 = vmatpush1.msra.mxu0 0.0
          %3520 = vmatprep.subr.mxu0 0.0
          %3521 = vmatpush1.msra.mxu0 0.0
          %3522 = vmatprep.subr.mxu0 0.0
          %3523 = vmatpush1.msra.mxu0 0.0
          %3524 = vmatprep.subr.mxu0 0.0
          %3525 = vmatpush1.msra.mxu0 0.0
          %3526 = vmatprep.subr.mxu0 0.0
          %3527 = vmatpush1.msra.mxu0 0.0
          %3528 = vmatprep.subr.mxu0 0.0
          %3529 = vmatpush1.msra.mxu0 0.0
          %3530 = vmatprep.subr.mxu0 0.0
          %3531 = vmatpush1.msra.mxu0 0.0
          %3532 = vmatprep.subr.mxu0 0.0
          %3533 = vmatpush1.msra.mxu0 0.0
          %3534 = vmatprep.subr.mxu0 0.0
          %3535 = vmatpush1.msra.mxu0 0.0
          %3536 = vmatprep.subr.mxu0 0.0
          %3537 = vmatpush1.msra.mxu0 0.0
          %3538 = vmatprep.subr.mxu0 0.0
          %3539 = vmatpush1.msra.mxu0 0.0
          %3540 = vmatprep.subr.mxu0 0.0
          %3541 = vmatpush1.msra.mxu0 0.0
          %3542 = vmatprep.subr.mxu0 0.0
          %3543 = vmatpush1.msra.mxu0 0.0
          %3544 = vmatprep.subr.mxu0 0.0
          %3545 = vmatpush1.msra.mxu0 0.0
          %3546 = vmatprep.subr.mxu0 0.0
          %3547 = vmatpush1.msra.mxu0 0.0
          %3548 = vmatprep.subr.mxu0 0.0
          %3549 = vmatpush1.msra.mxu0 0.0
          %3550 = vmatprep.subr.mxu0 0.0
          %3551 = vmatpush1.msra.mxu0 0.0
          %3552 = vmatprep.subr.mxu0 0.0
          %3553 = vmatpush1.msra.mxu0 0.0
          %3554 = vmatprep.subr.mxu0 0.0
          %3555 = vmatpush1.msra.mxu0 0.0
          %3556 = vmatprep.subr.mxu0 0.0
          %3557 = vmatpush1.msra.mxu0 0.0
          %3558 = vmatprep.subr.mxu0 0.0
          %3559 = vmatpush1.msra.mxu0 0.0
          %3560 = vmatprep.subr.mxu0 0.0
          %3561 = vmatpush1.msra.mxu0 0.0
          %3562 = vmatprep.subr.mxu0 0.0
          %3563 = vmatpush1.msra.mxu0 0.0
          %3564 = vmatprep.subr.mxu0 0.0
          %3565 = vmatpush1.msra.mxu0 0.0
          %3566 = vmatprep.subr.mxu0 0.0
          %3567 = vmatpush1.msra.mxu0 0.0
          %3568 = vmatprep.subr.mxu0 0.0
          %3569 = vmatpush1.msra.mxu0 0.0
          %3570 = vmatprep.subr.mxu0 0.0
          %3571 = vmatpush1.msra.mxu0 0.0
          %3572 = vmatprep.subr.mxu0 0.0
          %3573 = vmatpush1.msra.mxu0 0.0
          %3574 = vmatprep.mubr.f32.mxu0 0.0
          %3575 = vmatmul.mubr.f32.gmra.mrb[0].mxu0 %v3499
          %v3576 = vpop.f32.mrb[0].mxu0
          %v3577 = vadd.f32 0.0, %v3576
          %v3578 = vpop.f32.mrb[0].mxu0
          %3579 = vmatprep.mubr.f32.mxu0 0.0
          %3580 = vmatmul.mubr.f32.gmra.mrb[0].mxu0 %v3502
          %v3581 = vpop.f32.mrb[0].mxu0
          %v3582 = vadd.f32 0.0, %v3581
          %v3583 = vpop.f32.mrb[0].mxu0
          %3584 = vmatprep.mubr.f32.mxu0 0.0
          %3585 = vmatmul.mubr.f32.gmra.mrb[0].mxu0 %v3505
          %v3586 = vpop.f32.mrb[0].mxu0
          %v3587 = vadd.f32 0.0, %v3586
          %v3588 = vpop.f32.mrb[0].mxu0
          %3589 = vmatprep.mubr.f32.mxu0 0.0
          %3590 = vmatmul.mubr.f32.gmra.mrb[0].mxu0 %v3508
          %v3591 = vpop.f32.mrb[0].mxu0
          %v3592 = vadd.f32 0.0, %v3591
          %v3593 = vpop.f32.mrb[0].mxu0
          %3594 = vdwg.mxu0
          %v3596 = vlaneseq
          %v3597 = vshrl.u32 %v3596, 7
          %v3598 = vsub.s32 0, %v3597
          %v3599 = vrot.slane %v1074, %v3598
          %3600 = vrot.lane.b32.xlu0 %v3599, 64
          %v3601 = vpop.permute.xlu0 %3600
          %v3603 = vmul.f32 %v2015, %v3601
          %v3604 = vmul.f32 %v2016, %v3601
          %v3605 = vmul.f32 %v2017, %v3601
          %v3606 = vmul.f32 %v2018, %v3601
          %v3607 = vmul.f32 %v2019, %v3601
          %v3608 = vmul.f32 %v2020, %v3601
          %v3609 = vmul.f32 %v2021, %v3601
          %v3610 = vmul.f32 %v2022, %v3601
          %v3611 = vmul.f32 %v2023, %v3601
          %v3612 = vmul.f32 %v2024, %v3601
          %v3613 = vmul.f32 %v2025, %v3601
          %v3614 = vmul.f32 %v2026, %v3601
          %v3615 = vmul.f32 %v2027, %v3601
          %v3616 = vmul.f32 %v2028, %v3601
          %v3617 = vmul.f32 %v2029, %v3601
          %v3618 = vmul.f32 %v2030, %v3601
          %v3619 = vmul.f32 %v2031, %v3601
          %v3620 = vmul.f32 %v2032, %v3601
          %v3621 = vmul.f32 %v2033, %v3601
          %v3622 = vmul.f32 %v2034, %v3601
          %v3623 = vmul.f32 %v2035, %v3601
          %v3624 = vmul.f32 %v2036, %v3601
          %v3625 = vmul.f32 %v2037, %v3601
          %v3626 = vmul.f32 %v2038, %v3601
          %v3627 = vmul.f32 %v2039, %v3601
          %v3628 = vmul.f32 %v2040, %v3601
          %v3629 = vmul.f32 %v2041, %v3601
          %v3630 = vmul.f32 %v2042, %v3601
          %v3631 = vmul.f32 %v2043, %v3601
          %v3632 = vmul.f32 %v2044, %v3601
          %v3633 = vmul.f32 %v2045, %v3601
          %v3634 = vmul.f32 %v2046, %v3601
          %v3635 = vmul.f32 %v2047, %v3601
          %v3636 = vmul.f32 %v2048, %v3601
          %v3637 = vmul.f32 %v2049, %v3601
          %v3638 = vmul.f32 %v2050, %v3601
          %v3639 = vmul.f32 %v2051, %v3601
          %v3640 = vmul.f32 %v2052, %v3601
          %v3641 = vmul.f32 %v2053, %v3601
          %v3642 = vmul.f32 %v2054, %v3601
          %v3643 = vmul.f32 %v2055, %v3601
          %v3644 = vmul.f32 %v2056, %v3601
          %v3645 = vmul.f32 %v2057, %v3601
          %v3646 = vmul.f32 %v2058, %v3601
          %v3647 = vmul.f32 %v2059, %v3601
          %v3648 = vmul.f32 %v2060, %v3601
          %v3649 = vmul.f32 %v2061, %v3601
          %v3650 = vmul.f32 %v2062, %v3601
          %v3651 = vmul.f32 %v2063, %v3601
          %v3652 = vmul.f32 %v2064, %v3601
          %v3653 = vmul.f32 %v2065, %v3601
          %v3654 = vmul.f32 %v2066, %v3601
          %v3655 = vmul.f32 %v2067, %v3601
          %v3656 = vmul.f32 %v2068, %v3601
          %v3657 = vmul.f32 %v2069, %v3601
          %v3658 = vmul.f32 %v2070, %v3601
          %v3659 = vmul.f32 %v2071, %v3601
          %v3660 = vmul.f32 %v2072, %v3601
          %v3661 = vmul.f32 %v2073, %v3601
          %v3662 = vmul.f32 %v2074, %v3601
          %v3663 = vmul.f32 %v2075, %v3601
          %v3664 = vmul.f32 %v2076, %v3601
          %v3665 = vmul.f32 %v2077, %v3601
          %v3666 = vmul.f32 %v2078, %v3601
          %v3667 = vmul.f32 %v2079, %v3601
          %v3668 = vmul.f32 %v2080, %v3601
          %v3669 = vmul.f32 %v2081, %v3601
          %v3670 = vmul.f32 %v2082, %v3601
          %v3671 = vmul.f32 %v2083, %v3601
          %v3672 = vmul.f32 %v2084, %v3601
          %v3673 = vmul.f32 %v2085, %v3601
          %v3674 = vmul.f32 %v2086, %v3601
          %v3675 = vmul.f32 %v2087, %v3601
          %v3676 = vmul.f32 %v2088, %v3601
          %v3677 = vmul.f32 %v2089, %v3601
          %v3678 = vmul.f32 %v2090, %v3601
          %v3679 = vmul.f32 %v2091, %v3601
          %v3680 = vmul.f32 %v2092, %v3601
          %v3681 = vmul.f32 %v2093, %v3601
          %v3682 = vmul.f32 %v2094, %v3601
          %v3683 = vmul.f32 %v2095, %v3601
          %v3684 = vmul.f32 %v2096, %v3601
          %v3685 = vmul.f32 %v2097, %v3601
          %v3686 = vmul.f32 %v2098, %v3601
          %v3687 = vmul.f32 %v2099, %v3601
          %v3688 = vmul.f32 %v2100, %v3601
          %v3689 = vmul.f32 %v2101, %v3601
          %v3690 = vmul.f32 %v2102, %v3601
          %v3691 = vmul.f32 %v2103, %v3601
          %v3692 = vmul.f32 %v2104, %v3601
          %v3693 = vmul.f32 %v2105, %v3601
          %v3694 = vmul.f32 %v2106, %v3601
          %v3695 = vmul.f32 %v2107, %v3601
          %v3696 = vmul.f32 %v2108, %v3601
          %v3697 = vmul.f32 %v2109, %v3601
          %v3698 = vmul.f32 %v2110, %v3601
          %v3699 = vmul.f32 %v2111, %v3601
          %v3700 = vmul.f32 %v2112, %v3601
          %v3701 = vmul.f32 %v2113, %v3601
          %v3702 = vmul.f32 %v2114, %v3601
          %v3703 = vmul.f32 %v2115, %v3601
          %v3704 = vmul.f32 %v2116, %v3601
          %v3705 = vmul.f32 %v2117, %v3601
          %v3706 = vmul.f32 %v2118, %v3601
          %v3707 = vmul.f32 %v2119, %v3601
          %v3708 = vmul.f32 %v2120, %v3601
          %v3709 = vmul.f32 %v2121, %v3601
          %v3710 = vmul.f32 %v2122, %v3601
          %v3711 = vmul.f32 %v2123, %v3601
          %v3712 = vmul.f32 %v2124, %v3601
          %v3713 = vmul.f32 %v2125, %v3601
          %v3714 = vmul.f32 %v2126, %v3601
          %v3715 = vmul.f32 %v2127, %v3601
          %v3716 = vmul.f32 %v2128, %v3601
          %v3717 = vmul.f32 %v2129, %v3601
          %v3718 = vmul.f32 %v2130, %v3601
          %v3719 = vmul.f32 %v2131, %v3601
          %v3720 = vmul.f32 %v2132, %v3601
          %v3721 = vmul.f32 %v2133, %v3601
          %v3722 = vmul.f32 %v2134, %v3601
          %v3723 = vmul.f32 %v2135, %v3601
          %v3724 = vmul.f32 %v2136, %v3601
          %v3725 = vmul.f32 %v2137, %v3601
          %v3726 = vmul.f32 %v2138, %v3601
          %v3727 = vmul.f32 %v2139, %v3601
          %v3728 = vmul.f32 %v2140, %v3601
          %v3729 = vmul.f32 %v2141, %v3601
          %v3730 = vmul.f32 %v2142, %v3601
          %3859 = vrot.lane.b32.xlu0 %v3603, 64
          %v3860 = vpop.permute.xlu0 %3859
          %3861 = vrot.lane.b32.xlu0 %v3604, 64
          %v3862 = vpop.permute.xlu0 %3861
          %3863 = vrot.lane.b32.xlu0 %v3605, 64
          %v3864 = vpop.permute.xlu0 %3863
          %3865 = vrot.lane.b32.xlu0 %v3606, 64
          %v3866 = vpop.permute.xlu0 %3865
          %3867 = vrot.lane.b32.xlu0 %v3607, 64
          %v3868 = vpop.permute.xlu0 %3867
          %3869 = vrot.lane.b32.xlu0 %v3608, 64
          %v3870 = vpop.permute.xlu0 %3869
          %3871 = vrot.lane.b32.xlu0 %v3609, 64
          %v3872 = vpop.permute.xlu0 %3871
          %3873 = vrot.lane.b32.xlu0 %v3610, 64
          %v3874 = vpop.permute.xlu0 %3873
          %3875 = vrot.lane.b32.xlu0 %v3611, 64
          %v3876 = vpop.permute.xlu0 %3875
          %3877 = vrot.lane.b32.xlu0 %v3612, 64
          %v3878 = vpop.permute.xlu0 %3877
          %3879 = vrot.lane.b32.xlu0 %v3613, 64
          %v3880 = vpop.permute.xlu0 %3879
          %3881 = vrot.lane.b32.xlu0 %v3614, 64
          %v3882 = vpop.permute.xlu0 %3881
          %3883 = vrot.lane.b32.xlu0 %v3615, 64
          %v3884 = vpop.permute.xlu0 %3883
          %3885 = vrot.lane.b32.xlu0 %v3616, 64
          %v3886 = vpop.permute.xlu0 %3885
          %3887 = vrot.lane.b32.xlu0 %v3617, 64
          %v3888 = vpop.permute.xlu0 %3887
          %3889 = vrot.lane.b32.xlu0 %v3618, 64
          %v3890 = vpop.permute.xlu0 %3889
          %3891 = vrot.lane.b32.xlu0 %v3619, 64
          %v3892 = vpop.permute.xlu0 %3891
          %3893 = vrot.lane.b32.xlu0 %v3620, 64
          %v3894 = vpop.permute.xlu0 %3893
          %3895 = vrot.lane.b32.xlu0 %v3621, 64
          %v3896 = vpop.permute.xlu0 %3895
          %3897 = vrot.lane.b32.xlu0 %v3622, 64
          %v3898 = vpop.permute.xlu0 %3897
          %3899 = vrot.lane.b32.xlu0 %v3623, 64
          %v3900 = vpop.permute.xlu0 %3899
          %3901 = vrot.lane.b32.xlu0 %v3624, 64
          %v3902 = vpop.permute.xlu0 %3901
          %3903 = vrot.lane.b32.xlu0 %v3625, 64
          %v3904 = vpop.permute.xlu0 %3903
          %3905 = vrot.lane.b32.xlu0 %v3626, 64
          %v3906 = vpop.permute.xlu0 %3905
          %3907 = vrot.lane.b32.xlu0 %v3627, 64
          %v3908 = vpop.permute.xlu0 %3907
          %3909 = vrot.lane.b32.xlu0 %v3628, 64
          %v3910 = vpop.permute.xlu0 %3909
          %3911 = vrot.lane.b32.xlu0 %v3629, 64
          %v3912 = vpop.permute.xlu0 %3911
          %3913 = vrot.lane.b32.xlu0 %v3630, 64
          %v3914 = vpop.permute.xlu0 %3913
          %3915 = vrot.lane.b32.xlu0 %v3631, 64
          %v3916 = vpop.permute.xlu0 %3915
          %3917 = vrot.lane.b32.xlu0 %v3632, 64
          %v3918 = vpop.permute.xlu0 %3917
          %3919 = vrot.lane.b32.xlu0 %v3633, 64
          %v3920 = vpop.permute.xlu0 %3919
          %3921 = vrot.lane.b32.xlu0 %v3634, 64
          %v3922 = vpop.permute.xlu0 %3921
          %3923 = vrot.lane.b32.xlu0 %v3635, 64
          %v3924 = vpop.permute.xlu0 %3923
          %3925 = vrot.lane.b32.xlu0 %v3636, 64
          %v3926 = vpop.permute.xlu0 %3925
          %3927 = vrot.lane.b32.xlu0 %v3637, 64
          %v3928 = vpop.permute.xlu0 %3927
          %3929 = vrot.lane.b32.xlu0 %v3638, 64
          %v3930 = vpop.permute.xlu0 %3929
          %3931 = vrot.lane.b32.xlu0 %v3639, 64
          %v3932 = vpop.permute.xlu0 %3931
          %3933 = vrot.lane.b32.xlu0 %v3640, 64
          %v3934 = vpop.permute.xlu0 %3933
          %3935 = vrot.lane.b32.xlu0 %v3641, 64
          %v3936 = vpop.permute.xlu0 %3935
          %3937 = vrot.lane.b32.xlu0 %v3642, 64
          %v3938 = vpop.permute.xlu0 %3937
          %3939 = vrot.lane.b32.xlu0 %v3643, 64
          %v3940 = vpop.permute.xlu0 %3939
          %3941 = vrot.lane.b32.xlu0 %v3644, 64
          %v3942 = vpop.permute.xlu0 %3941
          %3943 = vrot.lane.b32.xlu0 %v3645, 64
          %v3944 = vpop.permute.xlu0 %3943
          %3945 = vrot.lane.b32.xlu0 %v3646, 64
          %v3946 = vpop.permute.xlu0 %3945
          %3947 = vrot.lane.b32.xlu0 %v3647, 64
          %v3948 = vpop.permute.xlu0 %3947
          %3949 = vrot.lane.b32.xlu0 %v3648, 64
          %v3950 = vpop.permute.xlu0 %3949
          %3951 = vrot.lane.b32.xlu0 %v3649, 64
          %v3952 = vpop.permute.xlu0 %3951
          %3953 = vrot.lane.b32.xlu0 %v3650, 64
          %v3954 = vpop.permute.xlu0 %3953
          %3955 = vrot.lane.b32.xlu0 %v3651, 64
          %v3956 = vpop.permute.xlu0 %3955
          %3957 = vrot.lane.b32.xlu0 %v3652, 64
          %v3958 = vpop.permute.xlu0 %3957
          %3959 = vrot.lane.b32.xlu0 %v3653, 64
          %v3960 = vpop.permute.xlu0 %3959
          %3961 = vrot.lane.b32.xlu0 %v3654, 64
          %v3962 = vpop.permute.xlu0 %3961
          %3963 = vrot.lane.b32.xlu0 %v3655, 64
          %v3964 = vpop.permute.xlu0 %3963
          %3965 = vrot.lane.b32.xlu0 %v3656, 64
          %v3966 = vpop.permute.xlu0 %3965
          %3967 = vrot.lane.b32.xlu0 %v3657, 64
          %v3968 = vpop.permute.xlu0 %3967
          %3969 = vrot.lane.b32.xlu0 %v3658, 64
          %v3970 = vpop.permute.xlu0 %3969
          %3971 = vrot.lane.b32.xlu0 %v3659, 64
          %v3972 = vpop.permute.xlu0 %3971
          %3973 = vrot.lane.b32.xlu0 %v3660, 64
          %v3974 = vpop.permute.xlu0 %3973
          %3975 = vrot.lane.b32.xlu0 %v3661, 64
          %v3976 = vpop.permute.xlu0 %3975
          %3977 = vrot.lane.b32.xlu0 %v3662, 64
          %v3978 = vpop.permute.xlu0 %3977
          %3979 = vrot.lane.b32.xlu0 %v3663, 64
          %v3980 = vpop.permute.xlu0 %3979
          %3981 = vrot.lane.b32.xlu0 %v3664, 64
          %v3982 = vpop.permute.xlu0 %3981
          %3983 = vrot.lane.b32.xlu0 %v3665, 64
          %v3984 = vpop.permute.xlu0 %3983
          %3985 = vrot.lane.b32.xlu0 %v3666, 64
          %v3986 = vpop.permute.xlu0 %3985
          %3987 = vrot.lane.b32.xlu0 %v3667, 64
          %v3988 = vpop.permute.xlu0 %3987
          %3989 = vrot.lane.b32.xlu0 %v3668, 64
          %v3990 = vpop.permute.xlu0 %3989
          %3991 = vrot.lane.b32.xlu0 %v3669, 64
          %v3992 = vpop.permute.xlu0 %3991
          %3993 = vrot.lane.b32.xlu0 %v3670, 64
          %v3994 = vpop.permute.xlu0 %3993
          %3995 = vrot.lane.b32.xlu0 %v3671, 64
          %v3996 = vpop.permute.xlu0 %3995
          %3997 = vrot.lane.b32.xlu0 %v3672, 64
          %v3998 = vpop.permute.xlu0 %3997
          %3999 = vrot.lane.b32.xlu0 %v3673, 64
          %v4000 = vpop.permute.xlu0 %3999
          %4001 = vrot.lane.b32.xlu0 %v3674, 64
          %v4002 = vpop.permute.xlu0 %4001
          %4003 = vrot.lane.b32.xlu0 %v3675, 64
          %v4004 = vpop.permute.xlu0 %4003
          %4005 = vrot.lane.b32.xlu0 %v3676, 64
          %v4006 = vpop.permute.xlu0 %4005
          %4007 = vrot.lane.b32.xlu0 %v3677, 64
          %v4008 = vpop.permute.xlu0 %4007
          %4009 = vrot.lane.b32.xlu0 %v3678, 64
          %v4010 = vpop.permute.xlu0 %4009
          %4011 = vrot.lane.b32.xlu0 %v3679, 64
          %v4012 = vpop.permute.xlu0 %4011
          %4013 = vrot.lane.b32.xlu0 %v3680, 64
          %v4014 = vpop.permute.xlu0 %4013
          %4015 = vrot.lane.b32.xlu0 %v3681, 64
          %v4016 = vpop.permute.xlu0 %4015
          %4017 = vrot.lane.b32.xlu0 %v3682, 64
          %v4018 = vpop.permute.xlu0 %4017
          %4019 = vrot.lane.b32.xlu0 %v3683, 64
          %v4020 = vpop.permute.xlu0 %4019
          %4021 = vrot.lane.b32.xlu0 %v3684, 64
          %v4022 = vpop.permute.xlu0 %4021
          %4023 = vrot.lane.b32.xlu0 %v3685, 64
          %v4024 = vpop.permute.xlu0 %4023
          %4025 = vrot.lane.b32.xlu0 %v3686, 64
          %v4026 = vpop.permute.xlu0 %4025
          %4027 = vrot.lane.b32.xlu0 %v3687, 64
          %v4028 = vpop.permute.xlu0 %4027
          %4029 = vrot.lane.b32.xlu0 %v3688, 64
          %v4030 = vpop.permute.xlu0 %4029
          %4031 = vrot.lane.b32.xlu0 %v3689, 64
          %v4032 = vpop.permute.xlu0 %4031
          %4033 = vrot.lane.b32.xlu0 %v3690, 64
          %v4034 = vpop.permute.xlu0 %4033
          %4035 = vrot.lane.b32.xlu0 %v3691, 64
          %v4036 = vpop.permute.xlu0 %4035
          %4037 = vrot.lane.b32.xlu0 %v3692, 64
          %v4038 = vpop.permute.xlu0 %4037
          %4039 = vrot.lane.b32.xlu0 %v3693, 64
          %v4040 = vpop.permute.xlu0 %4039
          %4041 = vrot.lane.b32.xlu0 %v3694, 64
          %v4042 = vpop.permute.xlu0 %4041
          %4043 = vrot.lane.b32.xlu0 %v3695, 64
          %v4044 = vpop.permute.xlu0 %4043
          %4045 = vrot.lane.b32.xlu0 %v3696, 64
          %v4046 = vpop.permute.xlu0 %4045
          %4047 = vrot.lane.b32.xlu0 %v3697, 64
          %v4048 = vpop.permute.xlu0 %4047
          %4049 = vrot.lane.b32.xlu0 %v3698, 64
          %v4050 = vpop.permute.xlu0 %4049
          %4051 = vrot.lane.b32.xlu0 %v3699, 64
          %v4052 = vpop.permute.xlu0 %4051
          %4053 = vrot.lane.b32.xlu0 %v3700, 64
          %v4054 = vpop.permute.xlu0 %4053
          %4055 = vrot.lane.b32.xlu0 %v3701, 64
          %v4056 = vpop.permute.xlu0 %4055
          %4057 = vrot.lane.b32.xlu0 %v3702, 64
          %v4058 = vpop.permute.xlu0 %4057
          %4059 = vrot.lane.b32.xlu0 %v3703, 64
          %v4060 = vpop.permute.xlu0 %4059
          %4061 = vrot.lane.b32.xlu0 %v3704, 64
          %v4062 = vpop.permute.xlu0 %4061
          %4063 = vrot.lane.b32.xlu0 %v3705, 64
          %v4064 = vpop.permute.xlu0 %4063
          %4065 = vrot.lane.b32.xlu0 %v3706, 64
          %v4066 = vpop.permute.xlu0 %4065
          %4067 = vrot.lane.b32.xlu0 %v3707, 64
          %v4068 = vpop.permute.xlu0 %4067
          %4069 = vrot.lane.b32.xlu0 %v3708, 64
          %v4070 = vpop.permute.xlu0 %4069
          %4071 = vrot.lane.b32.xlu0 %v3709, 64
          %v4072 = vpop.permute.xlu0 %4071
          %4073 = vrot.lane.b32.xlu0 %v3710, 64
          %v4074 = vpop.permute.xlu0 %4073
          %4075 = vrot.lane.b32.xlu0 %v3711, 64
          %v4076 = vpop.permute.xlu0 %4075
          %4077 = vrot.lane.b32.xlu0 %v3712, 64
          %v4078 = vpop.permute.xlu0 %4077
          %4079 = vrot.lane.b32.xlu0 %v3713, 64
          %v4080 = vpop.permute.xlu0 %4079
          %4081 = vrot.lane.b32.xlu0 %v3714, 64
          %v4082 = vpop.permute.xlu0 %4081
          %4083 = vrot.lane.b32.xlu0 %v3715, 64
          %v4084 = vpop.permute.xlu0 %4083
          %4085 = vrot.lane.b32.xlu0 %v3716, 64
          %v4086 = vpop.permute.xlu0 %4085
          %4087 = vrot.lane.b32.xlu0 %v3717, 64
          %v4088 = vpop.permute.xlu0 %4087
          %4089 = vrot.lane.b32.xlu0 %v3718, 64
          %v4090 = vpop.permute.xlu0 %4089
          %4091 = vrot.lane.b32.xlu0 %v3719, 64
          %v4092 = vpop.permute.xlu0 %4091
          %4093 = vrot.lane.b32.xlu0 %v3720, 64
          %v4094 = vpop.permute.xlu0 %4093
          %4095 = vrot.lane.b32.xlu0 %v3721, 64
          %v4096 = vpop.permute.xlu0 %4095
          %4097 = vrot.lane.b32.xlu0 %v3722, 64
          %v4098 = vpop.permute.xlu0 %4097
          %4099 = vrot.lane.b32.xlu0 %v3723, 64
          %v4100 = vpop.permute.xlu0 %4099
          %4101 = vrot.lane.b32.xlu0 %v3724, 64
          %v4102 = vpop.permute.xlu0 %4101
          %4103 = vrot.lane.b32.xlu0 %v3725, 64
          %v4104 = vpop.permute.xlu0 %4103
          %4105 = vrot.lane.b32.xlu0 %v3726, 64
          %v4106 = vpop.permute.xlu0 %4105
          %4107 = vrot.lane.b32.xlu0 %v3727, 64
          %v4108 = vpop.permute.xlu0 %4107
          %4109 = vrot.lane.b32.xlu0 %v3728, 64
          %v4110 = vpop.permute.xlu0 %4109
          %4111 = vrot.lane.b32.xlu0 %v3729, 64
          %v4112 = vpop.permute.xlu0 %4111
          %4113 = vrot.lane.b32.xlu0 %v3730, 64
          %v4114 = vpop.permute.xlu0 %4113
          %v4243 = vsel %vm2277, %v3860, 0.0
          %4244 = vadd.xlane.f32.xlu0 %v4243
          %v4245 = vpop.xlane.xlu0 %4244
          %v4246 = vsel %vm2277, %v3862, 0.0
          %4247 = vadd.xlane.f32.xlu0 %v4246
          %v4248 = vpop.xlane.xlu0 %4247
          %v4249 = vsel %vm2277, %v3864, 0.0
          %4250 = vadd.xlane.f32.xlu0 %v4249
          %v4251 = vpop.xlane.xlu0 %4250
          %v4252 = vsel %vm2277, %v3866, 0.0
          %4253 = vadd.xlane.f32.xlu0 %v4252
          %v4254 = vpop.xlane.xlu0 %4253
          %v4255 = vsel %vm2277, %v3868, 0.0
          %4256 = vadd.xlane.f32.xlu0 %v4255
          %v4257 = vpop.xlane.xlu0 %4256
          %v4258 = vsel %vm2277, %v3870, 0.0
          %4259 = vadd.xlane.f32.xlu0 %v4258
          %v4260 = vpop.xlane.xlu0 %4259
          %v4261 = vsel %vm2277, %v3872, 0.0
          %4262 = vadd.xlane.f32.xlu0 %v4261
          %v4263 = vpop.xlane.xlu0 %4262
          %v4264 = vsel %vm2277, %v3874, 0.0
          %4265 = vadd.xlane.f32.xlu0 %v4264
          %v4266 = vpop.xlane.xlu0 %4265
          %v4267 = vsel %vm2277, %v3876, 0.0
          %4268 = vadd.xlane.f32.xlu0 %v4267
          %v4269 = vpop.xlane.xlu0 %4268
          %v4270 = vsel %vm2277, %v3878, 0.0
          %4271 = vadd.xlane.f32.xlu0 %v4270
          %v4272 = vpop.xlane.xlu0 %4271
          %v4273 = vsel %vm2277, %v3880, 0.0
          %4274 = vadd.xlane.f32.xlu0 %v4273
          %v4275 = vpop.xlane.xlu0 %4274
          %v4276 = vsel %vm2277, %v3882, 0.0
          %4277 = vadd.xlane.f32.xlu0 %v4276
          %v4278 = vpop.xlane.xlu0 %4277
          %v4279 = vsel %vm2277, %v3884, 0.0
          %4280 = vadd.xlane.f32.xlu0 %v4279
          %v4281 = vpop.xlane.xlu0 %4280
          %v4282 = vsel %vm2277, %v3886, 0.0
          %4283 = vadd.xlane.f32.xlu0 %v4282
          %v4284 = vpop.xlane.xlu0 %4283
          %v4285 = vsel %vm2277, %v3888, 0.0
          %4286 = vadd.xlane.f32.xlu0 %v4285
          %v4287 = vpop.xlane.xlu0 %4286
          %v4288 = vsel %vm2277, %v3890, 0.0
          %4289 = vadd.xlane.f32.xlu0 %v4288
          %v4290 = vpop.xlane.xlu0 %4289
          %v4291 = vsel %vm2277, %v3892, 0.0
          %4292 = vadd.xlane.f32.xlu0 %v4291
          %v4293 = vpop.xlane.xlu0 %4292
          %v4294 = vsel %vm2277, %v3894, 0.0
          %4295 = vadd.xlane.f32.xlu0 %v4294
          %v4296 = vpop.xlane.xlu0 %4295
          %v4297 = vsel %vm2277, %v3896, 0.0
          %4298 = vadd.xlane.f32.xlu0 %v4297
          %v4299 = vpop.xlane.xlu0 %4298
          %v4300 = vsel %vm2277, %v3898, 0.0
          %4301 = vadd.xlane.f32.xlu0 %v4300
          %v4302 = vpop.xlane.xlu0 %4301
          %v4303 = vsel %vm2277, %v3900, 0.0
          %4304 = vadd.xlane.f32.xlu0 %v4303
          %v4305 = vpop.xlane.xlu0 %4304
          %v4306 = vsel %vm2277, %v3902, 0.0
          %4307 = vadd.xlane.f32.xlu0 %v4306
          %v4308 = vpop.xlane.xlu0 %4307
          %v4309 = vsel %vm2277, %v3904, 0.0
          %4310 = vadd.xlane.f32.xlu0 %v4309
          %v4311 = vpop.xlane.xlu0 %4310
          %v4312 = vsel %vm2277, %v3906, 0.0
          %4313 = vadd.xlane.f32.xlu0 %v4312
          %v4314 = vpop.xlane.xlu0 %4313
          %v4315 = vsel %vm2277, %v3908, 0.0
          %4316 = vadd.xlane.f32.xlu0 %v4315
          %v4317 = vpop.xlane.xlu0 %4316
          %v4318 = vsel %vm2277, %v3910, 0.0
          %4319 = vadd.xlane.f32.xlu0 %v4318
          %v4320 = vpop.xlane.xlu0 %4319
          %v4321 = vsel %vm2277, %v3912, 0.0
          %4322 = vadd.xlane.f32.xlu0 %v4321
          %v4323 = vpop.xlane.xlu0 %4322
          %v4324 = vsel %vm2277, %v3914, 0.0
          %4325 = vadd.xlane.f32.xlu0 %v4324
          %v4326 = vpop.xlane.xlu0 %4325
          %v4327 = vsel %vm2277, %v3916, 0.0
          %4328 = vadd.xlane.f32.xlu0 %v4327
          %v4329 = vpop.xlane.xlu0 %4328
          %v4330 = vsel %vm2277, %v3918, 0.0
          %4331 = vadd.xlane.f32.xlu0 %v4330
          %v4332 = vpop.xlane.xlu0 %4331
          %v4333 = vsel %vm2277, %v3920, 0.0
          %4334 = vadd.xlane.f32.xlu0 %v4333
          %v4335 = vpop.xlane.xlu0 %4334
          %v4336 = vsel %vm2277, %v3922, 0.0
          %4337 = vadd.xlane.f32.xlu0 %v4336
          %v4338 = vpop.xlane.xlu0 %4337
          %v4339 = vsel %vm2277, %v3924, 0.0
          %4340 = vadd.xlane.f32.xlu0 %v4339
          %v4341 = vpop.xlane.xlu0 %4340
          %v4342 = vsel %vm2277, %v3926, 0.0
          %4343 = vadd.xlane.f32.xlu0 %v4342
          %v4344 = vpop.xlane.xlu0 %4343
          %v4345 = vsel %vm2277, %v3928, 0.0
          %4346 = vadd.xlane.f32.xlu0 %v4345
          %v4347 = vpop.xlane.xlu0 %4346
          %v4348 = vsel %vm2277, %v3930, 0.0
          %4349 = vadd.xlane.f32.xlu0 %v4348
          %v4350 = vpop.xlane.xlu0 %4349
          %v4351 = vsel %vm2277, %v3932, 0.0
          %4352 = vadd.xlane.f32.xlu0 %v4351
          %v4353 = vpop.xlane.xlu0 %4352
          %v4354 = vsel %vm2277, %v3934, 0.0
          %4355 = vadd.xlane.f32.xlu0 %v4354
          %v4356 = vpop.xlane.xlu0 %4355
          %v4357 = vsel %vm2277, %v3936, 0.0
          %4358 = vadd.xlane.f32.xlu0 %v4357
          %v4359 = vpop.xlane.xlu0 %4358
          %v4360 = vsel %vm2277, %v3938, 0.0
          %4361 = vadd.xlane.f32.xlu0 %v4360
          %v4362 = vpop.xlane.xlu0 %4361
          %v4363 = vsel %vm2277, %v3940, 0.0
          %4364 = vadd.xlane.f32.xlu0 %v4363
          %v4365 = vpop.xlane.xlu0 %4364
          %v4366 = vsel %vm2277, %v3942, 0.0
          %4367 = vadd.xlane.f32.xlu0 %v4366
          %v4368 = vpop.xlane.xlu0 %4367
          %v4369 = vsel %vm2277, %v3944, 0.0
          %4370 = vadd.xlane.f32.xlu0 %v4369
          %v4371 = vpop.xlane.xlu0 %4370
          %v4372 = vsel %vm2277, %v3946, 0.0
          %4373 = vadd.xlane.f32.xlu0 %v4372
          %v4374 = vpop.xlane.xlu0 %4373
          %v4375 = vsel %vm2277, %v3948, 0.0
          %4376 = vadd.xlane.f32.xlu0 %v4375
          %v4377 = vpop.xlane.xlu0 %4376
          %v4378 = vsel %vm2277, %v3950, 0.0
          %4379 = vadd.xlane.f32.xlu0 %v4378
          %v4380 = vpop.xlane.xlu0 %4379
          %v4381 = vsel %vm2277, %v3952, 0.0
          %4382 = vadd.xlane.f32.xlu0 %v4381
          %v4383 = vpop.xlane.xlu0 %4382
          %v4384 = vsel %vm2277, %v3954, 0.0
          %4385 = vadd.xlane.f32.xlu0 %v4384
          %v4386 = vpop.xlane.xlu0 %4385
          %v4387 = vsel %vm2277, %v3956, 0.0
          %4388 = vadd.xlane.f32.xlu0 %v4387
          %v4389 = vpop.xlane.xlu0 %4388
          %v4390 = vsel %vm2277, %v3958, 0.0
          %4391 = vadd.xlane.f32.xlu0 %v4390
          %v4392 = vpop.xlane.xlu0 %4391
          %v4393 = vsel %vm2277, %v3960, 0.0
          %4394 = vadd.xlane.f32.xlu0 %v4393
          %v4395 = vpop.xlane.xlu0 %4394
          %v4396 = vsel %vm2277, %v3962, 0.0
          %4397 = vadd.xlane.f32.xlu0 %v4396
          %v4398 = vpop.xlane.xlu0 %4397
          %v4399 = vsel %vm2277, %v3964, 0.0
          %4400 = vadd.xlane.f32.xlu0 %v4399
          %v4401 = vpop.xlane.xlu0 %4400
          %v4402 = vsel %vm2277, %v3966, 0.0
          %4403 = vadd.xlane.f32.xlu0 %v4402
          %v4404 = vpop.xlane.xlu0 %4403
          %v4405 = vsel %vm2277, %v3968, 0.0
          %4406 = vadd.xlane.f32.xlu0 %v4405
          %v4407 = vpop.xlane.xlu0 %4406
          %v4408 = vsel %vm2277, %v3970, 0.0
          %4409 = vadd.xlane.f32.xlu0 %v4408
          %v4410 = vpop.xlane.xlu0 %4409
          %v4411 = vsel %vm2277, %v3972, 0.0
          %4412 = vadd.xlane.f32.xlu0 %v4411
          %v4413 = vpop.xlane.xlu0 %4412
          %v4414 = vsel %vm2277, %v3974, 0.0
          %4415 = vadd.xlane.f32.xlu0 %v4414
          %v4416 = vpop.xlane.xlu0 %4415
          %v4417 = vsel %vm2277, %v3976, 0.0
          %4418 = vadd.xlane.f32.xlu0 %v4417
          %v4419 = vpop.xlane.xlu0 %4418
          %v4420 = vsel %vm2277, %v3978, 0.0
          %4421 = vadd.xlane.f32.xlu0 %v4420
          %v4422 = vpop.xlane.xlu0 %4421
          %v4423 = vsel %vm2277, %v3980, 0.0
          %4424 = vadd.xlane.f32.xlu0 %v4423
          %v4425 = vpop.xlane.xlu0 %4424
          %v4426 = vsel %vm2277, %v3982, 0.0
          %4427 = vadd.xlane.f32.xlu0 %v4426
          %v4428 = vpop.xlane.xlu0 %4427
          %v4429 = vsel %vm2277, %v3984, 0.0
          %4430 = vadd.xlane.f32.xlu0 %v4429
          %v4431 = vpop.xlane.xlu0 %4430
          %v4432 = vsel %vm2277, %v3986, 0.0
          %4433 = vadd.xlane.f32.xlu0 %v4432
          %v4434 = vpop.xlane.xlu0 %4433
          %v4435 = vsel %vm2277, %v3988, 0.0
          %4436 = vadd.xlane.f32.xlu0 %v4435
          %v4437 = vpop.xlane.xlu0 %4436
          %v4438 = vsel %vm2277, %v3990, 0.0
          %4439 = vadd.xlane.f32.xlu0 %v4438
          %v4440 = vpop.xlane.xlu0 %4439
          %v4441 = vsel %vm2277, %v3992, 0.0
          %4442 = vadd.xlane.f32.xlu0 %v4441
          %v4443 = vpop.xlane.xlu0 %4442
          %v4444 = vsel %vm2277, %v3994, 0.0
          %4445 = vadd.xlane.f32.xlu0 %v4444
          %v4446 = vpop.xlane.xlu0 %4445
          %v4447 = vsel %vm2277, %v3996, 0.0
          %4448 = vadd.xlane.f32.xlu0 %v4447
          %v4449 = vpop.xlane.xlu0 %4448
          %v4450 = vsel %vm2277, %v3998, 0.0
          %4451 = vadd.xlane.f32.xlu0 %v4450
          %v4452 = vpop.xlane.xlu0 %4451
          %v4453 = vsel %vm2277, %v4000, 0.0
          %4454 = vadd.xlane.f32.xlu0 %v4453
          %v4455 = vpop.xlane.xlu0 %4454
          %v4456 = vsel %vm2277, %v4002, 0.0
          %4457 = vadd.xlane.f32.xlu0 %v4456
          %v4458 = vpop.xlane.xlu0 %4457
          %v4459 = vsel %vm2277, %v4004, 0.0
          %4460 = vadd.xlane.f32.xlu0 %v4459
          %v4461 = vpop.xlane.xlu0 %4460
          %v4462 = vsel %vm2277, %v4006, 0.0
          %4463 = vadd.xlane.f32.xlu0 %v4462
          %v4464 = vpop.xlane.xlu0 %4463
          %v4465 = vsel %vm2277, %v4008, 0.0
          %4466 = vadd.xlane.f32.xlu0 %v4465
          %v4467 = vpop.xlane.xlu0 %4466
          %v4468 = vsel %vm2277, %v4010, 0.0
          %4469 = vadd.xlane.f32.xlu0 %v4468
          %v4470 = vpop.xlane.xlu0 %4469
          %v4471 = vsel %vm2277, %v4012, 0.0
          %4472 = vadd.xlane.f32.xlu0 %v4471
          %v4473 = vpop.xlane.xlu0 %4472
          %v4474 = vsel %vm2277, %v4014, 0.0
          %4475 = vadd.xlane.f32.xlu0 %v4474
          %v4476 = vpop.xlane.xlu0 %4475
          %v4477 = vsel %vm2277, %v4016, 0.0
          %4478 = vadd.xlane.f32.xlu0 %v4477
          %v4479 = vpop.xlane.xlu0 %4478
          %v4480 = vsel %vm2277, %v4018, 0.0
          %4481 = vadd.xlane.f32.xlu0 %v4480
          %v4482 = vpop.xlane.xlu0 %4481
          %v4483 = vsel %vm2277, %v4020, 0.0
          %4484 = vadd.xlane.f32.xlu0 %v4483
          %v4485 = vpop.xlane.xlu0 %4484
          %v4486 = vsel %vm2277, %v4022, 0.0
          %4487 = vadd.xlane.f32.xlu0 %v4486
          %v4488 = vpop.xlane.xlu0 %4487
          %v4489 = vsel %vm2277, %v4024, 0.0
          %4490 = vadd.xlane.f32.xlu0 %v4489
          %v4491 = vpop.xlane.xlu0 %4490
          %v4492 = vsel %vm2277, %v4026, 0.0
          %4493 = vadd.xlane.f32.xlu0 %v4492
          %v4494 = vpop.xlane.xlu0 %4493
          %v4495 = vsel %vm2277, %v4028, 0.0
          %4496 = vadd.xlane.f32.xlu0 %v4495
          %v4497 = vpop.xlane.xlu0 %4496
          %v4498 = vsel %vm2277, %v4030, 0.0
          %4499 = vadd.xlane.f32.xlu0 %v4498
          %v4500 = vpop.xlane.xlu0 %4499
          %v4501 = vsel %vm2277, %v4032, 0.0
          %4502 = vadd.xlane.f32.xlu0 %v4501
          %v4503 = vpop.xlane.xlu0 %4502
          %v4504 = vsel %vm2277, %v4034, 0.0
          %4505 = vadd.xlane.f32.xlu0 %v4504
          %v4506 = vpop.xlane.xlu0 %4505
          %v4507 = vsel %vm2277, %v4036, 0.0
          %4508 = vadd.xlane.f32.xlu0 %v4507
          %v4509 = vpop.xlane.xlu0 %4508
          %v4510 = vsel %vm2277, %v4038, 0.0
          %4511 = vadd.xlane.f32.xlu0 %v4510
          %v4512 = vpop.xlane.xlu0 %4511
          %v4513 = vsel %vm2277, %v4040, 0.0
          %4514 = vadd.xlane.f32.xlu0 %v4513
          %v4515 = vpop.xlane.xlu0 %4514
          %v4516 = vsel %vm2277, %v4042, 0.0
          %4517 = vadd.xlane.f32.xlu0 %v4516
          %v4518 = vpop.xlane.xlu0 %4517
          %v4519 = vsel %vm2277, %v4044, 0.0
          %4520 = vadd.xlane.f32.xlu0 %v4519
          %v4521 = vpop.xlane.xlu0 %4520
          %v4522 = vsel %vm2277, %v4046, 0.0
          %4523 = vadd.xlane.f32.xlu0 %v4522
          %v4524 = vpop.xlane.xlu0 %4523
          %v4525 = vsel %vm2277, %v4048, 0.0
          %4526 = vadd.xlane.f32.xlu0 %v4525
          %v4527 = vpop.xlane.xlu0 %4526
          %v4528 = vsel %vm2277, %v4050, 0.0
          %4529 = vadd.xlane.f32.xlu0 %v4528
          %v4530 = vpop.xlane.xlu0 %4529
          %v4531 = vsel %vm2277, %v4052, 0.0
          %4532 = vadd.xlane.f32.xlu0 %v4531
          %v4533 = vpop.xlane.xlu0 %4532
          %v4534 = vsel %vm2277, %v4054, 0.0
          %4535 = vadd.xlane.f32.xlu0 %v4534
          %v4536 = vpop.xlane.xlu0 %4535
          %v4537 = vsel %vm2277, %v4056, 0.0
          %4538 = vadd.xlane.f32.xlu0 %v4537
          %v4539 = vpop.xlane.xlu0 %4538
          %v4540 = vsel %vm2277, %v4058, 0.0
          %4541 = vadd.xlane.f32.xlu0 %v4540
          %v4542 = vpop.xlane.xlu0 %4541
          %v4543 = vsel %vm2277, %v4060, 0.0
          %4544 = vadd.xlane.f32.xlu0 %v4543
          %v4545 = vpop.xlane.xlu0 %4544
          %v4546 = vsel %vm2277, %v4062, 0.0
          %4547 = vadd.xlane.f32.xlu0 %v4546
          %v4548 = vpop.xlane.xlu0 %4547
          %v4549 = vsel %vm2277, %v4064, 0.0
          %4550 = vadd.xlane.f32.xlu0 %v4549
          %v4551 = vpop.xlane.xlu0 %4550
          %v4552 = vsel %vm2277, %v4066, 0.0
          %4553 = vadd.xlane.f32.xlu0 %v4552
          %v4554 = vpop.xlane.xlu0 %4553
          %v4555 = vsel %vm2277, %v4068, 0.0
          %4556 = vadd.xlane.f32.xlu0 %v4555
          %v4557 = vpop.xlane.xlu0 %4556
          %v4558 = vsel %vm2277, %v4070, 0.0
          %4559 = vadd.xlane.f32.xlu0 %v4558
          %v4560 = vpop.xlane.xlu0 %4559
          %v4561 = vsel %vm2277, %v4072, 0.0
          %4562 = vadd.xlane.f32.xlu0 %v4561
          %v4563 = vpop.xlane.xlu0 %4562
          %v4564 = vsel %vm2277, %v4074, 0.0
          %4565 = vadd.xlane.f32.xlu0 %v4564
          %v4566 = vpop.xlane.xlu0 %4565
          %v4567 = vsel %vm2277, %v4076, 0.0
          %4568 = vadd.xlane.f32.xlu0 %v4567
          %v4569 = vpop.xlane.xlu0 %4568
          %v4570 = vsel %vm2277, %v4078, 0.0
          %4571 = vadd.xlane.f32.xlu0 %v4570
          %v4572 = vpop.xlane.xlu0 %4571
          %v4573 = vsel %vm2277, %v4080, 0.0
          %4574 = vadd.xlane.f32.xlu0 %v4573
          %v4575 = vpop.xlane.xlu0 %4574
          %v4576 = vsel %vm2277, %v4082, 0.0
          %4577 = vadd.xlane.f32.xlu0 %v4576
          %v4578 = vpop.xlane.xlu0 %4577
          %v4579 = vsel %vm2277, %v4084, 0.0
          %4580 = vadd.xlane.f32.xlu0 %v4579
          %v4581 = vpop.xlane.xlu0 %4580
          %v4582 = vsel %vm2277, %v4086, 0.0
          %4583 = vadd.xlane.f32.xlu0 %v4582
          %v4584 = vpop.xlane.xlu0 %4583
          %v4585 = vsel %vm2277, %v4088, 0.0
          %4586 = vadd.xlane.f32.xlu0 %v4585
          %v4587 = vpop.xlane.xlu0 %4586
          %v4588 = vsel %vm2277, %v4090, 0.0
          %4589 = vadd.xlane.f32.xlu0 %v4588
          %v4590 = vpop.xlane.xlu0 %4589
          %v4591 = vsel %vm2277, %v4092, 0.0
          %4592 = vadd.xlane.f32.xlu0 %v4591
          %v4593 = vpop.xlane.xlu0 %4592
          %v4594 = vsel %vm2277, %v4094, 0.0
          %4595 = vadd.xlane.f32.xlu0 %v4594
          %v4596 = vpop.xlane.xlu0 %4595
          %v4597 = vsel %vm2277, %v4096, 0.0
          %4598 = vadd.xlane.f32.xlu0 %v4597
          %v4599 = vpop.xlane.xlu0 %4598
          %v4600 = vsel %vm2277, %v4098, 0.0
          %4601 = vadd.xlane.f32.xlu0 %v4600
          %v4602 = vpop.xlane.xlu0 %4601
          %v4603 = vsel %vm2277, %v4100, 0.0
          %4604 = vadd.xlane.f32.xlu0 %v4603
          %v4605 = vpop.xlane.xlu0 %4604
          %v4606 = vsel %vm2277, %v4102, 0.0
          %4607 = vadd.xlane.f32.xlu0 %v4606
          %v4608 = vpop.xlane.xlu0 %4607
          %v4609 = vsel %vm2277, %v4104, 0.0
          %4610 = vadd.xlane.f32.xlu0 %v4609
          %v4611 = vpop.xlane.xlu0 %4610
          %v4612 = vsel %vm2277, %v4106, 0.0
          %4613 = vadd.xlane.f32.xlu0 %v4612
          %v4614 = vpop.xlane.xlu0 %4613
          %v4615 = vsel %vm2277, %v4108, 0.0
          %4616 = vadd.xlane.f32.xlu0 %v4615
          %v4617 = vpop.xlane.xlu0 %4616
          %v4618 = vsel %vm2277, %v4110, 0.0
          %4619 = vadd.xlane.f32.xlu0 %v4618
          %v4620 = vpop.xlane.xlu0 %4619
          %v4621 = vsel %vm2277, %v4112, 0.0
          %4622 = vadd.xlane.f32.xlu0 %v4621
          %v4623 = vpop.xlane.xlu0 %4622
          %v4624 = vsel %vm2277, %v4114, 0.0
          %4625 = vadd.xlane.f32.xlu0 %v4624
          %v4626 = vpop.xlane.xlu0 %4625
          %v4755 = vlaneseq
          %v4756 = vshrl.u32 %v4755, 7
          %v4757 = vsub.s32 %v2795, %v4756
          %v4758 = vrot.slane %v4245, %v4757
          %v4759 = vlaneseq
          %v4760 = vshrl.u32 %v4759, 7
          %v4761 = vsub.s32 %v2800, %v4760
          %v4762 = vrot.slane %v4248, %v4761
          %v4763 = vsel %vm2805, %v4762, %v4758
          %v4764 = vlaneseq
          %v4765 = vshrl.u32 %v4764, 7
          %v4766 = vsub.s32 %v2807, %v4765
          %v4767 = vrot.slane %v4251, %v4766
          %v4768 = vsel %vm2812, %v4767, %v4763
          %v4769 = vlaneseq
          %v4770 = vshrl.u32 %v4769, 7
          %v4771 = vsub.s32 %v2814, %v4770
          %v4772 = vrot.slane %v4254, %v4771
          %v4773 = vsel %vm2819, %v4772, %v4768
          %v4774 = vlaneseq
          %v4775 = vshrl.u32 %v4774, 7
          %v4776 = vsub.s32 %v2795, %v4775
          %v4777 = vrot.slane %v4257, %v4776
          %v4778 = vlaneseq
          %v4779 = vshrl.u32 %v4778, 7
          %v4780 = vsub.s32 %v2800, %v4779
          %v4781 = vrot.slane %v4260, %v4780
          %v4782 = vsel %vm2805, %v4781, %v4777
          %v4783 = vlaneseq
          %v4784 = vshrl.u32 %v4783, 7
          %v4785 = vsub.s32 %v2807, %v4784
          %v4786 = vrot.slane %v4263, %v4785
          %v4787 = vsel %vm2812, %v4786, %v4782
          %v4788 = vlaneseq
          %v4789 = vshrl.u32 %v4788, 7
          %v4790 = vsub.s32 %v2814, %v4789
          %v4791 = vrot.slane %v4266, %v4790
          %v4792 = vsel %vm2819, %v4791, %v4787
          %v4793 = vlaneseq
          %v4794 = vshrl.u32 %v4793, 7
          %v4795 = vsub.s32 %v2795, %v4794
          %v4796 = vrot.slane %v4269, %v4795
          %v4797 = vlaneseq
          %v4798 = vshrl.u32 %v4797, 7
          %v4799 = vsub.s32 %v2800, %v4798
          %v4800 = vrot.slane %v4272, %v4799
          %v4801 = vsel %vm2805, %v4800, %v4796
          %v4802 = vlaneseq
          %v4803 = vshrl.u32 %v4802, 7
          %v4804 = vsub.s32 %v2807, %v4803
          %v4805 = vrot.slane %v4275, %v4804
          %v4806 = vsel %vm2812, %v4805, %v4801
          %v4807 = vlaneseq
          %v4808 = vshrl.u32 %v4807, 7
          %v4809 = vsub.s32 %v2814, %v4808
          %v4810 = vrot.slane %v4278, %v4809
          %v4811 = vsel %vm2819, %v4810, %v4806
          %v4812 = vlaneseq
          %v4813 = vshrl.u32 %v4812, 7
          %v4814 = vsub.s32 %v2795, %v4813
          %v4815 = vrot.slane %v4281, %v4814
          %v4816 = vlaneseq
          %v4817 = vshrl.u32 %v4816, 7
          %v4818 = vsub.s32 %v2800, %v4817
          %v4819 = vrot.slane %v4284, %v4818
          %v4820 = vsel %vm2805, %v4819, %v4815
          %v4821 = vlaneseq
          %v4822 = vshrl.u32 %v4821, 7
          %v4823 = vsub.s32 %v2807, %v4822
          %v4824 = vrot.slane %v4287, %v4823
          %v4825 = vsel %vm2812, %v4824, %v4820
          %v4826 = vlaneseq
          %v4827 = vshrl.u32 %v4826, 7
          %v4828 = vsub.s32 %v2814, %v4827
          %v4829 = vrot.slane %v4290, %v4828
          %v4830 = vsel %vm2819, %v4829, %v4825
          %v4831 = vlaneseq
          %v4832 = vshrl.u32 %v4831, 7
          %v4833 = vsub.s32 %v2795, %v4832
          %v4834 = vrot.slane %v4293, %v4833
          %v4835 = vlaneseq
          %v4836 = vshrl.u32 %v4835, 7
          %v4837 = vsub.s32 %v2800, %v4836
          %v4838 = vrot.slane %v4296, %v4837
          %v4839 = vsel %vm2805, %v4838, %v4834
          %v4840 = vlaneseq
          %v4841 = vshrl.u32 %v4840, 7
          %v4842 = vsub.s32 %v2807, %v4841
          %v4843 = vrot.slane %v4299, %v4842
          %v4844 = vsel %vm2812, %v4843, %v4839
          %v4845 = vlaneseq
          %v4846 = vshrl.u32 %v4845, 7
          %v4847 = vsub.s32 %v2814, %v4846
          %v4848 = vrot.slane %v4302, %v4847
          %v4849 = vsel %vm2819, %v4848, %v4844
          %v4850 = vlaneseq
          %v4851 = vshrl.u32 %v4850, 7
          %v4852 = vsub.s32 %v2795, %v4851
          %v4853 = vrot.slane %v4305, %v4852
          %v4854 = vlaneseq
          %v4855 = vshrl.u32 %v4854, 7
          %v4856 = vsub.s32 %v2800, %v4855
          %v4857 = vrot.slane %v4308, %v4856
          %v4858 = vsel %vm2805, %v4857, %v4853
          %v4859 = vlaneseq
          %v4860 = vshrl.u32 %v4859, 7
          %v4861 = vsub.s32 %v2807, %v4860
          %v4862 = vrot.slane %v4311, %v4861
          %v4863 = vsel %vm2812, %v4862, %v4858
          %v4864 = vlaneseq
          %v4865 = vshrl.u32 %v4864, 7
          %v4866 = vsub.s32 %v2814, %v4865
          %v4867 = vrot.slane %v4314, %v4866
          %v4868 = vsel %vm2819, %v4867, %v4863
          %v4869 = vlaneseq
          %v4870 = vshrl.u32 %v4869, 7
          %v4871 = vsub.s32 %v2795, %v4870
          %v4872 = vrot.slane %v4317, %v4871
          %v4873 = vlaneseq
          %v4874 = vshrl.u32 %v4873, 7
          %v4875 = vsub.s32 %v2800, %v4874
          %v4876 = vrot.slane %v4320, %v4875
          %v4877 = vsel %vm2805, %v4876, %v4872
          %v4878 = vlaneseq
          %v4879 = vshrl.u32 %v4878, 7
          %v4880 = vsub.s32 %v2807, %v4879
          %v4881 = vrot.slane %v4323, %v4880
          %v4882 = vsel %vm2812, %v4881, %v4877
          %v4883 = vlaneseq
          %v4884 = vshrl.u32 %v4883, 7
          %v4885 = vsub.s32 %v2814, %v4884
          %v4886 = vrot.slane %v4326, %v4885
          %v4887 = vsel %vm2819, %v4886, %v4882
          %v4888 = vlaneseq
          %v4889 = vshrl.u32 %v4888, 7
          %v4890 = vsub.s32 %v2795, %v4889
          %v4891 = vrot.slane %v4329, %v4890
          %v4892 = vlaneseq
          %v4893 = vshrl.u32 %v4892, 7
          %v4894 = vsub.s32 %v2800, %v4893
          %v4895 = vrot.slane %v4332, %v4894
          %v4896 = vsel %vm2805, %v4895, %v4891
          %v4897 = vlaneseq
          %v4898 = vshrl.u32 %v4897, 7
          %v4899 = vsub.s32 %v2807, %v4898
          %v4900 = vrot.slane %v4335, %v4899
          %v4901 = vsel %vm2812, %v4900, %v4896
          %v4902 = vlaneseq
          %v4903 = vshrl.u32 %v4902, 7
          %v4904 = vsub.s32 %v2814, %v4903
          %v4905 = vrot.slane %v4338, %v4904
          %v4906 = vsel %vm2819, %v4905, %v4901
          %v4907 = vlaneseq
          %v4908 = vshrl.u32 %v4907, 7
          %v4909 = vsub.s32 %v2795, %v4908
          %v4910 = vrot.slane %v4341, %v4909
          %v4911 = vlaneseq
          %v4912 = vshrl.u32 %v4911, 7
          %v4913 = vsub.s32 %v2800, %v4912
          %v4914 = vrot.slane %v4344, %v4913
          %v4915 = vsel %vm2805, %v4914, %v4910
          %v4916 = vlaneseq
          %v4917 = vshrl.u32 %v4916, 7
          %v4918 = vsub.s32 %v2807, %v4917
          %v4919 = vrot.slane %v4347, %v4918
          %v4920 = vsel %vm2812, %v4919, %v4915
          %v4921 = vlaneseq
          %v4922 = vshrl.u32 %v4921, 7
          %v4923 = vsub.s32 %v2814, %v4922
          %v4924 = vrot.slane %v4350, %v4923
          %v4925 = vsel %vm2819, %v4924, %v4920
          %v4926 = vlaneseq
          %v4927 = vshrl.u32 %v4926, 7
          %v4928 = vsub.s32 %v2795, %v4927
          %v4929 = vrot.slane %v4353, %v4928
          %v4930 = vlaneseq
          %v4931 = vshrl.u32 %v4930, 7
          %v4932 = vsub.s32 %v2800, %v4931
          %v4933 = vrot.slane %v4356, %v4932
          %v4934 = vsel %vm2805, %v4933, %v4929
          %v4935 = vlaneseq
          %v4936 = vshrl.u32 %v4935, 7
          %v4937 = vsub.s32 %v2807, %v4936
          %v4938 = vrot.slane %v4359, %v4937
          %v4939 = vsel %vm2812, %v4938, %v4934
          %v4940 = vlaneseq
          %v4941 = vshrl.u32 %v4940, 7
          %v4942 = vsub.s32 %v2814, %v4941
          %v4943 = vrot.slane %v4362, %v4942
          %v4944 = vsel %vm2819, %v4943, %v4939
          %v4945 = vlaneseq
          %v4946 = vshrl.u32 %v4945, 7
          %v4947 = vsub.s32 %v2795, %v4946
          %v4948 = vrot.slane %v4365, %v4947
          %v4949 = vlaneseq
          %v4950 = vshrl.u32 %v4949, 7
          %v4951 = vsub.s32 %v2800, %v4950
          %v4952 = vrot.slane %v4368, %v4951
          %v4953 = vsel %vm2805, %v4952, %v4948
          %v4954 = vlaneseq
          %v4955 = vshrl.u32 %v4954, 7
          %v4956 = vsub.s32 %v2807, %v4955
          %v4957 = vrot.slane %v4371, %v4956
          %v4958 = vsel %vm2812, %v4957, %v4953
          %v4959 = vlaneseq
          %v4960 = vshrl.u32 %v4959, 7
          %v4961 = vsub.s32 %v2814, %v4960
          %v4962 = vrot.slane %v4374, %v4961
          %v4963 = vsel %vm2819, %v4962, %v4958
          %v4964 = vlaneseq
          %v4965 = vshrl.u32 %v4964, 7
          %v4966 = vsub.s32 %v2795, %v4965
          %v4967 = vrot.slane %v4377, %v4966
          %v4968 = vlaneseq
          %v4969 = vshrl.u32 %v4968, 7
          %v4970 = vsub.s32 %v2800, %v4969
          %v4971 = vrot.slane %v4380, %v4970
          %v4972 = vsel %vm2805, %v4971, %v4967
          %v4973 = vlaneseq
          %v4974 = vshrl.u32 %v4973, 7
          %v4975 = vsub.s32 %v2807, %v4974
          %v4976 = vrot.slane %v4383, %v4975
          %v4977 = vsel %vm2812, %v4976, %v4972
          %v4978 = vlaneseq
          %v4979 = vshrl.u32 %v4978, 7
          %v4980 = vsub.s32 %v2814, %v4979
          %v4981 = vrot.slane %v4386, %v4980
          %v4982 = vsel %vm2819, %v4981, %v4977
          %v4983 = vlaneseq
          %v4984 = vshrl.u32 %v4983, 7
          %v4985 = vsub.s32 %v2795, %v4984
          %v4986 = vrot.slane %v4389, %v4985
          %v4987 = vlaneseq
          %v4988 = vshrl.u32 %v4987, 7
          %v4989 = vsub.s32 %v2800, %v4988
          %v4990 = vrot.slane %v4392, %v4989
          %v4991 = vsel %vm2805, %v4990, %v4986
          %v4992 = vlaneseq
          %v4993 = vshrl.u32 %v4992, 7
          %v4994 = vsub.s32 %v2807, %v4993
          %v4995 = vrot.slane %v4395, %v4994
          %v4996 = vsel %vm2812, %v4995, %v4991
          %v4997 = vlaneseq
          %v4998 = vshrl.u32 %v4997, 7
          %v4999 = vsub.s32 %v2814, %v4998
          %v5000 = vrot.slane %v4398, %v4999
          %v5001 = vsel %vm2819, %v5000, %v4996
          %v5002 = vlaneseq
          %v5003 = vshrl.u32 %v5002, 7
          %v5004 = vsub.s32 %v2795, %v5003
          %v5005 = vrot.slane %v4401, %v5004
          %v5006 = vlaneseq
          %v5007 = vshrl.u32 %v5006, 7
          %v5008 = vsub.s32 %v2800, %v5007
          %v5009 = vrot.slane %v4404, %v5008
          %v5010 = vsel %vm2805, %v5009, %v5005
          %v5011 = vlaneseq
          %v5012 = vshrl.u32 %v5011, 7
          %v5013 = vsub.s32 %v2807, %v5012
          %v5014 = vrot.slane %v4407, %v5013
          %v5015 = vsel %vm2812, %v5014, %v5010
          %v5016 = vlaneseq
          %v5017 = vshrl.u32 %v5016, 7
          %v5018 = vsub.s32 %v2814, %v5017
          %v5019 = vrot.slane %v4410, %v5018
          %v5020 = vsel %vm2819, %v5019, %v5015
          %v5021 = vlaneseq
          %v5022 = vshrl.u32 %v5021, 7
          %v5023 = vsub.s32 %v2795, %v5022
          %v5024 = vrot.slane %v4413, %v5023
          %v5025 = vlaneseq
          %v5026 = vshrl.u32 %v5025, 7
          %v5027 = vsub.s32 %v2800, %v5026
          %v5028 = vrot.slane %v4416, %v5027
          %v5029 = vsel %vm2805, %v5028, %v5024
          %v5030 = vlaneseq
          %v5031 = vshrl.u32 %v5030, 7
          %v5032 = vsub.s32 %v2807, %v5031
          %v5033 = vrot.slane %v4419, %v5032
          %v5034 = vsel %vm2812, %v5033, %v5029
          %v5035 = vlaneseq
          %v5036 = vshrl.u32 %v5035, 7
          %v5037 = vsub.s32 %v2814, %v5036
          %v5038 = vrot.slane %v4422, %v5037
          %v5039 = vsel %vm2819, %v5038, %v5034
          %v5040 = vlaneseq
          %v5041 = vshrl.u32 %v5040, 7
          %v5042 = vsub.s32 %v2795, %v5041
          %v5043 = vrot.slane %v4425, %v5042
          %v5044 = vlaneseq
          %v5045 = vshrl.u32 %v5044, 7
          %v5046 = vsub.s32 %v2800, %v5045
          %v5047 = vrot.slane %v4428, %v5046
          %v5048 = vsel %vm2805, %v5047, %v5043
          %v5049 = vlaneseq
          %v5050 = vshrl.u32 %v5049, 7
          %v5051 = vsub.s32 %v2807, %v5050
          %v5052 = vrot.slane %v4431, %v5051
          %v5053 = vsel %vm2812, %v5052, %v5048
          %v5054 = vlaneseq
          %v5055 = vshrl.u32 %v5054, 7
          %v5056 = vsub.s32 %v2814, %v5055
          %v5057 = vrot.slane %v4434, %v5056
          %v5058 = vsel %vm2819, %v5057, %v5053
          %v5059 = vlaneseq
          %v5060 = vshrl.u32 %v5059, 7
          %v5061 = vsub.s32 %v2795, %v5060
          %v5062 = vrot.slane %v4437, %v5061
          %v5063 = vlaneseq
          %v5064 = vshrl.u32 %v5063, 7
          %v5065 = vsub.s32 %v2800, %v5064
          %v5066 = vrot.slane %v4440, %v5065
          %v5067 = vsel %vm2805, %v5066, %v5062
          %v5068 = vlaneseq
          %v5069 = vshrl.u32 %v5068, 7
          %v5070 = vsub.s32 %v2807, %v5069
          %v5071 = vrot.slane %v4443, %v5070
          %v5072 = vsel %vm2812, %v5071, %v5067
          %v5073 = vlaneseq
          %v5074 = vshrl.u32 %v5073, 7
          %v5075 = vsub.s32 %v2814, %v5074
          %v5076 = vrot.slane %v4446, %v5075
          %v5077 = vsel %vm2819, %v5076, %v5072
          %v5078 = vlaneseq
          %v5079 = vshrl.u32 %v5078, 7
          %v5080 = vsub.s32 %v2795, %v5079
          %v5081 = vrot.slane %v4449, %v5080
          %v5082 = vlaneseq
          %v5083 = vshrl.u32 %v5082, 7
          %v5084 = vsub.s32 %v2800, %v5083
          %v5085 = vrot.slane %v4452, %v5084
          %v5086 = vsel %vm2805, %v5085, %v5081
          %v5087 = vlaneseq
          %v5088 = vshrl.u32 %v5087, 7
          %v5089 = vsub.s32 %v2807, %v5088
          %v5090 = vrot.slane %v4455, %v5089
          %v5091 = vsel %vm2812, %v5090, %v5086
          %v5092 = vlaneseq
          %v5093 = vshrl.u32 %v5092, 7
          %v5094 = vsub.s32 %v2814, %v5093
          %v5095 = vrot.slane %v4458, %v5094
          %v5096 = vsel %vm2819, %v5095, %v5091
          %v5097 = vlaneseq
          %v5098 = vshrl.u32 %v5097, 7
          %v5099 = vsub.s32 %v2795, %v5098
          %v5100 = vrot.slane %v4461, %v5099
          %v5101 = vlaneseq
          %v5102 = vshrl.u32 %v5101, 7
          %v5103 = vsub.s32 %v2800, %v5102
          %v5104 = vrot.slane %v4464, %v5103
          %v5105 = vsel %vm2805, %v5104, %v5100
          %v5106 = vlaneseq
          %v5107 = vshrl.u32 %v5106, 7
          %v5108 = vsub.s32 %v2807, %v5107
          %v5109 = vrot.slane %v4467, %v5108
          %v5110 = vsel %vm2812, %v5109, %v5105
          %v5111 = vlaneseq
          %v5112 = vshrl.u32 %v5111, 7
          %v5113 = vsub.s32 %v2814, %v5112
          %v5114 = vrot.slane %v4470, %v5113
          %v5115 = vsel %vm2819, %v5114, %v5110
          %v5116 = vlaneseq
          %v5117 = vshrl.u32 %v5116, 7
          %v5118 = vsub.s32 %v2795, %v5117
          %v5119 = vrot.slane %v4473, %v5118
          %v5120 = vlaneseq
          %v5121 = vshrl.u32 %v5120, 7
          %v5122 = vsub.s32 %v2800, %v5121
          %v5123 = vrot.slane %v4476, %v5122
          %v5124 = vsel %vm2805, %v5123, %v5119
          %v5125 = vlaneseq
          %v5126 = vshrl.u32 %v5125, 7
          %v5127 = vsub.s32 %v2807, %v5126
          %v5128 = vrot.slane %v4479, %v5127
          %v5129 = vsel %vm2812, %v5128, %v5124
          %v5130 = vlaneseq
          %v5131 = vshrl.u32 %v5130, 7
          %v5132 = vsub.s32 %v2814, %v5131
          %v5133 = vrot.slane %v4482, %v5132
          %v5134 = vsel %vm2819, %v5133, %v5129
          %v5135 = vlaneseq
          %v5136 = vshrl.u32 %v5135, 7
          %v5137 = vsub.s32 %v2795, %v5136
          %v5138 = vrot.slane %v4485, %v5137
          %v5139 = vlaneseq
          %v5140 = vshrl.u32 %v5139, 7
          %v5141 = vsub.s32 %v2800, %v5140
          %v5142 = vrot.slane %v4488, %v5141
          %v5143 = vsel %vm2805, %v5142, %v5138
          %v5144 = vlaneseq
          %v5145 = vshrl.u32 %v5144, 7
          %v5146 = vsub.s32 %v2807, %v5145
          %v5147 = vrot.slane %v4491, %v5146
          %v5148 = vsel %vm2812, %v5147, %v5143
          %v5149 = vlaneseq
          %v5150 = vshrl.u32 %v5149, 7
          %v5151 = vsub.s32 %v2814, %v5150
          %v5152 = vrot.slane %v4494, %v5151
          %v5153 = vsel %vm2819, %v5152, %v5148
          %v5154 = vlaneseq
          %v5155 = vshrl.u32 %v5154, 7
          %v5156 = vsub.s32 %v2795, %v5155
          %v5157 = vrot.slane %v4497, %v5156
          %v5158 = vlaneseq
          %v5159 = vshrl.u32 %v5158, 7
          %v5160 = vsub.s32 %v2800, %v5159
          %v5161 = vrot.slane %v4500, %v5160
          %v5162 = vsel %vm2805, %v5161, %v5157
          %v5163 = vlaneseq
          %v5164 = vshrl.u32 %v5163, 7
          %v5165 = vsub.s32 %v2807, %v5164
          %v5166 = vrot.slane %v4503, %v5165
          %v5167 = vsel %vm2812, %v5166, %v5162
          %v5168 = vlaneseq
          %v5169 = vshrl.u32 %v5168, 7
          %v5170 = vsub.s32 %v2814, %v5169
          %v5171 = vrot.slane %v4506, %v5170
          %v5172 = vsel %vm2819, %v5171, %v5167
          %v5173 = vlaneseq
          %v5174 = vshrl.u32 %v5173, 7
          %v5175 = vsub.s32 %v2795, %v5174
          %v5176 = vrot.slane %v4509, %v5175
          %v5177 = vlaneseq
          %v5178 = vshrl.u32 %v5177, 7
          %v5179 = vsub.s32 %v2800, %v5178
          %v5180 = vrot.slane %v4512, %v5179
          %v5181 = vsel %vm2805, %v5180, %v5176
          %v5182 = vlaneseq
          %v5183 = vshrl.u32 %v5182, 7
          %v5184 = vsub.s32 %v2807, %v5183
          %v5185 = vrot.slane %v4515, %v5184
          %v5186 = vsel %vm2812, %v5185, %v5181
          %v5187 = vlaneseq
          %v5188 = vshrl.u32 %v5187, 7
          %v5189 = vsub.s32 %v2814, %v5188
          %v5190 = vrot.slane %v4518, %v5189
          %v5191 = vsel %vm2819, %v5190, %v5186
          %v5192 = vlaneseq
          %v5193 = vshrl.u32 %v5192, 7
          %v5194 = vsub.s32 %v2795, %v5193
          %v5195 = vrot.slane %v4521, %v5194
          %v5196 = vlaneseq
          %v5197 = vshrl.u32 %v5196, 7
          %v5198 = vsub.s32 %v2800, %v5197
          %v5199 = vrot.slane %v4524, %v5198
          %v5200 = vsel %vm2805, %v5199, %v5195
          %v5201 = vlaneseq
          %v5202 = vshrl.u32 %v5201, 7
          %v5203 = vsub.s32 %v2807, %v5202
          %v5204 = vrot.slane %v4527, %v5203
          %v5205 = vsel %vm2812, %v5204, %v5200
          %v5206 = vlaneseq
          %v5207 = vshrl.u32 %v5206, 7
          %v5208 = vsub.s32 %v2814, %v5207
          %v5209 = vrot.slane %v4530, %v5208
          %v5210 = vsel %vm2819, %v5209, %v5205
          %v5211 = vlaneseq
          %v5212 = vshrl.u32 %v5211, 7
          %v5213 = vsub.s32 %v2795, %v5212
          %v5214 = vrot.slane %v4533, %v5213
          %v5215 = vlaneseq
          %v5216 = vshrl.u32 %v5215, 7
          %v5217 = vsub.s32 %v2800, %v5216
          %v5218 = vrot.slane %v4536, %v5217
          %v5219 = vsel %vm2805, %v5218, %v5214
          %v5220 = vlaneseq
          %v5221 = vshrl.u32 %v5220, 7
          %v5222 = vsub.s32 %v2807, %v5221
          %v5223 = vrot.slane %v4539, %v5222
          %v5224 = vsel %vm2812, %v5223, %v5219
          %v5225 = vlaneseq
          %v5226 = vshrl.u32 %v5225, 7
          %v5227 = vsub.s32 %v2814, %v5226
          %v5228 = vrot.slane %v4542, %v5227
          %v5229 = vsel %vm2819, %v5228, %v5224
          %v5230 = vlaneseq
          %v5231 = vshrl.u32 %v5230, 7
          %v5232 = vsub.s32 %v2795, %v5231
          %v5233 = vrot.slane %v4545, %v5232
          %v5234 = vlaneseq
          %v5235 = vshrl.u32 %v5234, 7
          %v5236 = vsub.s32 %v2800, %v5235
          %v5237 = vrot.slane %v4548, %v5236
          %v5238 = vsel %vm2805, %v5237, %v5233
          %v5239 = vlaneseq
          %v5240 = vshrl.u32 %v5239, 7
          %v5241 = vsub.s32 %v2807, %v5240
          %v5242 = vrot.slane %v4551, %v5241
          %v5243 = vsel %vm2812, %v5242, %v5238
          %v5244 = vlaneseq
          %v5245 = vshrl.u32 %v5244, 7
          %v5246 = vsub.s32 %v2814, %v5245
          %v5247 = vrot.slane %v4554, %v5246
          %v5248 = vsel %vm2819, %v5247, %v5243
          %v5249 = vlaneseq
          %v5250 = vshrl.u32 %v5249, 7
          %v5251 = vsub.s32 %v2795, %v5250
          %v5252 = vrot.slane %v4557, %v5251
          %v5253 = vlaneseq
          %v5254 = vshrl.u32 %v5253, 7
          %v5255 = vsub.s32 %v2800, %v5254
          %v5256 = vrot.slane %v4560, %v5255
          %v5257 = vsel %vm2805, %v5256, %v5252
          %v5258 = vlaneseq
          %v5259 = vshrl.u32 %v5258, 7
          %v5260 = vsub.s32 %v2807, %v5259
          %v5261 = vrot.slane %v4563, %v5260
          %v5262 = vsel %vm2812, %v5261, %v5257
          %v5263 = vlaneseq
          %v5264 = vshrl.u32 %v5263, 7
          %v5265 = vsub.s32 %v2814, %v5264
          %v5266 = vrot.slane %v4566, %v5265
          %v5267 = vsel %vm2819, %v5266, %v5262
          %v5268 = vlaneseq
          %v5269 = vshrl.u32 %v5268, 7
          %v5270 = vsub.s32 %v2795, %v5269
          %v5271 = vrot.slane %v4569, %v5270
          %v5272 = vlaneseq
          %v5273 = vshrl.u32 %v5272, 7
          %v5274 = vsub.s32 %v2800, %v5273
          %v5275 = vrot.slane %v4572, %v5274
          %v5276 = vsel %vm2805, %v5275, %v5271
          %v5277 = vlaneseq
          %v5278 = vshrl.u32 %v5277, 7
          %v5279 = vsub.s32 %v2807, %v5278
          %v5280 = vrot.slane %v4575, %v5279
          %v5281 = vsel %vm2812, %v5280, %v5276
          %v5282 = vlaneseq
          %v5283 = vshrl.u32 %v5282, 7
          %v5284 = vsub.s32 %v2814, %v5283
          %v5285 = vrot.slane %v4578, %v5284
          %v5286 = vsel %vm2819, %v5285, %v5281
          %v5287 = vlaneseq
          %v5288 = vshrl.u32 %v5287, 7
          %v5289 = vsub.s32 %v2795, %v5288
          %v5290 = vrot.slane %v4581, %v5289
          %v5291 = vlaneseq
          %v5292 = vshrl.u32 %v5291, 7
          %v5293 = vsub.s32 %v2800, %v5292
          %v5294 = vrot.slane %v4584, %v5293
          %v5295 = vsel %vm2805, %v5294, %v5290
          %v5296 = vlaneseq
          %v5297 = vshrl.u32 %v5296, 7
          %v5298 = vsub.s32 %v2807, %v5297
          %v5299 = vrot.slane %v4587, %v5298
          %v5300 = vsel %vm2812, %v5299, %v5295
          %v5301 = vlaneseq
          %v5302 = vshrl.u32 %v5301, 7
          %v5303 = vsub.s32 %v2814, %v5302
          %v5304 = vrot.slane %v4590, %v5303
          %v5305 = vsel %vm2819, %v5304, %v5300
          %v5306 = vlaneseq
          %v5307 = vshrl.u32 %v5306, 7
          %v5308 = vsub.s32 %v2795, %v5307
          %v5309 = vrot.slane %v4593, %v5308
          %v5310 = vlaneseq
          %v5311 = vshrl.u32 %v5310, 7
          %v5312 = vsub.s32 %v2800, %v5311
          %v5313 = vrot.slane %v4596, %v5312
          %v5314 = vsel %vm2805, %v5313, %v5309
          %v5315 = vlaneseq
          %v5316 = vshrl.u32 %v5315, 7
          %v5317 = vsub.s32 %v2807, %v5316
          %v5318 = vrot.slane %v4599, %v5317
          %v5319 = vsel %vm2812, %v5318, %v5314
          %v5320 = vlaneseq
          %v5321 = vshrl.u32 %v5320, 7
          %v5322 = vsub.s32 %v2814, %v5321
          %v5323 = vrot.slane %v4602, %v5322
          %v5324 = vsel %vm2819, %v5323, %v5319
          %v5325 = vlaneseq
          %v5326 = vshrl.u32 %v5325, 7
          %v5327 = vsub.s32 %v2795, %v5326
          %v5328 = vrot.slane %v4605, %v5327
          %v5329 = vlaneseq
          %v5330 = vshrl.u32 %v5329, 7
          %v5331 = vsub.s32 %v2800, %v5330
          %v5332 = vrot.slane %v4608, %v5331
          %v5333 = vsel %vm2805, %v5332, %v5328
          %v5334 = vlaneseq
          %v5335 = vshrl.u32 %v5334, 7
          %v5336 = vsub.s32 %v2807, %v5335
          %v5337 = vrot.slane %v4611, %v5336
          %v5338 = vsel %vm2812, %v5337, %v5333
          %v5339 = vlaneseq
          %v5340 = vshrl.u32 %v5339, 7
          %v5341 = vsub.s32 %v2814, %v5340
          %v5342 = vrot.slane %v4614, %v5341
          %v5343 = vsel %vm2819, %v5342, %v5338
          %v5344 = vlaneseq
          %v5345 = vshrl.u32 %v5344, 7
          %v5346 = vsub.s32 %v2795, %v5345
          %v5347 = vrot.slane %v4617, %v5346
          %v5348 = vlaneseq
          %v5349 = vshrl.u32 %v5348, 7
          %v5350 = vsub.s32 %v2800, %v5349
          %v5351 = vrot.slane %v4620, %v5350
          %v5352 = vsel %vm2805, %v5351, %v5347
          %v5353 = vlaneseq
          %v5354 = vshrl.u32 %v5353, 7
          %v5355 = vsub.s32 %v2807, %v5354
          %v5356 = vrot.slane %v4623, %v5355
          %v5357 = vsel %vm2812, %v5356, %v5352
          %v5358 = vlaneseq
          %v5359 = vshrl.u32 %v5358, 7
          %v5360 = vsub.s32 %v2814, %v5359
          %v5361 = vrot.slane %v4626, %v5360
          %v5362 = vsel %vm2819, %v5361, %v5357
          %v5363 = vsel %vm3410, %v4792, %v4773
          %v5364 = vsel %vm3412, %v4811, %v5363
          %v5365 = vsel %vm3414, %v4830, %v5364
          %v5366 = vsel %vm3416, %v4849, %v5365
          %v5367 = vsel %vm3418, %v4868, %v5366
          %v5368 = vsel %vm3420, %v4887, %v5367
          %v5369 = vsel %vm3422, %v4906, %v5368
          %v5370 = vsel %vm3410, %v4944, %v4925
          %v5371 = vsel %vm3412, %v4963, %v5370
          %v5372 = vsel %vm3414, %v4982, %v5371
          %v5373 = vsel %vm3416, %v5001, %v5372
          %v5374 = vsel %vm3418, %v5020, %v5373
          %v5375 = vsel %vm3420, %v5039, %v5374
          %v5376 = vsel %vm3422, %v5058, %v5375
          %v5377 = vsel %vm3410, %v5096, %v5077
          %v5378 = vsel %vm3412, %v5115, %v5377
          %v5379 = vsel %vm3414, %v5134, %v5378
          %v5380 = vsel %vm3416, %v5153, %v5379
          %v5381 = vsel %vm3418, %v5172, %v5380
          %v5382 = vsel %vm3420, %v5191, %v5381
          %v5383 = vsel %vm3422, %v5210, %v5382
          %v5384 = vsel %vm3410, %v5248, %v5229
          %v5385 = vsel %vm3412, %v5267, %v5384
          %v5386 = vsel %vm3414, %v5286, %v5385
          %v5387 = vsel %vm3416, %v5305, %v5386
          %v5388 = vsel %vm3418, %v5324, %v5387
          %v5389 = vsel %vm3420, %v5343, %v5388
          %v5390 = vsel %vm3422, %v5362, %v5389
          %v5395 = vsel %vm2662, %v5369, -1e+30
          %v5396 = vsel %vm2663, %v5376, -1e+30
          %v5397 = vsel %vm2664, %v5383, -1e+30
          %v5398 = vsel %vm2665, %v5390, -1e+30
          %v5399 = vsel %vm3453, %v5395, -inf
          %5400 = vmax.xlane.f32.xlu0 %v5399
          %v5401 = vpop.xlane.xlu0 %5400
          %v5402 = vsel %vm3453, %v5396, -inf
          %5403 = vmax.xlane.f32.xlu0 %v5402
          %v5404 = vpop.xlane.xlu0 %5403
          %v5405 = vsel %vm3453, %v5397, -inf
          %5406 = vmax.xlane.f32.xlu0 %v5405
          %v5407 = vpop.xlane.xlu0 %5406
          %v5408 = vsel %vm3453, %v5398, -inf
          %5409 = vmax.xlane.f32.xlu0 %v5408
          %v5410 = vpop.xlane.xlu0 %5409
          %v5411 = vsub.f32 %v5395, %v5401
          %v5412 = vsub.f32 %v5396, %v5404
          %v5413 = vsub.f32 %v5397, %v5407
          %v5414 = vsub.f32 %v5398, %v5410
          %v5415 = vmul.f32 %v5411, 1.442695
          %v5416 = vpow.pop %v5415
          %v5417 = vmul.f32 %v5412, 1.442695
          %v5418 = vpow.pop %v5417
          %v5419 = vmul.f32 %v5413, 1.442695
          %v5420 = vpow.pop %v5419
          %v5421 = vmul.f32 %v5414, 1.442695
          %v5422 = vpow.pop %v5421
          %v5423 = vsel %vm3453, %v5416, 0.0
          %5424 = vadd.xlane.f32.xlu0 %v5423
          %v5425 = vpop.xlane.xlu0 %5424
          %v5426 = vsel %vm3453, %v5418, 0.0
          %5427 = vadd.xlane.f32.xlu0 %v5426
          %v5428 = vpop.xlane.xlu0 %5427
          %v5429 = vsel %vm3453, %v5420, 0.0
          %5430 = vadd.xlane.f32.xlu0 %v5429
          %v5431 = vpop.xlane.xlu0 %5430
          %v5432 = vsel %vm3453, %v5422, 0.0
          %5433 = vadd.xlane.f32.xlu0 %v5432
          %v5434 = vpop.xlane.xlu0 %5433
          %v5435 = vrcp.pop %v5425
          %v5436 = vmul.f32 %v5416, %v5435
          %v5437 = vrcp.pop %v5428
          %v5438 = vmul.f32 %v5418, %v5437
          %v5439 = vrcp.pop %v5431
          %v5440 = vmul.f32 %v5420, %v5439
          %v5441 = vrcp.pop %v5434
          %v5442 = vmul.f32 %v5422, %v5441
          %5447 = vrot.lane.b32.xlu0 %v1162, 64
          %v5448 = vpop.permute.xlu0 %5447
          %5449 = vrot.lane.b32.xlu0 %v1167, 64
          %v5450 = vpop.permute.xlu0 %5449
          %5451 = vrot.lane.b32.xlu0 %v1172, 64
          %v5452 = vpop.permute.xlu0 %5451
          %5453 = vrot.lane.b32.xlu0 %v1177, 64
          %v5454 = vpop.permute.xlu0 %5453
          %v5460 = vsel %vm3453, %v5436, 0
          %v5463 = vsel %vm3453, %v5438, 0
          %v5466 = vsel %vm3453, %v5440, 0
          %v5469 = vsel %vm3453, %v5442, 0
          %5471 = vmatprep.subr.mxu0 0.0
          %5472 = vmatpush1.msra.mxu0 %v5448
          %5473 = vmatprep.subr.mxu0 0.0
          %5474 = vmatpush1.msra.mxu0 %v5450
          %5475 = vmatprep.subr.mxu0 0.0
          %5476 = vmatpush1.msra.mxu0 %v5452
          %5477 = vmatprep.subr.mxu0 0.0
          %5478 = vmatpush1.msra.mxu0 %v5454
          %5479 = vmatprep.subr.mxu0 0.0
          %5480 = vmatpush1.msra.mxu0 0.0
          %5481 = vmatprep.subr.mxu0 0.0
          %5482 = vmatpush1.msra.mxu0 0.0
          %5483 = vmatprep.subr.mxu0 0.0
          %5484 = vmatpush1.msra.mxu0 0.0
          %5485 = vmatprep.subr.mxu0 0.0
          %5486 = vmatpush1.msra.mxu0 0.0
          %5487 = vmatprep.subr.mxu0 0.0
          %5488 = vmatpush1.msra.mxu0 0.0
          %5489 = vmatprep.subr.mxu0 0.0
          %5490 = vmatpush1.msra.mxu0 0.0
          %5491 = vmatprep.subr.mxu0 0.0
          %5492 = vmatpush1.msra.mxu0 0.0
          %5493 = vmatprep.subr.mxu0 0.0
          %5494 = vmatpush1.msra.mxu0 0.0
          %5495 = vmatprep.subr.mxu0 0.0
          %5496 = vmatpush1.msra.mxu0 0.0
          %5497 = vmatprep.subr.mxu0 0.0
          %5498 = vmatpush1.msra.mxu0 0.0
          %5499 = vmatprep.subr.mxu0 0.0
          %5500 = vmatpush1.msra.mxu0 0.0
          %5501 = vmatprep.subr.mxu0 0.0
          %5502 = vmatpush1.msra.mxu0 0.0
          %5503 = vmatprep.subr.mxu0 0.0
          %5504 = vmatpush1.msra.mxu0 0.0
          %5505 = vmatprep.subr.mxu0 0.0
          %5506 = vmatpush1.msra.mxu0 0.0
          %5507 = vmatprep.subr.mxu0 0.0
          %5508 = vmatpush1.msra.mxu0 0.0
          %5509 = vmatprep.subr.mxu0 0.0
          %5510 = vmatpush1.msra.mxu0 0.0
          %5511 = vmatprep.subr.mxu0 0.0
          %5512 = vmatpush1.msra.mxu0 0.0
          %5513 = vmatprep.subr.mxu0 0.0
          %5514 = vmatpush1.msra.mxu0 0.0
          %5515 = vmatprep.subr.mxu0 0.0
          %5516 = vmatpush1.msra.mxu0 0.0
          %5517 = vmatprep.subr.mxu0 0.0
          %5518 = vmatpush1.msra.mxu0 0.0
          %5519 = vmatprep.subr.mxu0 0.0
          %5520 = vmatpush1.msra.mxu0 0.0
          %5521 = vmatprep.subr.mxu0 0.0
          %5522 = vmatpush1.msra.mxu0 0.0
          %5523 = vmatprep.subr.mxu0 0.0
          %5524 = vmatpush1.msra.mxu0 0.0
          %5525 = vmatprep.subr.mxu0 0.0
          %5526 = vmatpush1.msra.mxu0 0.0
          %5527 = vmatprep.subr.mxu0 0.0
          %5528 = vmatpush1.msra.mxu0 0.0
          %5529 = vmatprep.subr.mxu0 0.0
          %5530 = vmatpush1.msra.mxu0 0.0
          %5531 = vmatprep.subr.mxu0 0.0
          %5532 = vmatpush1.msra.mxu0 0.0
          %5533 = vmatprep.subr.mxu0 0.0
          %5534 = vmatpush1.msra.mxu0 0.0
          %5535 = vmatprep.mubr.f32.mxu0 0.0
          %5536 = vmatmul.mubr.f32.gmra.mrb[0].mxu0 %v5460
          %v5537 = vpop.f32.mrb[0].mxu0
          %v5538 = vadd.f32 0.0, %v5537
          %v5539 = vpop.f32.mrb[0].mxu0
          %5540 = vmatprep.mubr.f32.mxu0 0.0
          %5541 = vmatmul.mubr.f32.gmra.mrb[0].mxu0 %v5463
          %v5542 = vpop.f32.mrb[0].mxu0
          %v5543 = vadd.f32 0.0, %v5542
          %v5544 = vpop.f32.mrb[0].mxu0
          %5545 = vmatprep.mubr.f32.mxu0 0.0
          %5546 = vmatmul.mubr.f32.gmra.mrb[0].mxu0 %v5466
          %v5547 = vpop.f32.mrb[0].mxu0
          %v5548 = vadd.f32 0.0, %v5547
          %v5549 = vpop.f32.mrb[0].mxu0
          %5550 = vmatprep.mubr.f32.mxu0 0.0
          %5551 = vmatmul.mubr.f32.gmra.mrb[0].mxu0 %v5469
          %v5552 = vpop.f32.mrb[0].mxu0
          %v5553 = vadd.f32 0.0, %v5552
          %v5554 = vpop.f32.mrb[0].mxu0
          %5555 = vdwg.mxu0
          %5560 = vrot.lane.b32.xlu0 %v5538, 64
          %v5561 = vpop.permute.xlu0 %5560
          %5562 = vrot.lane.b32.xlu0 %v5543, 64
          %v5563 = vpop.permute.xlu0 %5562
          %5564 = vrot.lane.b32.xlu0 %v5548, 64
          %v5565 = vpop.permute.xlu0 %5564
          %5566 = vrot.lane.b32.xlu0 %v5553, 64
          %v5567 = vpop.permute.xlu0 %5566
          %v5572 = vsel %vm2277, %v3577, %v5561
          %v5573 = vsel %vm2277, %v3582, %v5563
          %v5574 = vsel %vm2277, %v3587, %v5565
          %v5575 = vsel %vm2277, %v3592, %v5567
          %v5577 = vlaneseq
          %v5578 = vshrl.u32 %v5577, 7
          %v5579 = vsub.s32 0, %v5578
          %v5580 = vrot.slane %v1075, %v5579
          %v5582 = vadd.f32 %v5572, %v5580
          %v5583 = vadd.f32 %v5573, %v5580
          %v5584 = vadd.f32 %v5574, %v5580
          %v5585 = vadd.f32 %v5575, %v5580
          %v5586 = vmax.f32 %v5582, 0.0
          %v5587 = vmax.f32 %v5583, 0.0
          %v5588 = vmax.f32 %v5584, 0.0
          %v5589 = vmax.f32 %v5585, 0.0
          %5590 = vst [vmem:[#allocation2] sm:$0xff] %v5586
          %5591 = vst [vmem:[#allocation2 + $0x8] sm:$0xff] %v5587
          %5592 = vst [vmem:[#allocation2 + $0x10] sm:$0xff] %v5588
          %5593 = vst [vmem:[#allocation2 + $0x18] sm:$0xff] %v5589
        $region164: #{tpu_custom_call.1} parent=107 // pred_fallthru
          _
        %v5594 = vld [vmem:[#allocation2] sm:$0xff]
        %v5595 = vld [vmem:[#allocation2 + $0x8] sm:$0xff]
        %v5596 = vld [vmem:[#allocation2 + $0x10] sm:$0xff]
        %v5597 = vld [vmem:[#allocation2 + $0x18] sm:$0xff]
        %v5598 = vld [vmem:[%s881] sm:$0xff]
        %v5599 = vld [vmem:[%s881 + $0x8] sm:$0xf]
        %v5600 = vld [vmem:[%s881 + $0xc] sm:$0xff]
        %v5601 = vld [vmem:[%s881 + $0x14] sm:$0xf]
        %v5602 = vld [vmem:[%s881 + $0x18] sm:$0xff]
        %v5603 = vld [vmem:[%s881 + $0x20] sm:$0xf]
        %v5604 = vld [vmem:[%s881 + $0x24] sm:$0xff]
        %v5605 = vld [vmem:[%s881 + $0x2c] sm:$0xf]
        %v5606 = vld [vmem:[%s881 + $0x30] sm:$0xff]
        %v5607 = vld [vmem:[%s881 + $0x38] sm:$0xf]
        %v5608 = vld [vmem:[%s881 + $0x3c] sm:$0xff]
        %v5609 = vld [vmem:[%s881 + $0x44] sm:$0xf]
        %v5610 = vld [vmem:[%s881 + $0x48] sm:$0xff]
        %v5611 = vld [vmem:[%s881 + $0x50] sm:$0xf]
        %v5612 = vld [vmem:[%s881 + $0x54] sm:$0xff]
        %v5613 = vld [vmem:[%s881 + $0x5c] sm:$0xf]
        %v5614 = vld [vmem:[%s881 + $0x60] sm:$0xff]
        %v5615 = vld [vmem:[%s881 + $0x68] sm:$0xf]
        %v5616 = vld [vmem:[%s881 + $0x6c] sm:$0xff]
        %v5617 = vld [vmem:[%s881 + $0x74] sm:$0xf]
        %v5618 = vld [vmem:[%s881 + $0x78] sm:$0xff]
        %v5619 = vld [vmem:[%s881 + $0x80] sm:$0xf]
        %v5620 = vld [vmem:[%s881 + $0x84] sm:$0xff]
        %v5621 = vld [vmem:[%s881 + $0x8c] sm:$0xf]
        %v5622 = vld [vmem:[%s881 + $0x90] sm:$0xff]
        %v5623 = vld [vmem:[%s881 + $0x98] sm:$0xf]
        %v5624 = vld [vmem:[%s881 + $0x9c] sm:$0xff]
        %v5625 = vld [vmem:[%s881 + $0xa4] sm:$0xf]
        %v5626 = vld [vmem:[%s881 + $0xa8] sm:$0xff]
        %v5627 = vld [vmem:[%s881 + $0xb0] sm:$0xf]
        %v5628 = vld [vmem:[%s881 + $0xb4] sm:$0xff]
        %v5629 = vld [vmem:[%s881 + $0xbc] sm:$0xf]
        %v5630 = vunpack.c.l.bf16 %v5598
        %v5631 = vunpack.c.h.bf16 %v5598
        %v5632 = vunpack.c.l.bf16 %v5599
        %v5633 = vunpack.c.l.bf16 %v5600
        %v5634 = vunpack.c.h.bf16 %v5600
        %v5635 = vunpack.c.l.bf16 %v5601
        %v5636 = vunpack.c.l.bf16 %v5602
        %v5637 = vunpack.c.h.bf16 %v5602
        %v5638 = vunpack.c.l.bf16 %v5603
        %v5639 = vunpack.c.l.bf16 %v5604
        %v5640 = vunpack.c.h.bf16 %v5604
        %v5641 = vunpack.c.l.bf16 %v5605
        %v5642 = vunpack.c.l.bf16 %v5606
        %v5643 = vunpack.c.h.bf16 %v5606
        %v5644 = vunpack.c.l.bf16 %v5607
        %v5645 = vunpack.c.l.bf16 %v5608
        %v5646 = vunpack.c.h.bf16 %v5608
        %v5647 = vunpack.c.l.bf16 %v5609
        %v5648 = vunpack.c.l.bf16 %v5610
        %v5649 = vunpack.c.h.bf16 %v5610
        %v5650 = vunpack.c.l.bf16 %v5611
        %v5651 = vunpack.c.l.bf16 %v5612
        %v5652 = vunpack.c.h.bf16 %v5612
        %v5653 = vunpack.c.l.bf16 %v5613
        %v5654 = vunpack.c.l.bf16 %v5614
        %v5655 = vunpack.c.h.bf16 %v5614
        %v5656 = vunpack.c.l.bf16 %v5615
        %v5657 = vunpack.c.l.bf16 %v5616
        %v5658 = vunpack.c.h.bf16 %v5616
        %v5659 = vunpack.c.l.bf16 %v5617
        %v5660 = vunpack.c.l.bf16 %v5618
        %v5661 = vunpack.c.h.bf16 %v5618
        %v5662 = vunpack.c.l.bf16 %v5619
        %v5663 = vunpack.c.l.bf16 %v5620
        %v5664 = vunpack.c.h.bf16 %v5620
        %v5665 = vunpack.c.l.bf16 %v5621
        %v5666 = vunpack.c.l.bf16 %v5622
        %v5667 = vunpack.c.h.bf16 %v5622
        %v5668 = vunpack.c.l.bf16 %v5623
        %v5669 = vunpack.c.l.bf16 %v5624
        %v5670 = vunpack.c.h.bf16 %v5624
        %v5671 = vunpack.c.l.bf16 %v5625
        %v5672 = vunpack.c.l.bf16 %v5626
        %v5673 = vunpack.c.h.bf16 %v5626
        %v5674 = vunpack.c.l.bf16 %v5627
        %v5675 = vunpack.c.l.bf16 %v5628
        %v5676 = vunpack.c.h.bf16 %v5628
        %v5677 = vunpack.c.l.bf16 %v5629
        %v5678 = vld [vmem:[%s890] sm:$0x7]
        %v5679 = vld [vmem:[%s1037] sm:$0xf]
        %v5680 = vld [vmem:[%s1037 + $0x4] sm:$0xf]
        %v5681 = vld [vmem:[%s1037 + $0x8] sm:$0xf]
        %v5682 = vld [vmem:[%s1037 + $0xc] sm:$0xf]
        %v5683 = vld [vmem:[%s1037 + $0x10] sm:$0xf]
        %v5684 = vld [vmem:[%s1037 + $0x14] sm:$0xf]
        %v5685 = vld [vmem:[%s1037 + $0x18] sm:$0xf]
        %v5686 = vld [vmem:[%s1037 + $0x1c] sm:$0xf]
        %v5687 = vld [vmem:[%s1037 + $0x20] sm:$0xf]
        %v5688 = vld [vmem:[%s1037 + $0x24] sm:$0xf]
        %v5689 = vld [vmem:[%s1037 + $0x28] sm:$0xf]
        %v5690 = vld [vmem:[%s1037 + $0x2c] sm:$0xf]
        %v5691 = vld [vmem:[%s1037 + $0x30] sm:$0xf]
        %v5692 = vld [vmem:[%s1037 + $0x34] sm:$0xf]
        %v5693 = vld [vmem:[%s1037 + $0x38] sm:$0xf]
        %v5694 = vld [vmem:[%s1037 + $0x3c] sm:$0xf]
        %v5695 = vunpack.c.l.bf16 %v5679
        %v5696 = vunpack.c.l.bf16 %v5680
        %v5697 = vunpack.c.l.bf16 %v5681
        %v5698 = vunpack.c.l.bf16 %v5682
        %v5699 = vunpack.c.l.bf16 %v5683
        %v5700 = vunpack.c.l.bf16 %v5684
        %v5701 = vunpack.c.l.bf16 %v5685
        %v5702 = vunpack.c.l.bf16 %v5686
        %v5703 = vunpack.c.l.bf16 %v5687
        %v5704 = vunpack.c.l.bf16 %v5688
        %v5705 = vunpack.c.l.bf16 %v5689
        %v5706 = vunpack.c.l.bf16 %v5690
        %v5707 = vunpack.c.l.bf16 %v5691
        %v5708 = vunpack.c.l.bf16 %v5692
        %v5709 = vunpack.c.l.bf16 %v5693
        %v5710 = vunpack.c.l.bf16 %v5694
        %v5711 = vld [vmem:[%s898] sm:$0x1]
        %v5712 = vld [vmem:[%s906] sm:$0x1]
        %v5713 = vld [vmem:[%s914] sm:$0x1]
        %v5714 = vld [vmem:[%s923] sm:$0xff]
        %v5715 = vld [vmem:[%s923 + $0x8] sm:$0xff]
        %v5716 = vld [vmem:[%s923 + $0x10] sm:$0xff]
        %v5717 = vld [vmem:[%s923 + $0x18] sm:$0xff]
        %v5718 = vld [vmem:[%s923 + $0x20] sm:$0xff]
        %v5719 = vld [vmem:[%s923 + $0x28] sm:$0xff]
        %v5720 = vld [vmem:[%s923 + $0x30] sm:$0xff]
        %v5721 = vld [vmem:[%s923 + $0x38] sm:$0xff]
        %v5722 = vld [vmem:[%s923 + $0x40] sm:$0xff]
        %v5723 = vld [vmem:[%s923 + $0x48] sm:$0xff]
        %v5724 = vld [vmem:[%s923 + $0x50] sm:$0xff]
        %v5725 = vld [vmem:[%s923 + $0x58] sm:$0xff]
        %v5726 = vld [vmem:[%s923 + $0x60] sm:$0xff]
        %v5727 = vld [vmem:[%s923 + $0x68] sm:$0xff]
        %v5728 = vld [vmem:[%s923 + $0x70] sm:$0xff]
        %v5729 = vld [vmem:[%s923 + $0x78] sm:$0xff]
        %v5730 = vld [vmem:[%s923 + $0x80] sm:$0xff]
        %v5731 = vld [vmem:[%s923 + $0x88] sm:$0xff]
        %v5732 = vld [vmem:[%s923 + $0x90] sm:$0xff]
        %v5733 = vld [vmem:[%s923 + $0x98] sm:$0xff]
        %v5734 = vld [vmem:[%s923 + $0xa0] sm:$0xff]
        %v5735 = vld [vmem:[%s923 + $0xa8] sm:$0xff]
        %v5736 = vld [vmem:[%s923 + $0xb0] sm:$0xff]
        %v5737 = vld [vmem:[%s923 + $0xb8] sm:$0xff]
        %v5738 = vld [vmem:[%s923 + $0xc0] sm:$0xff]
        %v5739 = vld [vmem:[%s923 + $0xc8] sm:$0xff]
        %v5740 = vld [vmem:[%s923 + $0xd0] sm:$0xff]
        %v5741 = vld [vmem:[%s923 + $0xd8] sm:$0xff]
        %v5742 = vld [vmem:[%s923 + $0xe0] sm:$0xff]
        %v5743 = vld [vmem:[%s923 + $0xe8] sm:$0xff]
        %v5744 = vld [vmem:[%s923 + $0xf0] sm:$0xff]
        %v5745 = vld [vmem:[%s923 + $0xf8] sm:$0xff]
        %v5746 = vld [vmem:[%s923 + $0x100] sm:$0xff]
        %v5747 = vld [vmem:[%s923 + $0x108] sm:$0xff]
        %v5748 = vld [vmem:[%s923 + $0x110] sm:$0xff]
        %v5749 = vld [vmem:[%s923 + $0x118] sm:$0xff]
        %v5750 = vld [vmem:[%s923 + $0x120] sm:$0xff]
        %v5751 = vld [vmem:[%s923 + $0x128] sm:$0xff]
        %v5752 = vld [vmem:[%s923 + $0x130] sm:$0xff]
        %v5753 = vld [vmem:[%s923 + $0x138] sm:$0xff]
        %v5754 = vld [vmem:[%s923 + $0x140] sm:$0xff]
        %v5755 = vld [vmem:[%s923 + $0x148] sm:$0xff]
        %v5756 = vld [vmem:[%s923 + $0x150] sm:$0xff]
        %v5757 = vld [vmem:[%s923 + $0x158] sm:$0xff]
        %v5758 = vld [vmem:[%s923 + $0x160] sm:$0xff]
        %v5759 = vld [vmem:[%s923 + $0x168] sm:$0xff]
        %v5760 = vld [vmem:[%s923 + $0x170] sm:$0xff]
        %v5761 = vld [vmem:[%s923 + $0x178] sm:$0xff]
        %v5762 = vld [vmem:[%s923 + $0x180] sm:$0xff]
        %v5763 = vld [vmem:[%s923 + $0x188] sm:$0xff]
        %v5764 = vld [vmem:[%s923 + $0x190] sm:$0xff]
        %v5765 = vld [vmem:[%s923 + $0x198] sm:$0xff]
        %v5766 = vld [vmem:[%s923 + $0x1a0] sm:$0xff]
        %v5767 = vld [vmem:[%s923 + $0x1a8] sm:$0xff]
        %v5768 = vld [vmem:[%s923 + $0x1b0] sm:$0xff]
        %v5769 = vld [vmem:[%s923 + $0x1b8] sm:$0xff]
        %v5770 = vld [vmem:[%s923 + $0x1c0] sm:$0xff]
        %v5771 = vld [vmem:[%s923 + $0x1c8] sm:$0xff]
        %v5772 = vld [vmem:[%s923 + $0x1d0] sm:$0xff]
        %v5773 = vld [vmem:[%s923 + $0x1d8] sm:$0xff]
        %v5774 = vld [vmem:[%s923 + $0x1e0] sm:$0xff]
        %v5775 = vld [vmem:[%s923 + $0x1e8] sm:$0xff]
        %v5776 = vld [vmem:[%s923 + $0x1f0] sm:$0xff]
        %v5777 = vld [vmem:[%s923 + $0x1f8] sm:$0xff]
        %v5778 = vld [vmem:[%s923 + $0x200] sm:$0xff]
        %v5779 = vld [vmem:[%s923 + $0x208] sm:$0xff]
        %v5780 = vld [vmem:[%s923 + $0x210] sm:$0xff]
        %v5781 = vld [vmem:[%s923 + $0x218] sm:$0xff]
        %v5782 = vld [vmem:[%s923 + $0x220] sm:$0xff]
        %v5783 = vld [vmem:[%s923 + $0x228] sm:$0xff]
        %v5784 = vld [vmem:[%s923 + $0x230] sm:$0xff]
        %v5785 = vld [vmem:[%s923 + $0x238] sm:$0xff]
        %v5786 = vld [vmem:[%s923 + $0x240] sm:$0xff]
        %v5787 = vld [vmem:[%s923 + $0x248] sm:$0xff]
        %v5788 = vld [vmem:[%s923 + $0x250] sm:$0xff]
        %v5789 = vld [vmem:[%s923 + $0x258] sm:$0xff]
        %v5790 = vld [vmem:[%s923 + $0x260] sm:$0xff]
        %v5791 = vld [vmem:[%s923 + $0x268] sm:$0xff]
        %v5792 = vld [vmem:[%s923 + $0x270] sm:$0xff]
        %v5793 = vld [vmem:[%s923 + $0x278] sm:$0xff]
        %v5794 = vld [vmem:[%s923 + $0x280] sm:$0xff]
        %v5795 = vld [vmem:[%s923 + $0x288] sm:$0xff]
        %v5796 = vld [vmem:[%s923 + $0x290] sm:$0xff]
        %v5797 = vld [vmem:[%s923 + $0x298] sm:$0xff]
        %v5798 = vld [vmem:[%s923 + $0x2a0] sm:$0xff]
        %v5799 = vld [vmem:[%s923 + $0x2a8] sm:$0xff]
        %v5800 = vld [vmem:[%s923 + $0x2b0] sm:$0xff]
        %v5801 = vld [vmem:[%s923 + $0x2b8] sm:$0xff]
        %v5802 = vld [vmem:[%s923 + $0x2c0] sm:$0xff]
        %v5803 = vld [vmem:[%s923 + $0x2c8] sm:$0xff]
        %v5804 = vld [vmem:[%s923 + $0x2d0] sm:$0xff]
        %v5805 = vld [vmem:[%s923 + $0x2d8] sm:$0xff]
        %v5806 = vld [vmem:[%s923 + $0x2e0] sm:$0xff]
        %v5807 = vld [vmem:[%s923 + $0x2e8] sm:$0xff]
        %v5808 = vld [vmem:[%s923 + $0x2f0] sm:$0xff]
        %v5809 = vld [vmem:[%s923 + $0x2f8] sm:$0xff]
        %v5810 = vld [vmem:[%s923 + $0x300] sm:$0xff]
        %v5811 = vld [vmem:[%s923 + $0x308] sm:$0xff]
        %v5812 = vld [vmem:[%s923 + $0x310] sm:$0xff]
        %v5813 = vld [vmem:[%s923 + $0x318] sm:$0xff]
        %v5814 = vld [vmem:[%s923 + $0x320] sm:$0xff]
        %v5815 = vld [vmem:[%s923 + $0x328] sm:$0xff]
        %v5816 = vld [vmem:[%s923 + $0x330] sm:$0xff]
        %v5817 = vld [vmem:[%s923 + $0x338] sm:$0xff]
        %v5818 = vld [vmem:[%s923 + $0x340] sm:$0xff]
        %v5819 = vld [vmem:[%s923 + $0x348] sm:$0xff]
        %v5820 = vld [vmem:[%s923 + $0x350] sm:$0xff]
        %v5821 = vld [vmem:[%s923 + $0x358] sm:$0xff]
        %v5822 = vld [vmem:[%s923 + $0x360] sm:$0xff]
        %v5823 = vld [vmem:[%s923 + $0x368] sm:$0xff]
        %v5824 = vld [vmem:[%s923 + $0x370] sm:$0xff]
        %v5825 = vld [vmem:[%s923 + $0x378] sm:$0xff]
        %v5826 = vld [vmem:[%s923 + $0x380] sm:$0xff]
        %v5827 = vld [vmem:[%s923 + $0x388] sm:$0xff]
        %v5828 = vld [vmem:[%s923 + $0x390] sm:$0xff]
        %v5829 = vld [vmem:[%s923 + $0x398] sm:$0xff]
        %v5830 = vld [vmem:[%s923 + $0x3a0] sm:$0xff]
        %v5831 = vld [vmem:[%s923 + $0x3a8] sm:$0xff]
        %v5832 = vld [vmem:[%s923 + $0x3b0] sm:$0xff]
        %v5833 = vld [vmem:[%s923 + $0x3b8] sm:$0xff]
        %v5834 = vld [vmem:[%s923 + $0x3c0] sm:$0xff]
        %v5835 = vld [vmem:[%s923 + $0x3c8] sm:$0xff]
        %v5836 = vld [vmem:[%s923 + $0x3d0] sm:$0xff]
        %v5837 = vld [vmem:[%s923 + $0x3d8] sm:$0xff]
        %v5838 = vld [vmem:[%s923 + $0x3e0] sm:$0xff]
        %v5839 = vld [vmem:[%s923 + $0x3e8] sm:$0xff]
        %v5840 = vld [vmem:[%s923 + $0x3f0] sm:$0xff]
        %v5841 = vld [vmem:[%s923 + $0x3f8] sm:$0xff]
        %v5842 = vunpack.c.l.bf16 %v5714
        %v5843 = vunpack.c.h.bf16 %v5714
        %v5844 = vunpack.c.l.bf16 %v5715
        %v5845 = vunpack.c.h.bf16 %v5715
        %v5846 = vunpack.c.l.bf16 %v5716
        %v5847 = vunpack.c.h.bf16 %v5716
        %v5848 = vunpack.c.l.bf16 %v5717
        %v5849 = vunpack.c.h.bf16 %v5717
        %v5850 = vunpack.c.l.bf16 %v5718
        %v5851 = vunpack.c.h.bf16 %v5718
        %v5852 = vunpack.c.l.bf16 %v5719
        %v5853 = vunpack.c.h.bf16 %v5719
        %v5854 = vunpack.c.l.bf16 %v5720
        %v5855 = vunpack.c.h.bf16 %v5720
        %v5856 = vunpack.c.l.bf16 %v5721
        %v5857 = vunpack.c.h.bf16 %v5721
        %v5858 = vunpack.c.l.bf16 %v5722
        %v5859 = vunpack.c.h.bf16 %v5722
        %v5860 = vunpack.c.l.bf16 %v5723
        %v5861 = vunpack.c.h.bf16 %v5723
        %v5862 = vunpack.c.l.bf16 %v5724
        %v5863 = vunpack.c.h.bf16 %v5724
        %v5864 = vunpack.c.l.bf16 %v5725
        %v5865 = vunpack.c.h.bf16 %v5725
        %v5866 = vunpack.c.l.bf16 %v5726
        %v5867 = vunpack.c.h.bf16 %v5726
        %v5868 = vunpack.c.l.bf16 %v5727
        %v5869 = vunpack.c.h.bf16 %v5727
        %v5870 = vunpack.c.l.bf16 %v5728
        %v5871 = vunpack.c.h.bf16 %v5728
        %v5872 = vunpack.c.l.bf16 %v5729
        %v5873 = vunpack.c.h.bf16 %v5729
        %v5874 = vunpack.c.l.bf16 %v5730
        %v5875 = vunpack.c.h.bf16 %v5730
        %v5876 = vunpack.c.l.bf16 %v5731
        %v5877 = vunpack.c.h.bf16 %v5731
        %v5878 = vunpack.c.l.bf16 %v5732
        %v5879 = vunpack.c.h.bf16 %v5732
        %v5880 = vunpack.c.l.bf16 %v5733
        %v5881 = vunpack.c.h.bf16 %v5733
        %v5882 = vunpack.c.l.bf16 %v5734
        %v5883 = vunpack.c.h.bf16 %v5734
        %v5884 = vunpack.c.l.bf16 %v5735
        %v5885 = vunpack.c.h.bf16 %v5735
        %v5886 = vunpack.c.l.bf16 %v5736
        %v5887 = vunpack.c.h.bf16 %v5736
        %v5888 = vunpack.c.l.bf16 %v5737
        %v5889 = vunpack.c.h.bf16 %v5737
        %v5890 = vunpack.c.l.bf16 %v5738
        %v5891 = vunpack.c.h.bf16 %v5738
        %v5892 = vunpack.c.l.bf16 %v5739
        %v5893 = vunpack.c.h.bf16 %v5739
        %v5894 = vunpack.c.l.bf16 %v5740
        %v5895 = vunpack.c.h.bf16 %v5740
        %v5896 = vunpack.c.l.bf16 %v5741
        %v5897 = vunpack.c.h.bf16 %v5741
        %v5898 = vunpack.c.l.bf16 %v5742
        %v5899 = vunpack.c.h.bf16 %v5742
        %v5900 = vunpack.c.l.bf16 %v5743
        %v5901 = vunpack.c.h.bf16 %v5743
        %v5902 = vunpack.c.l.bf16 %v5744
        %v5903 = vunpack.c.h.bf16 %v5744
        %v5904 = vunpack.c.l.bf16 %v5745
        %v5905 = vunpack.c.h.bf16 %v5745
        %v5906 = vunpack.c.l.bf16 %v5746
        %v5907 = vunpack.c.h.bf16 %v5746
        %v5908 = vunpack.c.l.bf16 %v5747
        %v5909 = vunpack.c.h.bf16 %v5747
        %v5910 = vunpack.c.l.bf16 %v5748
        %v5911 = vunpack.c.h.bf16 %v5748
        %v5912 = vunpack.c.l.bf16 %v5749
        %v5913 = vunpack.c.h.bf16 %v5749
        %v5914 = vunpack.c.l.bf16 %v5750
        %v5915 = vunpack.c.h.bf16 %v5750
        %v5916 = vunpack.c.l.bf16 %v5751
        %v5917 = vunpack.c.h.bf16 %v5751
        %v5918 = vunpack.c.l.bf16 %v5752
        %v5919 = vunpack.c.h.bf16 %v5752
        %v5920 = vunpack.c.l.bf16 %v5753
        %v5921 = vunpack.c.h.bf16 %v5753
        %v5922 = vunpack.c.l.bf16 %v5754
        %v5923 = vunpack.c.h.bf16 %v5754
        %v5924 = vunpack.c.l.bf16 %v5755
        %v5925 = vunpack.c.h.bf16 %v5755
        %v5926 = vunpack.c.l.bf16 %v5756
        %v5927 = vunpack.c.h.bf16 %v5756
        %v5928 = vunpack.c.l.bf16 %v5757
        %v5929 = vunpack.c.h.bf16 %v5757
        %v5930 = vunpack.c.l.bf16 %v5758
        %v5931 = vunpack.c.h.bf16 %v5758
        %v5932 = vunpack.c.l.bf16 %v5759
        %v5933 = vunpack.c.h.bf16 %v5759
        %v5934 = vunpack.c.l.bf16 %v5760
        %v5935 = vunpack.c.h.bf16 %v5760
        %v5936 = vunpack.c.l.bf16 %v5761
        %v5937 = vunpack.c.h.bf16 %v5761
        %v5938 = vunpack.c.l.bf16 %v5762
        %v5939 = vunpack.c.h.bf16 %v5762
        %v5940 = vunpack.c.l.bf16 %v5763
        %v5941 = vunpack.c.h.bf16 %v5763
        %v5942 = vunpack.c.l.bf16 %v5764
        %v5943 = vunpack.c.h.bf16 %v5764
        %v5944 = vunpack.c.l.bf16 %v5765
        %v5945 = vunpack.c.h.bf16 %v5765
        %v5946 = vunpack.c.l.bf16 %v5766
        %v5947 = vunpack.c.h.bf16 %v5766
        %v5948 = vunpack.c.l.bf16 %v5767
        %v5949 = vunpack.c.h.bf16 %v5767
        %v5950 = vunpack.c.l.bf16 %v5768
        %v5951 = vunpack.c.h.bf16 %v5768
        %v5952 = vunpack.c.l.bf16 %v5769
        %v5953 = vunpack.c.h.bf16 %v5769
        %v5954 = vunpack.c.l.bf16 %v5770
        %v5955 = vunpack.c.h.bf16 %v5770
        %v5956 = vunpack.c.l.bf16 %v5771
        %v5957 = vunpack.c.h.bf16 %v5771
        %v5958 = vunpack.c.l.bf16 %v5772
        %v5959 = vunpack.c.h.bf16 %v5772
        %v5960 = vunpack.c.l.bf16 %v5773
        %v5961 = vunpack.c.h.bf16 %v5773
        %v5962 = vunpack.c.l.bf16 %v5774
        %v5963 = vunpack.c.h.bf16 %v5774
        %v5964 = vunpack.c.l.bf16 %v5775
        %v5965 = vunpack.c.h.bf16 %v5775
        %v5966 = vunpack.c.l.bf16 %v5776
        %v5967 = vunpack.c.h.bf16 %v5776
        %v5968 = vunpack.c.l.bf16 %v5777
        %v5969 = vunpack.c.h.bf16 %v5777
        %v5970 = vunpack.c.l.bf16 %v5778
        %v5971 = vunpack.c.h.bf16 %v5778
        %v5972 = vunpack.c.l.bf16 %v5779
        %v5973 = vunpack.c.h.bf16 %v5779
        %v5974 = vunpack.c.l.bf16 %v5780
        %v5975 = vunpack.c.h.bf16 %v5780
        %v5976 = vunpack.c.l.bf16 %v5781
        %v5977 = vunpack.c.h.bf16 %v5781
        %v5978 = vunpack.c.l.bf16 %v5782
        %v5979 = vunpack.c.h.bf16 %v5782
        %v5980 = vunpack.c.l.bf16 %v5783
        %v5981 = vunpack.c.h.bf16 %v5783
        %v5982 = vunpack.c.l.bf16 %v5784
        %v5983 = vunpack.c.h.bf16 %v5784
        %v5984 = vunpack.c.l.bf16 %v5785
        %v5985 = vunpack.c.h.bf16 %v5785
        %v5986 = vunpack.c.l.bf16 %v5786
        %v5987 = vunpack.c.h.bf16 %v5786
        %v5988 = vunpack.c.l.bf16 %v5787
        %v5989 = vunpack.c.h.bf16 %v5787
        %v5990 = vunpack.c.l.bf16 %v5788
        %v5991 = vunpack.c.h.bf16 %v5788
        %v5992 = vunpack.c.l.bf16 %v5789
        %v5993 = vunpack.c.h.bf16 %v5789
        %v5994 = vunpack.c.l.bf16 %v5790
        %v5995 = vunpack.c.h.bf16 %v5790
        %v5996 = vunpack.c.l.bf16 %v5791
        %v5997 = vunpack.c.h.bf16 %v5791
        %v5998 = vunpack.c.l.bf16 %v5792
        %v5999 = vunpack.c.h.bf16 %v5792
        %v6000 = vunpack.c.l.bf16 %v5793
        %v6001 = vunpack.c.h.bf16 %v5793
        %v6002 = vunpack.c.l.bf16 %v5794
        %v6003 = vunpack.c.h.bf16 %v5794
        %v6004 = vunpack.c.l.bf16 %v5795
        %v6005 = vunpack.c.h.bf16 %v5795
        %v6006 = vunpack.c.l.bf16 %v5796
        %v6007 = vunpack.c.h.bf16 %v5796
        %v6008 = vunpack.c.l.bf16 %v5797
        %v6009 = vunpack.c.h.bf16 %v5797
        %v6010 = vunpack.c.l.bf16 %v5798
        %v6011 = vunpack.c.h.bf16 %v5798
        %v6012 = vunpack.c.l.bf16 %v5799
        %v6013 = vunpack.c.h.bf16 %v5799
        %v6014 = vunpack.c.l.bf16 %v5800
        %v6015 = vunpack.c.h.bf16 %v5800
        %v6016 = vunpack.c.l.bf16 %v5801
        %v6017 = vunpack.c.h.bf16 %v5801
        %v6018 = vunpack.c.l.bf16 %v5802
        %v6019 = vunpack.c.h.bf16 %v5802
        %v6020 = vunpack.c.l.bf16 %v5803
        %v6021 = vunpack.c.h.bf16 %v5803
        %v6022 = vunpack.c.l.bf16 %v5804
        %v6023 = vunpack.c.h.bf16 %v5804
        %v6024 = vunpack.c.l.bf16 %v5805
        %v6025 = vunpack.c.h.bf16 %v5805
        %v6026 = vunpack.c.l.bf16 %v5806
        %v6027 = vunpack.c.h.bf16 %v5806
        %v6028 = vunpack.c.l.bf16 %v5807
        %v6029 = vunpack.c.h.bf16 %v5807
        %v6030 = vunpack.c.l.bf16 %v5808
        %v6031 = vunpack.c.h.bf16 %v5808
        %v6032 = vunpack.c.l.bf16 %v5809
        %v6033 = vunpack.c.h.bf16 %v5809
        %v6034 = vunpack.c.l.bf16 %v5810
        %v6035 = vunpack.c.h.bf16 %v5810
        %v6036 = vunpack.c.l.bf16 %v5811
        %v6037 = vunpack.c.h.bf16 %v5811
        %v6038 = vunpack.c.l.bf16 %v5812
        %v6039 = vunpack.c.h.bf16 %v5812
        %v6040 = vunpack.c.l.bf16 %v5813
        %v6041 = vunpack.c.h.bf16 %v5813
        %v6042 = vunpack.c.l.bf16 %v5814
        %v6043 = vunpack.c.h.bf16 %v5814
        %v6044 = vunpack.c.l.bf16 %v5815
        %v6045 = vunpack.c.h.bf16 %v5815
        %v6046 = vunpack.c.l.bf16 %v5816
        %v6047 = vunpack.c.h.bf16 %v5816
        %v6048 = vunpack.c.l.bf16 %v5817
        %v6049 = vunpack.c.h.bf16 %v5817
        %v6050 = vunpack.c.l.bf16 %v5818
        %v6051 = vunpack.c.h.bf16 %v5818
        %v6052 = vunpack.c.l.bf16 %v5819
        %v6053 = vunpack.c.h.bf16 %v5819
        %v6054 = vunpack.c.l.bf16 %v5820
        %v6055 = vunpack.c.h.bf16 %v5820
        %v6056 = vunpack.c.l.bf16 %v5821
        %v6057 = vunpack.c.h.bf16 %v5821
        %v6058 = vunpack.c.l.bf16 %v5822
        %v6059 = vunpack.c.h.bf16 %v5822
        %v6060 = vunpack.c.l.bf16 %v5823
        %v6061 = vunpack.c.h.bf16 %v5823
        %v6062 = vunpack.c.l.bf16 %v5824
        %v6063 = vunpack.c.h.bf16 %v5824
        %v6064 = vunpack.c.l.bf16 %v5825
        %v6065 = vunpack.c.h.bf16 %v5825
        %v6066 = vunpack.c.l.bf16 %v5826
        %v6067 = vunpack.c.h.bf16 %v5826
        %v6068 = vunpack.c.l.bf16 %v5827
        %v6069 = vunpack.c.h.bf16 %v5827
        %v6070 = vunpack.c.l.bf16 %v5828
        %v6071 = vunpack.c.h.bf16 %v5828
        %v6072 = vunpack.c.l.bf16 %v5829
        %v6073 = vunpack.c.h.bf16 %v5829
        %v6074 = vunpack.c.l.bf16 %v5830
        %v6075 = vunpack.c.h.bf16 %v5830
        %v6076 = vunpack.c.l.bf16 %v5831
        %v6077 = vunpack.c.h.bf16 %v5831
        %v6078 = vunpack.c.l.bf16 %v5832
        %v6079 = vunpack.c.h.bf16 %v5832
        %v6080 = vunpack.c.l.bf16 %v5833
        %v6081 = vunpack.c.h.bf16 %v5833
        %v6082 = vunpack.c.l.bf16 %v5834
        %v6083 = vunpack.c.h.bf16 %v5834
        %v6084 = vunpack.c.l.bf16 %v5835
        %v6085 = vunpack.c.h.bf16 %v5835
        %v6086 = vunpack.c.l.bf16 %v5836
        %v6087 = vunpack.c.h.bf16 %v5836
        %v6088 = vunpack.c.l.bf16 %v5837
        %v6089 = vunpack.c.h.bf16 %v5837
        %v6090 = vunpack.c.l.bf16 %v5838
        %v6091 = vunpack.c.h.bf16 %v5838
        %v6092 = vunpack.c.l.bf16 %v5839
        %v6093 = vunpack.c.h.bf16 %v5839
        %v6094 = vunpack.c.l.bf16 %v5840
        %v6095 = vunpack.c.h.bf16 %v5840
        %v6096 = vunpack.c.l.bf16 %v5841
        %v6097 = vunpack.c.h.bf16 %v5841
        %v6098 = vld [vmem:[%s1041] sm:$0xff]
        %v6099 = vld [vmem:[%s1041 + $0x8] sm:$0xff]
        %v6100 = vld [vmem:[%s932] sm:$0xf]
        %v6101 = vld [vmem:[%s932 + $0x4] sm:$0xf]
        %v6102 = vld [vmem:[%s932 + $0x8] sm:$0xf]
        %v6103 = vld [vmem:[%s932 + $0xc] sm:$0xf]
        %v6104 = vld [vmem:[%s932 + $0x10] sm:$0xf]
        %v6105 = vld [vmem:[%s932 + $0x14] sm:$0xf]
        %v6106 = vld [vmem:[%s932 + $0x18] sm:$0xf]
        %v6107 = vld [vmem:[%s932 + $0x1c] sm:$0xf]
        %v6108 = vld [vmem:[%s932 + $0x20] sm:$0xf]
        %v6109 = vld [vmem:[%s932 + $0x24] sm:$0xf]
        %v6110 = vld [vmem:[%s932 + $0x28] sm:$0xf]
        %v6111 = vld [vmem:[%s932 + $0x2c] sm:$0xf]
        %v6112 = vld [vmem:[%s932 + $0x30] sm:$0xf]
        %v6113 = vld [vmem:[%s932 + $0x34] sm:$0xf]
        %v6114 = vld [vmem:[%s932 + $0x38] sm:$0xf]
        %v6115 = vld [vmem:[%s932 + $0x3c] sm:$0xf]
        %v6116 = vld [vmem:[%s932 + $0x40] sm:$0xf]
        %v6117 = vld [vmem:[%s932 + $0x44] sm:$0xf]
        %v6118 = vld [vmem:[%s932 + $0x48] sm:$0xf]
        %v6119 = vld [vmem:[%s932 + $0x4c] sm:$0xf]
        %v6120 = vld [vmem:[%s932 + $0x50] sm:$0xf]
        %v6121 = vld [vmem:[%s932 + $0x54] sm:$0xf]
        %v6122 = vld [vmem:[%s932 + $0x58] sm:$0xf]
        %v6123 = vld [vmem:[%s932 + $0x5c] sm:$0xf]
        %v6124 = vld [vmem:[%s932 + $0x60] sm:$0xf]
        %v6125 = vld [vmem:[%s932 + $0x64] sm:$0xf]
        %v6126 = vld [vmem:[%s932 + $0x68] sm:$0xf]
        %v6127 = vld [vmem:[%s932 + $0x6c] sm:$0xf]
        %v6128 = vld [vmem:[%s932 + $0x70] sm:$0xf]
        %v6129 = vld [vmem:[%s932 + $0x74] sm:$0xf]
        %v6130 = vld [vmem:[%s932 + $0x78] sm:$0xf]
        %v6131 = vld [vmem:[%s932 + $0x7c] sm:$0xf]
        %v6132 = vld [vmem:[%s932 + $0x80] sm:$0xf]
        %v6133 = vld [vmem:[%s932 + $0x84] sm:$0xf]
        %v6134 = vld [vmem:[%s932 + $0x88] sm:$0xf]
        %v6135 = vld [vmem:[%s932 + $0x8c] sm:$0xf]
        %v6136 = vld [vmem:[%s932 + $0x90] sm:$0xf]
        %v6137 = vld [vmem:[%s932 + $0x94] sm:$0xf]
        %v6138 = vld [vmem:[%s932 + $0x98] sm:$0xf]
        %v6139 = vld [vmem:[%s932 + $0x9c] sm:$0xf]
        %v6140 = vld [vmem:[%s932 + $0xa0] sm:$0xf]
        %v6141 = vld [vmem:[%s932 + $0xa4] sm:$0xf]
        %v6142 = vld [vmem:[%s932 + $0xa8] sm:$0xf]
        %v6143 = vld [vmem:[%s932 + $0xac] sm:$0xf]
        %v6144 = vld [vmem:[%s932 + $0xb0] sm:$0xf]
        %v6145 = vld [vmem:[%s932 + $0xb4] sm:$0xf]
        %v6146 = vld [vmem:[%s932 + $0xb8] sm:$0xf]
        %v6147 = vld [vmem:[%s932 + $0xbc] sm:$0xf]
        %v6148 = vld [vmem:[%s932 + $0xc0] sm:$0xf]
        %v6149 = vld [vmem:[%s932 + $0xc4] sm:$0xf]
        %v6150 = vld [vmem:[%s932 + $0xc8] sm:$0xf]
        %v6151 = vld [vmem:[%s932 + $0xcc] sm:$0xf]
        %v6152 = vld [vmem:[%s932 + $0xd0] sm:$0xf]
        %v6153 = vld [vmem:[%s932 + $0xd4] sm:$0xf]
        %v6154 = vld [vmem:[%s932 + $0xd8] sm:$0xf]
        %v6155 = vld [vmem:[%s932 + $0xdc] sm:$0xf]
        %v6156 = vld [vmem:[%s932 + $0xe0] sm:$0xf]
        %v6157 = vld [vmem:[%s932 + $0xe4] sm:$0xf]
        %v6158 = vld [vmem:[%s932 + $0xe8] sm:$0xf]
        %v6159 = vld [vmem:[%s932 + $0xec] sm:$0xf]
        %v6160 = vld [vmem:[%s932 + $0xf0] sm:$0xf]
        %v6161 = vld [vmem:[%s932 + $0xf4] sm:$0xf]
        %v6162 = vld [vmem:[%s932 + $0xf8] sm:$0xf]
        %v6163 = vld [vmem:[%s932 + $0xfc] sm:$0xf]
        %v6164 = vld [vmem:[%s932 + $0x100] sm:$0xf]
        %v6165 = vld [vmem:[%s932 + $0x104] sm:$0xf]
        %v6166 = vld [vmem:[%s932 + $0x108] sm:$0xf]
        %v6167 = vld [vmem:[%s932 + $0x10c] sm:$0xf]
        %v6168 = vld [vmem:[%s932 + $0x110] sm:$0xf]
        %v6169 = vld [vmem:[%s932 + $0x114] sm:$0xf]
        %v6170 = vld [vmem:[%s932 + $0x118] sm:$0xf]
        %v6171 = vld [vmem:[%s932 + $0x11c] sm:$0xf]
        %v6172 = vld [vmem:[%s932 + $0x120] sm:$0xf]
        %v6173 = vld [vmem:[%s932 + $0x124] sm:$0xf]
        %v6174 = vld [vmem:[%s932 + $0x128] sm:$0xf]
        %v6175 = vld [vmem:[%s932 + $0x12c] sm:$0xf]
        %v6176 = vld [vmem:[%s932 + $0x130] sm:$0xf]
        %v6177 = vld [vmem:[%s932 + $0x134] sm:$0xf]
        %v6178 = vld [vmem:[%s932 + $0x138] sm:$0xf]
        %v6179 = vld [vmem:[%s932 + $0x13c] sm:$0xf]
        %v6180 = vld [vmem:[%s932 + $0x140] sm:$0xf]
        %v6181 = vld [vmem:[%s932 + $0x144] sm:$0xf]
        %v6182 = vld [vmem:[%s932 + $0x148] sm:$0xf]
        %v6183 = vld [vmem:[%s932 + $0x14c] sm:$0xf]
        %v6184 = vld [vmem:[%s932 + $0x150] sm:$0xf]
        %v6185 = vld [vmem:[%s932 + $0x154] sm:$0xf]
        %v6186 = vld [vmem:[%s932 + $0x158] sm:$0xf]
        %v6187 = vld [vmem:[%s932 + $0x15c] sm:$0xf]
        %v6188 = vld [vmem:[%s932 + $0x160] sm:$0xf]
        %v6189 = vld [vmem:[%s932 + $0x164] sm:$0xf]
        %v6190 = vld [vmem:[%s932 + $0x168] sm:$0xf]
        %v6191 = vld [vmem:[%s932 + $0x16c] sm:$0xf]
        %v6192 = vld [vmem:[%s932 + $0x170] sm:$0xf]
        %v6193 = vld [vmem:[%s932 + $0x174] sm:$0xf]
        %v6194 = vld [vmem:[%s932 + $0x178] sm:$0xf]
        %v6195 = vld [vmem:[%s932 + $0x17c] sm:$0xf]
        %v6196 = vld [vmem:[%s932 + $0x180] sm:$0xf]
        %v6197 = vld [vmem:[%s932 + $0x184] sm:$0xf]
        %v6198 = vld [vmem:[%s932 + $0x188] sm:$0xf]
        %v6199 = vld [vmem:[%s932 + $0x18c] sm:$0xf]
        %v6200 = vld [vmem:[%s932 + $0x190] sm:$0xf]
        %v6201 = vld [vmem:[%s932 + $0x194] sm:$0xf]
        %v6202 = vld [vmem:[%s932 + $0x198] sm:$0xf]
        %v6203 = vld [vmem:[%s932 + $0x19c] sm:$0xf]
        %v6204 = vld [vmem:[%s932 + $0x1a0] sm:$0xf]
        %v6205 = vld [vmem:[%s932 + $0x1a4] sm:$0xf]
        %v6206 = vld [vmem:[%s932 + $0x1a8] sm:$0xf]
        %v6207 = vld [vmem:[%s932 + $0x1ac] sm:$0xf]
        %v6208 = vld [vmem:[%s932 + $0x1b0] sm:$0xf]
        %v6209 = vld [vmem:[%s932 + $0x1b4] sm:$0xf]
        %v6210 = vld [vmem:[%s932 + $0x1b8] sm:$0xf]
        %v6211 = vld [vmem:[%s932 + $0x1bc] sm:$0xf]
        %v6212 = vld [vmem:[%s932 + $0x1c0] sm:$0xf]
        %v6213 = vld [vmem:[%s932 + $0x1c4] sm:$0xf]
        %v6214 = vld [vmem:[%s932 + $0x1c8] sm:$0xf]
        %v6215 = vld [vmem:[%s932 + $0x1cc] sm:$0xf]
        %v6216 = vld [vmem:[%s932 + $0x1d0] sm:$0xf]
        %v6217 = vld [vmem:[%s932 + $0x1d4] sm:$0xf]
        %v6218 = vld [vmem:[%s932 + $0x1d8] sm:$0xf]
        %v6219 = vld [vmem:[%s932 + $0x1dc] sm:$0xf]
        %v6220 = vld [vmem:[%s932 + $0x1e0] sm:$0xf]
        %v6221 = vld [vmem:[%s932 + $0x1e4] sm:$0xf]
        %v6222 = vld [vmem:[%s932 + $0x1e8] sm:$0xf]
        %v6223 = vld [vmem:[%s932 + $0x1ec] sm:$0xf]
        %v6224 = vld [vmem:[%s932 + $0x1f0] sm:$0xf]
        %v6225 = vld [vmem:[%s932 + $0x1f4] sm:$0xf]
        %v6226 = vld [vmem:[%s932 + $0x1f8] sm:$0xf]
        %v6227 = vld [vmem:[%s932 + $0x1fc] sm:$0xf]
        %v6228 = vld [vmem:[%s932 + $0x200] sm:$0xf]
        %v6229 = vld [vmem:[%s932 + $0x204] sm:$0xf]
        %v6230 = vld [vmem:[%s932 + $0x208] sm:$0xf]
        %v6231 = vld [vmem:[%s932 + $0x20c] sm:$0xf]
        %v6232 = vld [vmem:[%s932 + $0x210] sm:$0xf]
        %v6233 = vld [vmem:[%s932 + $0x214] sm:$0xf]
        %v6234 = vld [vmem:[%s932 + $0x218] sm:$0xf]
        %v6235 = vld [vmem:[%s932 + $0x21c] sm:$0xf]
        %v6236 = vld [vmem:[%s932 + $0x220] sm:$0xf]
        %v6237 = vld [vmem:[%s932 + $0x224] sm:$0xf]
        %v6238 = vld [vmem:[%s932 + $0x228] sm:$0xf]
        %v6239 = vld [vmem:[%s932 + $0x22c] sm:$0xf]
        %v6240 = vld [vmem:[%s932 + $0x230] sm:$0xf]
        %v6241 = vld [vmem:[%s932 + $0x234] sm:$0xf]
        %v6242 = vld [vmem:[%s932 + $0x238] sm:$0xf]
        %v6243 = vld [vmem:[%s932 + $0x23c] sm:$0xf]
        %v6244 = vld [vmem:[%s932 + $0x240] sm:$0xf]
        %v6245 = vld [vmem:[%s932 + $0x244] sm:$0xf]
        %v6246 = vld [vmem:[%s932 + $0x248] sm:$0xf]
        %v6247 = vld [vmem:[%s932 + $0x24c] sm:$0xf]
        %v6248 = vld [vmem:[%s932 + $0x250] sm:$0xf]
        %v6249 = vld [vmem:[%s932 + $0x254] sm:$0xf]
        %v6250 = vld [vmem:[%s932 + $0x258] sm:$0xf]
        %v6251 = vld [vmem:[%s932 + $0x25c] sm:$0xf]
        %v6252 = vld [vmem:[%s932 + $0x260] sm:$0xf]
        %v6253 = vld [vmem:[%s932 + $0x264] sm:$0xf]
        %v6254 = vld [vmem:[%s932 + $0x268] sm:$0xf]
        %v6255 = vld [vmem:[%s932 + $0x26c] sm:$0xf]
        %v6256 = vld [vmem:[%s932 + $0x270] sm:$0xf]
        %v6257 = vld [vmem:[%s932 + $0x274] sm:$0xf]
        %v6258 = vld [vmem:[%s932 + $0x278] sm:$0xf]
        %v6259 = vld [vmem:[%s932 + $0x27c] sm:$0xf]
        %v6260 = vld [vmem:[%s932 + $0x280] sm:$0xf]
        %v6261 = vld [vmem:[%s932 + $0x284] sm:$0xf]
        %v6262 = vld [vmem:[%s932 + $0x288] sm:$0xf]
        %v6263 = vld [vmem:[%s932 + $0x28c] sm:$0xf]
        %v6264 = vld [vmem:[%s932 + $0x290] sm:$0xf]
        %v6265 = vld [vmem:[%s932 + $0x294] sm:$0xf]
        %v6266 = vld [vmem:[%s932 + $0x298] sm:$0xf]
        %v6267 = vld [vmem:[%s932 + $0x29c] sm:$0xf]
        %v6268 = vld [vmem:[%s932 + $0x2a0] sm:$0xf]
        %v6269 = vld [vmem:[%s932 + $0x2a4] sm:$0xf]
        %v6270 = vld [vmem:[%s932 + $0x2a8] sm:$0xf]
        %v6271 = vld [vmem:[%s932 + $0x2ac] sm:$0xf]
        %v6272 = vld [vmem:[%s932 + $0x2b0] sm:$0xf]
        %v6273 = vld [vmem:[%s932 + $0x2b4] sm:$0xf]
        %v6274 = vld [vmem:[%s932 + $0x2b8] sm:$0xf]
        %v6275 = vld [vmem:[%s932 + $0x2bc] sm:$0xf]
        %v6276 = vld [vmem:[%s932 + $0x2c0] sm:$0xf]
        %v6277 = vld [vmem:[%s932 + $0x2c4] sm:$0xf]
        %v6278 = vld [vmem:[%s932 + $0x2c8] sm:$0xf]
        %v6279 = vld [vmem:[%s932 + $0x2cc] sm:$0xf]
        %v6280 = vld [vmem:[%s932 + $0x2d0] sm:$0xf]
        %v6281 = vld [vmem:[%s932 + $0x2d4] sm:$0xf]
        %v6282 = vld [vmem:[%s932 + $0x2d8] sm:$0xf]
        %v6283 = vld [vmem:[%s932 + $0x2dc] sm:$0xf]
        %v6284 = vld [vmem:[%s932 + $0x2e0] sm:$0xf]
        %v6285 = vld [vmem:[%s932 + $0x2e4] sm:$0xf]
        %v6286 = vld [vmem:[%s932 + $0x2e8] sm:$0xf]
        %v6287 = vld [vmem:[%s932 + $0x2ec] sm:$0xf]
        %v6288 = vld [vmem:[%s932 + $0x2f0] sm:$0xf]
        %v6289 = vld [vmem:[%s932 + $0x2f4] sm:$0xf]
        %v6290 = vld [vmem:[%s932 + $0x2f8] sm:$0xf]
        %v6291 = vld [vmem:[%s932 + $0x2fc] sm:$0xf]
        %v6292 = vld [vmem:[%s932 + $0x300] sm:$0xf]
        %v6293 = vld [vmem:[%s932 + $0x304] sm:$0xf]
        %v6294 = vld [vmem:[%s932 + $0x308] sm:$0xf]
        %v6295 = vld [vmem:[%s932 + $0x30c] sm:$0xf]
        %v6296 = vld [vmem:[%s932 + $0x310] sm:$0xf]
        %v6297 = vld [vmem:[%s932 + $0x314] sm:$0xf]
        %v6298 = vld [vmem:[%s932 + $0x318] sm:$0xf]
        %v6299 = vld [vmem:[%s932 + $0x31c] sm:$0xf]
        %v6300 = vld [vmem:[%s932 + $0x320] sm:$0xf]
        %v6301 = vld [vmem:[%s932 + $0x324] sm:$0xf]
        %v6302 = vld [vmem:[%s932 + $0x328] sm:$0xf]
        %v6303 = vld [vmem:[%s932 + $0x32c] sm:$0xf]
        %v6304 = vld [vmem:[%s932 + $0x330] sm:$0xf]
        %v6305 = vld [vmem:[%s932 + $0x334] sm:$0xf]
        %v6306 = vld [vmem:[%s932 + $0x338] sm:$0xf]
        %v6307 = vld [vmem:[%s932 + $0x33c] sm:$0xf]
        %v6308 = vld [vmem:[%s932 + $0x340] sm:$0xf]
        %v6309 = vld [vmem:[%s932 + $0x344] sm:$0xf]
        %v6310 = vld [vmem:[%s932 + $0x348] sm:$0xf]
        %v6311 = vld [vmem:[%s932 + $0x34c] sm:$0xf]
        %v6312 = vld [vmem:[%s932 + $0x350] sm:$0xf]
        %v6313 = vld [vmem:[%s932 + $0x354] sm:$0xf]
        %v6314 = vld [vmem:[%s932 + $0x358] sm:$0xf]
        %v6315 = vld [vmem:[%s932 + $0x35c] sm:$0xf]
        %v6316 = vld [vmem:[%s932 + $0x360] sm:$0xf]
        %v6317 = vld [vmem:[%s932 + $0x364] sm:$0xf]
        %v6318 = vld [vmem:[%s932 + $0x368] sm:$0xf]
        %v6319 = vld [vmem:[%s932 + $0x36c] sm:$0xf]
        %v6320 = vld [vmem:[%s932 + $0x370] sm:$0xf]
        %v6321 = vld [vmem:[%s932 + $0x374] sm:$0xf]
        %v6322 = vld [vmem:[%s932 + $0x378] sm:$0xf]
        %v6323 = vld [vmem:[%s932 + $0x37c] sm:$0xf]
        %v6324 = vld [vmem:[%s932 + $0x380] sm:$0xf]
        %v6325 = vld [vmem:[%s932 + $0x384] sm:$0xf]
        %v6326 = vld [vmem:[%s932 + $0x388] sm:$0xf]
        %v6327 = vld [vmem:[%s932 + $0x38c] sm:$0xf]
        %v6328 = vld [vmem:[%s932 + $0x390] sm:$0xf]
        %v6329 = vld [vmem:[%s932 + $0x394] sm:$0xf]
        %v6330 = vld [vmem:[%s932 + $0x398] sm:$0xf]
        %v6331 = vld [vmem:[%s932 + $0x39c] sm:$0xf]
        %v6332 = vld [vmem:[%s932 + $0x3a0] sm:$0xf]
        %v6333 = vld [vmem:[%s932 + $0x3a4] sm:$0xf]
        %v6334 = vld [vmem:[%s932 + $0x3a8] sm:$0xf]
        %v6335 = vld [vmem:[%s932 + $0x3ac] sm:$0xf]
        %v6336 = vld [vmem:[%s932 + $0x3b0] sm:$0xf]
        %v6337 = vld [vmem:[%s932 + $0x3b4] sm:$0xf]
        %v6338 = vld [vmem:[%s932 + $0x3b8] sm:$0xf]
        %v6339 = vld [vmem:[%s932 + $0x3bc] sm:$0xf]
        %v6340 = vld [vmem:[%s932 + $0x3c0] sm:$0xf]
        %v6341 = vld [vmem:[%s932 + $0x3c4] sm:$0xf]
        %v6342 = vld [vmem:[%s932 + $0x3c8] sm:$0xf]
        %v6343 = vld [vmem:[%s932 + $0x3cc] sm:$0xf]
        %v6344 = vld [vmem:[%s932 + $0x3d0] sm:$0xf]
        %v6345 = vld [vmem:[%s932 + $0x3d4] sm:$0xf]
        %v6346 = vld [vmem:[%s932 + $0x3d8] sm:$0xf]
        %v6347 = vld [vmem:[%s932 + $0x3dc] sm:$0xf]
        %v6348 = vld [vmem:[%s932 + $0x3e0] sm:$0xf]
        %v6349 = vld [vmem:[%s932 + $0x3e4] sm:$0xf]
        %v6350 = vld [vmem:[%s932 + $0x3e8] sm:$0xf]
        %v6351 = vld [vmem:[%s932 + $0x3ec] sm:$0xf]
        %v6352 = vld [vmem:[%s932 + $0x3f0] sm:$0xf]
        %v6353 = vld [vmem:[%s932 + $0x3f4] sm:$0xf]
        %v6354 = vld [vmem:[%s932 + $0x3f8] sm:$0xf]
        %v6355 = vld [vmem:[%s932 + $0x3fc] sm:$0xf]
        %v6356 = vunpack.c.l.bf16 %v6100
        %v6357 = vunpack.c.l.bf16 %v6101
        %v6358 = vunpack.c.l.bf16 %v6102
        %v6359 = vunpack.c.l.bf16 %v6103
        %v6360 = vunpack.c.l.bf16 %v6104
        %v6361 = vunpack.c.l.bf16 %v6105
        %v6362 = vunpack.c.l.bf16 %v6106
        %v6363 = vunpack.c.l.bf16 %v6107
        %v6364 = vunpack.c.l.bf16 %v6108
        %v6365 = vunpack.c.l.bf16 %v6109
        %v6366 = vunpack.c.l.bf16 %v6110
        %v6367 = vunpack.c.l.bf16 %v6111
        %v6368 = vunpack.c.l.bf16 %v6112
        %v6369 = vunpack.c.l.bf16 %v6113
        %v6370 = vunpack.c.l.bf16 %v6114
        %v6371 = vunpack.c.l.bf16 %v6115
        %v6372 = vunpack.c.l.bf16 %v6116
        %v6373 = vunpack.c.l.bf16 %v6117
        %v6374 = vunpack.c.l.bf16 %v6118
        %v6375 = vunpack.c.l.bf16 %v6119
        %v6376 = vunpack.c.l.bf16 %v6120
        %v6377 = vunpack.c.l.bf16 %v6121
        %v6378 = vunpack.c.l.bf16 %v6122
        %v6379 = vunpack.c.l.bf16 %v6123
        %v6380 = vunpack.c.l.bf16 %v6124
        %v6381 = vunpack.c.l.bf16 %v6125
        %v6382 = vunpack.c.l.bf16 %v6126
        %v6383 = vunpack.c.l.bf16 %v6127
        %v6384 = vunpack.c.l.bf16 %v6128
        %v6385 = vunpack.c.l.bf16 %v6129
        %v6386 = vunpack.c.l.bf16 %v6130
        %v6387 = vunpack.c.l.bf16 %v6131
        %v6388 = vunpack.c.l.bf16 %v6132
        %v6389 = vunpack.c.l.bf16 %v6133
        %v6390 = vunpack.c.l.bf16 %v6134
        %v6391 = vunpack.c.l.bf16 %v6135
        %v6392 = vunpack.c.l.bf16 %v6136
        %v6393 = vunpack.c.l.bf16 %v6137
        %v6394 = vunpack.c.l.bf16 %v6138
        %v6395 = vunpack.c.l.bf16 %v6139
        %v6396 = vunpack.c.l.bf16 %v6140
        %v6397 = vunpack.c.l.bf16 %v6141
        %v6398 = vunpack.c.l.bf16 %v6142
        %v6399 = vunpack.c.l.bf16 %v6143
        %v6400 = vunpack.c.l.bf16 %v6144
        %v6401 = vunpack.c.l.bf16 %v6145
        %v6402 = vunpack.c.l.bf16 %v6146
        %v6403 = vunpack.c.l.bf16 %v6147
        %v6404 = vunpack.c.l.bf16 %v6148
        %v6405 = vunpack.c.l.bf16 %v6149
        %v6406 = vunpack.c.l.bf16 %v6150
        %v6407 = vunpack.c.l.bf16 %v6151
        %v6408 = vunpack.c.l.bf16 %v6152
        %v6409 = vunpack.c.l.bf16 %v6153
        %v6410 = vunpack.c.l.bf16 %v6154
        %v6411 = vunpack.c.l.bf16 %v6155
        %v6412 = vunpack.c.l.bf16 %v6156
        %v6413 = vunpack.c.l.bf16 %v6157
        %v6414 = vunpack.c.l.bf16 %v6158
        %v6415 = vunpack.c.l.bf16 %v6159
        %v6416 = vunpack.c.l.bf16 %v6160
        %v6417 = vunpack.c.l.bf16 %v6161
        %v6418 = vunpack.c.l.bf16 %v6162
        %v6419 = vunpack.c.l.bf16 %v6163
        %v6420 = vunpack.c.l.bf16 %v6164
        %v6421 = vunpack.c.l.bf16 %v6165
        %v6422 = vunpack.c.l.bf16 %v6166
        %v6423 = vunpack.c.l.bf16 %v6167
        %v6424 = vunpack.c.l.bf16 %v6168
        %v6425 = vunpack.c.l.bf16 %v6169
        %v6426 = vunpack.c.l.bf16 %v6170
        %v6427 = vunpack.c.l.bf16 %v6171
        %v6428 = vunpack.c.l.bf16 %v6172
        %v6429 = vunpack.c.l.bf16 %v6173
        %v6430 = vunpack.c.l.bf16 %v6174
        %v6431 = vunpack.c.l.bf16 %v6175
        %v6432 = vunpack.c.l.bf16 %v6176
        %v6433 = vunpack.c.l.bf16 %v6177
        %v6434 = vunpack.c.l.bf16 %v6178
        %v6435 = vunpack.c.l.bf16 %v6179
        %v6436 = vunpack.c.l.bf16 %v6180
        %v6437 = vunpack.c.l.bf16 %v6181
        %v6438 = vunpack.c.l.bf16 %v6182
        %v6439 = vunpack.c.l.bf16 %v6183
        %v6440 = vunpack.c.l.bf16 %v6184
        %v6441 = vunpack.c.l.bf16 %v6185
        %v6442 = vunpack.c.l.bf16 %v6186
        %v6443 = vunpack.c.l.bf16 %v6187
        %v6444 = vunpack.c.l.bf16 %v6188
        %v6445 = vunpack.c.l.bf16 %v6189
        %v6446 = vunpack.c.l.bf16 %v6190
        %v6447 = vunpack.c.l.bf16 %v6191
        %v6448 = vunpack.c.l.bf16 %v6192
        %v6449 = vunpack.c.l.bf16 %v6193
        %v6450 = vunpack.c.l.bf16 %v6194
        %v6451 = vunpack.c.l.bf16 %v6195
        %v6452 = vunpack.c.l.bf16 %v6196
        %v6453 = vunpack.c.l.bf16 %v6197
        %v6454 = vunpack.c.l.bf16 %v6198
        %v6455 = vunpack.c.l.bf16 %v6199
        %v6456 = vunpack.c.l.bf16 %v6200
        %v6457 = vunpack.c.l.bf16 %v6201
        %v6458 = vunpack.c.l.bf16 %v6202
        %v6459 = vunpack.c.l.bf16 %v6203
        %v6460 = vunpack.c.l.bf16 %v6204
        %v6461 = vunpack.c.l.bf16 %v6205
        %v6462 = vunpack.c.l.bf16 %v6206
        %v6463 = vunpack.c.l.bf16 %v6207
        %v6464 = vunpack.c.l.bf16 %v6208
        %v6465 = vunpack.c.l.bf16 %v6209
        %v6466 = vunpack.c.l.bf16 %v6210
        %v6467 = vunpack.c.l.bf16 %v6211
        %v6468 = vunpack.c.l.bf16 %v6212
        %v6469 = vunpack.c.l.bf16 %v6213
        %v6470 = vunpack.c.l.bf16 %v6214
        %v6471 = vunpack.c.l.bf16 %v6215
        %v6472 = vunpack.c.l.bf16 %v6216
        %v6473 = vunpack.c.l.bf16 %v6217
        %v6474 = vunpack.c.l.bf16 %v6218
        %v6475 = vunpack.c.l.bf16 %v6219
        %v6476 = vunpack.c.l.bf16 %v6220
        %v6477 = vunpack.c.l.bf16 %v6221
        %v6478 = vunpack.c.l.bf16 %v6222
        %v6479 = vunpack.c.l.bf16 %v6223
        %v6480 = vunpack.c.l.bf16 %v6224
        %v6481 = vunpack.c.l.bf16 %v6225
        %v6482 = vunpack.c.l.bf16 %v6226
        %v6483 = vunpack.c.l.bf16 %v6227
        %v6484 = vunpack.c.l.bf16 %v6228
        %v6485 = vunpack.c.l.bf16 %v6229
        %v6486 = vunpack.c.l.bf16 %v6230
        %v6487 = vunpack.c.l.bf16 %v6231
        %v6488 = vunpack.c.l.bf16 %v6232
        %v6489 = vunpack.c.l.bf16 %v6233
        %v6490 = vunpack.c.l.bf16 %v6234
        %v6491 = vunpack.c.l.bf16 %v6235
        %v6492 = vunpack.c.l.bf16 %v6236
        %v6493 = vunpack.c.l.bf16 %v6237
        %v6494 = vunpack.c.l.bf16 %v6238
        %v6495 = vunpack.c.l.bf16 %v6239
        %v6496 = vunpack.c.l.bf16 %v6240
        %v6497 = vunpack.c.l.bf16 %v6241
        %v6498 = vunpack.c.l.bf16 %v6242
        %v6499 = vunpack.c.l.bf16 %v6243
        %v6500 = vunpack.c.l.bf16 %v6244
        %v6501 = vunpack.c.l.bf16 %v6245
        %v6502 = vunpack.c.l.bf16 %v6246
        %v6503 = vunpack.c.l.bf16 %v6247
        %v6504 = vunpack.c.l.bf16 %v6248
        %v6505 = vunpack.c.l.bf16 %v6249
        %v6506 = vunpack.c.l.bf16 %v6250
        %v6507 = vunpack.c.l.bf16 %v6251
        %v6508 = vunpack.c.l.bf16 %v6252
        %v6509 = vunpack.c.l.bf16 %v6253
        %v6510 = vunpack.c.l.bf16 %v6254
        %v6511 = vunpack.c.l.bf16 %v6255
        %v6512 = vunpack.c.l.bf16 %v6256
        %v6513 = vunpack.c.l.bf16 %v6257
        %v6514 = vunpack.c.l.bf16 %v6258
        %v6515 = vunpack.c.l.bf16 %v6259
        %v6516 = vunpack.c.l.bf16 %v6260
        %v6517 = vunpack.c.l.bf16 %v6261
        %v6518 = vunpack.c.l.bf16 %v6262
        %v6519 = vunpack.c.l.bf16 %v6263
        %v6520 = vunpack.c.l.bf16 %v6264
        %v6521 = vunpack.c.l.bf16 %v6265
        %v6522 = vunpack.c.l.bf16 %v6266
        %v6523 = vunpack.c.l.bf16 %v6267
        %v6524 = vunpack.c.l.bf16 %v6268
        %v6525 = vunpack.c.l.bf16 %v6269
        %v6526 = vunpack.c.l.bf16 %v6270
        %v6527 = vunpack.c.l.bf16 %v6271
        %v6528 = vunpack.c.l.bf16 %v6272
        %v6529 = vunpack.c.l.bf16 %v6273
        %v6530 = vunpack.c.l.bf16 %v6274
        %v6531 = vunpack.c.l.bf16 %v6275
        %v6532 = vunpack.c.l.bf16 %v6276
        %v6533 = vunpack.c.l.bf16 %v6277
        %v6534 = vunpack.c.l.bf16 %v6278
        %v6535 = vunpack.c.l.bf16 %v6279
        %v6536 = vunpack.c.l.bf16 %v6280
        %v6537 = vunpack.c.l.bf16 %v6281
        %v6538 = vunpack.c.l.bf16 %v6282
        %v6539 = vunpack.c.l.bf16 %v6283
        %v6540 = vunpack.c.l.bf16 %v6284
        %v6541 = vunpack.c.l.bf16 %v6285
        %v6542 = vunpack.c.l.bf16 %v6286
        %v6543 = vunpack.c.l.bf16 %v6287
        %v6544 = vunpack.c.l.bf16 %v6288
        %v6545 = vunpack.c.l.bf16 %v6289
        %v6546 = vunpack.c.l.bf16 %v6290
        %v6547 = vunpack.c.l.bf16 %v6291
        %v6548 = vunpack.c.l.bf16 %v6292
        %v6549 = vunpack.c.l.bf16 %v6293
        %v6550 = vunpack.c.l.bf16 %v6294
        %v6551 = vunpack.c.l.bf16 %v6295
        %v6552 = vunpack.c.l.bf16 %v6296
        %v6553 = vunpack.c.l.bf16 %v6297
        %v6554 = vunpack.c.l.bf16 %v6298
        %v6555 = vunpack.c.l.bf16 %v6299
        %v6556 = vunpack.c.l.bf16 %v6300
        %v6557 = vunpack.c.l.bf16 %v6301
        %v6558 = vunpack.c.l.bf16 %v6302
        %v6559 = vunpack.c.l.bf16 %v6303
        %v6560 = vunpack.c.l.bf16 %v6304
        %v6561 = vunpack.c.l.bf16 %v6305
        %v6562 = vunpack.c.l.bf16 %v6306
        %v6563 = vunpack.c.l.bf16 %v6307
        %v6564 = vunpack.c.l.bf16 %v6308
        %v6565 = vunpack.c.l.bf16 %v6309
        %v6566 = vunpack.c.l.bf16 %v6310
        %v6567 = vunpack.c.l.bf16 %v6311
        %v6568 = vunpack.c.l.bf16 %v6312
        %v6569 = vunpack.c.l.bf16 %v6313
        %v6570 = vunpack.c.l.bf16 %v6314
        %v6571 = vunpack.c.l.bf16 %v6315
        %v6572 = vunpack.c.l.bf16 %v6316
        %v6573 = vunpack.c.l.bf16 %v6317
        %v6574 = vunpack.c.l.bf16 %v6318
        %v6575 = vunpack.c.l.bf16 %v6319
        %v6576 = vunpack.c.l.bf16 %v6320
        %v6577 = vunpack.c.l.bf16 %v6321
        %v6578 = vunpack.c.l.bf16 %v6322
        %v6579 = vunpack.c.l.bf16 %v6323
        %v6580 = vunpack.c.l.bf16 %v6324
        %v6581 = vunpack.c.l.bf16 %v6325
        %v6582 = vunpack.c.l.bf16 %v6326
        %v6583 = vunpack.c.l.bf16 %v6327
        %v6584 = vunpack.c.l.bf16 %v6328
        %v6585 = vunpack.c.l.bf16 %v6329
        %v6586 = vunpack.c.l.bf16 %v6330
        %v6587 = vunpack.c.l.bf16 %v6331
        %v6588 = vunpack.c.l.bf16 %v6332
        %v6589 = vunpack.c.l.bf16 %v6333
        %v6590 = vunpack.c.l.bf16 %v6334
        %v6591 = vunpack.c.l.bf16 %v6335
        %v6592 = vunpack.c.l.bf16 %v6336
        %v6593 = vunpack.c.l.bf16 %v6337
        %v6594 = vunpack.c.l.bf16 %v6338
        %v6595 = vunpack.c.l.bf16 %v6339
        %v6596 = vunpack.c.l.bf16 %v6340
        %v6597 = vunpack.c.l.bf16 %v6341
        %v6598 = vunpack.c.l.bf16 %v6342
        %v6599 = vunpack.c.l.bf16 %v6343
        %v6600 = vunpack.c.l.bf16 %v6344
        %v6601 = vunpack.c.l.bf16 %v6345
        %v6602 = vunpack.c.l.bf16 %v6346
        %v6603 = vunpack.c.l.bf16 %v6347
        %v6604 = vunpack.c.l.bf16 %v6348
        %v6605 = vunpack.c.l.bf16 %v6349
        %v6606 = vunpack.c.l.bf16 %v6350
        %v6607 = vunpack.c.l.bf16 %v6351
        %v6608 = vunpack.c.l.bf16 %v6352
        %v6609 = vunpack.c.l.bf16 %v6353
        %v6610 = vunpack.c.l.bf16 %v6354
        %v6611 = vunpack.c.l.bf16 %v6355
        %v6612 = vld [vmem:[%s1044] sm:$0x1]
        %v6613 = vld [vmem:[%s1047] sm:$0x1]
        %v6614 = vld [vmem:[%s1050] sm:$0x1]
        %v6616 = vlaneseq
        %v6617 = vshrl.u32 %v6616, 7
        %v6618 = vsub.s32 0, %v6617
        %v6619 = vrot.slane %v5678, %v6618
        %v6620 = vlaneseq
        %v6621 = vshrl.u32 %v6620, 7
        %v6622 = vsub.s32 1, %v6621
        %v6623 = vrot.slane %v5678, %v6622
        %v6624 = vlaneseq
        %v6625 = vshrl.u32 %v6624, 7
        %v6626 = vsub.s32 2, %v6625
        %v6627 = vrot.slane %v5678, %v6626
        %6631 = vmatprep.subr.mxu0 %v5631
        %6632 = vmatpush1.msra.mxu0 %v5630
        %6633 = vmatprep.subr.mxu0 %v5634
        %6634 = vmatpush1.msra.mxu0 %v5633
        %6635 = vmatprep.subr.mxu0 %v5637
        %6636 = vmatpush1.msra.mxu0 %v5636
        %6637 = vmatprep.subr.mxu0 %v5640
        %6638 = vmatpush1.msra.mxu0 %v5639
        %6639 = vmatprep.subr.mxu0 %v5643
        %6640 = vmatpush1.msra.mxu0 %v5642
        %6641 = vmatprep.subr.mxu0 %v5646
        %6642 = vmatpush1.msra.mxu0 %v5645
        %6643 = vmatprep.subr.mxu0 %v5649
        %6644 = vmatpush1.msra.mxu0 %v5648
        %6645 = vmatprep.subr.mxu0 %v5652
        %6646 = vmatpush1.msra.mxu0 %v5651
        %6647 = vmatprep.subr.mxu0 %v5655
        %6648 = vmatpush1.msra.mxu0 %v5654
        %6649 = vmatprep.subr.mxu0 %v5658
        %6650 = vmatpush1.msra.mxu0 %v5657
        %6651 = vmatprep.subr.mxu0 %v5661
        %6652 = vmatpush1.msra.mxu0 %v5660
        %6653 = vmatprep.subr.mxu0 %v5664
        %6654 = vmatpush1.msra.mxu0 %v5663
        %6655 = vmatprep.subr.mxu0 %v5667
        %6656 = vmatpush1.msra.mxu0 %v5666
        %6657 = vmatprep.subr.mxu0 %v5670
        %6658 = vmatpush1.msra.mxu0 %v5669
        %6659 = vmatprep.subr.mxu0 %v5673
        %6660 = vmatpush1.msra.mxu0 %v5672
        %6661 = vmatprep.subr.mxu0 %v5676
        %6662 = vmatpush1.msra.mxu0 %v5675
        %6663 = vmatprep.subr.mxu0 0.0
        %6664 = vmatpush1.msra.mxu0 0.0
        %6665 = vmatprep.subr.mxu0 0.0
        %6666 = vmatpush1.msra.mxu0 0.0
        %6667 = vmatprep.subr.mxu0 0.0
        %6668 = vmatpush1.msra.mxu0 0.0
        %6669 = vmatprep.subr.mxu0 0.0
        %6670 = vmatpush1.msra.mxu0 0.0
        %6671 = vmatprep.subr.mxu0 0.0
        %6672 = vmatpush1.msra.mxu0 0.0
        %6673 = vmatprep.subr.mxu0 0.0
        %6674 = vmatpush1.msra.mxu0 0.0
        %6675 = vmatprep.subr.mxu0 0.0
        %6676 = vmatpush1.msra.mxu0 0.0
        %6677 = vmatprep.subr.mxu0 0.0
        %6678 = vmatpush1.msra.mxu0 0.0
        %6679 = vmatprep.subr.mxu0 0.0
        %6680 = vmatpush1.msra.mxu0 0.0
        %6681 = vmatprep.subr.mxu0 0.0
        %6682 = vmatpush1.msra.mxu0 0.0
        %6683 = vmatprep.subr.mxu0 0.0
        %6684 = vmatpush1.msra.mxu0 0.0
        %6685 = vmatprep.subr.mxu0 0.0
        %6686 = vmatpush1.msra.mxu0 0.0
        %6687 = vmatprep.subr.mxu0 0.0
        %6688 = vmatpush1.msra.mxu0 0.0
        %6689 = vmatprep.subr.mxu0 0.0
        %6690 = vmatpush1.msra.mxu0 0.0
        %6691 = vmatprep.subr.mxu0 0.0
        %6692 = vmatpush1.msra.mxu0 0.0
        %6693 = vmatprep.subr.mxu0 0.0
        %6694 = vmatpush1.msra.mxu0 0.0
        %6695 = vmatprep.mubr.f32.mxu0 0.0
        %6696 = vmatmul.mubr.f32.gmra.mrb[0].mxu0 %v5594
        %v6697 = vpop.f32.mrb[0].mxu0
        %v6698 = vadd.f32 %v6619, %v6697
        %v6699 = vpop.f32.mrb[0].mxu0
        %v6700 = vadd.f32 %v6623, %v6699
        %6701 = vmatprep.mubr.f32.mxu0 0.0
        %6702 = vmatmul.mubr.f32.gmra.mrb[0].mxu0 %v5595
        %v6703 = vpop.f32.mrb[0].mxu0
        %v6704 = vadd.f32 %v6619, %v6703
        %v6705 = vpop.f32.mrb[0].mxu0
        %v6706 = vadd.f32 %v6623, %v6705
        %6707 = vmatprep.mubr.f32.mxu0 0.0
        %6708 = vmatmul.mubr.f32.gmra.mrb[0].mxu0 %v5596
        %v6709 = vpop.f32.mrb[0].mxu0
        %v6710 = vadd.f32 %v6619, %v6709
        %v6711 = vpop.f32.mrb[0].mxu0
        %v6712 = vadd.f32 %v6623, %v6711
        %6713 = vmatprep.mubr.f32.mxu0 0.0
        %6714 = vmatmul.mubr.f32.gmra.mrb[0].mxu0 %v5597
        %v6715 = vpop.f32.mrb[0].mxu0
        %v6716 = vadd.f32 %v6619, %v6715
        %v6717 = vpop.f32.mrb[0].mxu0
        %v6718 = vadd.f32 %v6623, %v6717
        %6719 = vdwg.mxu0
        %6720 = vmatprep.subr.mxu0 0.0
        %6721 = vmatpush1.msra.mxu0 %v5632
        %6722 = vmatprep.subr.mxu0 0.0
        %6723 = vmatpush1.msra.mxu0 %v5635
        %6724 = vmatprep.subr.mxu0 0.0
        %6725 = vmatpush1.msra.mxu0 %v5638
        %6726 = vmatprep.subr.mxu0 0.0
        %6727 = vmatpush1.msra.mxu0 %v5641
        %6728 = vmatprep.subr.mxu0 0.0
        %6729 = vmatpush1.msra.mxu0 %v5644
        %6730 = vmatprep.subr.mxu0 0.0
        %6731 = vmatpush1.msra.mxu0 %v5647
        %6732 = vmatprep.subr.mxu0 0.0
        %6733 = vmatpush1.msra.mxu0 %v5650
        %6734 = vmatprep.subr.mxu0 0.0
        %6735 = vmatpush1.msra.mxu0 %v5653
        %6736 = vmatprep.subr.mxu0 0.0
        %6737 = vmatpush1.msra.mxu0 %v5656
        %6738 = vmatprep.subr.mxu0 0.0
        %6739 = vmatpush1.msra.mxu0 %v5659
        %6740 = vmatprep.subr.mxu0 0.0
        %6741 = vmatpush1.msra.mxu0 %v5662
        %6742 = vmatprep.subr.mxu0 0.0
        %6743 = vmatpush1.msra.mxu0 %v5665
        %6744 = vmatprep.subr.mxu0 0.0
        %6745 = vmatpush1.msra.mxu0 %v5668
        %6746 = vmatprep.subr.mxu0 0.0
        %6747 = vmatpush1.msra.mxu0 %v5671
        %6748 = vmatprep.subr.mxu0 0.0
        %6749 = vmatpush1.msra.mxu0 %v5674
        %6750 = vmatprep.subr.mxu0 0.0
        %6751 = vmatpush1.msra.mxu0 %v5677
        %6752 = vmatprep.subr.mxu0 0.0
        %6753 = vmatpush1.msra.mxu0 0.0
        %6754 = vmatprep.subr.mxu0 0.0
        %6755 = vmatpush1.msra.mxu0 0.0
        %6756 = vmatprep.subr.mxu0 0.0
        %6757 = vmatpush1.msra.mxu0 0.0
        %6758 = vmatprep.subr.mxu0 0.0
        %6759 = vmatpush1.msra.mxu0 0.0
        %6760 = vmatprep.subr.mxu0 0.0
        %6761 = vmatpush1.msra.mxu0 0.0
        %6762 = vmatprep.subr.mxu0 0.0
        %6763 = vmatpush1.msra.mxu0 0.0
        %6764 = vmatprep.subr.mxu0 0.0
        %6765 = vmatpush1.msra.mxu0 0.0
        %6766 = vmatprep.subr.mxu0 0.0
        %6767 = vmatpush1.msra.mxu0 0.0
        %6768 = vmatprep.subr.mxu0 0.0
        %6769 = vmatpush1.msra.mxu0 0.0
        %6770 = vmatprep.subr.mxu0 0.0
        %6771 = vmatpush1.msra.mxu0 0.0
        %6772 = vmatprep.subr.mxu0 0.0
        %6773 = vmatpush1.msra.mxu0 0.0
        %6774 = vmatprep.subr.mxu0 0.0
        %6775 = vmatpush1.msra.mxu0 0.0
        %6776 = vmatprep.subr.mxu0 0.0
        %6777 = vmatpush1.msra.mxu0 0.0
        %6778 = vmatprep.subr.mxu0 0.0
        %6779 = vmatpush1.msra.mxu0 0.0
        %6780 = vmatprep.subr.mxu0 0.0
        %6781 = vmatpush1.msra.mxu0 0.0
        %6782 = vmatprep.subr.mxu0 0.0
        %6783 = vmatpush1.msra.mxu0 0.0
        %6784 = vmatprep.mubr.f32.mxu0 0.0
        %6785 = vmatmul.mubr.f32.gmra.mrb[0].mxu0 %v5594
        %v6786 = vpop.f32.mrb[0].mxu0
        %v6787 = vadd.f32 %v6627, %v6786
        %v6788 = vpop.f32.mrb[0].mxu0
        %6789 = vmatprep.mubr.f32.mxu0 0.0
        %6790 = vmatmul.mubr.f32.gmra.mrb[0].mxu0 %v5595
        %v6791 = vpop.f32.mrb[0].mxu0
        %v6792 = vadd.f32 %v6627, %v6791
        %v6793 = vpop.f32.mrb[0].mxu0
        %6794 = vmatprep.mubr.f32.mxu0 0.0
        %6795 = vmatmul.mubr.f32.gmra.mrb[0].mxu0 %v5596
        %v6796 = vpop.f32.mrb[0].mxu0
        %v6797 = vadd.f32 %v6627, %v6796
        %v6798 = vpop.f32.mrb[0].mxu0
        %6799 = vmatprep.mubr.f32.mxu0 0.0
        %6800 = vmatmul.mubr.f32.gmra.mrb[0].mxu0 %v5597
        %v6801 = vpop.f32.mrb[0].mxu0
        %v6802 = vadd.f32 %v6627, %v6801
        %v6803 = vpop.f32.mrb[0].mxu0
        %6804 = vdwg.mxu0
        %vm6805 = vcmask 261120
        %v6807 = vsel %vm6805, %v6698, 0
        %v6810 = vsel %vm6805, %v6704, 0
        %v6813 = vsel %vm6805, %v6710, 0
        %v6816 = vsel %vm6805, %v6716, 0
        %v6819 = vsel %vm6805, %v6700, 0
        %v6822 = vsel %vm6805, %v6706, 0
        %v6825 = vsel %vm6805, %v6712, 0
        %v6828 = vsel %vm6805, %v6718, 0
        %6830 = vmatprep.subr.mxu0 0.0
        %6831 = vmatpush1.xpose.msra.mxu0 %v6819
        %6832 = vmatprep.subr.mxu0 0.0
        %6833 = vmatpush1.xpose.msra.mxu0 %v6822
        %6834 = vmatprep.subr.mxu0 0.0
        %6835 = vmatpush1.xpose.msra.mxu0 %v6825
        %6836 = vmatprep.subr.mxu0 0.0
        %6837 = vmatpush1.xpose.msra.mxu0 %v6828
        %6838 = vmatprep.subr.mxu0 0.0
        %6839 = vmatpush1.xpose.msra.mxu0 0.0
        %6840 = vmatprep.subr.mxu0 0.0
        %6841 = vmatpush1.xpose.msra.mxu0 0.0
        %6842 = vmatprep.subr.mxu0 0.0
        %6843 = vmatpush1.xpose.msra.mxu0 0.0
        %6844 = vmatprep.subr.mxu0 0.0
        %6845 = vmatpush1.xpose.msra.mxu0 0.0
        %6846 = vmatprep.subr.mxu0 0.0
        %6847 = vmatpush1.xpose.msra.mxu0 0.0
        %6848 = vmatprep.subr.mxu0 0.0
        %6849 = vmatpush1.xpose.msra.mxu0 0.0
        %6850 = vmatprep.subr.mxu0 0.0
        %6851 = vmatpush1.xpose.msra.mxu0 0.0
        %6852 = vmatprep.subr.mxu0 0.0
        %6853 = vmatpush1.xpose.msra.mxu0 0.0
        %6854 = vmatprep.subr.mxu0 0.0
        %6855 = vmatpush1.xpose.msra.mxu0 0.0
        %6856 = vmatprep.subr.mxu0 0.0
        %6857 = vmatpush1.xpose.msra.mxu0 0.0
        %6858 = vmatprep.subr.mxu0 0.0
        %6859 = vmatpush1.xpose.msra.mxu0 0.0
        %6860 = vmatprep.subr.mxu0 0.0
        %6861 = vmatpush1.xpose.msra.mxu0 0.0
        %6862 = vmatprep.subr.mxu0 0.0
        %6863 = vmatpush1.xpose.msra.mxu0 0.0
        %6864 = vmatprep.subr.mxu0 0.0
        %6865 = vmatpush1.xpose.msra.mxu0 0.0
        %6866 = vmatprep.subr.mxu0 0.0
        %6867 = vmatpush1.xpose.msra.mxu0 0.0
        %6868 = vmatprep.subr.mxu0 0.0
        %6869 = vmatpush1.xpose.msra.mxu0 0.0
        %6870 = vmatprep.subr.mxu0 0.0
        %6871 = vmatpush1.xpose.msra.mxu0 0.0
        %6872 = vmatprep.subr.mxu0 0.0
        %6873 = vmatpush1.xpose.msra.mxu0 0.0
        %6874 = vmatprep.subr.mxu0 0.0
        %6875 = vmatpush1.xpose.msra.mxu0 0.0
        %6876 = vmatprep.subr.mxu0 0.0
        %6877 = vmatpush1.xpose.msra.mxu0 0.0
        %6878 = vmatprep.subr.mxu0 0.0
        %6879 = vmatpush1.xpose.msra.mxu0 0.0
        %6880 = vmatprep.subr.mxu0 0.0
        %6881 = vmatpush1.xpose.msra.mxu0 0.0
        %6882 = vmatprep.subr.mxu0 0.0
        %6883 = vmatpush1.xpose.msra.mxu0 0.0
        %6884 = vmatprep.subr.mxu0 0.0
        %6885 = vmatpush1.xpose.msra.mxu0 0.0
        %6886 = vmatprep.subr.mxu0 0.0
        %6887 = vmatpush1.xpose.msra.mxu0 0.0
        %6888 = vmatprep.subr.mxu0 0.0
        %6889 = vmatpush1.xpose.msra.mxu0 0.0
        %6890 = vmatprep.subr.mxu0 0.0
        %6891 = vmatpush1.xpose.msra.mxu0 0.0
        %6892 = vmatprep.subr.mxu0 0.0
        %6893 = vmatpush1.xpose.msra.mxu0 0.0
        %6894 = vmatprep.mubr.f32.mxu0 0.0
        %6895 = vmatmul.mubr.f32.gmra.mrb[0].mxu0 %v6807
        %v6896 = vpop.f32.mrb[0].mxu0
        %v6897 = vadd.f32 0.0, %v6896
        %v6898 = vpop.f32.mrb[0].mxu0
        %6899 = vmatprep.mubr.f32.mxu0 0.0
        %6900 = vmatmul.mubr.f32.gmra.mrb[0].mxu0 %v6810
        %v6901 = vpop.f32.mrb[0].mxu0
        %v6902 = vadd.f32 0.0, %v6901
        %v6903 = vpop.f32.mrb[0].mxu0
        %6904 = vmatprep.mubr.f32.mxu0 0.0
        %6905 = vmatmul.mubr.f32.gmra.mrb[0].mxu0 %v6813
        %v6906 = vpop.f32.mrb[0].mxu0
        %v6907 = vadd.f32 0.0, %v6906
        %v6908 = vpop.f32.mrb[0].mxu0
        %6909 = vmatprep.mubr.f32.mxu0 0.0
        %6910 = vmatmul.mubr.f32.gmra.mrb[0].mxu0 %v6816
        %v6911 = vpop.f32.mrb[0].mxu0
        %v6912 = vadd.f32 0.0, %v6911
        %v6913 = vpop.f32.mrb[0].mxu0
        %6914 = vdwg.mxu0
        %v6915 = vmul.f32 %v6897, 0.17677669
        %v6916 = vmul.f32 %v6902, 0.17677669
        %v6917 = vmul.f32 %v6907, 0.17677669
        %v6918 = vmul.f32 %v6912, 0.17677669
        %v6919 = vsel %vm6805, %v6915, -inf
        %6920 = vmax.xlane.f32.xlu0 %v6919
        %v6921 = vpop.xlane.xlu0 %6920
        %v6922 = vsel %vm6805, %v6916, -inf
        %6923 = vmax.xlane.f32.xlu0 %v6922
        %v6924 = vpop.xlane.xlu0 %6923
        %v6925 = vsel %vm6805, %v6917, -inf
        %6926 = vmax.xlane.f32.xlu0 %v6925
        %v6927 = vpop.xlane.xlu0 %6926
        %v6928 = vsel %vm6805, %v6918, -inf
        %6929 = vmax.xlane.f32.xlu0 %v6928
        %v6930 = vpop.xlane.xlu0 %6929
        %v6931 = vsub.f32 %v6915, %v6921
        %v6932 = vsub.f32 %v6916, %v6924
        %v6933 = vsub.f32 %v6917, %v6927
        %v6934 = vsub.f32 %v6918, %v6930
        %v6935 = vmul.f32 %v6931, 1.442695
        %v6936 = vpow.pop %v6935
        %v6937 = vmul.f32 %v6932, 1.442695
        %v6938 = vpow.pop %v6937
        %v6939 = vmul.f32 %v6933, 1.442695
        %v6940 = vpow.pop %v6939
        %v6941 = vmul.f32 %v6934, 1.442695
        %v6942 = vpow.pop %v6941
        %v6943 = vsel %vm6805, %v6936, 0.0
        %6944 = vadd.xlane.f32.xlu0 %v6943
        %v6945 = vpop.xlane.xlu0 %6944
        %v6946 = vsel %vm6805, %v6938, 0.0
        %6947 = vadd.xlane.f32.xlu0 %v6946
        %v6948 = vpop.xlane.xlu0 %6947
        %v6949 = vsel %vm6805, %v6940, 0.0
        %6950 = vadd.xlane.f32.xlu0 %v6949
        %v6951 = vpop.xlane.xlu0 %6950
        %v6952 = vsel %vm6805, %v6942, 0.0
        %6953 = vadd.xlane.f32.xlu0 %v6952
        %v6954 = vpop.xlane.xlu0 %6953
        %v6955 = vrcp.pop %v6945
        %v6956 = vmul.f32 %v6936, %v6955
        %v6957 = vrcp.pop %v6948
        %v6958 = vmul.f32 %v6938, %v6957
        %v6959 = vrcp.pop %v6951
        %v6960 = vmul.f32 %v6940, %v6959
        %v6961 = vrcp.pop %v6954
        %v6962 = vmul.f32 %v6942, %v6961
        %v6964 = vsel %vm6805, %v6956, 0
        %v6967 = vsel %vm6805, %v6958, 0
        %v6970 = vsel %vm6805, %v6960, 0
        %v6973 = vsel %vm6805, %v6962, 0
        %6975 = vmatprep.subr.mxu0 0.0
        %6976 = vmatpush1.msra.mxu0 %v6787
        %6977 = vmatprep.subr.mxu0 0.0
        %6978 = vmatpush1.msra.mxu0 %v6792
        %6979 = vmatprep.subr.mxu0 0.0
        %6980 = vmatpush1.msra.mxu0 %v6797
        %6981 = vmatprep.subr.mxu0 0.0
        %6982 = vmatpush1.msra.mxu0 %v6802
        %6983 = vmatprep.subr.mxu0 0.0
        %6984 = vmatpush1.msra.mxu0 0.0
        %6985 = vmatprep.subr.mxu0 0.0
        %6986 = vmatpush1.msra.mxu0 0.0
        %6987 = vmatprep.subr.mxu0 0.0
        %6988 = vmatpush1.msra.mxu0 0.0
        %6989 = vmatprep.subr.mxu0 0.0
        %6990 = vmatpush1.msra.mxu0 0.0
        %6991 = vmatprep.subr.mxu0 0.0
        %6992 = vmatpush1.msra.mxu0 0.0
        %6993 = vmatprep.subr.mxu0 0.0
        %6994 = vmatpush1.msra.mxu0 0.0
        %6995 = vmatprep.subr.mxu0 0.0
        %6996 = vmatpush1.msra.mxu0 0.0
        %6997 = vmatprep.subr.mxu0 0.0
        %6998 = vmatpush1.msra.mxu0 0.0
        %6999 = vmatprep.subr.mxu0 0.0
        %7000 = vmatpush1.msra.mxu0 0.0
        %7001 = vmatprep.subr.mxu0 0.0
        %7002 = vmatpush1.msra.mxu0 0.0
        %7003 = vmatprep.subr.mxu0 0.0
        %7004 = vmatpush1.msra.mxu0 0.0
        %7005 = vmatprep.subr.mxu0 0.0
        %7006 = vmatpush1.msra.mxu0 0.0
        %7007 = vmatprep.subr.mxu0 0.0
        %7008 = vmatpush1.msra.mxu0 0.0
        %7009 = vmatprep.subr.mxu0 0.0
        %7010 = vmatpush1.msra.mxu0 0.0
        %7011 = vmatprep.subr.mxu0 0.0
        %7012 = vmatpush1.msra.mxu0 0.0
        %7013 = vmatprep.subr.mxu0 0.0
        %7014 = vmatpush1.msra.mxu0 0.0
        %7015 = vmatprep.subr.mxu0 0.0
        %7016 = vmatpush1.msra.mxu0 0.0
        %7017 = vmatprep.subr.mxu0 0.0
        %7018 = vmatpush1.msra.mxu0 0.0
        %7019 = vmatprep.subr.mxu0 0.0
        %7020 = vmatpush1.msra.mxu0 0.0
        %7021 = vmatprep.subr.mxu0 0.0
        %7022 = vmatpush1.msra.mxu0 0.0
        %7023 = vmatprep.subr.mxu0 0.0
        %7024 = vmatpush1.msra.mxu0 0.0
        %7025 = vmatprep.subr.mxu0 0.0
        %7026 = vmatpush1.msra.mxu0 0.0
        %7027 = vmatprep.subr.mxu0 0.0
        %7028 = vmatpush1.msra.mxu0 0.0
        %7029 = vmatprep.subr.mxu0 0.0
        %7030 = vmatpush1.msra.mxu0 0.0
        %7031 = vmatprep.subr.mxu0 0.0
        %7032 = vmatpush1.msra.mxu0 0.0
        %7033 = vmatprep.subr.mxu0 0.0
        %7034 = vmatpush1.msra.mxu0 0.0
        %7035 = vmatprep.subr.mxu0 0.0
        %7036 = vmatpush1.msra.mxu0 0.0
        %7037 = vmatprep.subr.mxu0 0.0
        %7038 = vmatpush1.msra.mxu0 0.0
        %7039 = vmatprep.mubr.f32.mxu0 0.0
        %7040 = vmatmul.mubr.f32.gmra.mrb[0].mxu0 %v6964
        %v7041 = vpop.f32.mrb[0].mxu0
        %v7042 = vadd.f32 0.0, %v7041
        %v7043 = vpop.f32.mrb[0].mxu0
        %7044 = vmatprep.mubr.f32.mxu0 0.0
        %7045 = vmatmul.mubr.f32.gmra.mrb[0].mxu0 %v6967
        %v7046 = vpop.f32.mrb[0].mxu0
        %v7047 = vadd.f32 0.0, %v7046
        %v7048 = vpop.f32.mrb[0].mxu0
        %7049 = vmatprep.mubr.f32.mxu0 0.0
        %7050 = vmatmul.mubr.f32.gmra.mrb[0].mxu0 %v6970
        %v7051 = vpop.f32.mrb[0].mxu0
        %v7052 = vadd.f32 0.0, %v7051
        %v7053 = vpop.f32.mrb[0].mxu0
        %7054 = vmatprep.mubr.f32.mxu0 0.0
        %7055 = vmatmul.mubr.f32.gmra.mrb[0].mxu0 %v6973
        %v7056 = vpop.f32.mrb[0].mxu0
        %v7057 = vadd.f32 0.0, %v7056
        %v7058 = vpop.f32.mrb[0].mxu0
        %7059 = vdwg.mxu0
        %7060 = vrot.lane.b32.xlu0 %v6698, 96
        %v7061 = vpop.permute.xlu0 %7060
        %7062 = vrot.lane.b32.xlu0 %v6704, 96
        %v7063 = vpop.permute.xlu0 %7062
        %7064 = vrot.lane.b32.xlu0 %v6710, 96
        %v7065 = vpop.permute.xlu0 %7064
        %7066 = vrot.lane.b32.xlu0 %v6716, 96
        %v7067 = vpop.permute.xlu0 %7066
        %7068 = vrot.lane.b32.xlu0 %v6700, 96
        %v7069 = vpop.permute.xlu0 %7068
        %7070 = vrot.lane.b32.xlu0 %v6706, 96
        %v7071 = vpop.permute.xlu0 %7070
        %7072 = vrot.lane.b32.xlu0 %v6712, 96
        %v7073 = vpop.permute.xlu0 %7072
        %7074 = vrot.lane.b32.xlu0 %v6718, 96
        %v7075 = vpop.permute.xlu0 %7074
        %v7076 = vsel %vm6805, %v7061, 0
        %v7078 = vsel %vm6805, %v7063, 0
        %v7080 = vsel %vm6805, %v7065, 0
        %v7082 = vsel %vm6805, %v7067, 0
        %v7084 = vsel %vm6805, %v7069, 0
        %v7086 = vsel %vm6805, %v7071, 0
        %v7088 = vsel %vm6805, %v7073, 0
        %v7090 = vsel %vm6805, %v7075, 0
        %7092 = vmatprep.subr.mxu0 0.0
        %7093 = vmatpush1.xpose.msra.mxu0 %v7084
        %7094 = vmatprep.subr.mxu0 0.0
        %7095 = vmatpush1.xpose.msra.mxu0 %v7086
        %7096 = vmatprep.subr.mxu0 0.0
        %7097 = vmatpush1.xpose.msra.mxu0 %v7088
        %7098 = vmatprep.subr.mxu0 0.0
        %7099 = vmatpush1.xpose.msra.mxu0 %v7090
        %7100 = vmatprep.subr.mxu0 0.0
        %7101 = vmatpush1.xpose.msra.mxu0 0.0
        %7102 = vmatprep.subr.mxu0 0.0
        %7103 = vmatpush1.xpose.msra.mxu0 0.0
        %7104 = vmatprep.subr.mxu0 0.0
        %7105 = vmatpush1.xpose.msra.mxu0 0.0
        %7106 = vmatprep.subr.mxu0 0.0
        %7107 = vmatpush1.xpose.msra.mxu0 0.0
        %7108 = vmatprep.subr.mxu0 0.0
        %7109 = vmatpush1.xpose.msra.mxu0 0.0
        %7110 = vmatprep.subr.mxu0 0.0
        %7111 = vmatpush1.xpose.msra.mxu0 0.0
        %7112 = vmatprep.subr.mxu0 0.0
        %7113 = vmatpush1.xpose.msra.mxu0 0.0
        %7114 = vmatprep.subr.mxu0 0.0
        %7115 = vmatpush1.xpose.msra.mxu0 0.0
        %7116 = vmatprep.subr.mxu0 0.0
        %7117 = vmatpush1.xpose.msra.mxu0 0.0
        %7118 = vmatprep.subr.mxu0 0.0
        %7119 = vmatpush1.xpose.msra.mxu0 0.0
        %7120 = vmatprep.subr.mxu0 0.0
        %7121 = vmatpush1.xpose.msra.mxu0 0.0
        %7122 = vmatprep.subr.mxu0 0.0
        %7123 = vmatpush1.xpose.msra.mxu0 0.0
        %7124 = vmatprep.subr.mxu0 0.0
        %7125 = vmatpush1.xpose.msra.mxu0 0.0
        %7126 = vmatprep.subr.mxu0 0.0
        %7127 = vmatpush1.xpose.msra.mxu0 0.0
        %7128 = vmatprep.subr.mxu0 0.0
        %7129 = vmatpush1.xpose.msra.mxu0 0.0
        %7130 = vmatprep.subr.mxu0 0.0
        %7131 = vmatpush1.xpose.msra.mxu0 0.0
        %7132 = vmatprep.subr.mxu0 0.0
        %7133 = vmatpush1.xpose.msra.mxu0 0.0
        %7134 = vmatprep.subr.mxu0 0.0
        %7135 = vmatpush1.xpose.msra.mxu0 0.0
        %7136 = vmatprep.subr.mxu0 0.0
        %7137 = vmatpush1.xpose.msra.mxu0 0.0
        %7138 = vmatprep.subr.mxu0 0.0
        %7139 = vmatpush1.xpose.msra.mxu0 0.0
        %7140 = vmatprep.subr.mxu0 0.0
        %7141 = vmatpush1.xpose.msra.mxu0 0.0
        %7142 = vmatprep.subr.mxu0 0.0
        %7143 = vmatpush1.xpose.msra.mxu0 0.0
        %7144 = vmatprep.subr.mxu0 0.0
        %7145 = vmatpush1.xpose.msra.mxu0 0.0
        %7146 = vmatprep.subr.mxu0 0.0
        %7147 = vmatpush1.xpose.msra.mxu0 0.0
        %7148 = vmatprep.subr.mxu0 0.0
        %7149 = vmatpush1.xpose.msra.mxu0 0.0
        %7150 = vmatprep.subr.mxu0 0.0
        %7151 = vmatpush1.xpose.msra.mxu0 0.0
        %7152 = vmatprep.subr.mxu0 0.0
        %7153 = vmatpush1.xpose.msra.mxu0 0.0
        %7154 = vmatprep.subr.mxu0 0.0
        %7155 = vmatpush1.xpose.msra.mxu0 0.0
        %7156 = vmatprep.mubr.f32.mxu0 0.0
        %7157 = vmatmul.mubr.f32.gmra.mrb[0].mxu0 %v7076
        %v7158 = vpop.f32.mrb[0].mxu0
        %v7159 = vadd.f32 0.0, %v7158
        %v7160 = vpop.f32.mrb[0].mxu0
        %7161 = vmatprep.mubr.f32.mxu0 0.0
        %7162 = vmatmul.mubr.f32.gmra.mrb[0].mxu0 %v7078
        %v7163 = vpop.f32.mrb[0].mxu0
        %v7164 = vadd.f32 0.0, %v7163
        %v7165 = vpop.f32.mrb[0].mxu0
        %7166 = vmatprep.mubr.f32.mxu0 0.0
        %7167 = vmatmul.mubr.f32.gmra.mrb[0].mxu0 %v7080
        %v7168 = vpop.f32.mrb[0].mxu0
        %v7169 = vadd.f32 0.0, %v7168
        %v7170 = vpop.f32.mrb[0].mxu0
        %7171 = vmatprep.mubr.f32.mxu0 0.0
        %7172 = vmatmul.mubr.f32.gmra.mrb[0].mxu0 %v7082
        %v7173 = vpop.f32.mrb[0].mxu0
        %v7174 = vadd.f32 0.0, %v7173
        %v7175 = vpop.f32.mrb[0].mxu0
        %7176 = vdwg.mxu0
        %v7177 = vmul.f32 %v7159, 0.17677669
        %v7178 = vmul.f32 %v7164, 0.17677669
        %v7179 = vmul.f32 %v7169, 0.17677669
        %v7180 = vmul.f32 %v7174, 0.17677669
        %v7181 = vsel %vm6805, %v7177, -inf
        %7182 = vmax.xlane.f32.xlu0 %v7181
        %v7183 = vpop.xlane.xlu0 %7182
        %v7184 = vsel %vm6805, %v7178, -inf
        %7185 = vmax.xlane.f32.xlu0 %v7184
        %v7186 = vpop.xlane.xlu0 %7185
        %v7187 = vsel %vm6805, %v7179, -inf
        %7188 = vmax.xlane.f32.xlu0 %v7187
        %v7189 = vpop.xlane.xlu0 %7188
        %v7190 = vsel %vm6805, %v7180, -inf
        %7191 = vmax.xlane.f32.xlu0 %v7190
        %v7192 = vpop.xlane.xlu0 %7191
        %v7193 = vsub.f32 %v7177, %v7183
        %v7194 = vsub.f32 %v7178, %v7186
        %v7195 = vsub.f32 %v7179, %v7189
        %v7196 = vsub.f32 %v7180, %v7192
        %v7197 = vmul.f32 %v7193, 1.442695
        %v7198 = vpow.pop %v7197
        %v7199 = vmul.f32 %v7194, 1.442695
        %v7200 = vpow.pop %v7199
        %v7201 = vmul.f32 %v7195, 1.442695
        %v7202 = vpow.pop %v7201
        %v7203 = vmul.f32 %v7196, 1.442695
        %v7204 = vpow.pop %v7203
        %v7205 = vsel %vm6805, %v7198, 0.0
        %7206 = vadd.xlane.f32.xlu0 %v7205
        %v7207 = vpop.xlane.xlu0 %7206
        %v7208 = vsel %vm6805, %v7200, 0.0
        %7209 = vadd.xlane.f32.xlu0 %v7208
        %v7210 = vpop.xlane.xlu0 %7209
        %v7211 = vsel %vm6805, %v7202, 0.0
        %7212 = vadd.xlane.f32.xlu0 %v7211
        %v7213 = vpop.xlane.xlu0 %7212
        %v7214 = vsel %vm6805, %v7204, 0.0
        %7215 = vadd.xlane.f32.xlu0 %v7214
        %v7216 = vpop.xlane.xlu0 %7215
        %v7217 = vrcp.pop %v7207
        %v7218 = vmul.f32 %v7198, %v7217
        %v7219 = vrcp.pop %v7210
        %v7220 = vmul.f32 %v7200, %v7219
        %v7221 = vrcp.pop %v7213
        %v7222 = vmul.f32 %v7202, %v7221
        %v7223 = vrcp.pop %v7216
        %v7224 = vmul.f32 %v7204, %v7223
        %7229 = vrot.lane.b32.xlu0 %v6787, 96
        %v7230 = vpop.permute.xlu0 %7229
        %7231 = vrot.lane.b32.xlu0 %v6792, 96
        %v7232 = vpop.permute.xlu0 %7231
        %7233 = vrot.lane.b32.xlu0 %v6797, 96
        %v7234 = vpop.permute.xlu0 %7233
        %7235 = vrot.lane.b32.xlu0 %v6802, 96
        %v7236 = vpop.permute.xlu0 %7235
        %v7242 = vsel %vm6805, %v7218, 0
        %v7245 = vsel %vm6805, %v7220, 0
        %v7248 = vsel %vm6805, %v7222, 0
        %v7251 = vsel %vm6805, %v7224, 0
        %7253 = vmatprep.subr.mxu0 0.0
        %7254 = vmatpush1.msra.mxu0 %v7230
        %7255 = vmatprep.subr.mxu0 0.0
        %7256 = vmatpush1.msra.mxu0 %v7232
        %7257 = vmatprep.subr.mxu0 0.0
        %7258 = vmatpush1.msra.mxu0 %v7234
        %7259 = vmatprep.subr.mxu0 0.0
        %7260 = vmatpush1.msra.mxu0 %v7236
        %7261 = vmatprep.subr.mxu0 0.0
        %7262 = vmatpush1.msra.mxu0 0.0
        %7263 = vmatprep.subr.mxu0 0.0
        %7264 = vmatpush1.msra.mxu0 0.0
        %7265 = vmatprep.subr.mxu0 0.0
        %7266 = vmatpush1.msra.mxu0 0.0
        %7267 = vmatprep.subr.mxu0 0.0
        %7268 = vmatpush1.msra.mxu0 0.0
        %7269 = vmatprep.subr.mxu0 0.0
        %7270 = vmatpush1.msra.mxu0 0.0
        %7271 = vmatprep.subr.mxu0 0.0
        %7272 = vmatpush1.msra.mxu0 0.0
        %7273 = vmatprep.subr.mxu0 0.0
        %7274 = vmatpush1.msra.mxu0 0.0
        %7275 = vmatprep.subr.mxu0 0.0
        %7276 = vmatpush1.msra.mxu0 0.0
        %7277 = vmatprep.subr.mxu0 0.0
        %7278 = vmatpush1.msra.mxu0 0.0
        %7279 = vmatprep.subr.mxu0 0.0
        %7280 = vmatpush1.msra.mxu0 0.0
        %7281 = vmatprep.subr.mxu0 0.0
        %7282 = vmatpush1.msra.mxu0 0.0
        %7283 = vmatprep.subr.mxu0 0.0
        %7284 = vmatpush1.msra.mxu0 0.0
        %7285 = vmatprep.subr.mxu0 0.0
        %7286 = vmatpush1.msra.mxu0 0.0
        %7287 = vmatprep.subr.mxu0 0.0
        %7288 = vmatpush1.msra.mxu0 0.0
        %7289 = vmatprep.subr.mxu0 0.0
        %7290 = vmatpush1.msra.mxu0 0.0
        %7291 = vmatprep.subr.mxu0 0.0
        %7292 = vmatpush1.msra.mxu0 0.0
        %7293 = vmatprep.subr.mxu0 0.0
        %7294 = vmatpush1.msra.mxu0 0.0
        %7295 = vmatprep.subr.mxu0 0.0
        %7296 = vmatpush1.msra.mxu0 0.0
        %7297 = vmatprep.subr.mxu0 0.0
        %7298 = vmatpush1.msra.mxu0 0.0
        %7299 = vmatprep.subr.mxu0 0.0
        %7300 = vmatpush1.msra.mxu0 0.0
        %7301 = vmatprep.subr.mxu0 0.0
        %7302 = vmatpush1.msra.mxu0 0.0
        %7303 = vmatprep.subr.mxu0 0.0
        %7304 = vmatpush1.msra.mxu0 0.0
        %7305 = vmatprep.subr.mxu0 0.0
        %7306 = vmatpush1.msra.mxu0 0.0
        %7307 = vmatprep.subr.mxu0 0.0
        %7308 = vmatpush1.msra.mxu0 0.0
        %7309 = vmatprep.subr.mxu0 0.0
        %7310 = vmatpush1.msra.mxu0 0.0
        %7311 = vmatprep.subr.mxu0 0.0
        %7312 = vmatpush1.msra.mxu0 0.0
        %7313 = vmatprep.subr.mxu0 0.0
        %7314 = vmatpush1.msra.mxu0 0.0
        %7315 = vmatprep.subr.mxu0 0.0
        %7316 = vmatpush1.msra.mxu0 0.0
        %7317 = vmatprep.mubr.f32.mxu0 0.0
        %7318 = vmatmul.mubr.f32.gmra.mrb[0].mxu0 %v7242
        %v7319 = vpop.f32.mrb[0].mxu0
        %v7320 = vadd.f32 0.0, %v7319
        %v7321 = vpop.f32.mrb[0].mxu0
        %7322 = vmatprep.mubr.f32.mxu0 0.0
        %7323 = vmatmul.mubr.f32.gmra.mrb[0].mxu0 %v7245
        %v7324 = vpop.f32.mrb[0].mxu0
        %v7325 = vadd.f32 0.0, %v7324
        %v7326 = vpop.f32.mrb[0].mxu0
        %7327 = vmatprep.mubr.f32.mxu0 0.0
        %7328 = vmatmul.mubr.f32.gmra.mrb[0].mxu0 %v7248
        %v7329 = vpop.f32.mrb[0].mxu0
        %v7330 = vadd.f32 0.0, %v7329
        %v7331 = vpop.f32.mrb[0].mxu0
        %7332 = vmatprep.mubr.f32.mxu0 0.0
        %7333 = vmatmul.mubr.f32.gmra.mrb[0].mxu0 %v7251
        %v7334 = vpop.f32.mrb[0].mxu0
        %v7335 = vadd.f32 0.0, %v7334
        %v7336 = vpop.f32.mrb[0].mxu0
        %7337 = vdwg.mxu0
        %7338 = vrot.lane.b32.xlu0 %v6698, 64
        %v7339 = vpop.permute.xlu0 %7338
        %7340 = vrot.lane.b32.xlu0 %v6704, 64
        %v7341 = vpop.permute.xlu0 %7340
        %7342 = vrot.lane.b32.xlu0 %v6710, 64
        %v7343 = vpop.permute.xlu0 %7342
        %7344 = vrot.lane.b32.xlu0 %v6716, 64
        %v7345 = vpop.permute.xlu0 %7344
        %7346 = vrot.lane.b32.xlu0 %v6700, 64
        %v7347 = vpop.permute.xlu0 %7346
        %7348 = vrot.lane.b32.xlu0 %v6706, 64
        %v7349 = vpop.permute.xlu0 %7348
        %7350 = vrot.lane.b32.xlu0 %v6712, 64
        %v7351 = vpop.permute.xlu0 %7350
        %7352 = vrot.lane.b32.xlu0 %v6718, 64
        %v7353 = vpop.permute.xlu0 %7352
        %v7354 = vsel %vm6805, %v7339, 0
        %v7356 = vsel %vm6805, %v7341, 0
        %v7358 = vsel %vm6805, %v7343, 0
        %v7360 = vsel %vm6805, %v7345, 0
        %v7362 = vsel %vm6805, %v7347, 0
        %v7364 = vsel %vm6805, %v7349, 0
        %v7366 = vsel %vm6805, %v7351, 0
        %v7368 = vsel %vm6805, %v7353, 0
        %7370 = vmatprep.subr.mxu0 0.0
        %7371 = vmatpush1.xpose.msra.mxu0 %v7362
        %7372 = vmatprep.subr.mxu0 0.0
        %7373 = vmatpush1.xpose.msra.mxu0 %v7364
        %7374 = vmatprep.subr.mxu0 0.0
        %7375 = vmatpush1.xpose.msra.mxu0 %v7366
        %7376 = vmatprep.subr.mxu0 0.0
        %7377 = vmatpush1.xpose.msra.mxu0 %v7368
        %7378 = vmatprep.subr.mxu0 0.0
        %7379 = vmatpush1.xpose.msra.mxu0 0.0
        %7380 = vmatprep.subr.mxu0 0.0
        %7381 = vmatpush1.xpose.msra.mxu0 0.0
        %7382 = vmatprep.subr.mxu0 0.0
        %7383 = vmatpush1.xpose.msra.mxu0 0.0
        %7384 = vmatprep.subr.mxu0 0.0
        %7385 = vmatpush1.xpose.msra.mxu0 0.0
        %7386 = vmatprep.subr.mxu0 0.0
        %7387 = vmatpush1.xpose.msra.mxu0 0.0
        %7388 = vmatprep.subr.mxu0 0.0
        %7389 = vmatpush1.xpose.msra.mxu0 0.0
        %7390 = vmatprep.subr.mxu0 0.0
        %7391 = vmatpush1.xpose.msra.mxu0 0.0
        %7392 = vmatprep.subr.mxu0 0.0
        %7393 = vmatpush1.xpose.msra.mxu0 0.0
        %7394 = vmatprep.subr.mxu0 0.0
        %7395 = vmatpush1.xpose.msra.mxu0 0.0
        %7396 = vmatprep.subr.mxu0 0.0
        %7397 = vmatpush1.xpose.msra.mxu0 0.0
        %7398 = vmatprep.subr.mxu0 0.0
        %7399 = vmatpush1.xpose.msra.mxu0 0.0
        %7400 = vmatprep.subr.mxu0 0.0
        %7401 = vmatpush1.xpose.msra.mxu0 0.0
        %7402 = vmatprep.subr.mxu0 0.0
        %7403 = vmatpush1.xpose.msra.mxu0 0.0
        %7404 = vmatprep.subr.mxu0 0.0
        %7405 = vmatpush1.xpose.msra.mxu0 0.0
        %7406 = vmatprep.subr.mxu0 0.0
        %7407 = vmatpush1.xpose.msra.mxu0 0.0
        %7408 = vmatprep.subr.mxu0 0.0
        %7409 = vmatpush1.xpose.msra.mxu0 0.0
        %7410 = vmatprep.subr.mxu0 0.0
        %7411 = vmatpush1.xpose.msra.mxu0 0.0
        %7412 = vmatprep.subr.mxu0 0.0
        %7413 = vmatpush1.xpose.msra.mxu0 0.0
        %7414 = vmatprep.subr.mxu0 0.0
        %7415 = vmatpush1.xpose.msra.mxu0 0.0
        %7416 = vmatprep.subr.mxu0 0.0
        %7417 = vmatpush1.xpose.msra.mxu0 0.0
        %7418 = vmatprep.subr.mxu0 0.0
        %7419 = vmatpush1.xpose.msra.mxu0 0.0
        %7420 = vmatprep.subr.mxu0 0.0
        %7421 = vmatpush1.xpose.msra.mxu0 0.0
        %7422 = vmatprep.subr.mxu0 0.0
        %7423 = vmatpush1.xpose.msra.mxu0 0.0
        %7424 = vmatprep.subr.mxu0 0.0
        %7425 = vmatpush1.xpose.msra.mxu0 0.0
        %7426 = vmatprep.subr.mxu0 0.0
        %7427 = vmatpush1.xpose.msra.mxu0 0.0
        %7428 = vmatprep.subr.mxu0 0.0
        %7429 = vmatpush1.xpose.msra.mxu0 0.0
        %7430 = vmatprep.subr.mxu0 0.0
        %7431 = vmatpush1.xpose.msra.mxu0 0.0
        %7432 = vmatprep.subr.mxu0 0.0
        %7433 = vmatpush1.xpose.msra.mxu0 0.0
        %7434 = vmatprep.mubr.f32.mxu0 0.0
        %7435 = vmatmul.mubr.f32.gmra.mrb[0].mxu0 %v7354
        %v7436 = vpop.f32.mrb[0].mxu0
        %v7437 = vadd.f32 0.0, %v7436
        %v7438 = vpop.f32.mrb[0].mxu0
        %7439 = vmatprep.mubr.f32.mxu0 0.0
        %7440 = vmatmul.mubr.f32.gmra.mrb[0].mxu0 %v7356
        %v7441 = vpop.f32.mrb[0].mxu0
        %v7442 = vadd.f32 0.0, %v7441
        %v7443 = vpop.f32.mrb[0].mxu0
        %7444 = vmatprep.mubr.f32.mxu0 0.0
        %7445 = vmatmul.mubr.f32.gmra.mrb[0].mxu0 %v7358
        %v7446 = vpop.f32.mrb[0].mxu0
        %v7447 = vadd.f32 0.0, %v7446
        %v7448 = vpop.f32.mrb[0].mxu0
        %7449 = vmatprep.mubr.f32.mxu0 0.0
        %7450 = vmatmul.mubr.f32.gmra.mrb[0].mxu0 %v7360
        %v7451 = vpop.f32.mrb[0].mxu0
        %v7452 = vadd.f32 0.0, %v7451
        %v7453 = vpop.f32.mrb[0].mxu0
        %7454 = vdwg.mxu0
        %v7455 = vmul.f32 %v7437, 0.17677669
        %v7456 = vmul.f32 %v7442, 0.17677669
        %v7457 = vmul.f32 %v7447, 0.17677669
        %v7458 = vmul.f32 %v7452, 0.17677669
        %v7459 = vsel %vm6805, %v7455, -inf
        %7460 = vmax.xlane.f32.xlu0 %v7459
        %v7461 = vpop.xlane.xlu0 %7460
        %v7462 = vsel %vm6805, %v7456, -inf
        %7463 = vmax.xlane.f32.xlu0 %v7462
        %v7464 = vpop.xlane.xlu0 %7463
        %v7465 = vsel %vm6805, %v7457, -inf
        %7466 = vmax.xlane.f32.xlu0 %v7465
        %v7467 = vpop.xlane.xlu0 %7466
        %v7468 = vsel %vm6805, %v7458, -inf
        %7469 = vmax.xlane.f32.xlu0 %v7468
        %v7470 = vpop.xlane.xlu0 %7469
        %v7471 = vsub.f32 %v7455, %v7461
        %v7472 = vsub.f32 %v7456, %v7464
        %v7473 = vsub.f32 %v7457, %v7467
        %v7474 = vsub.f32 %v7458, %v7470
        %v7475 = vmul.f32 %v7471, 1.442695
        %v7476 = vpow.pop %v7475
        %v7477 = vmul.f32 %v7472, 1.442695
        %v7478 = vpow.pop %v7477
        %v7479 = vmul.f32 %v7473, 1.442695
        %v7480 = vpow.pop %v7479
        %v7481 = vmul.f32 %v7474, 1.442695
        %v7482 = vpow.pop %v7481
        %v7483 = vsel %vm6805, %v7476, 0.0
        %7484 = vadd.xlane.f32.xlu0 %v7483
        %v7485 = vpop.xlane.xlu0 %7484
        %v7486 = vsel %vm6805, %v7478, 0.0
        %7487 = vadd.xlane.f32.xlu0 %v7486
        %v7488 = vpop.xlane.xlu0 %7487
        %v7489 = vsel %vm6805, %v7480, 0.0
        %7490 = vadd.xlane.f32.xlu0 %v7489
        %v7491 = vpop.xlane.xlu0 %7490
        %v7492 = vsel %vm6805, %v7482, 0.0
        %7493 = vadd.xlane.f32.xlu0 %v7492
        %v7494 = vpop.xlane.xlu0 %7493
        %v7495 = vrcp.pop %v7485
        %v7496 = vmul.f32 %v7476, %v7495
        %v7497 = vrcp.pop %v7488
        %v7498 = vmul.f32 %v7478, %v7497
        %v7499 = vrcp.pop %v7491
        %v7500 = vmul.f32 %v7480, %v7499
        %v7501 = vrcp.pop %v7494
        %v7502 = vmul.f32 %v7482, %v7501
        %7503 = vrot.lane.b32.xlu0 %v6787, 64
        %v7504 = vpop.permute.xlu0 %7503
        %7505 = vrot.lane.b32.xlu0 %v6792, 64
        %v7506 = vpop.permute.xlu0 %7505
        %7507 = vrot.lane.b32.xlu0 %v6797, 64
        %v7508 = vpop.permute.xlu0 %7507
        %7509 = vrot.lane.b32.xlu0 %v6802, 64
        %v7510 = vpop.permute.xlu0 %7509
        %v7516 = vsel %vm6805, %v7496, 0
        %v7519 = vsel %vm6805, %v7498, 0
        %v7522 = vsel %vm6805, %v7500, 0
        %v7525 = vsel %vm6805, %v7502, 0
        %7527 = vmatprep.subr.mxu0 0.0
        %7528 = vmatpush1.msra.mxu0 %v7504
        %7529 = vmatprep.subr.mxu0 0.0
        %7530 = vmatpush1.msra.mxu0 %v7506
        %7531 = vmatprep.subr.mxu0 0.0
        %7532 = vmatpush1.msra.mxu0 %v7508
        %7533 = vmatprep.subr.mxu0 0.0
        %7534 = vmatpush1.msra.mxu0 %v7510
        %7535 = vmatprep.subr.mxu0 0.0
        %7536 = vmatpush1.msra.mxu0 0.0
        %7537 = vmatprep.subr.mxu0 0.0
        %7538 = vmatpush1.msra.mxu0 0.0
        %7539 = vmatprep.subr.mxu0 0.0
        %7540 = vmatpush1.msra.mxu0 0.0
        %7541 = vmatprep.subr.mxu0 0.0
        %7542 = vmatpush1.msra.mxu0 0.0
        %7543 = vmatprep.subr.mxu0 0.0
        %7544 = vmatpush1.msra.mxu0 0.0
        %7545 = vmatprep.subr.mxu0 0.0
        %7546 = vmatpush1.msra.mxu0 0.0
        %7547 = vmatprep.subr.mxu0 0.0
        %7548 = vmatpush1.msra.mxu0 0.0
        %7549 = vmatprep.subr.mxu0 0.0
        %7550 = vmatpush1.msra.mxu0 0.0
        %7551 = vmatprep.subr.mxu0 0.0
        %7552 = vmatpush1.msra.mxu0 0.0
        %7553 = vmatprep.subr.mxu0 0.0
        %7554 = vmatpush1.msra.mxu0 0.0
        %7555 = vmatprep.subr.mxu0 0.0
        %7556 = vmatpush1.msra.mxu0 0.0
        %7557 = vmatprep.subr.mxu0 0.0
        %7558 = vmatpush1.msra.mxu0 0.0
        %7559 = vmatprep.subr.mxu0 0.0
        %7560 = vmatpush1.msra.mxu0 0.0
        %7561 = vmatprep.subr.mxu0 0.0
        %7562 = vmatpush1.msra.mxu0 0.0
        %7563 = vmatprep.subr.mxu0 0.0
        %7564 = vmatpush1.msra.mxu0 0.0
        %7565 = vmatprep.subr.mxu0 0.0
        %7566 = vmatpush1.msra.mxu0 0.0
        %7567 = vmatprep.subr.mxu0 0.0
        %7568 = vmatpush1.msra.mxu0 0.0
        %7569 = vmatprep.subr.mxu0 0.0
        %7570 = vmatpush1.msra.mxu0 0.0
        %7571 = vmatprep.subr.mxu0 0.0
        %7572 = vmatpush1.msra.mxu0 0.0
        %7573 = vmatprep.subr.mxu0 0.0
        %7574 = vmatpush1.msra.mxu0 0.0
        %7575 = vmatprep.subr.mxu0 0.0
        %7576 = vmatpush1.msra.mxu0 0.0
        %7577 = vmatprep.subr.mxu0 0.0
        %7578 = vmatpush1.msra.mxu0 0.0
        %7579 = vmatprep.subr.mxu0 0.0
        %7580 = vmatpush1.msra.mxu0 0.0
        %7581 = vmatprep.subr.mxu0 0.0
        %7582 = vmatpush1.msra.mxu0 0.0
        %7583 = vmatprep.subr.mxu0 0.0
        %7584 = vmatpush1.msra.mxu0 0.0
        %7585 = vmatprep.subr.mxu0 0.0
        %7586 = vmatpush1.msra.mxu0 0.0
        %7587 = vmatprep.subr.mxu0 0.0
        %7588 = vmatpush1.msra.mxu0 0.0
        %7589 = vmatprep.subr.mxu0 0.0
        %7590 = vmatpush1.msra.mxu0 0.0
        %7591 = vmatprep.mubr.f32.mxu0 0.0
        %7592 = vmatmul.mubr.f32.gmra.mrb[0].mxu0 %v7516
        %v7593 = vpop.f32.mrb[0].mxu0
        %v7594 = vadd.f32 0.0, %v7593
        %v7595 = vpop.f32.mrb[0].mxu0
        %7596 = vmatprep.mubr.f32.mxu0 0.0
        %7597 = vmatmul.mubr.f32.gmra.mrb[0].mxu0 %v7519
        %v7598 = vpop.f32.mrb[0].mxu0
        %v7599 = vadd.f32 0.0, %v7598
        %v7600 = vpop.f32.mrb[0].mxu0
        %7601 = vmatprep.mubr.f32.mxu0 0.0
        %7602 = vmatmul.mubr.f32.gmra.mrb[0].mxu0 %v7522
        %v7603 = vpop.f32.mrb[0].mxu0
        %v7604 = vadd.f32 0.0, %v7603
        %v7605 = vpop.f32.mrb[0].mxu0
        %7606 = vmatprep.mubr.f32.mxu0 0.0
        %7607 = vmatmul.mubr.f32.gmra.mrb[0].mxu0 %v7525
        %v7608 = vpop.f32.mrb[0].mxu0
        %v7609 = vadd.f32 0.0, %v7608
        %v7610 = vpop.f32.mrb[0].mxu0
        %7611 = vdwg.mxu0
        %7612 = vrot.lane.b32.xlu0 %v6698, 32
        %v7613 = vpop.permute.xlu0 %7612
        %7614 = vrot.lane.b32.xlu0 %v6704, 32
        %v7615 = vpop.permute.xlu0 %7614
        %7616 = vrot.lane.b32.xlu0 %v6710, 32
        %v7617 = vpop.permute.xlu0 %7616
        %7618 = vrot.lane.b32.xlu0 %v6716, 32
        %v7619 = vpop.permute.xlu0 %7618
        %7620 = vrot.lane.b32.xlu0 %v6700, 32
        %v7621 = vpop.permute.xlu0 %7620
        %7622 = vrot.lane.b32.xlu0 %v6706, 32
        %v7623 = vpop.permute.xlu0 %7622
        %7624 = vrot.lane.b32.xlu0 %v6712, 32
        %v7625 = vpop.permute.xlu0 %7624
        %7626 = vrot.lane.b32.xlu0 %v6718, 32
        %v7627 = vpop.permute.xlu0 %7626
        %v7628 = vsel %vm6805, %v7613, 0
        %v7630 = vsel %vm6805, %v7615, 0
        %v7632 = vsel %vm6805, %v7617, 0
        %v7634 = vsel %vm6805, %v7619, 0
        %v7636 = vsel %vm6805, %v7621, 0
        %v7638 = vsel %vm6805, %v7623, 0
        %v7640 = vsel %vm6805, %v7625, 0
        %v7642 = vsel %vm6805, %v7627, 0
        %7644 = vmatprep.subr.mxu0 0.0
        %7645 = vmatpush1.xpose.msra.mxu0 %v7636
        %7646 = vmatprep.subr.mxu0 0.0
        %7647 = vmatpush1.xpose.msra.mxu0 %v7638
        %7648 = vmatprep.subr.mxu0 0.0
        %7649 = vmatpush1.xpose.msra.mxu0 %v7640
        %7650 = vmatprep.subr.mxu0 0.0
        %7651 = vmatpush1.xpose.msra.mxu0 %v7642
        %7652 = vmatprep.subr.mxu0 0.0
        %7653 = vmatpush1.xpose.msra.mxu0 0.0
        %7654 = vmatprep.subr.mxu0 0.0
        %7655 = vmatpush1.xpose.msra.mxu0 0.0
        %7656 = vmatprep.subr.mxu0 0.0
        %7657 = vmatpush1.xpose.msra.mxu0 0.0
        %7658 = vmatprep.subr.mxu0 0.0
        %7659 = vmatpush1.xpose.msra.mxu0 0.0
        %7660 = vmatprep.subr.mxu0 0.0
        %7661 = vmatpush1.xpose.msra.mxu0 0.0
        %7662 = vmatprep.subr.mxu0 0.0
        %7663 = vmatpush1.xpose.msra.mxu0 0.0
        %7664 = vmatprep.subr.mxu0 0.0
        %7665 = vmatpush1.xpose.msra.mxu0 0.0
        %7666 = vmatprep.subr.mxu0 0.0
        %7667 = vmatpush1.xpose.msra.mxu0 0.0
        %7668 = vmatprep.subr.mxu0 0.0
        %7669 = vmatpush1.xpose.msra.mxu0 0.0
        %7670 = vmatprep.subr.mxu0 0.0
        %7671 = vmatpush1.xpose.msra.mxu0 0.0
        %7672 = vmatprep.subr.mxu0 0.0
        %7673 = vmatpush1.xpose.msra.mxu0 0.0
        %7674 = vmatprep.subr.mxu0 0.0
        %7675 = vmatpush1.xpose.msra.mxu0 0.0
        %7676 = vmatprep.subr.mxu0 0.0
        %7677 = vmatpush1.xpose.msra.mxu0 0.0
        %7678 = vmatprep.subr.mxu0 0.0
        %7679 = vmatpush1.xpose.msra.mxu0 0.0
        %7680 = vmatprep.subr.mxu0 0.0
        %7681 = vmatpush1.xpose.msra.mxu0 0.0
        %7682 = vmatprep.subr.mxu0 0.0
        %7683 = vmatpush1.xpose.msra.mxu0 0.0
        %7684 = vmatprep.subr.mxu0 0.0
        %7685 = vmatpush1.xpose.msra.mxu0 0.0
        %7686 = vmatprep.subr.mxu0 0.0
        %7687 = vmatpush1.xpose.msra.mxu0 0.0
        %7688 = vmatprep.subr.mxu0 0.0
        %7689 = vmatpush1.xpose.msra.mxu0 0.0
        %7690 = vmatprep.subr.mxu0 0.0
        %7691 = vmatpush1.xpose.msra.mxu0 0.0
        %7692 = vmatprep.subr.mxu0 0.0
        %7693 = vmatpush1.xpose.msra.mxu0 0.0
        %7694 = vmatprep.subr.mxu0 0.0
        %7695 = vmatpush1.xpose.msra.mxu0 0.0
        %7696 = vmatprep.subr.mxu0 0.0
        %7697 = vmatpush1.xpose.msra.mxu0 0.0
        %7698 = vmatprep.subr.mxu0 0.0
        %7699 = vmatpush1.xpose.msra.mxu0 0.0
        %7700 = vmatprep.subr.mxu0 0.0
        %7701 = vmatpush1.xpose.msra.mxu0 0.0
        %7702 = vmatprep.subr.mxu0 0.0
        %7703 = vmatpush1.xpose.msra.mxu0 0.0
        %7704 = vmatprep.subr.mxu0 0.0
        %7705 = vmatpush1.xpose.msra.mxu0 0.0
        %7706 = vmatprep.subr.mxu0 0.0
        %7707 = vmatpush1.xpose.msra.mxu0 0.0
        %7708 = vmatprep.mubr.f32.mxu0 0.0
        %7709 = vmatmul.mubr.f32.gmra.mrb[0].mxu0 %v7628
        %v7710 = vpop.f32.mrb[0].mxu0
        %v7711 = vadd.f32 0.0, %v7710
        %v7712 = vpop.f32.mrb[0].mxu0
        %7713 = vmatprep.mubr.f32.mxu0 0.0
        %7714 = vmatmul.mubr.f32.gmra.mrb[0].mxu0 %v7630
        %v7715 = vpop.f32.mrb[0].mxu0
        %v7716 = vadd.f32 0.0, %v7715
        %v7717 = vpop.f32.mrb[0].mxu0
        %7718 = vmatprep.mubr.f32.mxu0 0.0
        %7719 = vmatmul.mubr.f32.gmra.mrb[0].mxu0 %v7632
        %v7720 = vpop.f32.mrb[0].mxu0
        %v7721 = vadd.f32 0.0, %v7720
        %v7722 = vpop.f32.mrb[0].mxu0
        %7723 = vmatprep.mubr.f32.mxu0 0.0
        %7724 = vmatmul.mubr.f32.gmra.mrb[0].mxu0 %v7634
        %v7725 = vpop.f32.mrb[0].mxu0
        %v7726 = vadd.f32 0.0, %v7725
        %v7727 = vpop.f32.mrb[0].mxu0
        %7728 = vdwg.mxu0
        %v7729 = vmul.f32 %v7711, 0.17677669
        %v7730 = vmul.f32 %v7716, 0.17677669
        %v7731 = vmul.f32 %v7721, 0.17677669
        %v7732 = vmul.f32 %v7726, 0.17677669
        %v7733 = vsel %vm6805, %v7729, -inf
        %7734 = vmax.xlane.f32.xlu0 %v7733
        %v7735 = vpop.xlane.xlu0 %7734
        %v7736 = vsel %vm6805, %v7730, -inf
        %7737 = vmax.xlane.f32.xlu0 %v7736
        %v7738 = vpop.xlane.xlu0 %7737
        %v7739 = vsel %vm6805, %v7731, -inf
        %7740 = vmax.xlane.f32.xlu0 %v7739
        %v7741 = vpop.xlane.xlu0 %7740
        %v7742 = vsel %vm6805, %v7732, -inf
        %7743 = vmax.xlane.f32.xlu0 %v7742
        %v7744 = vpop.xlane.xlu0 %7743
        %v7745 = vsub.f32 %v7729, %v7735
        %v7746 = vsub.f32 %v7730, %v7738
        %v7747 = vsub.f32 %v7731, %v7741
        %v7748 = vsub.f32 %v7732, %v7744
        %v7749 = vmul.f32 %v7745, 1.442695
        %v7750 = vpow.pop %v7749
        %v7751 = vmul.f32 %v7746, 1.442695
        %v7752 = vpow.pop %v7751
        %v7753 = vmul.f32 %v7747, 1.442695
        %v7754 = vpow.pop %v7753
        %v7755 = vmul.f32 %v7748, 1.442695
        %v7756 = vpow.pop %v7755
        %v7757 = vsel %vm6805, %v7750, 0.0
        %7758 = vadd.xlane.f32.xlu0 %v7757
        %v7759 = vpop.xlane.xlu0 %7758
        %v7760 = vsel %vm6805, %v7752, 0.0
        %7761 = vadd.xlane.f32.xlu0 %v7760
        %v7762 = vpop.xlane.xlu0 %7761
        %v7763 = vsel %vm6805, %v7754, 0.0
        %7764 = vadd.xlane.f32.xlu0 %v7763
        %v7765 = vpop.xlane.xlu0 %7764
        %v7766 = vsel %vm6805, %v7756, 0.0
        %7767 = vadd.xlane.f32.xlu0 %v7766
        %v7768 = vpop.xlane.xlu0 %7767
        %v7769 = vrcp.pop %v7759
        %v7770 = vmul.f32 %v7750, %v7769
        %v7771 = vrcp.pop %v7762
        %v7772 = vmul.f32 %v7752, %v7771
        %v7773 = vrcp.pop %v7765
        %v7774 = vmul.f32 %v7754, %v7773
        %v7775 = vrcp.pop %v7768
        %v7776 = vmul.f32 %v7756, %v7775
        %7777 = vrot.lane.b32.xlu0 %v6787, 32
        %v7778 = vpop.permute.xlu0 %7777
        %7779 = vrot.lane.b32.xlu0 %v6792, 32
        %v7780 = vpop.permute.xlu0 %7779
        %7781 = vrot.lane.b32.xlu0 %v6797, 32
        %v7782 = vpop.permute.xlu0 %7781
        %7783 = vrot.lane.b32.xlu0 %v6802, 32
        %v7784 = vpop.permute.xlu0 %7783
        %v7790 = vsel %vm6805, %v7770, 0
        %v7793 = vsel %vm6805, %v7772, 0
        %v7796 = vsel %vm6805, %v7774, 0
        %v7799 = vsel %vm6805, %v7776, 0
        %7801 = vmatprep.subr.mxu0 0.0
        %7802 = vmatpush1.msra.mxu0 %v7778
        %7803 = vmatprep.subr.mxu0 0.0
        %7804 = vmatpush1.msra.mxu0 %v7780
        %7805 = vmatprep.subr.mxu0 0.0
        %7806 = vmatpush1.msra.mxu0 %v7782
        %7807 = vmatprep.subr.mxu0 0.0
        %7808 = vmatpush1.msra.mxu0 %v7784
        %7809 = vmatprep.subr.mxu0 0.0
        %7810 = vmatpush1.msra.mxu0 0.0
        %7811 = vmatprep.subr.mxu0 0.0
        %7812 = vmatpush1.msra.mxu0 0.0
        %7813 = vmatprep.subr.mxu0 0.0
        %7814 = vmatpush1.msra.mxu0 0.0
        %7815 = vmatprep.subr.mxu0 0.0
        %7816 = vmatpush1.msra.mxu0 0.0
        %7817 = vmatprep.subr.mxu0 0.0
        %7818 = vmatpush1.msra.mxu0 0.0
        %7819 = vmatprep.subr.mxu0 0.0
        %7820 = vmatpush1.msra.mxu0 0.0
        %7821 = vmatprep.subr.mxu0 0.0
        %7822 = vmatpush1.msra.mxu0 0.0
        %7823 = vmatprep.subr.mxu0 0.0
        %7824 = vmatpush1.msra.mxu0 0.0
        %7825 = vmatprep.subr.mxu0 0.0
        %7826 = vmatpush1.msra.mxu0 0.0
        %7827 = vmatprep.subr.mxu0 0.0
        %7828 = vmatpush1.msra.mxu0 0.0
        %7829 = vmatprep.subr.mxu0 0.0
        %7830 = vmatpush1.msra.mxu0 0.0
        %7831 = vmatprep.subr.mxu0 0.0
        %7832 = vmatpush1.msra.mxu0 0.0
        %7833 = vmatprep.subr.mxu0 0.0
        %7834 = vmatpush1.msra.mxu0 0.0
        %7835 = vmatprep.subr.mxu0 0.0
        %7836 = vmatpush1.msra.mxu0 0.0
        %7837 = vmatprep.subr.mxu0 0.0
        %7838 = vmatpush1.msra.mxu0 0.0
        %7839 = vmatprep.subr.mxu0 0.0
        %7840 = vmatpush1.msra.mxu0 0.0
        %7841 = vmatprep.subr.mxu0 0.0
        %7842 = vmatpush1.msra.mxu0 0.0
        %7843 = vmatprep.subr.mxu0 0.0
        %7844 = vmatpush1.msra.mxu0 0.0
        %7845 = vmatprep.subr.mxu0 0.0
        %7846 = vmatpush1.msra.mxu0 0.0
        %7847 = vmatprep.subr.mxu0 0.0
        %7848 = vmatpush1.msra.mxu0 0.0
        %7849 = vmatprep.subr.mxu0 0.0
        %7850 = vmatpush1.msra.mxu0 0.0
        %7851 = vmatprep.subr.mxu0 0.0
        %7852 = vmatpush1.msra.mxu0 0.0
        %7853 = vmatprep.subr.mxu0 0.0
        %7854 = vmatpush1.msra.mxu0 0.0
        %7855 = vmatprep.subr.mxu0 0.0
        %7856 = vmatpush1.msra.mxu0 0.0
        %7857 = vmatprep.subr.mxu0 0.0
        %7858 = vmatpush1.msra.mxu0 0.0
        %7859 = vmatprep.subr.mxu0 0.0
        %7860 = vmatpush1.msra.mxu0 0.0
        %7861 = vmatprep.subr.mxu0 0.0
        %7862 = vmatpush1.msra.mxu0 0.0
        %7863 = vmatprep.subr.mxu0 0.0
        %7864 = vmatpush1.msra.mxu0 0.0
        %7865 = vmatprep.mubr.f32.mxu0 0.0
        %7866 = vmatmul.mubr.f32.gmra.mrb[0].mxu0 %v7790
        %v7867 = vpop.f32.mrb[0].mxu0
        %v7868 = vadd.f32 0.0, %v7867
        %v7869 = vpop.f32.mrb[0].mxu0
        %7870 = vmatprep.mubr.f32.mxu0 0.0
        %7871 = vmatmul.mubr.f32.gmra.mrb[0].mxu0 %v7793
        %v7872 = vpop.f32.mrb[0].mxu0
        %v7873 = vadd.f32 0.0, %v7872
        %v7874 = vpop.f32.mrb[0].mxu0
        %7875 = vmatprep.mubr.f32.mxu0 0.0
        %7876 = vmatmul.mubr.f32.gmra.mrb[0].mxu0 %v7796
        %v7877 = vpop.f32.mrb[0].mxu0
        %v7878 = vadd.f32 0.0, %v7877
        %v7879 = vpop.f32.mrb[0].mxu0
        %7880 = vmatprep.mubr.f32.mxu0 0.0
        %7881 = vmatmul.mubr.f32.gmra.mrb[0].mxu0 %v7799
        %v7882 = vpop.f32.mrb[0].mxu0
        %v7883 = vadd.f32 0.0, %v7882
        %v7884 = vpop.f32.mrb[0].mxu0
        %7885 = vdwg.mxu0
        %7890 = vrot.lane.b32.xlu0 %v7320, 32
        %v7891 = vpop.permute.xlu0 %7890
        %7892 = vrot.lane.b32.xlu0 %v7325, 32
        %v7893 = vpop.permute.xlu0 %7892
        %7894 = vrot.lane.b32.xlu0 %v7330, 32
        %v7895 = vpop.permute.xlu0 %7894
        %7896 = vrot.lane.b32.xlu0 %v7335, 32
        %v7897 = vpop.permute.xlu0 %7896
        %7906 = vrot.lane.b32.xlu0 %v7594, 64
        %v7907 = vpop.permute.xlu0 %7906
        %7908 = vrot.lane.b32.xlu0 %v7599, 64
        %v7909 = vpop.permute.xlu0 %7908
        %7910 = vrot.lane.b32.xlu0 %v7604, 64
        %v7911 = vpop.permute.xlu0 %7910
        %7912 = vrot.lane.b32.xlu0 %v7609, 64
        %v7913 = vpop.permute.xlu0 %7912
        %7922 = vrot.lane.b32.xlu0 %v7868, 96
        %v7923 = vpop.permute.xlu0 %7922
        %7924 = vrot.lane.b32.xlu0 %v7873, 96
        %v7925 = vpop.permute.xlu0 %7924
        %7926 = vrot.lane.b32.xlu0 %v7878, 96
        %v7927 = vpop.permute.xlu0 %7926
        %7928 = vrot.lane.b32.xlu0 %v7883, 96
        %v7929 = vpop.permute.xlu0 %7928
        %v7934 = vsel %vm6805, %v7042, %v7891
        %v7935 = vsel %vm6805, %v7047, %v7893
        %v7936 = vsel %vm6805, %v7052, %v7895
        %v7937 = vsel %vm6805, %v7057, %v7897
        %vm7938 = vcmask 523264
        %v7939 = vsel %vm7938, %v7934, %v7907
        %v7940 = vsel %vm7938, %v7935, %v7909
        %v7941 = vsel %vm7938, %v7936, %v7911
        %v7942 = vsel %vm7938, %v7937, %v7913
        %vm7943 = vcmask 785408
        %v7944 = vsel %vm7943, %v7939, %v7923
        %v7945 = vsel %vm7943, %v7940, %v7925
        %v7946 = vsel %vm7943, %v7941, %v7927
        %v7947 = vsel %vm7943, %v7942, %v7929
        %v7949 = vlaneseq
        %v7950 = vshrl.u32 %v7949, 7
        %v7951 = vsub.s32 0, %v7950
        %v7952 = vrot.slane %v5711, %v7951
        %7954 = vmatprep.subr.mxu0 0.0
        %7955 = vmatpush1.msra.mxu0 %v5695
        %7956 = vmatprep.subr.mxu0 0.0
        %7957 = vmatpush1.msra.mxu0 %v5696
        %7958 = vmatprep.subr.mxu0 0.0
        %7959 = vmatpush1.msra.mxu0 %v5697
        %7960 = vmatprep.subr.mxu0 0.0
        %7961 = vmatpush1.msra.mxu0 %v5698
        %7962 = vmatprep.subr.mxu0 0.0
        %7963 = vmatpush1.msra.mxu0 %v5699
        %7964 = vmatprep.subr.mxu0 0.0
        %7965 = vmatpush1.msra.mxu0 %v5700
        %7966 = vmatprep.subr.mxu0 0.0
        %7967 = vmatpush1.msra.mxu0 %v5701
        %7968 = vmatprep.subr.mxu0 0.0
        %7969 = vmatpush1.msra.mxu0 %v5702
        %7970 = vmatprep.subr.mxu0 0.0
        %7971 = vmatpush1.msra.mxu0 %v5703
        %7972 = vmatprep.subr.mxu0 0.0
        %7973 = vmatpush1.msra.mxu0 %v5704
        %7974 = vmatprep.subr.mxu0 0.0
        %7975 = vmatpush1.msra.mxu0 %v5705
        %7976 = vmatprep.subr.mxu0 0.0
        %7977 = vmatpush1.msra.mxu0 %v5706
        %7978 = vmatprep.subr.mxu0 0.0
        %7979 = vmatpush1.msra.mxu0 %v5707
        %7980 = vmatprep.subr.mxu0 0.0
        %7981 = vmatpush1.msra.mxu0 %v5708
        %7982 = vmatprep.subr.mxu0 0.0
        %7983 = vmatpush1.msra.mxu0 %v5709
        %7984 = vmatprep.subr.mxu0 0.0
        %7985 = vmatpush1.msra.mxu0 %v5710
        %7986 = vmatprep.subr.mxu0 0.0
        %7987 = vmatpush1.msra.mxu0 0.0
        %7988 = vmatprep.subr.mxu0 0.0
        %7989 = vmatpush1.msra.mxu0 0.0
        %7990 = vmatprep.subr.mxu0 0.0
        %7991 = vmatpush1.msra.mxu0 0.0
        %7992 = vmatprep.subr.mxu0 0.0
        %7993 = vmatpush1.msra.mxu0 0.0
        %7994 = vmatprep.subr.mxu0 0.0
        %7995 = vmatpush1.msra.mxu0 0.0
        %7996 = vmatprep.subr.mxu0 0.0
        %7997 = vmatpush1.msra.mxu0 0.0
        %7998 = vmatprep.subr.mxu0 0.0
        %7999 = vmatpush1.msra.mxu0 0.0
        %8000 = vmatprep.subr.mxu0 0.0
        %8001 = vmatpush1.msra.mxu0 0.0
        %8002 = vmatprep.subr.mxu0 0.0
        %8003 = vmatpush1.msra.mxu0 0.0
        %8004 = vmatprep.subr.mxu0 0.0
        %8005 = vmatpush1.msra.mxu0 0.0
        %8006 = vmatprep.subr.mxu0 0.0
        %8007 = vmatpush1.msra.mxu0 0.0
        %8008 = vmatprep.subr.mxu0 0.0
        %8009 = vmatpush1.msra.mxu0 0.0
        %8010 = vmatprep.subr.mxu0 0.0
        %8011 = vmatpush1.msra.mxu0 0.0
        %8012 = vmatprep.subr.mxu0 0.0
        %8013 = vmatpush1.msra.mxu0 0.0
        %8014 = vmatprep.subr.mxu0 0.0
        %8015 = vmatpush1.msra.mxu0 0.0
        %8016 = vmatprep.subr.mxu0 0.0
        %8017 = vmatpush1.msra.mxu0 0.0
        %8018 = vmatprep.mubr.f32.mxu0 0.0
        %8019 = vmatmul.mubr.f32.gmra.mrb[0].mxu0 %v7944
        %v8020 = vpop.f32.mrb[0].mxu0
        %v8021 = vadd.f32 %v7952, %v8020
        %v8022 = vpop.f32.mrb[0].mxu0
        %8023 = vmatprep.mubr.f32.mxu0 0.0
        %8024 = vmatmul.mubr.f32.gmra.mrb[0].mxu0 %v7945
        %v8025 = vpop.f32.mrb[0].mxu0
        %v8026 = vadd.f32 %v7952, %v8025
        %v8027 = vpop.f32.mrb[0].mxu0
        %8028 = vmatprep.mubr.f32.mxu0 0.0
        %8029 = vmatmul.mubr.f32.gmra.mrb[0].mxu0 %v7946
        %v8030 = vpop.f32.mrb[0].mxu0
        %v8031 = vadd.f32 %v7952, %v8030
        %v8032 = vpop.f32.mrb[0].mxu0
        %8033 = vmatprep.mubr.f32.mxu0 0.0
        %8034 = vmatmul.mubr.f32.gmra.mrb[0].mxu0 %v7947
        %v8035 = vpop.f32.mrb[0].mxu0
        %v8036 = vadd.f32 %v7952, %v8035
        %v8037 = vpop.f32.mrb[0].mxu0
        %8038 = vdwg.mxu0
        %v8039 = vadd.f32 %v5594, %v8021
        %v8040 = vadd.f32 %v5595, %v8026
        %v8041 = vadd.f32 %v5596, %v8031
        %v8042 = vadd.f32 %v5597, %v8036
        %8043 = vadd.xlane.f32.xlu0 %v8039
        %v8044 = vpop.xlane.xlu0 %8043
        %8045 = vadd.xlane.f32.xlu0 %v8040
        %v8046 = vpop.xlane.xlu0 %8045
        %8047 = vadd.xlane.f32.xlu0 %v8041
        %v8048 = vpop.xlane.xlu0 %8047
        %8049 = vadd.xlane.f32.xlu0 %v8042
        %v8050 = vpop.xlane.xlu0 %8049
        %v8051 = vrcp.pop 128.0
        %v8052 = vmul.f32 %v8044, %v8051
        %v8053 = vmul.f32 %v8046, %v8051
        %v8054 = vmul.f32 %v8048, %v8051
        %v8055 = vmul.f32 %v8050, %v8051
        %v8056 = vsub.f32 %v8039, %v8052
        %v8057 = vsub.f32 %v8040, %v8053
        %v8058 = vsub.f32 %v8041, %v8054
        %v8059 = vsub.f32 %v8042, %v8055
        %v8060 = vmul.f32 %v8056, %v8056
        %v8061 = vmul.f32 %v8057, %v8057
        %v8062 = vmul.f32 %v8058, %v8058
        %v8063 = vmul.f32 %v8059, %v8059
        %8064 = vadd.xlane.f32.xlu0 %v8060
        %v8065 = vpop.xlane.xlu0 %8064
        %8066 = vadd.xlane.f32.xlu0 %v8061
        %v8067 = vpop.xlane.xlu0 %8066
        %8068 = vadd.xlane.f32.xlu0 %v8062
        %v8069 = vpop.xlane.xlu0 %8068
        %8070 = vadd.xlane.f32.xlu0 %v8063
        %v8071 = vpop.xlane.xlu0 %8070
        %v8072 = vmul.f32 %v8065, %v8051
        %v8073 = vmul.f32 %v8067, %v8051
        %v8074 = vmul.f32 %v8069, %v8051
        %v8075 = vmul.f32 %v8071, %v8051
        %v8076 = vadd.f32 %v8072, 1e-05
        %v8077 = vadd.f32 %v8073, 1e-05
        %v8078 = vadd.f32 %v8074, 1e-05
        %v8079 = vadd.f32 %v8075, 1e-05
        %v8080 = vrsqrt.pop %v8076
        %v8081 = vrsqrt.pop %v8077
        %v8082 = vrsqrt.pop %v8078
        %v8083 = vrsqrt.pop %v8079
        %v8084 = vmul.f32 %v8056, %v8080
        %v8085 = vmul.f32 %v8057, %v8081
        %v8086 = vmul.f32 %v8058, %v8082
        %v8087 = vmul.f32 %v8059, %v8083
        %v8089 = vlaneseq
        %v8090 = vshrl.u32 %v8089, 7
        %v8091 = vsub.s32 0, %v8090
        %v8092 = vrot.slane %v5712, %v8091
        %v8094 = vmul.f32 %v8084, %v8092
        %v8095 = vmul.f32 %v8085, %v8092
        %v8096 = vmul.f32 %v8086, %v8092
        %v8097 = vmul.f32 %v8087, %v8092
        %v8099 = vlaneseq
        %v8100 = vshrl.u32 %v8099, 7
        %v8101 = vsub.s32 0, %v8100
        %v8102 = vrot.slane %v5713, %v8101
        %v8104 = vadd.f32 %v8094, %v8102
        %v8105 = vadd.f32 %v8095, %v8102
        %v8106 = vadd.f32 %v8096, %v8102
        %v8107 = vadd.f32 %v8097, %v8102
        %v8110 = vlaneseq
        %v8111 = vshrl.u32 %v8110, 7
        %v8112 = vsub.s32 0, %v8111
        %v8113 = vrot.slane %v6098, %v8112
        %v8114 = vlaneseq
        %v8115 = vshrl.u32 %v8114, 7
        %v8116 = vsub.s32 1, %v8115
        %v8117 = vrot.slane %v6098, %v8116
        %v8118 = vlaneseq
        %v8119 = vshrl.u32 %v8118, 7
        %v8120 = vsub.s32 2, %v8119
        %v8121 = vrot.slane %v6098, %v8120
        %v8122 = vlaneseq
        %v8123 = vshrl.u32 %v8122, 7
        %v8124 = vsub.s32 3, %v8123
        %v8125 = vrot.slane %v6098, %v8124
        %v8126 = vlaneseq
        %v8127 = vshrl.u32 %v8126, 7
        %v8128 = vsub.s32 4, %v8127
        %v8129 = vrot.slane %v6098, %v8128
        %v8130 = vlaneseq
        %v8131 = vshrl.u32 %v8130, 7
        %v8132 = vsub.s32 5, %v8131
        %v8133 = vrot.slane %v6098, %v8132
        %v8134 = vlaneseq
        %v8135 = vshrl.u32 %v8134, 7
        %v8136 = vsub.s32 6, %v8135
        %v8137 = vrot.slane %v6098, %v8136
        %v8138 = vlaneseq
        %v8139 = vshrl.u32 %v8138, 7
        %v8140 = vsub.s32 7, %v8139
        %v8141 = vrot.slane %v6098, %v8140
        %v8142 = vlaneseq
        %v8143 = vshrl.u32 %v8142, 7
        %v8144 = vsub.s32 0, %v8143
        %v8145 = vrot.slane %v6099, %v8144
        %v8146 = vlaneseq
        %v8147 = vshrl.u32 %v8146, 7
        %v8148 = vsub.s32 1, %v8147
        %v8149 = vrot.slane %v6099, %v8148
        %v8150 = vlaneseq
        %v8151 = vshrl.u32 %v8150, 7
        %v8152 = vsub.s32 2, %v8151
        %v8153 = vrot.slane %v6099, %v8152
        %v8154 = vlaneseq
        %v8155 = vshrl.u32 %v8154, 7
        %v8156 = vsub.s32 3, %v8155
        %v8157 = vrot.slane %v6099, %v8156
        %v8158 = vlaneseq
        %v8159 = vshrl.u32 %v8158, 7
        %v8160 = vsub.s32 4, %v8159
        %v8161 = vrot.slane %v6099, %v8160
        %v8162 = vlaneseq
        %v8163 = vshrl.u32 %v8162, 7
        %v8164 = vsub.s32 5, %v8163
        %v8165 = vrot.slane %v6099, %v8164
        %v8166 = vlaneseq
        %v8167 = vshrl.u32 %v8166, 7
        %v8168 = vsub.s32 6, %v8167
        %v8169 = vrot.slane %v6099, %v8168
        %v8170 = vlaneseq
        %v8171 = vshrl.u32 %v8170, 7
        %v8172 = vsub.s32 7, %v8171
        %v8173 = vrot.slane %v6099, %v8172
        %8190 = vmatprep.subr.mxu0 %v5843
        %8191 = vmatpush1.msra.mxu0 %v5842
        %8192 = vmatprep.subr.mxu0 %v5859
        %8193 = vmatpush1.msra.mxu0 %v5858
        %8194 = vmatprep.subr.mxu0 %v5875
        %8195 = vmatpush1.msra.mxu0 %v5874
        %8196 = vmatprep.subr.mxu0 %v5891
        %8197 = vmatpush1.msra.mxu0 %v5890
        %8198 = vmatprep.subr.mxu0 %v5907
        %8199 = vmatpush1.msra.mxu0 %v5906
        %8200 = vmatprep.subr.mxu0 %v5923
        %8201 = vmatpush1.msra.mxu0 %v5922
        %8202 = vmatprep.subr.mxu0 %v5939
        %8203 = vmatpush1.msra.mxu0 %v5938
        %8204 = vmatprep.subr.mxu0 %v5955
        %8205 = vmatpush1.msra.mxu0 %v5954
        %8206 = vmatprep.subr.mxu0 %v5971
        %8207 = vmatpush1.msra.mxu0 %v5970
        %8208 = vmatprep.subr.mxu0 %v5987
        %8209 = vmatpush1.msra.mxu0 %v5986
        %8210 = vmatprep.subr.mxu0 %v6003
        %8211 = vmatpush1.msra.mxu0 %v6002
        %8212 = vmatprep.subr.mxu0 %v6019
        %8213 = vmatpush1.msra.mxu0 %v6018
        %8214 = vmatprep.subr.mxu0 %v6035
        %8215 = vmatpush1.msra.mxu0 %v6034
        %8216 = vmatprep.subr.mxu0 %v6051
        %8217 = vmatpush1.msra.mxu0 %v6050
        %8218 = vmatprep.subr.mxu0 %v6067
        %8219 = vmatpush1.msra.mxu0 %v6066
        %8220 = vmatprep.subr.mxu0 %v6083
        %8221 = vmatpush1.msra.mxu0 %v6082
        %8222 = vmatprep.subr.mxu0 0.0
        %8223 = vmatpush1.msra.mxu0 0.0
        %8224 = vmatprep.subr.mxu0 0.0
        %8225 = vmatpush1.msra.mxu0 0.0
        %8226 = vmatprep.subr.mxu0 0.0
        %8227 = vmatpush1.msra.mxu0 0.0
        %8228 = vmatprep.subr.mxu0 0.0
        %8229 = vmatpush1.msra.mxu0 0.0
        %8230 = vmatprep.subr.mxu0 0.0
        %8231 = vmatpush1.msra.mxu0 0.0
        %8232 = vmatprep.subr.mxu0 0.0
        %8233 = vmatpush1.msra.mxu0 0.0
        %8234 = vmatprep.subr.mxu0 0.0
        %8235 = vmatpush1.msra.mxu0 0.0
        %8236 = vmatprep.subr.mxu0 0.0
        %8237 = vmatpush1.msra.mxu0 0.0
        %8238 = vmatprep.subr.mxu0 0.0
        %8239 = vmatpush1.msra.mxu0 0.0
        %8240 = vmatprep.subr.mxu0 0.0
        %8241 = vmatpush1.msra.mxu0 0.0
        %8242 = vmatprep.subr.mxu0 0.0
        %8243 = vmatpush1.msra.mxu0 0.0
        %8244 = vmatprep.subr.mxu0 0.0
        %8245 = vmatpush1.msra.mxu0 0.0
        %8246 = vmatprep.subr.mxu0 0.0
        %8247 = vmatpush1.msra.mxu0 0.0
        %8248 = vmatprep.subr.mxu0 0.0
        %8249 = vmatpush1.msra.mxu0 0.0
        %8250 = vmatprep.subr.mxu0 0.0
        %8251 = vmatpush1.msra.mxu0 0.0
        %8252 = vmatprep.subr.mxu0 0.0
        %8253 = vmatpush1.msra.mxu0 0.0
        %8254 = vmatprep.mubr.f32.mxu0 0.0
        %8255 = vmatmul.mubr.f32.gmra.mrb[0].mxu0 %v8104
        %v8256 = vpop.f32.mrb[0].mxu0
        %v8257 = vadd.f32 %v8113, %v8256
        %v8258 = vpop.f32.mrb[0].mxu0
        %v8259 = vadd.f32 %v8117, %v8258
        %8260 = vmatprep.mubr.f32.mxu0 0.0
        %8261 = vmatmul.mubr.f32.gmra.mrb[0].mxu0 %v8105
        %v8262 = vpop.f32.mrb[0].mxu0
        %v8263 = vadd.f32 %v8113, %v8262
        %v8264 = vpop.f32.mrb[0].mxu0
        %v8265 = vadd.f32 %v8117, %v8264
        %8266 = vmatprep.mubr.f32.mxu0 0.0
        %8267 = vmatmul.mubr.f32.gmra.mrb[0].mxu0 %v8106
        %v8268 = vpop.f32.mrb[0].mxu0
        %v8269 = vadd.f32 %v8113, %v8268
        %v8270 = vpop.f32.mrb[0].mxu0
        %v8271 = vadd.f32 %v8117, %v8270
        %8272 = vmatprep.mubr.f32.mxu0 0.0
        %8273 = vmatmul.mubr.f32.gmra.mrb[0].mxu0 %v8107
        %v8274 = vpop.f32.mrb[0].mxu0
        %v8275 = vadd.f32 %v8113, %v8274
        %v8276 = vpop.f32.mrb[0].mxu0
        %v8277 = vadd.f32 %v8117, %v8276
        %8278 = vdwg.mxu0
        %8279 = vmatprep.subr.mxu0 %v5845
        %8280 = vmatpush1.msra.mxu0 %v5844
        %8281 = vmatprep.subr.mxu0 %v5861
        %8282 = vmatpush1.msra.mxu0 %v5860
        %8283 = vmatprep.subr.mxu0 %v5877
        %8284 = vmatpush1.msra.mxu0 %v5876
        %8285 = vmatprep.subr.mxu0 %v5893
        %8286 = vmatpush1.msra.mxu0 %v5892
        %8287 = vmatprep.subr.mxu0 %v5909
        %8288 = vmatpush1.msra.mxu0 %v5908
        %8289 = vmatprep.subr.mxu0 %v5925
        %8290 = vmatpush1.msra.mxu0 %v5924
        %8291 = vmatprep.subr.mxu0 %v5941
        %8292 = vmatpush1.msra.mxu0 %v5940
        %8293 = vmatprep.subr.mxu0 %v5957
        %8294 = vmatpush1.msra.mxu0 %v5956
        %8295 = vmatprep.subr.mxu0 %v5973
        %8296 = vmatpush1.msra.mxu0 %v5972
        %8297 = vmatprep.subr.mxu0 %v5989
        %8298 = vmatpush1.msra.mxu0 %v5988
        %8299 = vmatprep.subr.mxu0 %v6005
        %8300 = vmatpush1.msra.mxu0 %v6004
        %8301 = vmatprep.subr.mxu0 %v6021
        %8302 = vmatpush1.msra.mxu0 %v6020
        %8303 = vmatprep.subr.mxu0 %v6037
        %8304 = vmatpush1.msra.mxu0 %v6036
        %8305 = vmatprep.subr.mxu0 %v6053
        %8306 = vmatpush1.msra.mxu0 %v6052
        %8307 = vmatprep.subr.mxu0 %v6069
        %8308 = vmatpush1.msra.mxu0 %v6068
        %8309 = vmatprep.subr.mxu0 %v6085
        %8310 = vmatpush1.msra.mxu0 %v6084
        %8311 = vmatprep.subr.mxu0 0.0
        %8312 = vmatpush1.msra.mxu0 0.0
        %8313 = vmatprep.subr.mxu0 0.0
        %8314 = vmatpush1.msra.mxu0 0.0
        %8315 = vmatprep.subr.mxu0 0.0
        %8316 = vmatpush1.msra.mxu0 0.0
        %8317 = vmatprep.subr.mxu0 0.0
        %8318 = vmatpush1.msra.mxu0 0.0
        %8319 = vmatprep.subr.mxu0 0.0
        %8320 = vmatpush1.msra.mxu0 0.0
        %8321 = vmatprep.subr.mxu0 0.0
        %8322 = vmatpush1.msra.mxu0 0.0
        %8323 = vmatprep.subr.mxu0 0.0
        %8324 = vmatpush1.msra.mxu0 0.0
        %8325 = vmatprep.subr.mxu0 0.0
        %8326 = vmatpush1.msra.mxu0 0.0
        %8327 = vmatprep.subr.mxu0 0.0
        %8328 = vmatpush1.msra.mxu0 0.0
        %8329 = vmatprep.subr.mxu0 0.0
        %8330 = vmatpush1.msra.mxu0 0.0
        %8331 = vmatprep.subr.mxu0 0.0
        %8332 = vmatpush1.msra.mxu0 0.0
        %8333 = vmatprep.subr.mxu0 0.0
        %8334 = vmatpush1.msra.mxu0 0.0
        %8335 = vmatprep.subr.mxu0 0.0
        %8336 = vmatpush1.msra.mxu0 0.0
        %8337 = vmatprep.subr.mxu0 0.0
        %8338 = vmatpush1.msra.mxu0 0.0
        %8339 = vmatprep.subr.mxu0 0.0
        %8340 = vmatpush1.msra.mxu0 0.0
        %8341 = vmatprep.subr.mxu0 0.0
        %8342 = vmatpush1.msra.mxu0 0.0
        %8343 = vmatprep.mubr.f32.mxu0 0.0
        %8344 = vmatmul.mubr.f32.gmra.mrb[0].mxu0 %v8104
        %v8345 = vpop.f32.mrb[0].mxu0
        %v8346 = vadd.f32 %v8121, %v8345
        %v8347 = vpop.f32.mrb[0].mxu0
        %v8348 = vadd.f32 %v8125, %v8347
        %8349 = vmatprep.mubr.f32.mxu0 0.0
        %8350 = vmatmul.mubr.f32.gmra.mrb[0].mxu0 %v8105
        %v8351 = vpop.f32.mrb[0].mxu0
        %v8352 = vadd.f32 %v8121, %v8351
        %v8353 = vpop.f32.mrb[0].mxu0
        %v8354 = vadd.f32 %v8125, %v8353
        %8355 = vmatprep.mubr.f32.mxu0 0.0
        %8356 = vmatmul.mubr.f32.gmra.mrb[0].mxu0 %v8106
        %v8357 = vpop.f32.mrb[0].mxu0
        %v8358 = vadd.f32 %v8121, %v8357
        %v8359 = vpop.f32.mrb[0].mxu0
        %v8360 = vadd.f32 %v8125, %v8359
        %8361 = vmatprep.mubr.f32.mxu0 0.0
        %8362 = vmatmul.mubr.f32.gmra.mrb[0].mxu0 %v8107
        %v8363 = vpop.f32.mrb[0].mxu0
        %v8364 = vadd.f32 %v8121, %v8363
        %v8365 = vpop.f32.mrb[0].mxu0
        %v8366 = vadd.f32 %v8125, %v8365
        %8367 = vdwg.mxu0
        %8368 = vmatprep.subr.mxu0 %v5847
        %8369 = vmatpush1.msra.mxu0 %v5846
        %8370 = vmatprep.subr.mxu0 %v5863
        %8371 = vmatpush1.msra.mxu0 %v5862
        %8372 = vmatprep.subr.mxu0 %v5879
        %8373 = vmatpush1.msra.mxu0 %v5878
        %8374 = vmatprep.subr.mxu0 %v5895
        %8375 = vmatpush1.msra.mxu0 %v5894
        %8376 = vmatprep.subr.mxu0 %v5911
        %8377 = vmatpush1.msra.mxu0 %v5910
        %8378 = vmatprep.subr.mxu0 %v5927
        %8379 = vmatpush1.msra.mxu0 %v5926
        %8380 = vmatprep.subr.mxu0 %v5943
        %8381 = vmatpush1.msra.mxu0 %v5942
        %8382 = vmatprep.subr.mxu0 %v5959
        %8383 = vmatpush1.msra.mxu0 %v5958
        %8384 = vmatprep.subr.mxu0 %v5975
        %8385 = vmatpush1.msra.mxu0 %v5974
        %8386 = vmatprep.subr.mxu0 %v5991
        %8387 = vmatpush1.msra.mxu0 %v5990
        %8388 = vmatprep.subr.mxu0 %v6007
        %8389 = vmatpush1.msra.mxu0 %v6006
        %8390 = vmatprep.subr.mxu0 %v6023
        %8391 = vmatpush1.msra.mxu0 %v6022
        %8392 = vmatprep.subr.mxu0 %v6039
        %8393 = vmatpush1.msra.mxu0 %v6038
        %8394 = vmatprep.subr.mxu0 %v6055
        %8395 = vmatpush1.msra.mxu0 %v6054
        %8396 = vmatprep.subr.mxu0 %v6071
        %8397 = vmatpush1.msra.mxu0 %v6070
        %8398 = vmatprep.subr.mxu0 %v6087
        %8399 = vmatpush1.msra.mxu0 %v6086
        %8400 = vmatprep.subr.mxu0 0.0
        %8401 = vmatpush1.msra.mxu0 0.0
        %8402 = vmatprep.subr.mxu0 0.0
        %8403 = vmatpush1.msra.mxu0 0.0
        %8404 = vmatprep.subr.mxu0 0.0
        %8405 = vmatpush1.msra.mxu0 0.0
        %8406 = vmatprep.subr.mxu0 0.0
        %8407 = vmatpush1.msra.mxu0 0.0
        %8408 = vmatprep.subr.mxu0 0.0
        %8409 = vmatpush1.msra.mxu0 0.0
        %8410 = vmatprep.subr.mxu0 0.0
        %8411 = vmatpush1.msra.mxu0 0.0
        %8412 = vmatprep.subr.mxu0 0.0
        %8413 = vmatpush1.msra.mxu0 0.0
        %8414 = vmatprep.subr.mxu0 0.0
        %8415 = vmatpush1.msra.mxu0 0.0
        %8416 = vmatprep.subr.mxu0 0.0
        %8417 = vmatpush1.msra.mxu0 0.0
        %8418 = vmatprep.subr.mxu0 0.0
        %8419 = vmatpush1.msra.mxu0 0.0
        %8420 = vmatprep.subr.mxu0 0.0
        %8421 = vmatpush1.msra.mxu0 0.0
        %8422 = vmatprep.subr.mxu0 0.0
        %8423 = vmatpush1.msra.mxu0 0.0
        %8424 = vmatprep.subr.mxu0 0.0
        %8425 = vmatpush1.msra.mxu0 0.0
        %8426 = vmatprep.subr.mxu0 0.0
        %8427 = vmatpush1.msra.mxu0 0.0
        %8428 = vmatprep.subr.mxu0 0.0
        %8429 = vmatpush1.msra.mxu0 0.0
        %8430 = vmatprep.subr.mxu0 0.0
        %8431 = vmatpush1.msra.mxu0 0.0
        %8432 = vmatprep.mubr.f32.mxu0 0.0
        %8433 = vmatmul.mubr.f32.gmra.mrb[0].mxu0 %v8104
        %v8434 = vpop.f32.mrb[0].mxu0
        %v8435 = vadd.f32 %v8129, %v8434
        %v8436 = vpop.f32.mrb[0].mxu0
        %v8437 = vadd.f32 %v8133, %v8436
        %8438 = vmatprep.mubr.f32.mxu0 0.0
        %8439 = vmatmul.mubr.f32.gmra.mrb[0].mxu0 %v8105
        %v8440 = vpop.f32.mrb[0].mxu0
        %v8441 = vadd.f32 %v8129, %v8440
        %v8442 = vpop.f32.mrb[0].mxu0
        %v8443 = vadd.f32 %v8133, %v8442
        %8444 = vmatprep.mubr.f32.mxu0 0.0
        %8445 = vmatmul.mubr.f32.gmra.mrb[0].mxu0 %v8106
        %v8446 = vpop.f32.mrb[0].mxu0
        %v8447 = vadd.f32 %v8129, %v8446
        %v8448 = vpop.f32.mrb[0].mxu0
        %v8449 = vadd.f32 %v8133, %v8448
        %8450 = vmatprep.mubr.f32.mxu0 0.0
        %8451 = vmatmul.mubr.f32.gmra.mrb[0].mxu0 %v8107
        %v8452 = vpop.f32.mrb[0].mxu0
        %v8453 = vadd.f32 %v8129, %v8452
        %v8454 = vpop.f32.mrb[0].mxu0
        %v8455 = vadd.f32 %v8133, %v8454
        %8456 = vdwg.mxu0
        %8457 = vmatprep.subr.mxu0 %v5849
        %8458 = vmatpush1.msra.mxu0 %v5848
        %8459 = vmatprep.subr.mxu0 %v5865
        %8460 = vmatpush1.msra.mxu0 %v5864
        %8461 = vmatprep.subr.mxu0 %v5881
        %8462 = vmatpush1.msra.mxu0 %v5880
        %8463 = vmatprep.subr.mxu0 %v5897
        %8464 = vmatpush1.msra.mxu0 %v5896
        %8465 = vmatprep.subr.mxu0 %v5913
        %8466 = vmatpush1.msra.mxu0 %v5912
        %8467 = vmatprep.subr.mxu0 %v5929
        %8468 = vmatpush1.msra.mxu0 %v5928
        %8469 = vmatprep.subr.mxu0 %v5945
        %8470 = vmatpush1.msra.mxu0 %v5944
        %8471 = vmatprep.subr.mxu0 %v5961
        %8472 = vmatpush1.msra.mxu0 %v5960
        %8473 = vmatprep.subr.mxu0 %v5977
        %8474 = vmatpush1.msra.mxu0 %v5976
        %8475 = vmatprep.subr.mxu0 %v5993
        %8476 = vmatpush1.msra.mxu0 %v5992
        %8477 = vmatprep.subr.mxu0 %v6009
        %8478 = vmatpush1.msra.mxu0 %v6008
        %8479 = vmatprep.subr.mxu0 %v6025
        %8480 = vmatpush1.msra.mxu0 %v6024
        %8481 = vmatprep.subr.mxu0 %v6041
        %8482 = vmatpush1.msra.mxu0 %v6040
        %8483 = vmatprep.subr.mxu0 %v6057
        %8484 = vmatpush1.msra.mxu0 %v6056
        %8485 = vmatprep.subr.mxu0 %v6073
        %8486 = vmatpush1.msra.mxu0 %v6072
        %8487 = vmatprep.subr.mxu0 %v6089
        %8488 = vmatpush1.msra.mxu0 %v6088
        %8489 = vmatprep.subr.mxu0 0.0
        %8490 = vmatpush1.msra.mxu0 0.0
        %8491 = vmatprep.subr.mxu0 0.0
        %8492 = vmatpush1.msra.mxu0 0.0
        %8493 = vmatprep.subr.mxu0 0.0
        %8494 = vmatpush1.msra.mxu0 0.0
        %8495 = vmatprep.subr.mxu0 0.0
        %8496 = vmatpush1.msra.mxu0 0.0
        %8497 = vmatprep.subr.mxu0 0.0
        %8498 = vmatpush1.msra.mxu0 0.0
        %8499 = vmatprep.subr.mxu0 0.0
        %8500 = vmatpush1.msra.mxu0 0.0
        %8501 = vmatprep.subr.mxu0 0.0
        %8502 = vmatpush1.msra.mxu0 0.0
        %8503 = vmatprep.subr.mxu0 0.0
        %8504 = vmatpush1.msra.mxu0 0.0
        %8505 = vmatprep.subr.mxu0 0.0
        %8506 = vmatpush1.msra.mxu0 0.0
        %8507 = vmatprep.subr.mxu0 0.0
        %8508 = vmatpush1.msra.mxu0 0.0
        %8509 = vmatprep.subr.mxu0 0.0
        %8510 = vmatpush1.msra.mxu0 0.0
        %8511 = vmatprep.subr.mxu0 0.0
        %8512 = vmatpush1.msra.mxu0 0.0
        %8513 = vmatprep.subr.mxu0 0.0
        %8514 = vmatpush1.msra.mxu0 0.0
        %8515 = vmatprep.subr.mxu0 0.0
        %8516 = vmatpush1.msra.mxu0 0.0
        %8517 = vmatprep.subr.mxu0 0.0
        %8518 = vmatpush1.msra.mxu0 0.0
        %8519 = vmatprep.subr.mxu0 0.0
        %8520 = vmatpush1.msra.mxu0 0.0
        %8521 = vmatprep.mubr.f32.mxu0 0.0
        %8522 = vmatmul.mubr.f32.gmra.mrb[0].mxu0 %v8104
        %v8523 = vpop.f32.mrb[0].mxu0
        %v8524 = vadd.f32 %v8137, %v8523
        %v8525 = vpop.f32.mrb[0].mxu0
        %v8526 = vadd.f32 %v8141, %v8525
        %8527 = vmatprep.mubr.f32.mxu0 0.0
        %8528 = vmatmul.mubr.f32.gmra.mrb[0].mxu0 %v8105
        %v8529 = vpop.f32.mrb[0].mxu0
        %v8530 = vadd.f32 %v8137, %v8529
        %v8531 = vpop.f32.mrb[0].mxu0
        %v8532 = vadd.f32 %v8141, %v8531
        %8533 = vmatprep.mubr.f32.mxu0 0.0
        %8534 = vmatmul.mubr.f32.gmra.mrb[0].mxu0 %v8106
        %v8535 = vpop.f32.mrb[0].mxu0
        %v8536 = vadd.f32 %v8137, %v8535
        %v8537 = vpop.f32.mrb[0].mxu0
        %v8538 = vadd.f32 %v8141, %v8537
        %8539 = vmatprep.mubr.f32.mxu0 0.0
        %8540 = vmatmul.mubr.f32.gmra.mrb[0].mxu0 %v8107
        %v8541 = vpop.f32.mrb[0].mxu0
        %v8542 = vadd.f32 %v8137, %v8541
        %v8543 = vpop.f32.mrb[0].mxu0
        %v8544 = vadd.f32 %v8141, %v8543
        %8545 = vdwg.mxu0
        %8546 = vmatprep.subr.mxu0 %v5851
        %8547 = vmatpush1.msra.mxu0 %v5850
        %8548 = vmatprep.subr.mxu0 %v5867
        %8549 = vmatpush1.msra.mxu0 %v5866
        %8550 = vmatprep.subr.mxu0 %v5883
        %8551 = vmatpush1.msra.mxu0 %v5882
        %8552 = vmatprep.subr.mxu0 %v5899
        %8553 = vmatpush1.msra.mxu0 %v5898
        %8554 = vmatprep.subr.mxu0 %v5915
        %8555 = vmatpush1.msra.mxu0 %v5914
        %8556 = vmatprep.subr.mxu0 %v5931
        %8557 = vmatpush1.msra.mxu0 %v5930
        %8558 = vmatprep.subr.mxu0 %v5947
        %8559 = vmatpush1.msra.mxu0 %v5946
        %8560 = vmatprep.subr.mxu0 %v5963
        %8561 = vmatpush1.msra.mxu0 %v5962
        %8562 = vmatprep.subr.mxu0 %v5979
        %8563 = vmatpush1.msra.mxu0 %v5978
        %8564 = vmatprep.subr.mxu0 %v5995
        %8565 = vmatpush1.msra.mxu0 %v5994
        %8566 = vmatprep.subr.mxu0 %v6011
        %8567 = vmatpush1.msra.mxu0 %v6010
        %8568 = vmatprep.subr.mxu0 %v6027
        %8569 = vmatpush1.msra.mxu0 %v6026
        %8570 = vmatprep.subr.mxu0 %v6043
        %8571 = vmatpush1.msra.mxu0 %v6042
        %8572 = vmatprep.subr.mxu0 %v6059
        %8573 = vmatpush1.msra.mxu0 %v6058
        %8574 = vmatprep.subr.mxu0 %v6075
        %8575 = vmatpush1.msra.mxu0 %v6074
        %8576 = vmatprep.subr.mxu0 %v6091
        %8577 = vmatpush1.msra.mxu0 %v6090
        %8578 = vmatprep.subr.mxu0 0.0
        %8579 = vmatpush1.msra.mxu0 0.0
        %8580 = vmatprep.subr.mxu0 0.0
        %8581 = vmatpush1.msra.mxu0 0.0
        %8582 = vmatprep.subr.mxu0 0.0
        %8583 = vmatpush1.msra.mxu0 0.0
        %8584 = vmatprep.subr.mxu0 0.0
        %8585 = vmatpush1.msra.mxu0 0.0
        %8586 = vmatprep.subr.mxu0 0.0
        %8587 = vmatpush1.msra.mxu0 0.0
        %8588 = vmatprep.subr.mxu0 0.0
        %8589 = vmatpush1.msra.mxu0 0.0
        %8590 = vmatprep.subr.mxu0 0.0
        %8591 = vmatpush1.msra.mxu0 0.0
        %8592 = vmatprep.subr.mxu0 0.0
        %8593 = vmatpush1.msra.mxu0 0.0
        %8594 = vmatprep.subr.mxu0 0.0
        %8595 = vmatpush1.msra.mxu0 0.0
        %8596 = vmatprep.subr.mxu0 0.0
        %8597 = vmatpush1.msra.mxu0 0.0
        %8598 = vmatprep.subr.mxu0 0.0
        %8599 = vmatpush1.msra.mxu0 0.0
        %8600 = vmatprep.subr.mxu0 0.0
        %8601 = vmatpush1.msra.mxu0 0.0
        %8602 = vmatprep.subr.mxu0 0.0
        %8603 = vmatpush1.msra.mxu0 0.0
        %8604 = vmatprep.subr.mxu0 0.0
        %8605 = vmatpush1.msra.mxu0 0.0
        %8606 = vmatprep.subr.mxu0 0.0
        %8607 = vmatpush1.msra.mxu0 0.0
        %8608 = vmatprep.subr.mxu0 0.0
        %8609 = vmatpush1.msra.mxu0 0.0
        %8610 = vmatprep.mubr.f32.mxu0 0.0
        %8611 = vmatmul.mubr.f32.gmra.mrb[0].mxu0 %v8104
        %v8612 = vpop.f32.mrb[0].mxu0
        %v8613 = vadd.f32 %v8145, %v8612
        %v8614 = vpop.f32.mrb[0].mxu0
        %v8615 = vadd.f32 %v8149, %v8614
        %8616 = vmatprep.mubr.f32.mxu0 0.0
        %8617 = vmatmul.mubr.f32.gmra.mrb[0].mxu0 %v8105
        %v8618 = vpop.f32.mrb[0].mxu0
        %v8619 = vadd.f32 %v8145, %v8618
        %v8620 = vpop.f32.mrb[0].mxu0
        %v8621 = vadd.f32 %v8149, %v8620
        %8622 = vmatprep.mubr.f32.mxu0 0.0
        %8623 = vmatmul.mubr.f32.gmra.mrb[0].mxu0 %v8106
        %v8624 = vpop.f32.mrb[0].mxu0
        %v8625 = vadd.f32 %v8145, %v8624
        %v8626 = vpop.f32.mrb[0].mxu0
        %v8627 = vadd.f32 %v8149, %v8626
        %8628 = vmatprep.mubr.f32.mxu0 0.0
        %8629 = vmatmul.mubr.f32.gmra.mrb[0].mxu0 %v8107
        %v8630 = vpop.f32.mrb[0].mxu0
        %v8631 = vadd.f32 %v8145, %v8630
        %v8632 = vpop.f32.mrb[0].mxu0
        %v8633 = vadd.f32 %v8149, %v8632
        %8634 = vdwg.mxu0
        %8635 = vmatprep.subr.mxu0 %v5853
        %8636 = vmatpush1.msra.mxu0 %v5852
        %8637 = vmatprep.subr.mxu0 %v5869
        %8638 = vmatpush1.msra.mxu0 %v5868
        %8639 = vmatprep.subr.mxu0 %v5885
        %8640 = vmatpush1.msra.mxu0 %v5884
        %8641 = vmatprep.subr.mxu0 %v5901
        %8642 = vmatpush1.msra.mxu0 %v5900
        %8643 = vmatprep.subr.mxu0 %v5917
        %8644 = vmatpush1.msra.mxu0 %v5916
        %8645 = vmatprep.subr.mxu0 %v5933
        %8646 = vmatpush1.msra.mxu0 %v5932
        %8647 = vmatprep.subr.mxu0 %v5949
        %8648 = vmatpush1.msra.mxu0 %v5948
        %8649 = vmatprep.subr.mxu0 %v5965
        %8650 = vmatpush1.msra.mxu0 %v5964
        %8651 = vmatprep.subr.mxu0 %v5981
        %8652 = vmatpush1.msra.mxu0 %v5980
        %8653 = vmatprep.subr.mxu0 %v5997
        %8654 = vmatpush1.msra.mxu0 %v5996
        %8655 = vmatprep.subr.mxu0 %v6013
        %8656 = vmatpush1.msra.mxu0 %v6012
        %8657 = vmatprep.subr.mxu0 %v6029
        %8658 = vmatpush1.msra.mxu0 %v6028
        %8659 = vmatprep.subr.mxu0 %v6045
        %8660 = vmatpush1.msra.mxu0 %v6044
        %8661 = vmatprep.subr.mxu0 %v6061
        %8662 = vmatpush1.msra.mxu0 %v6060
        %8663 = vmatprep.subr.mxu0 %v6077
        %8664 = vmatpush1.msra.mxu0 %v6076
        %8665 = vmatprep.subr.mxu0 %v6093
        %8666 = vmatpush1.msra.mxu0 %v6092
        %8667 = vmatprep.subr.mxu0 0.0
        %8668 = vmatpush1.msra.mxu0 0.0
        %8669 = vmatprep.subr.mxu0 0.0
        %8670 = vmatpush1.msra.mxu0 0.0
        %8671 = vmatprep.subr.mxu0 0.0
        %8672 = vmatpush1.msra.mxu0 0.0
        %8673 = vmatprep.subr.mxu0 0.0
        %8674 = vmatpush1.msra.mxu0 0.0
        %8675 = vmatprep.subr.mxu0 0.0
        %8676 = vmatpush1.msra.mxu0 0.0
        %8677 = vmatprep.subr.mxu0 0.0
        %8678 = vmatpush1.msra.mxu0 0.0
        %8679 = vmatprep.subr.mxu0 0.0
        %8680 = vmatpush1.msra.mxu0 0.0
        %8681 = vmatprep.subr.mxu0 0.0
        %8682 = vmatpush1.msra.mxu0 0.0
        %8683 = vmatprep.subr.mxu0 0.0
        %8684 = vmatpush1.msra.mxu0 0.0
        %8685 = vmatprep.subr.mxu0 0.0
        %8686 = vmatpush1.msra.mxu0 0.0
        %8687 = vmatprep.subr.mxu0 0.0
        %8688 = vmatpush1.msra.mxu0 0.0
        %8689 = vmatprep.subr.mxu0 0.0
        %8690 = vmatpush1.msra.mxu0 0.0
        %8691 = vmatprep.subr.mxu0 0.0
        %8692 = vmatpush1.msra.mxu0 0.0
        %8693 = vmatprep.subr.mxu0 0.0
        %8694 = vmatpush1.msra.mxu0 0.0
        %8695 = vmatprep.subr.mxu0 0.0
        %8696 = vmatpush1.msra.mxu0 0.0
        %8697 = vmatprep.subr.mxu0 0.0
        %8698 = vmatpush1.msra.mxu0 0.0
        %8699 = vmatprep.mubr.f32.mxu0 0.0
        %8700 = vmatmul.mubr.f32.gmra.mrb[0].mxu0 %v8104
        %v8701 = vpop.f32.mrb[0].mxu0
        %v8702 = vadd.f32 %v8153, %v8701
        %v8703 = vpop.f32.mrb[0].mxu0
        %v8704 = vadd.f32 %v8157, %v8703
        %8705 = vmatprep.mubr.f32.mxu0 0.0
        %8706 = vmatmul.mubr.f32.gmra.mrb[0].mxu0 %v8105
        %v8707 = vpop.f32.mrb[0].mxu0
        %v8708 = vadd.f32 %v8153, %v8707
        %v8709 = vpop.f32.mrb[0].mxu0
        %v8710 = vadd.f32 %v8157, %v8709
        %8711 = vmatprep.mubr.f32.mxu0 0.0
        %8712 = vmatmul.mubr.f32.gmra.mrb[0].mxu0 %v8106
        %v8713 = vpop.f32.mrb[0].mxu0
        %v8714 = vadd.f32 %v8153, %v8713
        %v8715 = vpop.f32.mrb[0].mxu0
        %v8716 = vadd.f32 %v8157, %v8715
        %8717 = vmatprep.mubr.f32.mxu0 0.0
        %8718 = vmatmul.mubr.f32.gmra.mrb[0].mxu0 %v8107
        %v8719 = vpop.f32.mrb[0].mxu0
        %v8720 = vadd.f32 %v8153, %v8719
        %v8721 = vpop.f32.mrb[0].mxu0
        %v8722 = vadd.f32 %v8157, %v8721
        %8723 = vdwg.mxu0
        %8724 = vmatprep.subr.mxu0 %v5855
        %8725 = vmatpush1.msra.mxu0 %v5854
        %8726 = vmatprep.subr.mxu0 %v5871
        %8727 = vmatpush1.msra.mxu0 %v5870
        %8728 = vmatprep.subr.mxu0 %v5887
        %8729 = vmatpush1.msra.mxu0 %v5886
        %8730 = vmatprep.subr.mxu0 %v5903
        %8731 = vmatpush1.msra.mxu0 %v5902
        %8732 = vmatprep.subr.mxu0 %v5919
        %8733 = vmatpush1.msra.mxu0 %v5918
        %8734 = vmatprep.subr.mxu0 %v5935
        %8735 = vmatpush1.msra.mxu0 %v5934
        %8736 = vmatprep.subr.mxu0 %v5951
        %8737 = vmatpush1.msra.mxu0 %v5950
        %8738 = vmatprep.subr.mxu0 %v5967
        %8739 = vmatpush1.msra.mxu0 %v5966
        %8740 = vmatprep.subr.mxu0 %v5983
        %8741 = vmatpush1.msra.mxu0 %v5982
        %8742 = vmatprep.subr.mxu0 %v5999
        %8743 = vmatpush1.msra.mxu0 %v5998
        %8744 = vmatprep.subr.mxu0 %v6015
        %8745 = vmatpush1.msra.mxu0 %v6014
        %8746 = vmatprep.subr.mxu0 %v6031
        %8747 = vmatpush1.msra.mxu0 %v6030
        %8748 = vmatprep.subr.mxu0 %v6047
        %8749 = vmatpush1.msra.mxu0 %v6046
        %8750 = vmatprep.subr.mxu0 %v6063
        %8751 = vmatpush1.msra.mxu0 %v6062
        %8752 = vmatprep.subr.mxu0 %v6079
        %8753 = vmatpush1.msra.mxu0 %v6078
        %8754 = vmatprep.subr.mxu0 %v6095
        %8755 = vmatpush1.msra.mxu0 %v6094
        %8756 = vmatprep.subr.mxu0 0.0
        %8757 = vmatpush1.msra.mxu0 0.0
        %8758 = vmatprep.subr.mxu0 0.0
        %8759 = vmatpush1.msra.mxu0 0.0
        %8760 = vmatprep.subr.mxu0 0.0
        %8761 = vmatpush1.msra.mxu0 0.0
        %8762 = vmatprep.subr.mxu0 0.0
        %8763 = vmatpush1.msra.mxu0 0.0
        %8764 = vmatprep.subr.mxu0 0.0
        %8765 = vmatpush1.msra.mxu0 0.0
        %8766 = vmatprep.subr.mxu0 0.0
        %8767 = vmatpush1.msra.mxu0 0.0
        %8768 = vmatprep.subr.mxu0 0.0
        %8769 = vmatpush1.msra.mxu0 0.0
        %8770 = vmatprep.subr.mxu0 0.0
        %8771 = vmatpush1.msra.mxu0 0.0
        %8772 = vmatprep.subr.mxu0 0.0
        %8773 = vmatpush1.msra.mxu0 0.0
        %8774 = vmatprep.subr.mxu0 0.0
        %8775 = vmatpush1.msra.mxu0 0.0
        %8776 = vmatprep.subr.mxu0 0.0
        %8777 = vmatpush1.msra.mxu0 0.0
        %8778 = vmatprep.subr.mxu0 0.0
        %8779 = vmatpush1.msra.mxu0 0.0
        %8780 = vmatprep.subr.mxu0 0.0
        %8781 = vmatpush1.msra.mxu0 0.0
        %8782 = vmatprep.subr.mxu0 0.0
        %8783 = vmatpush1.msra.mxu0 0.0
        %8784 = vmatprep.subr.mxu0 0.0
        %8785 = vmatpush1.msra.mxu0 0.0
        %8786 = vmatprep.subr.mxu0 0.0
        %8787 = vmatpush1.msra.mxu0 0.0
        %8788 = vmatprep.mubr.f32.mxu0 0.0
        %8789 = vmatmul.mubr.f32.gmra.mrb[0].mxu0 %v8104
        %v8790 = vpop.f32.mrb[0].mxu0
        %v8791 = vadd.f32 %v8161, %v8790
        %v8792 = vpop.f32.mrb[0].mxu0
        %v8793 = vadd.f32 %v8165, %v8792
        %8794 = vmatprep.mubr.f32.mxu0 0.0
        %8795 = vmatmul.mubr.f32.gmra.mrb[0].mxu0 %v8105
        %v8796 = vpop.f32.mrb[0].mxu0
        %v8797 = vadd.f32 %v8161, %v8796
        %v8798 = vpop.f32.mrb[0].mxu0
        %v8799 = vadd.f32 %v8165, %v8798
        %8800 = vmatprep.mubr.f32.mxu0 0.0
        %8801 = vmatmul.mubr.f32.gmra.mrb[0].mxu0 %v8106
        %v8802 = vpop.f32.mrb[0].mxu0
        %v8803 = vadd.f32 %v8161, %v8802
        %v8804 = vpop.f32.mrb[0].mxu0
        %v8805 = vadd.f32 %v8165, %v8804
        %8806 = vmatprep.mubr.f32.mxu0 0.0
        %8807 = vmatmul.mubr.f32.gmra.mrb[0].mxu0 %v8107
        %v8808 = vpop.f32.mrb[0].mxu0
        %v8809 = vadd.f32 %v8161, %v8808
        %v8810 = vpop.f32.mrb[0].mxu0
        %v8811 = vadd.f32 %v8165, %v8810
        %8812 = vdwg.mxu0
        %8813 = vmatprep.subr.mxu0 %v5857
        %8814 = vmatpush1.msra.mxu0 %v5856
        %8815 = vmatprep.subr.mxu0 %v5873
        %8816 = vmatpush1.msra.mxu0 %v5872
        %8817 = vmatprep.subr.mxu0 %v5889
        %8818 = vmatpush1.msra.mxu0 %v5888
        %8819 = vmatprep.subr.mxu0 %v5905
        %8820 = vmatpush1.msra.mxu0 %v5904
        %8821 = vmatprep.subr.mxu0 %v5921
        %8822 = vmatpush1.msra.mxu0 %v5920
        %8823 = vmatprep.subr.mxu0 %v5937
        %8824 = vmatpush1.msra.mxu0 %v5936
        %8825 = vmatprep.subr.mxu0 %v5953
        %8826 = vmatpush1.msra.mxu0 %v5952
        %8827 = vmatprep.subr.mxu0 %v5969
        %8828 = vmatpush1.msra.mxu0 %v5968
        %8829 = vmatprep.subr.mxu0 %v5985
        %8830 = vmatpush1.msra.mxu0 %v5984
        %8831 = vmatprep.subr.mxu0 %v6001
        %8832 = vmatpush1.msra.mxu0 %v6000
        %8833 = vmatprep.subr.mxu0 %v6017
        %8834 = vmatpush1.msra.mxu0 %v6016
        %8835 = vmatprep.subr.mxu0 %v6033
        %8836 = vmatpush1.msra.mxu0 %v6032
        %8837 = vmatprep.subr.mxu0 %v6049
        %8838 = vmatpush1.msra.mxu0 %v6048
        %8839 = vmatprep.subr.mxu0 %v6065
        %8840 = vmatpush1.msra.mxu0 %v6064
        %8841 = vmatprep.subr.mxu0 %v6081
        %8842 = vmatpush1.msra.mxu0 %v6080
        %8843 = vmatprep.subr.mxu0 %v6097
        %8844 = vmatpush1.msra.mxu0 %v6096
        %8845 = vmatprep.subr.mxu0 0.0
        %8846 = vmatpush1.msra.mxu0 0.0
        %8847 = vmatprep.subr.mxu0 0.0
        %8848 = vmatpush1.msra.mxu0 0.0
        %8849 = vmatprep.subr.mxu0 0.0
        %8850 = vmatpush1.msra.mxu0 0.0
        %8851 = vmatprep.subr.mxu0 0.0
        %8852 = vmatpush1.msra.mxu0 0.0
        %8853 = vmatprep.subr.mxu0 0.0
        %8854 = vmatpush1.msra.mxu0 0.0
        %8855 = vmatprep.subr.mxu0 0.0
        %8856 = vmatpush1.msra.mxu0 0.0
        %8857 = vmatprep.subr.mxu0 0.0
        %8858 = vmatpush1.msra.mxu0 0.0
        %8859 = vmatprep.subr.mxu0 0.0
        %8860 = vmatpush1.msra.mxu0 0.0
        %8861 = vmatprep.subr.mxu0 0.0
        %8862 = vmatpush1.msra.mxu0 0.0
        %8863 = vmatprep.subr.mxu0 0.0
        %8864 = vmatpush1.msra.mxu0 0.0
        %8865 = vmatprep.subr.mxu0 0.0
        %8866 = vmatpush1.msra.mxu0 0.0
        %8867 = vmatprep.subr.mxu0 0.0
        %8868 = vmatpush1.msra.mxu0 0.0
        %8869 = vmatprep.subr.mxu0 0.0
        %8870 = vmatpush1.msra.mxu0 0.0
        %8871 = vmatprep.subr.mxu0 0.0
        %8872 = vmatpush1.msra.mxu0 0.0
        %8873 = vmatprep.subr.mxu0 0.0
        %8874 = vmatpush1.msra.mxu0 0.0
        %8875 = vmatprep.subr.mxu0 0.0
        %8876 = vmatpush1.msra.mxu0 0.0
        %8877 = vmatprep.mubr.f32.mxu0 0.0
        %8878 = vmatmul.mubr.f32.gmra.mrb[0].mxu0 %v8104
        %v8879 = vpop.f32.mrb[0].mxu0
        %v8880 = vadd.f32 %v8169, %v8879
        %v8881 = vpop.f32.mrb[0].mxu0
        %v8882 = vadd.f32 %v8173, %v8881
        %8883 = vmatprep.mubr.f32.mxu0 0.0
        %8884 = vmatmul.mubr.f32.gmra.mrb[0].mxu0 %v8105
        %v8885 = vpop.f32.mrb[0].mxu0
        %v8886 = vadd.f32 %v8169, %v8885
        %v8887 = vpop.f32.mrb[0].mxu0
        %v8888 = vadd.f32 %v8173, %v8887
        %8889 = vmatprep.mubr.f32.mxu0 0.0
        %8890 = vmatmul.mubr.f32.gmra.mrb[0].mxu0 %v8106
        %v8891 = vpop.f32.mrb[0].mxu0
        %v8892 = vadd.f32 %v8169, %v8891
        %v8893 = vpop.f32.mrb[0].mxu0
        %v8894 = vadd.f32 %v8173, %v8893
        %8895 = vmatprep.mubr.f32.mxu0 0.0
        %8896 = vmatmul.mubr.f32.gmra.mrb[0].mxu0 %v8107
        %v8897 = vpop.f32.mrb[0].mxu0
        %v8898 = vadd.f32 %v8169, %v8897
        %v8899 = vpop.f32.mrb[0].mxu0
        %v8900 = vadd.f32 %v8173, %v8899
        %8901 = vdwg.mxu0
        %v8902 = vmax.f32 %v8257, 0.0
        %v8903 = vmax.f32 %v8259, 0.0
        %v8904 = vmax.f32 %v8346, 0.0
        %v8905 = vmax.f32 %v8348, 0.0
        %v8906 = vmax.f32 %v8435, 0.0
        %v8907 = vmax.f32 %v8437, 0.0
        %v8908 = vmax.f32 %v8524, 0.0
        %v8909 = vmax.f32 %v8526, 0.0
        %v8910 = vmax.f32 %v8613, 0.0
        %v8911 = vmax.f32 %v8615, 0.0
        %v8912 = vmax.f32 %v8702, 0.0
        %v8913 = vmax.f32 %v8704, 0.0
        %v8914 = vmax.f32 %v8791, 0.0
        %v8915 = vmax.f32 %v8793, 0.0
        %v8916 = vmax.f32 %v8880, 0.0
        %v8917 = vmax.f32 %v8882, 0.0
        %v8918 = vmax.f32 %v8263, 0.0
        %v8919 = vmax.f32 %v8265, 0.0
        %v8920 = vmax.f32 %v8352, 0.0
        %v8921 = vmax.f32 %v8354, 0.0
        %v8922 = vmax.f32 %v8441, 0.0
        %v8923 = vmax.f32 %v8443, 0.0
        %v8924 = vmax.f32 %v8530, 0.0
        %v8925 = vmax.f32 %v8532, 0.0
        %v8926 = vmax.f32 %v8619, 0.0
        %v8927 = vmax.f32 %v8621, 0.0
        %v8928 = vmax.f32 %v8708, 0.0
        %v8929 = vmax.f32 %v8710, 0.0
        %v8930 = vmax.f32 %v8797, 0.0
        %v8931 = vmax.f32 %v8799, 0.0
        %v8932 = vmax.f32 %v8886, 0.0
        %v8933 = vmax.f32 %v8888, 0.0
        %v8934 = vmax.f32 %v8269, 0.0
        %v8935 = vmax.f32 %v8271, 0.0
        %v8936 = vmax.f32 %v8358, 0.0
        %v8937 = vmax.f32 %v8360, 0.0
        %v8938 = vmax.f32 %v8447, 0.0
        %v8939 = vmax.f32 %v8449, 0.0
        %v8940 = vmax.f32 %v8536, 0.0
        %v8941 = vmax.f32 %v8538, 0.0
        %v8942 = vmax.f32 %v8625, 0.0
        %v8943 = vmax.f32 %v8627, 0.0
        %v8944 = vmax.f32 %v8714, 0.0
        %v8945 = vmax.f32 %v8716, 0.0
        %v8946 = vmax.f32 %v8803, 0.0
        %v8947 = vmax.f32 %v8805, 0.0
        %v8948 = vmax.f32 %v8892, 0.0
        %v8949 = vmax.f32 %v8894, 0.0
        %v8950 = vmax.f32 %v8275, 0.0
        %v8951 = vmax.f32 %v8277, 0.0
        %v8952 = vmax.f32 %v8364, 0.0
        %v8953 = vmax.f32 %v8366, 0.0
        %v8954 = vmax.f32 %v8453, 0.0
        %v8955 = vmax.f32 %v8455, 0.0
        %v8956 = vmax.f32 %v8542, 0.0
        %v8957 = vmax.f32 %v8544, 0.0
        %v8958 = vmax.f32 %v8631, 0.0
        %v8959 = vmax.f32 %v8633, 0.0
        %v8960 = vmax.f32 %v8720, 0.0
        %v8961 = vmax.f32 %v8722, 0.0
        %v8962 = vmax.f32 %v8809, 0.0
        %v8963 = vmax.f32 %v8811, 0.0
        %v8964 = vmax.f32 %v8898, 0.0
        %v8965 = vmax.f32 %v8900, 0.0
        %v8967 = vlaneseq
        %v8968 = vshrl.u32 %v8967, 7
        %v8969 = vsub.s32 0, %v8968
        %v8970 = vrot.slane %v6612, %v8969
        %8972 = vmatprep.subr.mxu0 0.0
        %8973 = vmatpush1.msra.mxu0 %v6356
        %8974 = vmatprep.subr.mxu0 0.0
        %8975 = vmatpush1.msra.mxu0 %v6357
        %8976 = vmatprep.subr.mxu0 0.0
        %8977 = vmatpush1.msra.mxu0 %v6358
        %8978 = vmatprep.subr.mxu0 0.0
        %8979 = vmatpush1.msra.mxu0 %v6359
        %8980 = vmatprep.subr.mxu0 0.0
        %8981 = vmatpush1.msra.mxu0 %v6360
        %8982 = vmatprep.subr.mxu0 0.0
        %8983 = vmatpush1.msra.mxu0 %v6361
        %8984 = vmatprep.subr.mxu0 0.0
        %8985 = vmatpush1.msra.mxu0 %v6362
        %8986 = vmatprep.subr.mxu0 0.0
        %8987 = vmatpush1.msra.mxu0 %v6363
        %8988 = vmatprep.subr.mxu0 0.0
        %8989 = vmatpush1.msra.mxu0 %v6364
        %8990 = vmatprep.subr.mxu0 0.0
        %8991 = vmatpush1.msra.mxu0 %v6365
        %8992 = vmatprep.subr.mxu0 0.0
        %8993 = vmatpush1.msra.mxu0 %v6366
        %8994 = vmatprep.subr.mxu0 0.0
        %8995 = vmatpush1.msra.mxu0 %v6367
        %8996 = vmatprep.subr.mxu0 0.0
        %8997 = vmatpush1.msra.mxu0 %v6368
        %8998 = vmatprep.subr.mxu0 0.0
        %8999 = vmatpush1.msra.mxu0 %v6369
        %9000 = vmatprep.subr.mxu0 0.0
        %9001 = vmatpush1.msra.mxu0 %v6370
        %9002 = vmatprep.subr.mxu0 0.0
        %9003 = vmatpush1.msra.mxu0 %v6371
        %9004 = vmatprep.subr.mxu0 0.0
        %9005 = vmatpush1.msra.mxu0 %v6372
        %9006 = vmatprep.subr.mxu0 0.0
        %9007 = vmatpush1.msra.mxu0 %v6373
        %9008 = vmatprep.subr.mxu0 0.0
        %9009 = vmatpush1.msra.mxu0 %v6374
        %9010 = vmatprep.subr.mxu0 0.0
        %9011 = vmatpush1.msra.mxu0 %v6375
        %9012 = vmatprep.subr.mxu0 0.0
        %9013 = vmatpush1.msra.mxu0 %v6376
        %9014 = vmatprep.subr.mxu0 0.0
        %9015 = vmatpush1.msra.mxu0 %v6377
        %9016 = vmatprep.subr.mxu0 0.0
        %9017 = vmatpush1.msra.mxu0 %v6378
        %9018 = vmatprep.subr.mxu0 0.0
        %9019 = vmatpush1.msra.mxu0 %v6379
        %9020 = vmatprep.subr.mxu0 0.0
        %9021 = vmatpush1.msra.mxu0 %v6380
        %9022 = vmatprep.subr.mxu0 0.0
        %9023 = vmatpush1.msra.mxu0 %v6381
        %9024 = vmatprep.subr.mxu0 0.0
        %9025 = vmatpush1.msra.mxu0 %v6382
        %9026 = vmatprep.subr.mxu0 0.0
        %9027 = vmatpush1.msra.mxu0 %v6383
        %9028 = vmatprep.subr.mxu0 0.0
        %9029 = vmatpush1.msra.mxu0 %v6384
        %9030 = vmatprep.subr.mxu0 0.0
        %9031 = vmatpush1.msra.mxu0 %v6385
        %9032 = vmatprep.subr.mxu0 0.0
        %9033 = vmatpush1.msra.mxu0 %v6386
        %9034 = vmatprep.subr.mxu0 0.0
        %9035 = vmatpush1.msra.mxu0 %v6387
        %9036 = vmatprep.mubr.f32.mxu0 %v8903
        %9037 = vmatmul.mubr.f32.gmra.mrb[0].mxu0 %v8902
        %v9038 = vpop.f32.mrb[0].mxu0
        %v9039 = vadd.f32 %v8970, %v9038
        %v9040 = vpop.f32.mrb[0].mxu0
        %9041 = vmatprep.mubr.f32.mxu0 %v8919
        %9042 = vmatmul.mubr.f32.gmra.mrb[0].mxu0 %v8918
        %v9043 = vpop.f32.mrb[0].mxu0
        %v9044 = vadd.f32 %v8970, %v9043
        %v9045 = vpop.f32.mrb[0].mxu0
        %9046 = vmatprep.mubr.f32.mxu0 %v8935
        %9047 = vmatmul.mubr.f32.gmra.mrb[0].mxu0 %v8934
        %v9048 = vpop.f32.mrb[0].mxu0
        %v9049 = vadd.f32 %v8970, %v9048
        %v9050 = vpop.f32.mrb[0].mxu0
        %9051 = vmatprep.mubr.f32.mxu0 %v8951
        %9052 = vmatmul.mubr.f32.gmra.mrb[0].mxu0 %v8950
        %v9053 = vpop.f32.mrb[0].mxu0
        %v9054 = vadd.f32 %v8970, %v9053
        %v9055 = vpop.f32.mrb[0].mxu0
        %9056 = vdwg.mxu0
        %9057 = vmatprep.subr.mxu0 0.0
        %9058 = vmatpush1.msra.mxu0 %v6388
        %9059 = vmatprep.subr.mxu0 0.0
        %9060 = vmatpush1.msra.mxu0 %v6389
        %9061 = vmatprep.subr.mxu0 0.0
        %9062 = vmatpush1.msra.mxu0 %v6390
        %9063 = vmatprep.subr.mxu0 0.0
        %9064 = vmatpush1.msra.mxu0 %v6391
        %9065 = vmatprep.subr.mxu0 0.0
        %9066 = vmatpush1.msra.mxu0 %v6392
        %9067 = vmatprep.subr.mxu0 0.0
        %9068 = vmatpush1.msra.mxu0 %v6393
        %9069 = vmatprep.subr.mxu0 0.0
        %9070 = vmatpush1.msra.mxu0 %v6394
        %9071 = vmatprep.subr.mxu0 0.0
        %9072 = vmatpush1.msra.mxu0 %v6395
        %9073 = vmatprep.subr.mxu0 0.0
        %9074 = vmatpush1.msra.mxu0 %v6396
        %9075 = vmatprep.subr.mxu0 0.0
        %9076 = vmatpush1.msra.mxu0 %v6397
        %9077 = vmatprep.subr.mxu0 0.0
        %9078 = vmatpush1.msra.mxu0 %v6398
        %9079 = vmatprep.subr.mxu0 0.0
        %9080 = vmatpush1.msra.mxu0 %v6399
        %9081 = vmatprep.subr.mxu0 0.0
        %9082 = vmatpush1.msra.mxu0 %v6400
        %9083 = vmatprep.subr.mxu0 0.0
        %9084 = vmatpush1.msra.mxu0 %v6401
        %9085 = vmatprep.subr.mxu0 0.0
        %9086 = vmatpush1.msra.mxu0 %v6402
        %9087 = vmatprep.subr.mxu0 0.0
        %9088 = vmatpush1.msra.mxu0 %v6403
        %9089 = vmatprep.subr.mxu0 0.0
        %9090 = vmatpush1.msra.mxu0 %v6404
        %9091 = vmatprep.subr.mxu0 0.0
        %9092 = vmatpush1.msra.mxu0 %v6405
        %9093 = vmatprep.subr.mxu0 0.0
        %9094 = vmatpush1.msra.mxu0 %v6406
        %9095 = vmatprep.subr.mxu0 0.0
        %9096 = vmatpush1.msra.mxu0 %v6407
        %9097 = vmatprep.subr.mxu0 0.0
        %9098 = vmatpush1.msra.mxu0 %v6408
        %9099 = vmatprep.subr.mxu0 0.0
        %9100 = vmatpush1.msra.mxu0 %v6409
        %9101 = vmatprep.subr.mxu0 0.0
        %9102 = vmatpush1.msra.mxu0 %v6410
        %9103 = vmatprep.subr.mxu0 0.0
        %9104 = vmatpush1.msra.mxu0 %v6411
        %9105 = vmatprep.subr.mxu0 0.0
        %9106 = vmatpush1.msra.mxu0 %v6412
        %9107 = vmatprep.subr.mxu0 0.0
        %9108 = vmatpush1.msra.mxu0 %v6413
        %9109 = vmatprep.subr.mxu0 0.0
        %9110 = vmatpush1.msra.mxu0 %v6414
        %9111 = vmatprep.subr.mxu0 0.0
        %9112 = vmatpush1.msra.mxu0 %v6415
        %9113 = vmatprep.subr.mxu0 0.0
        %9114 = vmatpush1.msra.mxu0 %v6416
        %9115 = vmatprep.subr.mxu0 0.0
        %9116 = vmatpush1.msra.mxu0 %v6417
        %9117 = vmatprep.subr.mxu0 0.0
        %9118 = vmatpush1.msra.mxu0 %v6418
        %9119 = vmatprep.subr.mxu0 0.0
        %9120 = vmatpush1.msra.mxu0 %v6419
        %9121 = vmatprep.mubr.f32.mxu0 %v8905
        %9122 = vmatmul.mubr.f32.gmra.mrb[0].mxu0 %v8904
        %v9123 = vpop.f32.mrb[0].mxu0
        %v9124 = vadd.f32 %v9039, %v9123
        %v9125 = vpop.f32.mrb[0].mxu0
        %9126 = vmatprep.mubr.f32.mxu0 %v8921
        %9127 = vmatmul.mubr.f32.gmra.mrb[0].mxu0 %v8920
        %v9128 = vpop.f32.mrb[0].mxu0
        %v9129 = vadd.f32 %v9044, %v9128
        %v9130 = vpop.f32.mrb[0].mxu0
        %9131 = vmatprep.mubr.f32.mxu0 %v8937
        %9132 = vmatmul.mubr.f32.gmra.mrb[0].mxu0 %v8936
        %v9133 = vpop.f32.mrb[0].mxu0
        %v9134 = vadd.f32 %v9049, %v9133
        %v9135 = vpop.f32.mrb[0].mxu0
        %9136 = vmatprep.mubr.f32.mxu0 %v8953
        %9137 = vmatmul.mubr.f32.gmra.mrb[0].mxu0 %v8952
        %v9138 = vpop.f32.mrb[0].mxu0
        %v9139 = vadd.f32 %v9054, %v9138
        %v9140 = vpop.f32.mrb[0].mxu0
        %9141 = vdwg.mxu0
        %9142 = vmatprep.subr.mxu0 0.0
        %9143 = vmatpush1.msra.mxu0 %v6420
        %9144 = vmatprep.subr.mxu0 0.0
        %9145 = vmatpush1.msra.mxu0 %v6421
        %9146 = vmatprep.subr.mxu0 0.0
        %9147 = vmatpush1.msra.mxu0 %v6422
        %9148 = vmatprep.subr.mxu0 0.0
        %9149 = vmatpush1.msra.mxu0 %v6423
        %9150 = vmatprep.subr.mxu0 0.0
        %9151 = vmatpush1.msra.mxu0 %v6424
        %9152 = vmatprep.subr.mxu0 0.0
        %9153 = vmatpush1.msra.mxu0 %v6425
        %9154 = vmatprep.subr.mxu0 0.0
        %9155 = vmatpush1.msra.mxu0 %v6426
        %9156 = vmatprep.subr.mxu0 0.0
        %9157 = vmatpush1.msra.mxu0 %v6427
        %9158 = vmatprep.subr.mxu0 0.0
        %9159 = vmatpush1.msra.mxu0 %v6428
        %9160 = vmatprep.subr.mxu0 0.0
        %9161 = vmatpush1.msra.mxu0 %v6429
        %9162 = vmatprep.subr.mxu0 0.0
        %9163 = vmatpush1.msra.mxu0 %v6430
        %9164 = vmatprep.subr.mxu0 0.0
        %9165 = vmatpush1.msra.mxu0 %v6431
        %9166 = vmatprep.subr.mxu0 0.0
        %9167 = vmatpush1.msra.mxu0 %v6432
        %9168 = vmatprep.subr.mxu0 0.0
        %9169 = vmatpush1.msra.mxu0 %v6433
        %9170 = vmatprep.subr.mxu0 0.0
        %9171 = vmatpush1.msra.mxu0 %v6434
        %9172 = vmatprep.subr.mxu0 0.0
        %9173 = vmatpush1.msra.mxu0 %v6435
        %9174 = vmatprep.subr.mxu0 0.0
        %9175 = vmatpush1.msra.mxu0 %v6436
        %9176 = vmatprep.subr.mxu0 0.0
        %9177 = vmatpush1.msra.mxu0 %v6437
        %9178 = vmatprep.subr.mxu0 0.0
        %9179 = vmatpush1.msra.mxu0 %v6438
        %9180 = vmatprep.subr.mxu0 0.0
        %9181 = vmatpush1.msra.mxu0 %v6439
        %9182 = vmatprep.subr.mxu0 0.0
        %9183 = vmatpush1.msra.mxu0 %v6440
        %9184 = vmatprep.subr.mxu0 0.0
        %9185 = vmatpush1.msra.mxu0 %v6441
        %9186 = vmatprep.subr.mxu0 0.0
        %9187 = vmatpush1.msra.mxu0 %v6442
        %9188 = vmatprep.subr.mxu0 0.0
        %9189 = vmatpush1.msra.mxu0 %v6443
        %9190 = vmatprep.subr.mxu0 0.0
        %9191 = vmatpush1.msra.mxu0 %v6444
        %9192 = vmatprep.subr.mxu0 0.0
        %9193 = vmatpush1.msra.mxu0 %v6445
        %9194 = vmatprep.subr.mxu0 0.0
        %9195 = vmatpush1.msra.mxu0 %v6446
        %9196 = vmatprep.subr.mxu0 0.0
        %9197 = vmatpush1.msra.mxu0 %v6447
        %9198 = vmatprep.subr.mxu0 0.0
        %9199 = vmatpush1.msra.mxu0 %v6448
        %9200 = vmatprep.subr.mxu0 0.0
        %9201 = vmatpush1.msra.mxu0 %v6449
        %9202 = vmatprep.subr.mxu0 0.0
        %9203 = vmatpush1.msra.mxu0 %v6450
        %9204 = vmatprep.subr.mxu0 0.0
        %9205 = vmatpush1.msra.mxu0 %v6451
        %9206 = vmatprep.mubr.f32.mxu0 %v8907
        %9207 = vmatmul.mubr.f32.gmra.mrb[0].mxu0 %v8906
        %v9208 = vpop.f32.mrb[0].mxu0
        %v9209 = vadd.f32 %v9124, %v9208
        %v9210 = vpop.f32.mrb[0].mxu0
        %9211 = vmatprep.mubr.f32.mxu0 %v8923
        %9212 = vmatmul.mubr.f32.gmra.mrb[0].mxu0 %v8922
        %v9213 = vpop.f32.mrb[0].mxu0
        %v9214 = vadd.f32 %v9129, %v9213
        %v9215 = vpop.f32.mrb[0].mxu0
        %9216 = vmatprep.mubr.f32.mxu0 %v8939
        %9217 = vmatmul.mubr.f32.gmra.mrb[0].mxu0 %v8938
        %v9218 = vpop.f32.mrb[0].mxu0
        %v9219 = vadd.f32 %v9134, %v9218
        %v9220 = vpop.f32.mrb[0].mxu0
        %9221 = vmatprep.mubr.f32.mxu0 %v8955
        %9222 = vmatmul.mubr.f32.gmra.mrb[0].mxu0 %v8954
        %v9223 = vpop.f32.mrb[0].mxu0
        %v9224 = vadd.f32 %v9139, %v9223
        %v9225 = vpop.f32.mrb[0].mxu0
        %9226 = vdwg.mxu0
        %9227 = vmatprep.subr.mxu0 0.0
        %9228 = vmatpush1.msra.mxu0 %v6452
        %9229 = vmatprep.subr.mxu0 0.0
        %9230 = vmatpush1.msra.mxu0 %v6453
        %9231 = vmatprep.subr.mxu0 0.0
        %9232 = vmatpush1.msra.mxu0 %v6454
        %9233 = vmatprep.subr.mxu0 0.0
        %9234 = vmatpush1.msra.mxu0 %v6455
        %9235 = vmatprep.subr.mxu0 0.0
        %9236 = vmatpush1.msra.mxu0 %v6456
        %9237 = vmatprep.subr.mxu0 0.0
        %9238 = vmatpush1.msra.mxu0 %v6457
        %9239 = vmatprep.subr.mxu0 0.0
        %9240 = vmatpush1.msra.mxu0 %v6458
        %9241 = vmatprep.subr.mxu0 0.0
        %9242 = vmatpush1.msra.mxu0 %v6459
        %9243 = vmatprep.subr.mxu0 0.0
        %9244 = vmatpush1.msra.mxu0 %v6460
        %9245 = vmatprep.subr.mxu0 0.0
        %9246 = vmatpush1.msra.mxu0 %v6461
        %9247 = vmatprep.subr.mxu0 0.0
        %9248 = vmatpush1.msra.mxu0 %v6462
        %9249 = vmatprep.subr.mxu0 0.0
        %9250 = vmatpush1.msra.mxu0 %v6463
        %9251 = vmatprep.subr.mxu0 0.0
        %9252 = vmatpush1.msra.mxu0 %v6464
        %9253 = vmatprep.subr.mxu0 0.0
        %9254 = vmatpush1.msra.mxu0 %v6465
        %9255 = vmatprep.subr.mxu0 0.0
        %9256 = vmatpush1.msra.mxu0 %v6466
        %9257 = vmatprep.subr.mxu0 0.0
        %9258 = vmatpush1.msra.mxu0 %v6467
        %9259 = vmatprep.subr.mxu0 0.0
        %9260 = vmatpush1.msra.mxu0 %v6468
        %9261 = vmatprep.subr.mxu0 0.0
        %9262 = vmatpush1.msra.mxu0 %v6469
        %9263 = vmatprep.subr.mxu0 0.0
        %9264 = vmatpush1.msra.mxu0 %v6470
        %9265 = vmatprep.subr.mxu0 0.0
        %9266 = vmatpush1.msra.mxu0 %v6471
        %9267 = vmatprep.subr.mxu0 0.0
        %9268 = vmatpush1.msra.mxu0 %v6472
        %9269 = vmatprep.subr.mxu0 0.0
        %9270 = vmatpush1.msra.mxu0 %v6473
        %9271 = vmatprep.subr.mxu0 0.0
        %9272 = vmatpush1.msra.mxu0 %v6474
        %9273 = vmatprep.subr.mxu0 0.0
        %9274 = vmatpush1.msra.mxu0 %v6475
        %9275 = vmatprep.subr.mxu0 0.0
        %9276 = vmatpush1.msra.mxu0 %v6476
        %9277 = vmatprep.subr.mxu0 0.0
        %9278 = vmatpush1.msra.mxu0 %v6477
        %9279 = vmatprep.subr.mxu0 0.0
        %9280 = vmatpush1.msra.mxu0 %v6478
        %9281 = vmatprep.subr.mxu0 0.0
        %9282 = vmatpush1.msra.mxu0 %v6479
        %9283 = vmatprep.subr.mxu0 0.0
        %9284 = vmatpush1.msra.mxu0 %v6480
        %9285 = vmatprep.subr.mxu0 0.0
        %9286 = vmatpush1.msra.mxu0 %v6481
        %9287 = vmatprep.subr.mxu0 0.0
        %9288 = vmatpush1.msra.mxu0 %v6482
        %9289 = vmatprep.subr.mxu0 0.0
        %9290 = vmatpush1.msra.mxu0 %v6483
        %9291 = vmatprep.mubr.f32.mxu0 %v8909
        %9292 = vmatmul.mubr.f32.gmra.mrb[0].mxu0 %v8908
        %v9293 = vpop.f32.mrb[0].mxu0
        %v9294 = vadd.f32 %v9209, %v9293
        %v9295 = vpop.f32.mrb[0].mxu0
        %9296 = vmatprep.mubr.f32.mxu0 %v8925
        %9297 = vmatmul.mubr.f32.gmra.mrb[0].mxu0 %v8924
        %v9298 = vpop.f32.mrb[0].mxu0
        %v9299 = vadd.f32 %v9214, %v9298
        %v9300 = vpop.f32.mrb[0].mxu0
        %9301 = vmatprep.mubr.f32.mxu0 %v8941
        %9302 = vmatmul.mubr.f32.gmra.mrb[0].mxu0 %v8940
        %v9303 = vpop.f32.mrb[0].mxu0
        %v9304 = vadd.f32 %v9219, %v9303
        %v9305 = vpop.f32.mrb[0].mxu0
        %9306 = vmatprep.mubr.f32.mxu0 %v8957
        %9307 = vmatmul.mubr.f32.gmra.mrb[0].mxu0 %v8956
        %v9308 = vpop.f32.mrb[0].mxu0
        %v9309 = vadd.f32 %v9224, %v9308
        %v9310 = vpop.f32.mrb[0].mxu0
        %9311 = vdwg.mxu0
        %9312 = vmatprep.subr.mxu0 0.0
        %9313 = vmatpush1.msra.mxu0 %v6484
        %9314 = vmatprep.subr.mxu0 0.0
        %9315 = vmatpush1.msra.mxu0 %v6485
        %9316 = vmatprep.subr.mxu0 0.0
        %9317 = vmatpush1.msra.mxu0 %v6486
        %9318 = vmatprep.subr.mxu0 0.0
        %9319 = vmatpush1.msra.mxu0 %v6487
        %9320 = vmatprep.subr.mxu0 0.0
        %9321 = vmatpush1.msra.mxu0 %v6488
        %9322 = vmatprep.subr.mxu0 0.0
        %9323 = vmatpush1.msra.mxu0 %v6489
        %9324 = vmatprep.subr.mxu0 0.0
        %9325 = vmatpush1.msra.mxu0 %v6490
        %9326 = vmatprep.subr.mxu0 0.0
        %9327 = vmatpush1.msra.mxu0 %v6491
        %9328 = vmatprep.subr.mxu0 0.0
        %9329 = vmatpush1.msra.mxu0 %v6492
        %9330 = vmatprep.subr.mxu0 0.0
        %9331 = vmatpush1.msra.mxu0 %v6493
        %9332 = vmatprep.subr.mxu0 0.0
        %9333 = vmatpush1.msra.mxu0 %v6494
        %9334 = vmatprep.subr.mxu0 0.0
        %9335 = vmatpush1.msra.mxu0 %v6495
        %9336 = vmatprep.subr.mxu0 0.0
        %9337 = vmatpush1.msra.mxu0 %v6496
        %9338 = vmatprep.subr.mxu0 0.0
        %9339 = vmatpush1.msra.mxu0 %v6497
        %9340 = vmatprep.subr.mxu0 0.0
        %9341 = vmatpush1.msra.mxu0 %v6498
        %9342 = vmatprep.subr.mxu0 0.0
        %9343 = vmatpush1.msra.mxu0 %v6499
        %9344 = vmatprep.subr.mxu0 0.0
        %9345 = vmatpush1.msra.mxu0 %v6500
        %9346 = vmatprep.subr.mxu0 0.0
        %9347 = vmatpush1.msra.mxu0 %v6501
        %9348 = vmatprep.subr.mxu0 0.0
        %9349 = vmatpush1.msra.mxu0 %v6502
        %9350 = vmatprep.subr.mxu0 0.0
        %9351 = vmatpush1.msra.mxu0 %v6503
        %9352 = vmatprep.subr.mxu0 0.0
        %9353 = vmatpush1.msra.mxu0 %v6504
        %9354 = vmatprep.subr.mxu0 0.0
        %9355 = vmatpush1.msra.mxu0 %v6505
        %9356 = vmatprep.subr.mxu0 0.0
        %9357 = vmatpush1.msra.mxu0 %v6506
        %9358 = vmatprep.subr.mxu0 0.0
        %9359 = vmatpush1.msra.mxu0 %v6507
        %9360 = vmatprep.subr.mxu0 0.0
        %9361 = vmatpush1.msra.mxu0 %v6508
        %9362 = vmatprep.subr.mxu0 0.0
        %9363 = vmatpush1.msra.mxu0 %v6509
        %9364 = vmatprep.subr.mxu0 0.0
        %9365 = vmatpush1.msra.mxu0 %v6510
        %9366 = vmatprep.subr.mxu0 0.0
        %9367 = vmatpush1.msra.mxu0 %v6511
        %9368 = vmatprep.subr.mxu0 0.0
        %9369 = vmatpush1.msra.mxu0 %v6512
        %9370 = vmatprep.subr.mxu0 0.0
        %9371 = vmatpush1.msra.mxu0 %v6513
        %9372 = vmatprep.subr.mxu0 0.0
        %9373 = vmatpush1.msra.mxu0 %v6514
        %9374 = vmatprep.subr.mxu0 0.0
        %9375 = vmatpush1.msra.mxu0 %v6515
        %9376 = vmatprep.mubr.f32.mxu0 %v8911
        %9377 = vmatmul.mubr.f32.gmra.mrb[0].mxu0 %v8910
        %v9378 = vpop.f32.mrb[0].mxu0
        %v9379 = vadd.f32 %v9294, %v9378
        %v9380 = vpop.f32.mrb[0].mxu0
        %9381 = vmatprep.mubr.f32.mxu0 %v8927
        %9382 = vmatmul.mubr.f32.gmra.mrb[0].mxu0 %v8926
        %v9383 = vpop.f32.mrb[0].mxu0
        %v9384 = vadd.f32 %v9299, %v9383
        %v9385 = vpop.f32.mrb[0].mxu0
        %9386 = vmatprep.mubr.f32.mxu0 %v8943
        %9387 = vmatmul.mubr.f32.gmra.mrb[0].mxu0 %v8942
        %v9388 = vpop.f32.mrb[0].mxu0
        %v9389 = vadd.f32 %v9304, %v9388
        %v9390 = vpop.f32.mrb[0].mxu0
        %9391 = vmatprep.mubr.f32.mxu0 %v8959
        %9392 = vmatmul.mubr.f32.gmra.mrb[0].mxu0 %v8958
        %v9393 = vpop.f32.mrb[0].mxu0
        %v9394 = vadd.f32 %v9309, %v9393
        %v9395 = vpop.f32.mrb[0].mxu0
        %9396 = vdwg.mxu0
        %9397 = vmatprep.subr.mxu0 0.0
        %9398 = vmatpush1.msra.mxu0 %v6516
        %9399 = vmatprep.subr.mxu0 0.0
        %9400 = vmatpush1.msra.mxu0 %v6517
        %9401 = vmatprep.subr.mxu0 0.0
        %9402 = vmatpush1.msra.mxu0 %v6518
        %9403 = vmatprep.subr.mxu0 0.0
        %9404 = vmatpush1.msra.mxu0 %v6519
        %9405 = vmatprep.subr.mxu0 0.0
        %9406 = vmatpush1.msra.mxu0 %v6520
        %9407 = vmatprep.subr.mxu0 0.0
        %9408 = vmatpush1.msra.mxu0 %v6521
        %9409 = vmatprep.subr.mxu0 0.0
        %9410 = vmatpush1.msra.mxu0 %v6522
        %9411 = vmatprep.subr.mxu0 0.0
        %9412 = vmatpush1.msra.mxu0 %v6523
        %9413 = vmatprep.subr.mxu0 0.0
        %9414 = vmatpush1.msra.mxu0 %v6524
        %9415 = vmatprep.subr.mxu0 0.0
        %9416 = vmatpush1.msra.mxu0 %v6525
        %9417 = vmatprep.subr.mxu0 0.0
        %9418 = vmatpush1.msra.mxu0 %v6526
        %9419 = vmatprep.subr.mxu0 0.0
        %9420 = vmatpush1.msra.mxu0 %v6527
        %9421 = vmatprep.subr.mxu0 0.0
        %9422 = vmatpush1.msra.mxu0 %v6528
        %9423 = vmatprep.subr.mxu0 0.0
        %9424 = vmatpush1.msra.mxu0 %v6529
        %9425 = vmatprep.subr.mxu0 0.0
        %9426 = vmatpush1.msra.mxu0 %v6530
        %9427 = vmatprep.subr.mxu0 0.0
        %9428 = vmatpush1.msra.mxu0 %v6531
        %9429 = vmatprep.subr.mxu0 0.0
        %9430 = vmatpush1.msra.mxu0 %v6532
        %9431 = vmatprep.subr.mxu0 0.0
        %9432 = vmatpush1.msra.mxu0 %v6533
        %9433 = vmatprep.subr.mxu0 0.0
        %9434 = vmatpush1.msra.mxu0 %v6534
        %9435 = vmatprep.subr.mxu0 0.0
        %9436 = vmatpush1.msra.mxu0 %v6535
        %9437 = vmatprep.subr.mxu0 0.0
        %9438 = vmatpush1.msra.mxu0 %v6536
        %9439 = vmatprep.subr.mxu0 0.0
        %9440 = vmatpush1.msra.mxu0 %v6537
        %9441 = vmatprep.subr.mxu0 0.0
        %9442 = vmatpush1.msra.mxu0 %v6538
        %9443 = vmatprep.subr.mxu0 0.0
        %9444 = vmatpush1.msra.mxu0 %v6539
        %9445 = vmatprep.subr.mxu0 0.0
        %9446 = vmatpush1.msra.mxu0 %v6540
        %9447 = vmatprep.subr.mxu0 0.0
        %9448 = vmatpush1.msra.mxu0 %v6541
        %9449 = vmatprep.subr.mxu0 0.0
        %9450 = vmatpush1.msra.mxu0 %v6542
        %9451 = vmatprep.subr.mxu0 0.0
        %9452 = vmatpush1.msra.mxu0 %v6543
        %9453 = vmatprep.subr.mxu0 0.0
        %9454 = vmatpush1.msra.mxu0 %v6544
        %9455 = vmatprep.subr.mxu0 0.0
        %9456 = vmatpush1.msra.mxu0 %v6545
        %9457 = vmatprep.subr.mxu0 0.0
        %9458 = vmatpush1.msra.mxu0 %v6546
        %9459 = vmatprep.subr.mxu0 0.0
        %9460 = vmatpush1.msra.mxu0 %v6547
        %9461 = vmatprep.mubr.f32.mxu0 %v8913
        %9462 = vmatmul.mubr.f32.gmra.mrb[0].mxu0 %v8912
        %v9463 = vpop.f32.mrb[0].mxu0
        %v9464 = vadd.f32 %v9379, %v9463
        %v9465 = vpop.f32.mrb[0].mxu0
        %9466 = vmatprep.mubr.f32.mxu0 %v8929
        %9467 = vmatmul.mubr.f32.gmra.mrb[0].mxu0 %v8928
        %v9468 = vpop.f32.mrb[0].mxu0
        %v9469 = vadd.f32 %v9384, %v9468
        %v9470 = vpop.f32.mrb[0].mxu0
        %9471 = vmatprep.mubr.f32.mxu0 %v8945
        %9472 = vmatmul.mubr.f32.gmra.mrb[0].mxu0 %v8944
        %v9473 = vpop.f32.mrb[0].mxu0
        %v9474 = vadd.f32 %v9389, %v9473
        %v9475 = vpop.f32.mrb[0].mxu0
        %9476 = vmatprep.mubr.f32.mxu0 %v8961
        %9477 = vmatmul.mubr.f32.gmra.mrb[0].mxu0 %v8960
        %v9478 = vpop.f32.mrb[0].mxu0
        %v9479 = vadd.f32 %v9394, %v9478
        %v9480 = vpop.f32.mrb[0].mxu0
        %9481 = vdwg.mxu0
        %9482 = vmatprep.subr.mxu0 0.0
        %9483 = vmatpush1.msra.mxu0 %v6548
        %9484 = vmatprep.subr.mxu0 0.0
        %9485 = vmatpush1.msra.mxu0 %v6549
        %9486 = vmatprep.subr.mxu0 0.0
        %9487 = vmatpush1.msra.mxu0 %v6550
        %9488 = vmatprep.subr.mxu0 0.0
        %9489 = vmatpush1.msra.mxu0 %v6551
        %9490 = vmatprep.subr.mxu0 0.0
        %9491 = vmatpush1.msra.mxu0 %v6552
        %9492 = vmatprep.subr.mxu0 0.0
        %9493 = vmatpush1.msra.mxu0 %v6553
        %9494 = vmatprep.subr.mxu0 0.0
        %9495 = vmatpush1.msra.mxu0 %v6554
        %9496 = vmatprep.subr.mxu0 0.0
        %9497 = vmatpush1.msra.mxu0 %v6555
        %9498 = vmatprep.subr.mxu0 0.0
        %9499 = vmatpush1.msra.mxu0 %v6556
        %9500 = vmatprep.subr.mxu0 0.0
        %9501 = vmatpush1.msra.mxu0 %v6557
        %9502 = vmatprep.subr.mxu0 0.0
        %9503 = vmatpush1.msra.mxu0 %v6558
        %9504 = vmatprep.subr.mxu0 0.0
        %9505 = vmatpush1.msra.mxu0 %v6559
        %9506 = vmatprep.subr.mxu0 0.0
        %9507 = vmatpush1.msra.mxu0 %v6560
        %9508 = vmatprep.subr.mxu0 0.0
        %9509 = vmatpush1.msra.mxu0 %v6561
        %9510 = vmatprep.subr.mxu0 0.0
        %9511 = vmatpush1.msra.mxu0 %v6562
        %9512 = vmatprep.subr.mxu0 0.0
        %9513 = vmatpush1.msra.mxu0 %v6563
        %9514 = vmatprep.subr.mxu0 0.0
        %9515 = vmatpush1.msra.mxu0 %v6564
        %9516 = vmatprep.subr.mxu0 0.0
        %9517 = vmatpush1.msra.mxu0 %v6565
        %9518 = vmatprep.subr.mxu0 0.0
        %9519 = vmatpush1.msra.mxu0 %v6566
        %9520 = vmatprep.subr.mxu0 0.0
        %9521 = vmatpush1.msra.mxu0 %v6567
        %9522 = vmatprep.subr.mxu0 0.0
        %9523 = vmatpush1.msra.mxu0 %v6568
        %9524 = vmatprep.subr.mxu0 0.0
        %9525 = vmatpush1.msra.mxu0 %v6569
        %9526 = vmatprep.subr.mxu0 0.0
        %9527 = vmatpush1.msra.mxu0 %v6570
        %9528 = vmatprep.subr.mxu0 0.0
        %9529 = vmatpush1.msra.mxu0 %v6571
        %9530 = vmatprep.subr.mxu0 0.0
        %9531 = vmatpush1.msra.mxu0 %v6572
        %9532 = vmatprep.subr.mxu0 0.0
        %9533 = vmatpush1.msra.mxu0 %v6573
        %9534 = vmatprep.subr.mxu0 0.0
        %9535 = vmatpush1.msra.mxu0 %v6574
        %9536 = vmatprep.subr.mxu0 0.0
        %9537 = vmatpush1.msra.mxu0 %v6575
        %9538 = vmatprep.subr.mxu0 0.0
        %9539 = vmatpush1.msra.mxu0 %v6576
        %9540 = vmatprep.subr.mxu0 0.0
        %9541 = vmatpush1.msra.mxu0 %v6577
        %9542 = vmatprep.subr.mxu0 0.0
        %9543 = vmatpush1.msra.mxu0 %v6578
        %9544 = vmatprep.subr.mxu0 0.0
        %9545 = vmatpush1.msra.mxu0 %v6579
        %9546 = vmatprep.mubr.f32.mxu0 %v8915
        %9547 = vmatmul.mubr.f32.gmra.mrb[0].mxu0 %v8914
        %v9548 = vpop.f32.mrb[0].mxu0
        %v9549 = vadd.f32 %v9464, %v9548
        %v9550 = vpop.f32.mrb[0].mxu0
        %9551 = vmatprep.mubr.f32.mxu0 %v8931
        %9552 = vmatmul.mubr.f32.gmra.mrb[0].mxu0 %v8930
        %v9553 = vpop.f32.mrb[0].mxu0
        %v9554 = vadd.f32 %v9469, %v9553
        %v9555 = vpop.f32.mrb[0].mxu0
        %9556 = vmatprep.mubr.f32.mxu0 %v8947
        %9557 = vmatmul.mubr.f32.gmra.mrb[0].mxu0 %v8946
        %v9558 = vpop.f32.mrb[0].mxu0
        %v9559 = vadd.f32 %v9474, %v9558
        %v9560 = vpop.f32.mrb[0].mxu0
        %9561 = vmatprep.mubr.f32.mxu0 %v8963
        %9562 = vmatmul.mubr.f32.gmra.mrb[0].mxu0 %v8962
        %v9563 = vpop.f32.mrb[0].mxu0
        %v9564 = vadd.f32 %v9479, %v9563
        %v9565 = vpop.f32.mrb[0].mxu0
        %9566 = vdwg.mxu0
        %9567 = vmatprep.subr.mxu0 0.0
        %9568 = vmatpush1.msra.mxu0 %v6580
        %9569 = vmatprep.subr.mxu0 0.0
        %9570 = vmatpush1.msra.mxu0 %v6581
        %9571 = vmatprep.subr.mxu0 0.0
        %9572 = vmatpush1.msra.mxu0 %v6582
        %9573 = vmatprep.subr.mxu0 0.0
        %9574 = vmatpush1.msra.mxu0 %v6583
        %9575 = vmatprep.subr.mxu0 0.0
        %9576 = vmatpush1.msra.mxu0 %v6584
        %9577 = vmatprep.subr.mxu0 0.0
        %9578 = vmatpush1.msra.mxu0 %v6585
        %9579 = vmatprep.subr.mxu0 0.0
        %9580 = vmatpush1.msra.mxu0 %v6586
        %9581 = vmatprep.subr.mxu0 0.0
        %9582 = vmatpush1.msra.mxu0 %v6587
        %9583 = vmatprep.subr.mxu0 0.0
        %9584 = vmatpush1.msra.mxu0 %v6588
        %9585 = vmatprep.subr.mxu0 0.0
        %9586 = vmatpush1.msra.mxu0 %v6589
        %9587 = vmatprep.subr.mxu0 0.0
        %9588 = vmatpush1.msra.mxu0 %v6590
        %9589 = vmatprep.subr.mxu0 0.0
        %9590 = vmatpush1.msra.mxu0 %v6591
        %9591 = vmatprep.subr.mxu0 0.0
        %9592 = vmatpush1.msra.mxu0 %v6592
        %9593 = vmatprep.subr.mxu0 0.0
        %9594 = vmatpush1.msra.mxu0 %v6593
        %9595 = vmatprep.subr.mxu0 0.0
        %9596 = vmatpush1.msra.mxu0 %v6594
        %9597 = vmatprep.subr.mxu0 0.0
        %9598 = vmatpush1.msra.mxu0 %v6595
        %9599 = vmatprep.subr.mxu0 0.0
        %9600 = vmatpush1.msra.mxu0 %v6596
        %9601 = vmatprep.subr.mxu0 0.0
        %9602 = vmatpush1.msra.mxu0 %v6597
        %9603 = vmatprep.subr.mxu0 0.0
        %9604 = vmatpush1.msra.mxu0 %v6598
        %9605 = vmatprep.subr.mxu0 0.0
        %9606 = vmatpush1.msra.mxu0 %v6599
        %9607 = vmatprep.subr.mxu0 0.0
        %9608 = vmatpush1.msra.mxu0 %v6600
        %9609 = vmatprep.subr.mxu0 0.0
        %9610 = vmatpush1.msra.mxu0 %v6601
        %9611 = vmatprep.subr.mxu0 0.0
        %9612 = vmatpush1.msra.mxu0 %v6602
        %9613 = vmatprep.subr.mxu0 0.0
        %9614 = vmatpush1.msra.mxu0 %v6603
        %9615 = vmatprep.subr.mxu0 0.0
        %9616 = vmatpush1.msra.mxu0 %v6604
        %9617 = vmatprep.subr.mxu0 0.0
        %9618 = vmatpush1.msra.mxu0 %v6605
        %9619 = vmatprep.subr.mxu0 0.0
        %9620 = vmatpush1.msra.mxu0 %v6606
        %9621 = vmatprep.subr.mxu0 0.0
        %9622 = vmatpush1.msra.mxu0 %v6607
        %9623 = vmatprep.subr.mxu0 0.0
        %9624 = vmatpush1.msra.mxu0 %v6608
        %9625 = vmatprep.subr.mxu0 0.0
        %9626 = vmatpush1.msra.mxu0 %v6609
        %9627 = vmatprep.subr.mxu0 0.0
        %9628 = vmatpush1.msra.mxu0 %v6610
        %9629 = vmatprep.subr.mxu0 0.0
        %9630 = vmatpush1.msra.mxu0 %v6611
        %9631 = vmatprep.mubr.f32.mxu0 %v8917
        %9632 = vmatmul.mubr.f32.gmra.mrb[0].mxu0 %v8916
        %v9633 = vpop.f32.mrb[0].mxu0
        %v9634 = vadd.f32 %v9549, %v9633
        %v9635 = vpop.f32.mrb[0].mxu0
        %9636 = vmatprep.mubr.f32.mxu0 %v8933
        %9637 = vmatmul.mubr.f32.gmra.mrb[0].mxu0 %v8932
        %v9638 = vpop.f32.mrb[0].mxu0
        %v9639 = vadd.f32 %v9554, %v9638
        %v9640 = vpop.f32.mrb[0].mxu0
        %9641 = vmatprep.mubr.f32.mxu0 %v8949
        %9642 = vmatmul.mubr.f32.gmra.mrb[0].mxu0 %v8948
        %v9643 = vpop.f32.mrb[0].mxu0
        %v9644 = vadd.f32 %v9559, %v9643
        %v9645 = vpop.f32.mrb[0].mxu0
        %9646 = vmatprep.mubr.f32.mxu0 %v8965
        %9647 = vmatmul.mubr.f32.gmra.mrb[0].mxu0 %v8964
        %v9648 = vpop.f32.mrb[0].mxu0
        %v9649 = vadd.f32 %v9564, %v9648
        %v9650 = vpop.f32.mrb[0].mxu0
        %9651 = vdwg.mxu0
        %v9652 = vadd.f32 %v8104, %v9634
        %v9653 = vadd.f32 %v8105, %v9639
        %v9654 = vadd.f32 %v8106, %v9644
        %v9655 = vadd.f32 %v8107, %v9649
        %9656 = vadd.xlane.f32.xlu0 %v9652
        %v9657 = vpop.xlane.xlu0 %9656
        %9658 = vadd.xlane.f32.xlu0 %v9653
        %v9659 = vpop.xlane.xlu0 %9658
        %9660 = vadd.xlane.f32.xlu0 %v9654
        %v9661 = vpop.xlane.xlu0 %9660
        %9662 = vadd.xlane.f32.xlu0 %v9655
        %v9663 = vpop.xlane.xlu0 %9662
        %v9664 = vmul.f32 %v9657, %v8051
        %v9665 = vmul.f32 %v9659, %v8051
        %v9666 = vmul.f32 %v9661, %v8051
        %v9667 = vmul.f32 %v9663, %v8051
        %v9668 = vsub.f32 %v9652, %v9664
        %v9669 = vsub.f32 %v9653, %v9665
        %v9670 = vsub.f32 %v9654, %v9666
        %v9671 = vsub.f32 %v9655, %v9667
        %v9672 = vmul.f32 %v9668, %v9668
        %v9673 = vmul.f32 %v9669, %v9669
        %v9674 = vmul.f32 %v9670, %v9670
        %v9675 = vmul.f32 %v9671, %v9671
        %9676 = vadd.xlane.f32.xlu0 %v9672
        %v9677 = vpop.xlane.xlu0 %9676
        %9678 = vadd.xlane.f32.xlu0 %v9673
        %v9679 = vpop.xlane.xlu0 %9678
        %9680 = vadd.xlane.f32.xlu0 %v9674
        %v9681 = vpop.xlane.xlu0 %9680
        %9682 = vadd.xlane.f32.xlu0 %v9675
        %v9683 = vpop.xlane.xlu0 %9682
        %v9684 = vmul.f32 %v9677, %v8051
        %v9685 = vmul.f32 %v9679, %v8051
        %v9686 = vmul.f32 %v9681, %v8051
        %v9687 = vmul.f32 %v9683, %v8051
        %v9688 = vadd.f32 %v9684, 1e-05
        %v9689 = vadd.f32 %v9685, 1e-05
        %v9690 = vadd.f32 %v9686, 1e-05
        %v9691 = vadd.f32 %v9687, 1e-05
        %v9692 = vrsqrt.pop %v9688
        %v9693 = vrsqrt.pop %v9689
        %v9694 = vrsqrt.pop %v9690
        %v9695 = vrsqrt.pop %v9691
        %v9696 = vmul.f32 %v9668, %v9692
        %v9697 = vmul.f32 %v9669, %v9693
        %v9698 = vmul.f32 %v9670, %v9694
        %v9699 = vmul.f32 %v9671, %v9695
        %v9701 = vlaneseq
        %v9702 = vshrl.u32 %v9701, 7
        %v9703 = vsub.s32 0, %v9702
        %v9704 = vrot.slane %v6613, %v9703
        %v9706 = vmul.f32 %v9696, %v9704
        %v9707 = vmul.f32 %v9697, %v9704
        %v9708 = vmul.f32 %v9698, %v9704
        %v9709 = vmul.f32 %v9699, %v9704
        %v9711 = vlaneseq
        %v9712 = vshrl.u32 %v9711, 7
        %v9713 = vsub.s32 0, %v9712
        %v9714 = vrot.slane %v6614, %v9713
        %v9716 = vadd.f32 %v9706, %v9714
        %v9717 = vadd.f32 %v9707, %v9714
        %v9718 = vadd.f32 %v9708, %v9714
        %v9719 = vadd.f32 %v9709, %v9714
        %9720 = vst [vmem:[#allocation2] sm:$0xff] %v9716
        %9721 = vst [vmem:[#allocation2 + $0x8] sm:$0xff] %v9717
        %9722 = vst [vmem:[#allocation2 + $0x10] sm:$0xff] %v9718
        %9723 = vst [vmem:[#allocation2 + $0x18] sm:$0xff] %v9719
        %p9724 = scmp.eq.s32.totalorder %s37, 1
        // Predicated region
        $region165: #{tpu_custom_call.1} parent=107 // pred_check
          %p9725 = pneg %p9724
        $region166: #{tpu_custom_call.1} parent=107 // pred_check_branch
          %9727 = sbr.rel (%p9725) target = $region168
        $region167: #{tpu_custom_call.1} parent=107 // pred_region
          %v9728 = vld [vmem:[#allocation2] sm:$0xff]
          %v9729 = vld [vmem:[#allocation2 + $0x8] sm:$0xff]
          %v9730 = vld [vmem:[#allocation2 + $0x10] sm:$0xff]
          %v9731 = vld [vmem:[#allocation2 + $0x18] sm:$0xff]
          %v9732 = vld [vmem:[%s20] sm:$0xf]
          %v9733 = vld [vmem:[%s20 + $0x4] sm:$0xf]
          %v9734 = vld [vmem:[%s20 + $0x8] sm:$0xf]
          %v9735 = vld [vmem:[%s20 + $0xc] sm:$0xf]
          %v9736 = vld [vmem:[%s20 + $0x10] sm:$0xf]
          %v9737 = vld [vmem:[%s20 + $0x14] sm:$0xf]
          %v9738 = vld [vmem:[%s20 + $0x18] sm:$0xf]
          %v9739 = vld [vmem:[%s20 + $0x1c] sm:$0xf]
          %v9740 = vld [vmem:[%s20 + $0x20] sm:$0xf]
          %v9741 = vld [vmem:[%s20 + $0x24] sm:$0xf]
          %v9742 = vld [vmem:[%s20 + $0x28] sm:$0xf]
          %v9743 = vld [vmem:[%s20 + $0x2c] sm:$0xf]
          %v9744 = vld [vmem:[%s20 + $0x30] sm:$0xf]
          %v9745 = vld [vmem:[%s20 + $0x34] sm:$0xf]
          %v9746 = vld [vmem:[%s20 + $0x38] sm:$0xf]
          %v9747 = vld [vmem:[%s20 + $0x3c] sm:$0xf]
          %v9748 = vunpack.c.l.bf16 %v9732
          %v9749 = vunpack.c.l.bf16 %v9733
          %v9750 = vunpack.c.l.bf16 %v9734
          %v9751 = vunpack.c.l.bf16 %v9735
          %v9752 = vunpack.c.l.bf16 %v9736
          %v9753 = vunpack.c.l.bf16 %v9737
          %v9754 = vunpack.c.l.bf16 %v9738
          %v9755 = vunpack.c.l.bf16 %v9739
          %v9756 = vunpack.c.l.bf16 %v9740
          %v9757 = vunpack.c.l.bf16 %v9741
          %v9758 = vunpack.c.l.bf16 %v9742
          %v9759 = vunpack.c.l.bf16 %v9743
          %v9760 = vunpack.c.l.bf16 %v9744
          %v9761 = vunpack.c.l.bf16 %v9745
          %v9762 = vunpack.c.l.bf16 %v9746
          %v9763 = vunpack.c.l.bf16 %v9747
          %v9764 = vld [vmem:[%s21] sm:$0x1]
          %v9766 = vlaneseq
          %v9767 = vshrl.u32 %v9766, 7
          %v9768 = vsub.s32 0, %v9767
          %v9769 = vrot.slane %v9764, %v9768
          %9771 = vmatprep.subr.mxu0 0.0
          %9772 = vmatpush1.msra.mxu0 %v9748
          %9773 = vmatprep.subr.mxu0 0.0
          %9774 = vmatpush1.msra.mxu0 %v9749
          %9775 = vmatprep.subr.mxu0 0.0
          %9776 = vmatpush1.msra.mxu0 %v9750
          %9777 = vmatprep.subr.mxu0 0.0
          %9778 = vmatpush1.msra.mxu0 %v9751
          %9779 = vmatprep.subr.mxu0 0.0
          %9780 = vmatpush1.msra.mxu0 %v9752
          %9781 = vmatprep.subr.mxu0 0.0
          %9782 = vmatpush1.msra.mxu0 %v9753
          %9783 = vmatprep.subr.mxu0 0.0
          %9784 = vmatpush1.msra.mxu0 %v9754
          %9785 = vmatprep.subr.mxu0 0.0
          %9786 = vmatpush1.msra.mxu0 %v9755
          %9787 = vmatprep.subr.mxu0 0.0
          %9788 = vmatpush1.msra.mxu0 %v9756
          %9789 = vmatprep.subr.mxu0 0.0
          %9790 = vmatpush1.msra.mxu0 %v9757
          %9791 = vmatprep.subr.mxu0 0.0
          %9792 = vmatpush1.msra.mxu0 %v9758
          %9793 = vmatprep.subr.mxu0 0.0
          %9794 = vmatpush1.msra.mxu0 %v9759
          %9795 = vmatprep.subr.mxu0 0.0
          %9796 = vmatpush1.msra.mxu0 %v9760
          %9797 = vmatprep.subr.mxu0 0.0
          %9798 = vmatpush1.msra.mxu0 %v9761
          %9799 = vmatprep.subr.mxu0 0.0
          %9800 = vmatpush1.msra.mxu0 %v9762
          %9801 = vmatprep.subr.mxu0 0.0
          %9802 = vmatpush1.msra.mxu0 %v9763
          %9803 = vmatprep.subr.mxu0 0.0
          %9804 = vmatpush1.msra.mxu0 0.0
          %9805 = vmatprep.subr.mxu0 0.0
          %9806 = vmatpush1.msra.mxu0 0.0
          %9807 = vmatprep.subr.mxu0 0.0
          %9808 = vmatpush1.msra.mxu0 0.0
          %9809 = vmatprep.subr.mxu0 0.0
          %9810 = vmatpush1.msra.mxu0 0.0
          %9811 = vmatprep.subr.mxu0 0.0
          %9812 = vmatpush1.msra.mxu0 0.0
          %9813 = vmatprep.subr.mxu0 0.0
          %9814 = vmatpush1.msra.mxu0 0.0
          %9815 = vmatprep.subr.mxu0 0.0
          %9816 = vmatpush1.msra.mxu0 0.0
          %9817 = vmatprep.subr.mxu0 0.0
          %9818 = vmatpush1.msra.mxu0 0.0
          %9819 = vmatprep.subr.mxu0 0.0
          %9820 = vmatpush1.msra.mxu0 0.0
          %9821 = vmatprep.subr.mxu0 0.0
          %9822 = vmatpush1.msra.mxu0 0.0
          %9823 = vmatprep.subr.mxu0 0.0
          %9824 = vmatpush1.msra.mxu0 0.0
          %9825 = vmatprep.subr.mxu0 0.0
          %9826 = vmatpush1.msra.mxu0 0.0
          %9827 = vmatprep.subr.mxu0 0.0
          %9828 = vmatpush1.msra.mxu0 0.0
          %9829 = vmatprep.subr.mxu0 0.0
          %9830 = vmatpush1.msra.mxu0 0.0
          %9831 = vmatprep.subr.mxu0 0.0
          %9832 = vmatpush1.msra.mxu0 0.0
          %9833 = vmatprep.subr.mxu0 0.0
          %9834 = vmatpush1.msra.mxu0 0.0
          %9835 = vmatprep.mubr.f32.mxu0 0.0
          %9836 = vmatmul.mubr.f32.gmra.mrb[0].mxu0 %v9728
          %v9837 = vpop.f32.mrb[0].mxu0
          %v9838 = vadd.f32 %v9769, %v9837
          %v9839 = vpop.f32.mrb[0].mxu0
          %9840 = vmatprep.mubr.f32.mxu0 0.0
          %9841 = vmatmul.mubr.f32.gmra.mrb[0].mxu0 %v9729
          %v9842 = vpop.f32.mrb[0].mxu0
          %v9843 = vadd.f32 %v9769, %v9842
          %v9844 = vpop.f32.mrb[0].mxu0
          %9845 = vmatprep.mubr.f32.mxu0 0.0
          %9846 = vmatmul.mubr.f32.gmra.mrb[0].mxu0 %v9730
          %v9847 = vpop.f32.mrb[0].mxu0
          %v9848 = vadd.f32 %v9769, %v9847
          %v9849 = vpop.f32.mrb[0].mxu0
          %9850 = vmatprep.mubr.f32.mxu0 0.0
          %9851 = vmatmul.mubr.f32.gmra.mrb[0].mxu0 %v9731
          %v9852 = vpop.f32.mrb[0].mxu0
          %v9853 = vadd.f32 %v9769, %v9852
          %v9854 = vpop.f32.mrb[0].mxu0
          %9855 = vdwg.mxu0
          %vm9856 = vcmask 64512
          %9857 = vst.msk [vmem:[%s22] sm:$0xff] %vm9856, %v9838
          %9858 = vst.msk [vmem:[%s22 + $0x8] sm:$0xff] %vm9856, %v9843
          %9859 = vst.msk [vmem:[%s22 + $0x10] sm:$0xff] %vm9856, %v9848
          %9860 = vst.msk [vmem:[%s22 + $0x18] sm:$0xff] %vm9856, %v9853
        $region168: #{tpu_custom_call.1} parent=107 // pred_fallthru
          _
        // Predicated region
        $region169: #{tpu_custom_call.1} parent=107 // pred_check
          %p9861 = pneg %p572
        $region170: #{tpu_custom_call.1} parent=107 // pred_check_branch
          %9863 = sbr.rel (%p9861) target = $region172
        $region171: #{tpu_custom_call.1} parent=107 // pred_region
          _
        $region172: #{tpu_custom_call.1} parent=107 // pred_fallthru
          _
        // Predicated region
        $region173: #{tpu_custom_call.1} parent=107 // pred_check
          %p9864 = pneg %p572
        $region174: #{tpu_custom_call.1} parent=107 // pred_check_branch
          %9866 = sbr.rel (%p9864) target = $region176
        $region175: #{tpu_custom_call.1} parent=107 // pred_region
          _
        $region176: #{tpu_custom_call.1} parent=107 // pred_fallthru
          _
      $region108: #{tpu_custom_call.1} parent=5 // pred_fallthru
        _
      %p9867 = scmp.le.s32.totalorder 2, %s32
      // Predicated region
      $region177: #{tpu_custom_call.1} parent=5 // pred_check
        %p9868 = pneg %p9867
      $region178: #{tpu_custom_call.1} parent=5 // pred_check_branch
        %9870 = sbr.rel (%p9868) target = $region180
      $region179: #{tpu_custom_call.1} parent=5 // pred_region
        %s9871 = ssub.s32 %s32, 2
      $region180: #{tpu_custom_call.1} parent=5 // pred_fallthru
        _
    $region6: #{tpu_custom_call.1} parent=1 // loop_footer
      %s36 = sadd.s32 1, %s32
    $region7: #{tpu_custom_call.1} parent=1 // loop_footer_branch
      %31 = sbr.rel target = $region3
    $region8: #{tpu_custom_call.1} parent=1 // loop_exit
      _
    %9872 = vsyncpa [#allocation4], 1
    %s9873 = scalar_lea.sflag [#allocation4], 1
    %9874 = vsyncpa %s9873, 1
    %9875 = vsyncpa [#allocation6], 1
    %9876 = vsyncpa [#allocation9], 1
    %9877 = vsyncpa [#allocation12], 1

</llo_original>
